<compile_context>
chip_gen: v7x
topology: tpu7x:2x2x1
jax: 0.10.0
libtpu: 0.0.40
codegen_flags: <defaults>
</compile_context>

<pallas_src>
import jax
import jax.numpy as jnp
from jax.experimental import pallas as pl
from jax.experimental.pallas import tpu as pltpu

# ----- RefractTracer.__init__ hyper-parameters (deterministic, in-script) -----
IOR_AIR = 1.0003
IOR_OBJECT = 1.52
N_SAMPLES = 64
N_UPSAMPLE = 64      # TODO(synk): kernel reuses the coarse sample table; n_upsample != n_samples
                     #             would just add a second (tlin, iota) table input pair.
UPSAMPLE = True
SDF_RADIUS = 0.5     # synthetic analytic SDF standing in for sdf_network

LANE = 128           # TPU lane width
SUB = 8              # sublane rows per grid step -> SUB*LANE = 1024 rays/step
                     # (sweep up to 16/32 on v5e/v6e; keep 8 and <=32 MiB VMEM on v7x)
N_OUT_ROWS = 18      # packed output channels (see wrapper)


# ----------------------- math shared by kernel & pure-JAX reference -----------------------
def _sample_tables(s, l):
    """March tables (linspace values + bracket indices), shape (N, s, l) / (N-1, s, l).
    Built OUTSIDE the kernel and passed as inputs (constant index_map -> fetched once)."""
    t = jnp.arange(N_SAMPLES, dtype=jnp.float32) * (1.0 / (N_SAMPLES - 1))
    tlin = jnp.broadcast_to(t[:, None, None], (N_SAMPLES, s, l))
    iota = jnp.broadcast_to(
        jnp.arange(N_SAMPLES - 1, dtype=jnp.int32)[:, None, None],
        (N_SAMPLES - 1, s, l))
    return tlin, iota


def _sign_scan(g, iota):
    """g: (n, S, L) sign-function values; iota: (n-1, S, L) int32.
    Returns (onehot (n-1,S,L) f32, has_int (S,L) bool). torch.argmax semantics:
    all-False -> bracket 0.  All slices / reductions are along the leading (untiled)
    axis -> pure VALU plane ops, no XLU relayouts."""
    prod = g[1:] * g[:-1]
    sc = prod <= 0.0
    big = jnp.int32(g.shape[0])
    first_true = jnp.min(jnp.where(sc, iota, big), axis=0)      # (S, L)
    has_int = jnp.any(sc, axis=0)                               # (S, L)
    idx = jnp.where(has_int, first_true, 0)
    onehot = (iota == idx).astype(g.dtype)                      # reused for every gather
    return onehot, has_int


def _gather_pair(vals, onehot):
    """vals: (n, S, L); onehot: (n-1, S, L) -> (value at bracket start, at bracket end)."""
    before = jnp.sum(vals[:-1] * onehot, axis=0)
    after = jnp.sum(vals[1:] * onehot, axis=0)
    return before, after


def _intersection_with_sdf(o, d, enter_object, tlin, iota, need_geom=True):
    """o, d: tuples of 3 (S, L) arrays.  Sphere-SDF ray march + linear root refinement.
    Sign function is the quadratic g(z) = (a z + b) z + c (same sign as the true SDF)."""
    ox, oy, oz = o
    dx, dy, dz = d
    r2 = SDF_RADIUS * SDF_RADIUS

    # per-ray quadratic coefficients (computed once per pass, outside the sample loop)
    a = dx * dx + dy * dy + dz * dz
    b = 2.0 * (ox * dx + oy * dy + oz * dz)
    c = ox * ox + oy * oy + oz * oz - r2

    # near_far_from_sphere
    mid = 0.5 * (-b) / a
    near = jnp.maximum(mid - 1.0, 0.0)
    far = mid + 1.0

    z_coarse = near + (far - near) * tlin                    # (N, S, L)
    g_coarse = (a * z_coarse + b) * z_coarse + c             # 4 VALU ops / sample
    onehot_c, has_int = _sign_scan(g_coarse, iota)
    z_before, z_after = _gather_pair(z_coarse, onehot_c)

    if UPSAMPLE and need_geom:
        z_fine = z_before + (z_after - z_before) * tlin      # (N, S, L)
        g_fine = (a * z_fine + b) * z_fine + c
        onehot_f, _ = _sign_scan(g_fine, iota)
        g_b, g_a = _gather_pair(g_fine, onehot_f)
        z_before, z_after = _gather_pair(z_fine, onehot_f)
    else:
        # third pass (need_geom=False): coarse-bracket sign direction equals the fine
        # one for the analytic sphere, so skipping the fine march here is exact.
        g_b, g_a = _gather_pair(g_coarse, onehot_c)

    from_air_to_object = jnp.logical_and(g_b >= 0.0, g_a <= 0.0)
    if enter_object:
        valid = jnp.logical_and(has_int, from_air_to_object)
    else:
        valid = jnp.logical_and(has_int, jnp.logical_not(from_air_to_object))

    if not need_geom:
        # validity bit only — skip interpolation / normals entirely
        return valid, None, None

    # true SDF only at the two bracketing samples (2 sqrts per ray per march)
    sdf_before = jnp.sqrt(jnp.maximum(g_b + r2, 0.0)) - SDF_RADIUS
    sdf_after = jnp.sqrt(jnp.maximum(g_a + r2, 0.0)) - SDF_RADIUS
    denom = sdf_after - sdf_before
    eps = jnp.float32(1e-10)
    denom = jnp.where(jnp.abs(denom) < eps,                  # sign-preserving guard
                      jnp.where(denom < 0.0, -eps, eps), denom)
    inter_z = z_before - sdf_before * (z_after - z_before) / denom
    ix = ox + inter_z * dx
    iy = oy + inter_z * dy
    iz = oz + inter_z * dz

    # analytic sphere SDF gradient = p / |p|  (already unit length)
    p2 = ix * ix + iy * iy + iz * iz
    inv = jax.lax.rsqrt(jnp.maximum(p2, 1e-12))
    zero = jnp.zeros_like(ix)
    nx = jnp.where(valid, ix * inv, zero)
    ny = jnp.where(valid, iy * inv, zero)
    nz = jnp.where(valid, iz * inv, zero)
    return valid, (ix, iy, iz), (nx, ny, nz)


def _dot3(a, b):
    return a[0] * b[0] + a[1] * b[1] + a[2] * b[2]


def _reflection(i, n):
    cos = -_dot3(i, n)
    rp = tuple(ic + nc * cos for ic, nc in zip(i, n))
    rp_norm = jnp.clip(_dot3(rp, rp), 0.0, 0.999999)
    s = jnp.sqrt(1.0 - rp_norm)
    r = tuple(rpc + nc * s for rpc, nc in zip(rp, n))
    inv = jax.lax.rsqrt(jnp.maximum(_dot3(r, r), 1e-10))
    return tuple(rc * inv for rc in r)


def _refraction(i, n, ior_in, ior_out):
    cos = -_dot3(i, n)
    ip = tuple(ic + nc * cos for ic, nc in zip(i, n))
    ratio = ior_in / ior_out
    tp = tuple(c * ratio for c in ip)
    tp_norm = _dot3(tp, tp)
    total_reflect = tp_norm > 0.999999
    s = jnp.sqrt(1.0 - jnp.clip(tp_norm, 0.0, 0.999999))
    t = tuple(-nc * s + tpc for nc, tpc in zip(n, tp))
    inv = jax.lax.rsqrt(jnp.maximum(_dot3(t, t), 1e-10))
    t = tuple(c * inv for c in t)
    cos_t = -_dot3(t, n)
    e_i = (cos_t * ior_out - cos * ior_in) / jnp.maximum(cos_t * ior_out + cos * ior_in, 1e-10)
    e_p = (cos_t * ior_in - cos * ior_out) / jnp.maximum(cos_t * ior_in + cos * ior_out, 1e-10)
    attenuate = jnp.clip(0.5 * (e_i * e_i + e_p * e_p), 0.0, 1.0)
    return t, attenuate, total_reflect


def _trace(o, d, tlin, iota):
    """o, d: tuples of 3 arrays of shape (S, L) float32; tlin/iota: (N[,-1], S, L) tables."""
    zero = jnp.zeros_like(o[0])

    valid1, p1, n1 = _intersection_with_sdf(o, d, True, tlin, iota)
    no_intersection = jnp.logical_not(valid1)

    refl_d = _reflection(d, n1)
    reflect_o = tuple(jnp.where(valid1, c, zero) for c in p1)
    reflect_d = tuple(jnp.where(valid1, c, zero) for c in refl_d)

    refr1_d, att1, tr1 = _refraction(d, n1, IOR_AIR, IOR_OBJECT)
    total_reflection = jnp.logical_and(valid1, tr1)
    reflect_rate = jnp.where(valid1, att1, zero)
    valid_refract = jnp.logical_and(valid1, jnp.logical_not(total_reflection))

    # second intersection: exit the object
    valid2_raw, p2, n2 = _intersection_with_sdf(p1, refr1_d, False, tlin, iota)
    valid2 = jnp.logical_and(valid_refract, valid2_raw)

    refr2_d, att2, _ = _refraction(refr1_d, tuple(-c for c in n2), IOR_OBJECT, IOR_AIR)

    # third march: rays that re-enter the object are rejected (validity bit only)
    more_int, _, _ = _intersection_with_sdf(p2, refr2_d, True, tlin, iota, need_geom=False)
    final = jnp.logical_and(valid2, jnp.logical_not(more_int))

    refract_o = tuple(jnp.where(final, c, zero) for c in p2)
    refract_d = tuple(jnp.where(final, c, zero) for c in refr2_d)
    refract_rate = jnp.where(final, (1.0 - att1) * (1.0 - att2), zero)

    return {
        "no_intersection": no_intersection,
        "total_reflection": total_reflection,
        "twice_refraction": final,
        "four_refraction": jnp.zeros_like(no_intersection),
        "reflect_o": reflect_o,
        "reflect_d": reflect_d,
        "refract_o": refract_o,
        "refract_d": refract_d,
        "reflect_rate": reflect_rate,
        "refract_rate": refract_rate,
    }


# --------------------------------- Pallas kernel ---------------------------------
def _refract_kernel(tlin_ref, iota_ref, o_ref, d_ref, out_ref):
    # tlin_ref: (N_SAMPLES, SUB, LANE) f32 ; iota_ref: (N_SAMPLES-1, SUB, LANE) i32
    # o_ref / d_ref: (3, SUB, LANE) ; out_ref: (18, SUB, LANE) lane-dense packed slab
    tlin = tlin_ref[...]
    iota = iota_ref[...]
    o = (o_ref[0], o_ref[1], o_ref[2])          # each a full (8, 128)-vreg plane
    d = (d_ref[0], d_ref[1], d_ref[2])
    r = _trace(o, d, tlin, iota)

    f32 = jnp.float32
    # direct per-row stores of full (8,128) vregs — no concatenate / sublane interleave
    out_ref[0] = r["no_intersection"].astype(f32)
    out_ref[1] = r["total_reflection"].astype(f32)
    out_ref[2] = r["twice_refraction"].astype(f32)
    out_ref[3] = r["four_refraction"].astype(f32)
    for k in range(3):
        out_ref[4 + k] = r["reflect_o"][k]
        out_ref[7 + k] = r["reflect_d"][k]
        out_ref[10 + k] = r["refract_o"][k]
        out_ref[13 + k] = r["refract_d"][k]
    out_ref[16] = r["reflect_rate"]
    out_ref[17] = r["refract_rate"]


def refract_tracer_forward(rays_o, rays_d, sub=SUB):
    B = rays_o.shape[0]
    rows = pl.cdiv(B, LANE)                                  # rows of 128 rays
    rows_pad = max(sub, pl.cdiv(rows, sub) * sub)            # multiple of SUB (>= one tile)
    Bp = rows_pad * LANE
    pad = Bp - B

    # padded rays are well-formed (start above the sphere, point straight down); results discarded
    pad_o = jnp.broadcast_to(jnp.array([0.0, 0.0, 2.0], jnp.float32), (pad, 3))
    pad_d = jnp.broadcast_to(jnp.array([0.0, 0.0, -1.0], jnp.float32), (pad, 3))
    # ray r -> (row = r // 128, lane = r % 128): full (sublane, lane) tiles of rays
    o_p = jnp.concatenate([rays_o.astype(jnp.float32), pad_o], axis=0).T.reshape(3, rows_pad, LANE)
    d_p = jnp.concatenate([rays_d.astype(jnp.float32), pad_d], axis=0).T.reshape(3, rows_pad, LANE)

    tlin, iota = _sample_tables(sub, LANE)

    grid = rows_pad // sub                                   # >= 2 when B > sub*128 (v7x megacore)
    ray_spec = pl.BlockSpec((3, sub, LANE), lambda i: (0, i, 0))
    tlin_spec = pl.BlockSpec((N_SAMPLES, sub, LANE), lambda i: (0, 0, 0))   # fetched once
    iota_spec = pl.BlockSpec((N_SAMPLES - 1, sub, LANE), lambda i: (0, 0, 0))
    out_spec = pl.BlockSpec((N_OUT_ROWS, sub, LANE), lambda i: (0, i, 0))

    packed = pl.pallas_call(
        _refract_kernel,
        out_shape=jax.ShapeDtypeStruct((N_OUT_ROWS, rows_pad, LANE), jnp.float32),
        grid_spec=pltpu.PrefetchScalarGridSpec(
            num_scalar_prefetch=0,
            grid=(grid,),
            in_specs=[tlin_spec, iota_spec, ray_spec, ray_spec],
            out_specs=out_spec,
        ),
        compiler_params=pltpu.CompilerParams(
            dimension_semantics=("parallel",),               # shards ray tiles across TCs (v7x)
            vmem_limit_bytes=32 * 1024 * 1024,               # live set is a few MiB at SUB=8
        ),
    )(tlin, iota, o_p, d_p)

    packed = packed.reshape(N_OUT_ROWS, Bp)[:, :B]           # (18, B)
    return {
        "batch_size": B,
        "no_intersection_mask": packed[0] > 0.5,
        "total_reflection_mask": packed[1] > 0.5,
        "twice_refraction_mask": packed[2] > 0.5,
        "four_refraction_mask": packed[3] > 0.5,
        "reflect_rays_o": packed[4:7].T,
        "reflect_rays_d": packed[7:10].T,
        "refract_rays_o": packed[10:13].T,
        "refract_rays_d": packed[13:16].T,
        "reflect_rate": packed[16:17].T,
        "refract_rate": packed[17:18].T,
    }


# ------------------------------------- main --------------------------------------
if __name__ == "__main__":
    key = jax.random.PRNGKey(0)
    B = 16
    k1, k2 = jax.random.split(key)
    # rays start above the sphere and point roughly at the origin so they hit it
    xy = jax.random.uniform(k1, (B, 2), minval=-0.3, maxval=0.3)
    rays_o = jnp.concatenate([xy, jnp.full((B, 1), 2.0)], axis=1).astype(jnp.float32)
    tgt = jax.random.uniform(k2, (B, 3), minval=-0.1, maxval=0.1)
    dvec = tgt - rays_o
    rays_d = (dvec / jnp.linalg.norm(dvec, axis=1, keepdims=True)).astype(jnp.float32)

    out = refract_tracer_forward(rays_o, rays_d)
    jax.block_until_ready(out)

    # pure-JAX reference (same math, no Pallas) — check robust first-bounce quantities
    o_t = tuple(rays_o.T[k:k + 1, :] for k in range(3))      # (1, B) each
    d_t = tuple(rays_d.T[k:k + 1, :] for k in range(3))
    tlin_r, iota_r = _sample_tables(1, B)
    ref = _trace(o_t, d_t, tlin_r, iota_r)
    ref_reflect_d = jnp.concatenate(ref["reflect_d"], axis=0).T          # (B, 3)

    assert out["reflect_rays_o"].shape == (B, 3)
    assert out["refract_rate"].shape == (B, 1)
    assert bool(jnp.array_equal(out["no_intersection_mask"], ref["no_intersection"][0]))
    assert bool(jnp.allclose(out["reflect_rays_d"], ref_reflect_d, atol=1e-3))
    assert bool(jnp.allclose(out["reflect_rate"], ref["reflect_rate"].T, atol=1e-3))
    assert bool(jnp.all(jnp.isfinite(out["refract_rays_d"])))

    print("KERNEL_OK")
</pallas_src>

<mosaic_0001>
module attributes {stable_mosaic.version = 11 : i64} {
  func.func @_refract_kernel(%arg0: i32, %arg1: memref<64x8x128xf32, #tpu.memory_space<vmem>>, %arg2: memref<63x8x128xi32, #tpu.memory_space<vmem>>, %arg3: memref<3x8x128xf32, #tpu.memory_space<vmem>>, %arg4: memref<3x8x128xf32, #tpu.memory_space<vmem>>, %arg5: memref<18x8x128xf32, #tpu.memory_space<vmem>>) attributes {dimension_semantics = [#tpu.dimension_semantics<parallel>], iteration_bounds = array<i64: 1>, scalar_prefetch = 0 : i64, scratch_operands = 0 : i64, tpu.core_type = #tpu.core_type<tc>, window_params = [{pipeline_mode = #tpu.pipeline_mode<synchronous>, transform_indices = @transform_0, window_bounds = array<i64: 64, 8, 128>}, {pipeline_mode = #tpu.pipeline_mode<synchronous>, transform_indices = @transform_1, window_bounds = array<i64: 63, 8, 128>}, {transform_indices = @transform_2, window_bounds = array<i64: 3, 8, 128>}, {transform_indices = @transform_3, window_bounds = array<i64: 3, 8, 128>}, {transform_indices = @transform_4, window_bounds = array<i64: 18, 8, 128>}]} {
    %c0 = arith.constant 0 : index
    %c0_0 = arith.constant 0 : index
    %c0_1 = arith.constant 0 : index
    %0 = vector.load %arg1[%c0, %c0_0, %c0_1] : memref<64x8x128xf32, #tpu.memory_space<vmem>>, vector<64x8x128xf32>
    %c0_2 = arith.constant 0 : index
    %c0_3 = arith.constant 0 : index
    %c0_4 = arith.constant 0 : index
    %1 = vector.load %arg2[%c0_2, %c0_3, %c0_4] : memref<63x8x128xi32, #tpu.memory_space<vmem>>, vector<63x8x128xi32>
    %c0_5 = arith.constant 0 : index
    %c0_6 = arith.constant 0 : index
    %c0_7 = arith.constant 0 : index
    %2 = vector.load %arg3[%c0_5, %c0_6, %c0_7] : memref<3x8x128xf32, #tpu.memory_space<vmem>>, vector<1x8x128xf32>
    %3 = vector.shape_cast %2 : vector<1x8x128xf32> to vector<8x128xf32>
    %c1 = arith.constant 1 : index
    %c0_8 = arith.constant 0 : index
    %c0_9 = arith.constant 0 : index
    %4 = vector.load %arg3[%c1, %c0_8, %c0_9] : memref<3x8x128xf32, #tpu.memory_space<vmem>>, vector<1x8x128xf32>
    %5 = vector.shape_cast %4 : vector<1x8x128xf32> to vector<8x128xf32>
    %c2 = arith.constant 2 : index
    %c0_10 = arith.constant 0 : index
    %c0_11 = arith.constant 0 : index
    %6 = vector.load %arg3[%c2, %c0_10, %c0_11] : memref<3x8x128xf32, #tpu.memory_space<vmem>>, vector<1x8x128xf32>
    %7 = vector.shape_cast %6 : vector<1x8x128xf32> to vector<8x128xf32>
    %c0_12 = arith.constant 0 : index
    %c0_13 = arith.constant 0 : index
    %c0_14 = arith.constant 0 : index
    %8 = vector.load %arg4[%c0_12, %c0_13, %c0_14] : memref<3x8x128xf32, #tpu.memory_space<vmem>>, vector<1x8x128xf32>
    %9 = vector.shape_cast %8 : vector<1x8x128xf32> to vector<8x128xf32>
    %c1_15 = arith.constant 1 : index
    %c0_16 = arith.constant 0 : index
    %c0_17 = arith.constant 0 : index
    %10 = vector.load %arg4[%c1_15, %c0_16, %c0_17] : memref<3x8x128xf32, #tpu.memory_space<vmem>>, vector<1x8x128xf32>
    %11 = vector.shape_cast %10 : vector<1x8x128xf32> to vector<8x128xf32>
    %c2_18 = arith.constant 2 : index
    %c0_19 = arith.constant 0 : index
    %c0_20 = arith.constant 0 : index
    %12 = vector.load %arg4[%c2_18, %c0_19, %c0_20] : memref<3x8x128xf32, #tpu.memory_space<vmem>>, vector<1x8x128xf32>
    %13 = vector.shape_cast %12 : vector<1x8x128xf32> to vector<8x128xf32>
    %cst = arith.constant 0.000000e+00 : f32
    %14 = vector.broadcast %cst : f32 to vector<8x128xf32>
    %15 = arith.mulf %9, %9 : vector<8x128xf32>
    %16 = arith.mulf %11, %11 : vector<8x128xf32>
    %17 = arith.addf %15, %16 : vector<8x128xf32>
    %18 = arith.mulf %13, %13 : vector<8x128xf32>
    %19 = arith.addf %17, %18 : vector<8x128xf32>
    %20 = arith.mulf %3, %9 : vector<8x128xf32>
    %21 = arith.mulf %5, %11 : vector<8x128xf32>
    %22 = arith.addf %20, %21 : vector<8x128xf32>
    %23 = arith.mulf %7, %13 : vector<8x128xf32>
    %24 = arith.addf %22, %23 : vector<8x128xf32>
    %cst_21 = arith.constant 2.000000e+00 : f32
    %25 = vector.broadcast %cst_21 : f32 to vector<8x128xf32>
    %26 = arith.mulf %25, %24 : vector<8x128xf32>
    %27 = arith.mulf %3, %3 : vector<8x128xf32>
    %28 = arith.mulf %5, %5 : vector<8x128xf32>
    %29 = arith.addf %27, %28 : vector<8x128xf32>
    %30 = arith.mulf %7, %7 : vector<8x128xf32>
    %31 = arith.addf %29, %30 : vector<8x128xf32>
    %cst_22 = arith.constant 2.500000e-01 : f32
    %32 = vector.broadcast %cst_22 : f32 to vector<8x128xf32>
    %33 = arith.subf %31, %32 : vector<8x128xf32>
    %cst_23 = arith.constant 0.000000e+00 : f32
    %34 = vector.broadcast %cst_23 : f32 to vector<8x128xf32>
    %35 = arith.subf %34, %26 : vector<8x128xf32>
    %cst_24 = arith.constant 5.000000e-01 : f32
    %36 = vector.broadcast %cst_24 : f32 to vector<8x128xf32>
    %37 = arith.mulf %36, %35 : vector<8x128xf32>
    %38 = arith.divf %37, %19 : vector<8x128xf32>
    %cst_25 = arith.constant 1.000000e+00 : f32
    %39 = vector.broadcast %cst_25 : f32 to vector<8x128xf32>
    %40 = arith.subf %38, %39 : vector<8x128xf32>
    %cst_26 = arith.constant 0.000000e+00 : f32
    %41 = vector.broadcast %cst_26 : f32 to vector<8x128xf32>
    %42 = arith.maximumf %40, %41 : vector<8x128xf32>
    %cst_27 = arith.constant 1.000000e+00 : f32
    %43 = vector.broadcast %cst_27 : f32 to vector<8x128xf32>
    %44 = arith.addf %38, %43 : vector<8x128xf32>
    %45 = arith.subf %44, %42 : vector<8x128xf32>
    %46 = vector.shape_cast %45 : vector<8x128xf32> to vector<1x8x128xf32>
    %47 = vector.broadcast %46 : vector<1x8x128xf32> to vector<64x8x128xf32>
    %48 = arith.mulf %47, %0 : vector<64x8x128xf32>
    %49 = vector.shape_cast %42 : vector<8x128xf32> to vector<1x8x128xf32>
    %50 = vector.broadcast %49 : vector<1x8x128xf32> to vector<64x8x128xf32>
    %51 = arith.addf %50, %48 : vector<64x8x128xf32>
    %52 = vector.shape_cast %19 : vector<8x128xf32> to vector<1x8x128xf32>
    %53 = vector.broadcast %52 : vector<1x8x128xf32> to vector<64x8x128xf32>
    %54 = arith.mulf %53, %51 : vector<64x8x128xf32>
    %55 = vector.shape_cast %26 : vector<8x128xf32> to vector<1x8x128xf32>
    %56 = vector.broadcast %55 : vector<1x8x128xf32> to vector<64x8x128xf32>
    %57 = arith.addf %54, %56 : vector<64x8x128xf32>
    %58 = arith.mulf %57, %51 : vector<64x8x128xf32>
    %59 = vector.shape_cast %33 : vector<8x128xf32> to vector<1x8x128xf32>
    %60 = vector.broadcast %59 : vector<1x8x128xf32> to vector<64x8x128xf32>
    %61 = arith.addf %58, %60 : vector<64x8x128xf32>
    %62 = vector.extract_strided_slice %61 {offsets = [1, 0, 0], sizes = [63, 8, 128], strides = [1, 1, 1]} : vector<64x8x128xf32> to vector<63x8x128xf32>
    %63 = vector.extract_strided_slice %61 {offsets = [0, 0, 0], sizes = [63, 8, 128], strides = [1, 1, 1]} : vector<64x8x128xf32> to vector<63x8x128xf32>
    %64 = arith.mulf %62, %63 : vector<63x8x128xf32>
    %cst_28 = arith.constant 0.000000e+00 : f32
    %65 = vector.broadcast %cst_28 : f32 to vector<63x8x128xf32>
    %66 = arith.cmpf ole, %64, %65 : vector<63x8x128xf32>
    %c64_i32 = arith.constant 64 : i32
    %67 = vector.broadcast %c64_i32 : i32 to vector<63x8x128xi32>
    %68 = arith.select %66, %1, %67 : vector<63x8x128xi1>, vector<63x8x128xi32>
    %cst_29 = arith.constant dense<2147483647> : vector<8x128xi32>
    %69 = vector.multi_reduction <minsi>, %68, %cst_29 [0] : vector<63x8x128xi32> to vector<8x128xi32>
    %cst_30 = arith.constant 1.000000e+00 : f32
    %cst_31 = arith.constant 0.000000e+00 : f32
    %70 = vector.broadcast %cst_30 : f32 to vector<63x8x128xf32>
    %71 = vector.broadcast %cst_31 : f32 to vector<63x8x128xf32>
    %72 = arith.select %66, %70, %71 : vector<63x8x128xi1>, vector<63x8x128xf32>
    %cst_32 = arith.constant dense<0xFF800000> : vector<8x128xf32>
    %73 = vector.multi_reduction <maximumf>, %72, %cst_32 [0] : vector<63x8x128xf32> to vector<8x128xf32>
    %cst_33 = arith.constant 0.000000e+00 : f32
    %74 = vector.broadcast %cst_33 : f32 to vector<8x128xf32>
    %75 = arith.cmpf ogt, %73, %74 : vector<8x128xf32>
    %c0_i32 = arith.constant 0 : i32
    %76 = vector.broadcast %c0_i32 : i32 to vector<8x128xi32>
    %77 = arith.select %75, %69, %76 : vector<8x128xi1>, vector<8x128xi32>
    %78 = vector.shape_cast %77 : vector<8x128xi32> to vector<1x8x128xi32>
    %79 = vector.broadcast %78 : vector<1x8x128xi32> to vector<63x8x128xi32>
    %80 = arith.cmpi eq, %1, %79 : vector<63x8x128xi32>
    %81 = arith.extui %80 : vector<63x8x128xi1> to vector<63x8x128xi32>
    %82 = arith.sitofp %81 : vector<63x8x128xi32> to vector<63x8x128xf32>
    %83 = vector.extract_strided_slice %51 {offsets = [0, 0, 0], sizes = [63, 8, 128], strides = [1, 1, 1]} : vector<64x8x128xf32> to vector<63x8x128xf32>
    %84 = arith.mulf %83, %82 : vector<63x8x128xf32>
    %cst_34 = arith.constant dense<0.000000e+00> : vector<8x128xf32>
    %85 = vector.multi_reduction <add>, %84, %cst_34 [0] : vector<63x8x128xf32> to vector<8x128xf32>
    %86 = vector.extract_strided_slice %51 {offsets = [1, 0, 0], sizes = [63, 8, 128], strides = [1, 1, 1]} : vector<64x8x128xf32> to vector<63x8x128xf32>
    %87 = arith.mulf %86, %82 : vector<63x8x128xf32>
    %cst_35 = arith.constant dense<0.000000e+00> : vector<8x128xf32>
    %88 = vector.multi_reduction <add>, %87, %cst_35 [0] : vector<63x8x128xf32> to vector<8x128xf32>
    %89 = arith.subf %88, %85 : vector<8x128xf32>
    %90 = vector.shape_cast %89 : vector<8x128xf32> to vector<1x8x128xf32>
    %91 = vector.broadcast %90 : vector<1x8x128xf32> to vector<64x8x128xf32>
    %92 = arith.mulf %91, %0 : vector<64x8x128xf32>
    %93 = vector.shape_cast %85 : vector<8x128xf32> to vector<1x8x128xf32>
    %94 = vector.broadcast %93 : vector<1x8x128xf32> to vector<64x8x128xf32>
    %95 = arith.addf %94, %92 : vector<64x8x128xf32>
    %96 = vector.shape_cast %19 : vector<8x128xf32> to vector<1x8x128xf32>
    %97 = vector.broadcast %96 : vector<1x8x128xf32> to vector<64x8x128xf32>
    %98 = arith.mulf %97, %95 : vector<64x8x128xf32>
    %99 = vector.shape_cast %26 : vector<8x128xf32> to vector<1x8x128xf32>
    %100 = vector.broadcast %99 : vector<1x8x128xf32> to vector<64x8x128xf32>
    %101 = arith.addf %98, %100 : vector<64x8x128xf32>
    %102 = arith.mulf %101, %95 : vector<64x8x128xf32>
    %103 = vector.shape_cast %33 : vector<8x128xf32> to vector<1x8x128xf32>
    %104 = vector.broadcast %103 : vector<1x8x128xf32> to vector<64x8x128xf32>
    %105 = arith.addf %102, %104 : vector<64x8x128xf32>
    %106 = vector.extract_strided_slice %105 {offsets = [1, 0, 0], sizes = [63, 8, 128], strides = [1, 1, 1]} : vector<64x8x128xf32> to vector<63x8x128xf32>
    %107 = vector.extract_strided_slice %105 {offsets = [0, 0, 0], sizes = [63, 8, 128], strides = [1, 1, 1]} : vector<64x8x128xf32> to vector<63x8x128xf32>
    %108 = arith.mulf %106, %107 : vector<63x8x128xf32>
    %cst_36 = arith.constant 0.000000e+00 : f32
    %109 = vector.broadcast %cst_36 : f32 to vector<63x8x128xf32>
    %110 = arith.cmpf ole, %108, %109 : vector<63x8x128xf32>
    %c64_i32_37 = arith.constant 64 : i32
    %111 = vector.broadcast %c64_i32_37 : i32 to vector<63x8x128xi32>
    %112 = arith.select %110, %1, %111 : vector<63x8x128xi1>, vector<63x8x128xi32>
    %cst_38 = arith.constant dense<2147483647> : vector<8x128xi32>
    %113 = vector.multi_reduction <minsi>, %112, %cst_38 [0] : vector<63x8x128xi32> to vector<8x128xi32>
    %cst_39 = arith.constant 1.000000e+00 : f32
    %cst_40 = arith.constant 0.000000e+00 : f32
    %114 = vector.broadcast %cst_39 : f32 to vector<63x8x128xf32>
    %115 = vector.broadcast %cst_40 : f32 to vector<63x8x128xf32>
    %116 = arith.select %110, %114, %115 : vector<63x8x128xi1>, vector<63x8x128xf32>
    %cst_41 = arith.constant dense<0xFF800000> : vector<8x128xf32>
    %117 = vector.multi_reduction <maximumf>, %116, %cst_41 [0] : vector<63x8x128xf32> to vector<8x128xf32>
    %cst_42 = arith.constant 0.000000e+00 : f32
    %118 = vector.broadcast %cst_42 : f32 to vector<8x128xf32>
    %119 = arith.cmpf ogt, %117, %118 : vector<8x128xf32>
    %c0_i32_43 = arith.constant 0 : i32
    %120 = vector.broadcast %c0_i32_43 : i32 to vector<8x128xi32>
    %121 = arith.select %119, %113, %120 : vector<8x128xi1>, vector<8x128xi32>
    %122 = vector.shape_cast %121 : vector<8x128xi32> to vector<1x8x128xi32>
    %123 = vector.broadcast %122 : vector<1x8x128xi32> to vector<63x8x128xi32>
    %124 = arith.cmpi eq, %1, %123 : vector<63x8x128xi32>
    %125 = arith.extui %124 : vector<63x8x128xi1> to vector<63x8x128xi32>
    %126 = arith.sitofp %125 : vector<63x8x128xi32> to vector<63x8x128xf32>
    %127 = vector.extract_strided_slice %105 {offsets = [0, 0, 0], sizes = [63, 8, 128], strides = [1, 1, 1]} : vector<64x8x128xf32> to vector<63x8x128xf32>
    %128 = arith.mulf %127, %126 : vector<63x8x128xf32>
    %cst_44 = arith.constant dense<0.000000e+00> : vector<8x128xf32>
    %129 = vector.multi_reduction <add>, %128, %cst_44 [0] : vector<63x8x128xf32> to vector<8x128xf32>
    %130 = vector.extract_strided_slice %105 {offsets = [1, 0, 0], sizes = [63, 8, 128], strides = [1, 1, 1]} : vector<64x8x128xf32> to vector<63x8x128xf32>
    %131 = arith.mulf %130, %126 : vector<63x8x128xf32>
    %cst_45 = arith.constant dense<0.000000e+00> : vector<8x128xf32>
    %132 = vector.multi_reduction <add>, %131, %cst_45 [0] : vector<63x8x128xf32> to vector<8x128xf32>
    %133 = vector.extract_strided_slice %95 {offsets = [0, 0, 0], sizes = [63, 8, 128], strides = [1, 1, 1]} : vector<64x8x128xf32> to vector<63x8x128xf32>
    %134 = arith.mulf %133, %126 : vector<63x8x128xf32>
    %cst_46 = arith.constant dense<0.000000e+00> : vector<8x128xf32>
    %135 = vector.multi_reduction <add>, %134, %cst_46 [0] : vector<63x8x128xf32> to vector<8x128xf32>
    %136 = vector.extract_strided_slice %95 {offsets = [1, 0, 0], sizes = [63, 8, 128], strides = [1, 1, 1]} : vector<64x8x128xf32> to vector<63x8x128xf32>
    %137 = arith.mulf %136, %126 : vector<63x8x128xf32>
    %cst_47 = arith.constant dense<0.000000e+00> : vector<8x128xf32>
    %138 = vector.multi_reduction <add>, %137, %cst_47 [0] : vector<63x8x128xf32> to vector<8x128xf32>
    %cst_48 = arith.constant 0.000000e+00 : f32
    %139 = vector.broadcast %cst_48 : f32 to vector<8x128xf32>
    %140 = arith.cmpf oge, %129, %139 : vector<8x128xf32>
    %cst_49 = arith.constant 0.000000e+00 : f32
    %141 = vector.broadcast %cst_49 : f32 to vector<8x128xf32>
    %142 = arith.cmpf ole, %132, %141 : vector<8x128xf32>
    %143 = arith.andi %140, %142 : vector<8x128xi1>
    %144 = arith.andi %75, %143 : vector<8x128xi1>
    %cst_50 = arith.constant 2.500000e-01 : f32
    %145 = vector.broadcast %cst_50 : f32 to vector<8x128xf32>
    %146 = arith.addf %129, %145 : vector<8x128xf32>
    %cst_51 = arith.constant 0.000000e+00 : f32
    %147 = vector.broadcast %cst_51 : f32 to vector<8x128xf32>
    %148 = arith.maximumf %146, %147 : vector<8x128xf32>
    %149 = math.sqrt %148 : vector<8x128xf32>
    %cst_52 = arith.constant 5.000000e-01 : f32
    %150 = vector.broadcast %cst_52 : f32 to vector<8x128xf32>
    %151 = arith.subf %149, %150 : vector<8x128xf32>
    %cst_53 = arith.constant 2.500000e-01 : f32
    %152 = vector.broadcast %cst_53 : f32 to vector<8x128xf32>
    %153 = arith.addf %132, %152 : vector<8x128xf32>
    %cst_54 = arith.constant 0.000000e+00 : f32
    %154 = vector.broadcast %cst_54 : f32 to vector<8x128xf32>
    %155 = arith.maximumf %153, %154 : vector<8x128xf32>
    %156 = math.sqrt %155 : vector<8x128xf32>
    %cst_55 = arith.constant 5.000000e-01 : f32
    %157 = vector.broadcast %cst_55 : f32 to vector<8x128xf32>
    %158 = arith.subf %156, %157 : vector<8x128xf32>
    %159 = arith.subf %158, %151 : vector<8x128xf32>
    %160 = math.absf %159 : vector<8x128xf32>
    %cst_56 = arith.constant 1.000000e-10 : f32
    %161 = vector.broadcast %cst_56 : f32 to vector<8x128xf32>
    %162 = arith.cmpf olt, %160, %161 : vector<8x128xf32>
    %cst_57 = arith.constant 0.000000e+00 : f32
    %163 = vector.broadcast %cst_57 : f32 to vector<8x128xf32>
    %164 = arith.cmpf olt, %159, %163 : vector<8x128xf32>
    %cst_58 = arith.constant 0.000000e+00 : f32
    %cst_59 = arith.constant 1.000000e-10 : f32
    %165 = arith.subf %cst_58, %cst_59 : f32
    %cst_60 = arith.constant 1.000000e-10 : f32
    %166 = vector.broadcast %165 : f32 to vector<8x128xf32>
    %167 = vector.broadcast %cst_60 : f32 to vector<8x128xf32>
    %168 = arith.select %164, %166, %167 : vector<8x128xi1>, vector<8x128xf32>
    %169 = arith.select %162, %168, %159 : vector<8x128xi1>, vector<8x128xf32>
    %170 = arith.subf %138, %135 : vector<8x128xf32>
    %171 = arith.mulf %151, %170 : vector<8x128xf32>
    %172 = arith.divf %171, %169 : vector<8x128xf32>
    %173 = arith.subf %135, %172 : vector<8x128xf32>
    %174 = arith.mulf %173, %9 : vector<8x128xf32>
    %175 = arith.addf %3, %174 : vector<8x128xf32>
    %176 = arith.mulf %173, %11 : vector<8x128xf32>
    %177 = arith.addf %5, %176 : vector<8x128xf32>
    %178 = arith.mulf %173, %13 : vector<8x128xf32>
    %179 = arith.addf %7, %178 : vector<8x128xf32>
    %180 = arith.mulf %175, %175 : vector<8x128xf32>
    %181 = arith.mulf %177, %177 : vector<8x128xf32>
    %182 = arith.addf %180, %181 : vector<8x128xf32>
    %183 = arith.mulf %179, %179 : vector<8x128xf32>
    %184 = arith.addf %182, %183 : vector<8x128xf32>
    %cst_61 = arith.constant 9.99999996E-13 : f32
    %185 = vector.broadcast %cst_61 : f32 to vector<8x128xf32>
    %186 = arith.maximumf %184, %185 : vector<8x128xf32>
    %187 = math.rsqrt %186 : vector<8x128xf32>
    %cst_62 = arith.constant 0.000000e+00 : f32
    %188 = vector.broadcast %cst_62 : f32 to vector<8x128xf32>
    %189 = arith.mulf %175, %187 : vector<8x128xf32>
    %190 = arith.select %144, %189, %188 : vector<8x128xi1>, vector<8x128xf32>
    %191 = arith.mulf %177, %187 : vector<8x128xf32>
    %192 = arith.select %144, %191, %188 : vector<8x128xi1>, vector<8x128xf32>
    %193 = arith.mulf %179, %187 : vector<8x128xf32>
    %194 = arith.select %144, %193, %188 : vector<8x128xi1>, vector<8x128xf32>
    %cst_63 = arith.constant dense<true> : vector<8x128xi1>
    %195 = arith.xori %144, %cst_63 : vector<8x128xi1>
    %196 = arith.mulf %9, %190 : vector<8x128xf32>
    %197 = arith.mulf %11, %192 : vector<8x128xf32>
    %198 = arith.addf %196, %197 : vector<8x128xf32>
    %199 = arith.mulf %13, %194 : vector<8x128xf32>
    %200 = arith.addf %198, %199 : vector<8x128xf32>
    %cst_64 = arith.constant 0.000000e+00 : f32
    %201 = vector.broadcast %cst_64 : f32 to vector<8x128xf32>
    %202 = arith.subf %201, %200 : vector<8x128xf32>
    %203 = arith.mulf %190, %202 : vector<8x128xf32>
    %204 = arith.addf %9, %203 : vector<8x128xf32>
    %205 = arith.mulf %192, %202 : vector<8x128xf32>
    %206 = arith.addf %11, %205 : vector<8x128xf32>
    %207 = arith.mulf %194, %202 : vector<8x128xf32>
    %208 = arith.addf %13, %207 : vector<8x128xf32>
    %209 = arith.mulf %204, %204 : vector<8x128xf32>
    %210 = arith.mulf %206, %206 : vector<8x128xf32>
    %211 = arith.addf %209, %210 : vector<8x128xf32>
    %212 = arith.mulf %208, %208 : vector<8x128xf32>
    %213 = arith.addf %211, %212 : vector<8x128xf32>
    %cst_65 = arith.constant 0.000000e+00 : f32
    %cst_66 = arith.constant 0.999998986 : f32
    %214 = vector.broadcast %cst_65 : f32 to vector<8x128xf32>
    %215 = arith.maximumf %214, %213 : vector<8x128xf32>
    %216 = vector.broadcast %cst_66 : f32 to vector<8x128xf32>
    %217 = arith.minimumf %216, %215 : vector<8x128xf32>
    %cst_67 = arith.constant 1.000000e+00 : f32
    %218 = vector.broadcast %cst_67 : f32 to vector<8x128xf32>
    %219 = arith.subf %218, %217 : vector<8x128xf32>
    %220 = math.sqrt %219 : vector<8x128xf32>
    %221 = arith.mulf %190, %220 : vector<8x128xf32>
    %222 = arith.addf %204, %221 : vector<8x128xf32>
    %223 = arith.mulf %192, %220 : vector<8x128xf32>
    %224 = arith.addf %206, %223 : vector<8x128xf32>
    %225 = arith.mulf %194, %220 : vector<8x128xf32>
    %226 = arith.addf %208, %225 : vector<8x128xf32>
    %227 = arith.mulf %222, %222 : vector<8x128xf32>
    %228 = arith.mulf %224, %224 : vector<8x128xf32>
    %229 = arith.addf %227, %228 : vector<8x128xf32>
    %230 = arith.mulf %226, %226 : vector<8x128xf32>
    %231 = arith.addf %229, %230 : vector<8x128xf32>
    %cst_68 = arith.constant 1.000000e-10 : f32
    %232 = vector.broadcast %cst_68 : f32 to vector<8x128xf32>
    %233 = arith.maximumf %231, %232 : vector<8x128xf32>
    %234 = math.rsqrt %233 : vector<8x128xf32>
    %235 = arith.mulf %222, %234 : vector<8x128xf32>
    %236 = arith.mulf %224, %234 : vector<8x128xf32>
    %237 = arith.mulf %226, %234 : vector<8x128xf32>
    %238 = arith.select %144, %175, %14 : vector<8x128xi1>, vector<8x128xf32>
    %239 = arith.select %144, %177, %14 : vector<8x128xi1>, vector<8x128xf32>
    %240 = arith.select %144, %179, %14 : vector<8x128xi1>, vector<8x128xf32>
    %241 = arith.select %144, %235, %14 : vector<8x128xi1>, vector<8x128xf32>
    %242 = arith.select %144, %236, %14 : vector<8x128xi1>, vector<8x128xf32>
    %243 = arith.select %144, %237, %14 : vector<8x128xi1>, vector<8x128xf32>
    %244 = arith.mulf %9, %190 : vector<8x128xf32>
    %245 = arith.mulf %11, %192 : vector<8x128xf32>
    %246 = arith.addf %244, %245 : vector<8x128xf32>
    %247 = arith.mulf %13, %194 : vector<8x128xf32>
    %248 = arith.addf %246, %247 : vector<8x128xf32>
    %cst_69 = arith.constant 0.000000e+00 : f32
    %249 = vector.broadcast %cst_69 : f32 to vector<8x128xf32>
    %250 = arith.subf %249, %248 : vector<8x128xf32>
    %251 = arith.mulf %190, %250 : vector<8x128xf32>
    %252 = arith.addf %9, %251 : vector<8x128xf32>
    %253 = arith.mulf %192, %250 : vector<8x128xf32>
    %254 = arith.addf %11, %253 : vector<8x128xf32>
    %255 = arith.mulf %194, %250 : vector<8x128xf32>
    %256 = arith.addf %13, %255 : vector<8x128xf32>
    %cst_70 = arith.constant 0.658092081 : f32
    %257 = vector.broadcast %cst_70 : f32 to vector<8x128xf32>
    %258 = arith.mulf %252, %257 : vector<8x128xf32>
    %cst_71 = arith.constant 0.658092081 : f32
    %259 = vector.broadcast %cst_71 : f32 to vector<8x128xf32>
    %260 = arith.mulf %254, %259 : vector<8x128xf32>
    %cst_72 = arith.constant 0.658092081 : f32
    %261 = vector.broadcast %cst_72 : f32 to vector<8x128xf32>
    %262 = arith.mulf %256, %261 : vector<8x128xf32>
    %263 = arith.mulf %258, %258 : vector<8x128xf32>
    %264 = arith.mulf %260, %260 : vector<8x128xf32>
    %265 = arith.addf %263, %264 : vector<8x128xf32>
    %266 = arith.mulf %262, %262 : vector<8x128xf32>
    %267 = arith.addf %265, %266 : vector<8x128xf32>
    %cst_73 = arith.constant 0.999998986 : f32
    %268 = vector.broadcast %cst_73 : f32 to vector<8x128xf32>
    %269 = arith.cmpf ogt, %267, %268 : vector<8x128xf32>
    %cst_74 = arith.constant 0.000000e+00 : f32
    %cst_75 = arith.constant 0.999998986 : f32
    %270 = vector.broadcast %cst_74 : f32 to vector<8x128xf32>
    %271 = arith.maximumf %270, %267 : vector<8x128xf32>
    %272 = vector.broadcast %cst_75 : f32 to vector<8x128xf32>
    %273 = arith.minimumf %272, %271 : vector<8x128xf32>
    %cst_76 = arith.constant 1.000000e+00 : f32
    %274 = vector.broadcast %cst_76 : f32 to vector<8x128xf32>
    %275 = arith.subf %274, %273 : vector<8x128xf32>
    %276 = math.sqrt %275 : vector<8x128xf32>
    %cst_77 = arith.constant 0.000000e+00 : f32
    %277 = vector.broadcast %cst_77 : f32 to vector<8x128xf32>
    %278 = arith.subf %277, %190 : vector<8x128xf32>
    %279 = arith.mulf %278, %276 : vector<8x128xf32>
    %280 = arith.addf %279, %258 : vector<8x128xf32>
    %cst_78 = arith.constant 0.000000e+00 : f32
    %281 = vector.broadcast %cst_78 : f32 to vector<8x128xf32>
    %282 = arith.subf %281, %192 : vector<8x128xf32>
    %283 = arith.mulf %282, %276 : vector<8x128xf32>
    %284 = arith.addf %283, %260 : vector<8x128xf32>
    %cst_79 = arith.constant 0.000000e+00 : f32
    %285 = vector.broadcast %cst_79 : f32 to vector<8x128xf32>
    %286 = arith.subf %285, %194 : vector<8x128xf32>
    %287 = arith.mulf %286, %276 : vector<8x128xf32>
    %288 = arith.addf %287, %262 : vector<8x128xf32>
    %289 = arith.mulf %280, %280 : vector<8x128xf32>
    %290 = arith.mulf %284, %284 : vector<8x128xf32>
    %291 = arith.addf %289, %290 : vector<8x128xf32>
    %292 = arith.mulf %288, %288 : vector<8x128xf32>
    %293 = arith.addf %291, %292 : vector<8x128xf32>
    %cst_80 = arith.constant 1.000000e-10 : f32
    %294 = vector.broadcast %cst_80 : f32 to vector<8x128xf32>
    %295 = arith.maximumf %293, %294 : vector<8x128xf32>
    %296 = math.rsqrt %295 : vector<8x128xf32>
    %297 = arith.mulf %280, %296 : vector<8x128xf32>
    %298 = arith.mulf %284, %296 : vector<8x128xf32>
    %299 = arith.mulf %288, %296 : vector<8x128xf32>
    %300 = arith.mulf %297, %190 : vector<8x128xf32>
    %301 = arith.mulf %298, %192 : vector<8x128xf32>
    %302 = arith.addf %300, %301 : vector<8x128xf32>
    %303 = arith.mulf %299, %194 : vector<8x128xf32>
    %304 = arith.addf %302, %303 : vector<8x128xf32>
    %cst_81 = arith.constant 0.000000e+00 : f32
    %305 = vector.broadcast %cst_81 : f32 to vector<8x128xf32>
    %306 = arith.subf %305, %304 : vector<8x128xf32>
    %cst_82 = arith.constant 1.520000e+00 : f32
    %307 = vector.broadcast %cst_82 : f32 to vector<8x128xf32>
    %308 = arith.mulf %306, %307 : vector<8x128xf32>
    %cst_83 = arith.constant 1.000300e+00 : f32
    %309 = vector.broadcast %cst_83 : f32 to vector<8x128xf32>
    %310 = arith.mulf %250, %309 : vector<8x128xf32>
    %311 = arith.subf %308, %310 : vector<8x128xf32>
    %cst_84 = arith.constant 1.520000e+00 : f32
    %312 = vector.broadcast %cst_84 : f32 to vector<8x128xf32>
    %313 = arith.mulf %306, %312 : vector<8x128xf32>
    %cst_85 = arith.constant 1.000300e+00 : f32
    %314 = vector.broadcast %cst_85 : f32 to vector<8x128xf32>
    %315 = arith.mulf %250, %314 : vector<8x128xf32>
    %316 = arith.addf %313, %315 : vector<8x128xf32>
    %cst_86 = arith.constant 1.000000e-10 : f32
    %317 = vector.broadcast %cst_86 : f32 to vector<8x128xf32>
    %318 = arith.maximumf %316, %317 : vector<8x128xf32>
    %319 = arith.divf %311, %318 : vector<8x128xf32>
    %cst_87 = arith.constant 1.000300e+00 : f32
    %320 = vector.broadcast %cst_87 : f32 to vector<8x128xf32>
    %321 = arith.mulf %306, %320 : vector<8x128xf32>
    %cst_88 = arith.constant 1.520000e+00 : f32
    %322 = vector.broadcast %cst_88 : f32 to vector<8x128xf32>
    %323 = arith.mulf %250, %322 : vector<8x128xf32>
    %324 = arith.subf %321, %323 : vector<8x128xf32>
    %cst_89 = arith.constant 1.000300e+00 : f32
    %325 = vector.broadcast %cst_89 : f32 to vector<8x128xf32>
    %326 = arith.mulf %306, %325 : vector<8x128xf32>
    %cst_90 = arith.constant 1.520000e+00 : f32
    %327 = vector.broadcast %cst_90 : f32 to vector<8x128xf32>
    %328 = arith.mulf %250, %327 : vector<8x128xf32>
    %329 = arith.addf %326, %328 : vector<8x128xf32>
    %cst_91 = arith.constant 1.000000e-10 : f32
    %330 = vector.broadcast %cst_91 : f32 to vector<8x128xf32>
    %331 = arith.maximumf %329, %330 : vector<8x128xf32>
    %332 = arith.divf %324, %331 : vector<8x128xf32>
    %333 = arith.mulf %319, %319 : vector<8x128xf32>
    %334 = arith.mulf %332, %332 : vector<8x128xf32>
    %335 = arith.addf %333, %334 : vector<8x128xf32>
    %cst_92 = arith.constant 5.000000e-01 : f32
    %336 = vector.broadcast %cst_92 : f32 to vector<8x128xf32>
    %337 = arith.mulf %336, %335 : vector<8x128xf32>
    %cst_93 = arith.constant 0.000000e+00 : f32
    %cst_94 = arith.constant 1.000000e+00 : f32
    %338 = vector.broadcast %cst_93 : f32 to vector<8x128xf32>
    %339 = arith.maximumf %338, %337 : vector<8x128xf32>
    %340 = vector.broadcast %cst_94 : f32 to vector<8x128xf32>
    %341 = arith.minimumf %340, %339 : vector<8x128xf32>
    %342 = arith.andi %144, %269 : vector<8x128xi1>
    %343 = arith.select %144, %341, %14 : vector<8x128xi1>, vector<8x128xf32>
    %cst_95 = arith.constant dense<true> : vector<8x128xi1>
    %344 = arith.xori %342, %cst_95 : vector<8x128xi1>
    %345 = arith.andi %144, %344 : vector<8x128xi1>
    %346 = arith.mulf %297, %297 : vector<8x128xf32>
    %347 = arith.mulf %298, %298 : vector<8x128xf32>
    %348 = arith.addf %346, %347 : vector<8x128xf32>
    %349 = arith.mulf %299, %299 : vector<8x128xf32>
    %350 = arith.addf %348, %349 : vector<8x128xf32>
    %351 = arith.mulf %175, %297 : vector<8x128xf32>
    %352 = arith.mulf %177, %298 : vector<8x128xf32>
    %353 = arith.addf %351, %352 : vector<8x128xf32>
    %354 = arith.mulf %179, %299 : vector<8x128xf32>
    %355 = arith.addf %353, %354 : vector<8x128xf32>
    %cst_96 = arith.constant 2.000000e+00 : f32
    %356 = vector.broadcast %cst_96 : f32 to vector<8x128xf32>
    %357 = arith.mulf %356, %355 : vector<8x128xf32>
    %358 = arith.mulf %175, %175 : vector<8x128xf32>
    %359 = arith.mulf %177, %177 : vector<8x128xf32>
    %360 = arith.addf %358, %359 : vector<8x128xf32>
    %361 = arith.mulf %179, %179 : vector<8x128xf32>
    %362 = arith.addf %360, %361 : vector<8x128xf32>
    %cst_97 = arith.constant 2.500000e-01 : f32
    %363 = vector.broadcast %cst_97 : f32 to vector<8x128xf32>
    %364 = arith.subf %362, %363 : vector<8x128xf32>
    %cst_98 = arith.constant 0.000000e+00 : f32
    %365 = vector.broadcast %cst_98 : f32 to vector<8x128xf32>
    %366 = arith.subf %365, %357 : vector<8x128xf32>
    %cst_99 = arith.constant 5.000000e-01 : f32
    %367 = vector.broadcast %cst_99 : f32 to vector<8x128xf32>
    %368 = arith.mulf %367, %366 : vector<8x128xf32>
    %369 = arith.divf %368, %350 : vector<8x128xf32>
    %cst_100 = arith.constant 1.000000e+00 : f32
    %370 = vector.broadcast %cst_100 : f32 to vector<8x128xf32>
    %371 = arith.subf %369, %370 : vector<8x128xf32>
    %cst_101 = arith.constant 0.000000e+00 : f32
    %372 = vector.broadcast %cst_101 : f32 to vector<8x128xf32>
    %373 = arith.maximumf %371, %372 : vector<8x128xf32>
    %cst_102 = arith.constant 1.000000e+00 : f32
    %374 = vector.broadcast %cst_102 : f32 to vector<8x128xf32>
    %375 = arith.addf %369, %374 : vector<8x128xf32>
    %376 = arith.subf %375, %373 : vector<8x128xf32>
    %377 = vector.shape_cast %376 : vector<8x128xf32> to vector<1x8x128xf32>
    %378 = vector.broadcast %377 : vector<1x8x128xf32> to vector<64x8x128xf32>
    %379 = arith.mulf %378, %0 : vector<64x8x128xf32>
    %380 = vector.shape_cast %373 : vector<8x128xf32> to vector<1x8x128xf32>
    %381 = vector.broadcast %380 : vector<1x8x128xf32> to vector<64x8x128xf32>
    %382 = arith.addf %381, %379 : vector<64x8x128xf32>
    %383 = vector.shape_cast %350 : vector<8x128xf32> to vector<1x8x128xf32>
    %384 = vector.broadcast %383 : vector<1x8x128xf32> to vector<64x8x128xf32>
    %385 = arith.mulf %384, %382 : vector<64x8x128xf32>
    %386 = vector.shape_cast %357 : vector<8x128xf32> to vector<1x8x128xf32>
    %387 = vector.broadcast %386 : vector<1x8x128xf32> to vector<64x8x128xf32>
    %388 = arith.addf %385, %387 : vector<64x8x128xf32>
    %389 = arith.mulf %388, %382 : vector<64x8x128xf32>
    %390 = vector.shape_cast %364 : vector<8x128xf32> to vector<1x8x128xf32>
    %391 = vector.broadcast %390 : vector<1x8x128xf32> to vector<64x8x128xf32>
    %392 = arith.addf %389, %391 : vector<64x8x128xf32>
    %393 = vector.extract_strided_slice %392 {offsets = [1, 0, 0], sizes = [63, 8, 128], strides = [1, 1, 1]} : vector<64x8x128xf32> to vector<63x8x128xf32>
    %394 = vector.extract_strided_slice %392 {offsets = [0, 0, 0], sizes = [63, 8, 128], strides = [1, 1, 1]} : vector<64x8x128xf32> to vector<63x8x128xf32>
    %395 = arith.mulf %393, %394 : vector<63x8x128xf32>
    %cst_103 = arith.constant 0.000000e+00 : f32
    %396 = vector.broadcast %cst_103 : f32 to vector<63x8x128xf32>
    %397 = arith.cmpf ole, %395, %396 : vector<63x8x128xf32>
    %c64_i32_104 = arith.constant 64 : i32
    %398 = vector.broadcast %c64_i32_104 : i32 to vector<63x8x128xi32>
    %399 = arith.select %397, %1, %398 : vector<63x8x128xi1>, vector<63x8x128xi32>
    %cst_105 = arith.constant dense<2147483647> : vector<8x128xi32>
    %400 = vector.multi_reduction <minsi>, %399, %cst_105 [0] : vector<63x8x128xi32> to vector<8x128xi32>
    %cst_106 = arith.constant 1.000000e+00 : f32
    %cst_107 = arith.constant 0.000000e+00 : f32
    %401 = vector.broadcast %cst_106 : f32 to vector<63x8x128xf32>
    %402 = vector.broadcast %cst_107 : f32 to vector<63x8x128xf32>
    %403 = arith.select %397, %401, %402 : vector<63x8x128xi1>, vector<63x8x128xf32>
    %cst_108 = arith.constant dense<0xFF800000> : vector<8x128xf32>
    %404 = vector.multi_reduction <maximumf>, %403, %cst_108 [0] : vector<63x8x128xf32> to vector<8x128xf32>
    %cst_109 = arith.constant 0.000000e+00 : f32
    %405 = vector.broadcast %cst_109 : f32 to vector<8x128xf32>
    %406 = arith.cmpf ogt, %404, %405 : vector<8x128xf32>
    %c0_i32_110 = arith.constant 0 : i32
    %407 = vector.broadcast %c0_i32_110 : i32 to vector<8x128xi32>
    %408 = arith.select %406, %400, %407 : vector<8x128xi1>, vector<8x128xi32>
    %409 = vector.shape_cast %408 : vector<8x128xi32> to vector<1x8x128xi32>
    %410 = vector.broadcast %409 : vector<1x8x128xi32> to vector<63x8x128xi32>
    %411 = arith.cmpi eq, %1, %410 : vector<63x8x128xi32>
    %412 = arith.extui %411 : vector<63x8x128xi1> to vector<63x8x128xi32>
    %413 = arith.sitofp %412 : vector<63x8x128xi32> to vector<63x8x128xf32>
    %414 = vector.extract_strided_slice %382 {offsets = [0, 0, 0], sizes = [63, 8, 128], strides = [1, 1, 1]} : vector<64x8x128xf32> to vector<63x8x128xf32>
    %415 = arith.mulf %414, %413 : vector<63x8x128xf32>
    %cst_111 = arith.constant dense<0.000000e+00> : vector<8x128xf32>
    %416 = vector.multi_reduction <add>, %415, %cst_111 [0] : vector<63x8x128xf32> to vector<8x128xf32>
    %417 = vector.extract_strided_slice %382 {offsets = [1, 0, 0], sizes = [63, 8, 128], strides = [1, 1, 1]} : vector<64x8x128xf32> to vector<63x8x128xf32>
    %418 = arith.mulf %417, %413 : vector<63x8x128xf32>
    %cst_112 = arith.constant dense<0.000000e+00> : vector<8x128xf32>
    %419 = vector.multi_reduction <add>, %418, %cst_112 [0] : vector<63x8x128xf32> to vector<8x128xf32>
    %420 = arith.subf %419, %416 : vector<8x128xf32>
    %421 = vector.shape_cast %420 : vector<8x128xf32> to vector<1x8x128xf32>
    %422 = vector.broadcast %421 : vector<1x8x128xf32> to vector<64x8x128xf32>
    %423 = arith.mulf %422, %0 : vector<64x8x128xf32>
    %424 = vector.shape_cast %416 : vector<8x128xf32> to vector<1x8x128xf32>
    %425 = vector.broadcast %424 : vector<1x8x128xf32> to vector<64x8x128xf32>
    %426 = arith.addf %425, %423 : vector<64x8x128xf32>
    %427 = vector.shape_cast %350 : vector<8x128xf32> to vector<1x8x128xf32>
    %428 = vector.broadcast %427 : vector<1x8x128xf32> to vector<64x8x128xf32>
    %429 = arith.mulf %428, %426 : vector<64x8x128xf32>
    %430 = vector.shape_cast %357 : vector<8x128xf32> to vector<1x8x128xf32>
    %431 = vector.broadcast %430 : vector<1x8x128xf32> to vector<64x8x128xf32>
    %432 = arith.addf %429, %431 : vector<64x8x128xf32>
    %433 = arith.mulf %432, %426 : vector<64x8x128xf32>
    %434 = vector.shape_cast %364 : vector<8x128xf32> to vector<1x8x128xf32>
    %435 = vector.broadcast %434 : vector<1x8x128xf32> to vector<64x8x128xf32>
    %436 = arith.addf %433, %435 : vector<64x8x128xf32>
    %437 = vector.extract_strided_slice %436 {offsets = [1, 0, 0], sizes = [63, 8, 128], strides = [1, 1, 1]} : vector<64x8x128xf32> to vector<63x8x128xf32>
    %438 = vector.extract_strided_slice %436 {offsets = [0, 0, 0], sizes = [63, 8, 128], strides = [1, 1, 1]} : vector<64x8x128xf32> to vector<63x8x128xf32>
    %439 = arith.mulf %437, %438 : vector<63x8x128xf32>
    %cst_113 = arith.constant 0.000000e+00 : f32
    %440 = vector.broadcast %cst_113 : f32 to vector<63x8x128xf32>
    %441 = arith.cmpf ole, %439, %440 : vector<63x8x128xf32>
    %c64_i32_114 = arith.constant 64 : i32
    %442 = vector.broadcast %c64_i32_114 : i32 to vector<63x8x128xi32>
    %443 = arith.select %441, %1, %442 : vector<63x8x128xi1>, vector<63x8x128xi32>
    %cst_115 = arith.constant dense<2147483647> : vector<8x128xi32>
    %444 = vector.multi_reduction <minsi>, %443, %cst_115 [0] : vector<63x8x128xi32> to vector<8x128xi32>
    %cst_116 = arith.constant 1.000000e+00 : f32
    %cst_117 = arith.constant 0.000000e+00 : f32
    %445 = vector.broadcast %cst_116 : f32 to vector<63x8x128xf32>
    %446 = vector.broadcast %cst_117 : f32 to vector<63x8x128xf32>
    %447 = arith.select %441, %445, %446 : vector<63x8x128xi1>, vector<63x8x128xf32>
    %cst_118 = arith.constant dense<0xFF800000> : vector<8x128xf32>
    %448 = vector.multi_reduction <maximumf>, %447, %cst_118 [0] : vector<63x8x128xf32> to vector<8x128xf32>
    %cst_119 = arith.constant 0.000000e+00 : f32
    %449 = vector.broadcast %cst_119 : f32 to vector<8x128xf32>
    %450 = arith.cmpf ogt, %448, %449 : vector<8x128xf32>
    %c0_i32_120 = arith.constant 0 : i32
    %451 = vector.broadcast %c0_i32_120 : i32 to vector<8x128xi32>
    %452 = arith.select %450, %444, %451 : vector<8x128xi1>, vector<8x128xi32>
    %453 = vector.shape_cast %452 : vector<8x128xi32> to vector<1x8x128xi32>
    %454 = vector.broadcast %453 : vector<1x8x128xi32> to vector<63x8x128xi32>
    %455 = arith.cmpi eq, %1, %454 : vector<63x8x128xi32>
    %456 = arith.extui %455 : vector<63x8x128xi1> to vector<63x8x128xi32>
    %457 = arith.sitofp %456 : vector<63x8x128xi32> to vector<63x8x128xf32>
    %458 = vector.extract_strided_slice %436 {offsets = [0, 0, 0], sizes = [63, 8, 128], strides = [1, 1, 1]} : vector<64x8x128xf32> to vector<63x8x128xf32>
    %459 = arith.mulf %458, %457 : vector<63x8x128xf32>
    %cst_121 = arith.constant dense<0.000000e+00> : vector<8x128xf32>
    %460 = vector.multi_reduction <add>, %459, %cst_121 [0] : vector<63x8x128xf32> to vector<8x128xf32>
    %461 = vector.extract_strided_slice %436 {offsets = [1, 0, 0], sizes = [63, 8, 128], strides = [1, 1, 1]} : vector<64x8x128xf32> to vector<63x8x128xf32>
    %462 = arith.mulf %461, %457 : vector<63x8x128xf32>
    %cst_122 = arith.constant dense<0.000000e+00> : vector<8x128xf32>
    %463 = vector.multi_reduction <add>, %462, %cst_122 [0] : vector<63x8x128xf32> to vector<8x128xf32>
    %464 = vector.extract_strided_slice %426 {offsets = [0, 0, 0], sizes = [63, 8, 128], strides = [1, 1, 1]} : vector<64x8x128xf32> to vector<63x8x128xf32>
    %465 = arith.mulf %464, %457 : vector<63x8x128xf32>
    %cst_123 = arith.constant dense<0.000000e+00> : vector<8x128xf32>
    %466 = vector.multi_reduction <add>, %465, %cst_123 [0] : vector<63x8x128xf32> to vector<8x128xf32>
    %467 = vector.extract_strided_slice %426 {offsets = [1, 0, 0], sizes = [63, 8, 128], strides = [1, 1, 1]} : vector<64x8x128xf32> to vector<63x8x128xf32>
    %468 = arith.mulf %467, %457 : vector<63x8x128xf32>
    %cst_124 = arith.constant dense<0.000000e+00> : vector<8x128xf32>
    %469 = vector.multi_reduction <add>, %468, %cst_124 [0] : vector<63x8x128xf32> to vector<8x128xf32>
    %cst_125 = arith.constant 0.000000e+00 : f32
    %470 = vector.broadcast %cst_125 : f32 to vector<8x128xf32>
    %471 = arith.cmpf oge, %460, %470 : vector<8x128xf32>
    %cst_126 = arith.constant 0.000000e+00 : f32
    %472 = vector.broadcast %cst_126 : f32 to vector<8x128xf32>
    %473 = arith.cmpf ole, %463, %472 : vector<8x128xf32>
    %474 = arith.andi %471, %473 : vector<8x128xi1>
    %cst_127 = arith.constant dense<true> : vector<8x128xi1>
    %475 = arith.xori %474, %cst_127 : vector<8x128xi1>
    %476 = arith.andi %406, %475 : vector<8x128xi1>
    %cst_128 = arith.constant 2.500000e-01 : f32
    %477 = vector.broadcast %cst_128 : f32 to vector<8x128xf32>
    %478 = arith.addf %460, %477 : vector<8x128xf32>
    %cst_129 = arith.constant 0.000000e+00 : f32
    %479 = vector.broadcast %cst_129 : f32 to vector<8x128xf32>
    %480 = arith.maximumf %478, %479 : vector<8x128xf32>
    %481 = math.sqrt %480 : vector<8x128xf32>
    %cst_130 = arith.constant 5.000000e-01 : f32
    %482 = vector.broadcast %cst_130 : f32 to vector<8x128xf32>
    %483 = arith.subf %481, %482 : vector<8x128xf32>
    %cst_131 = arith.constant 2.500000e-01 : f32
    %484 = vector.broadcast %cst_131 : f32 to vector<8x128xf32>
    %485 = arith.addf %463, %484 : vector<8x128xf32>
    %cst_132 = arith.constant 0.000000e+00 : f32
    %486 = vector.broadcast %cst_132 : f32 to vector<8x128xf32>
    %487 = arith.maximumf %485, %486 : vector<8x128xf32>
    %488 = math.sqrt %487 : vector<8x128xf32>
    %cst_133 = arith.constant 5.000000e-01 : f32
    %489 = vector.broadcast %cst_133 : f32 to vector<8x128xf32>
    %490 = arith.subf %488, %489 : vector<8x128xf32>
    %491 = arith.subf %490, %483 : vector<8x128xf32>
    %492 = math.absf %491 : vector<8x128xf32>
    %cst_134 = arith.constant 1.000000e-10 : f32
    %493 = vector.broadcast %cst_134 : f32 to vector<8x128xf32>
    %494 = arith.cmpf olt, %492, %493 : vector<8x128xf32>
    %cst_135 = arith.constant 0.000000e+00 : f32
    %495 = vector.broadcast %cst_135 : f32 to vector<8x128xf32>
    %496 = arith.cmpf olt, %491, %495 : vector<8x128xf32>
    %cst_136 = arith.constant 0.000000e+00 : f32
    %cst_137 = arith.constant 1.000000e-10 : f32
    %497 = arith.subf %cst_136, %cst_137 : f32
    %cst_138 = arith.constant 1.000000e-10 : f32
    %498 = vector.broadcast %497 : f32 to vector<8x128xf32>
    %499 = vector.broadcast %cst_138 : f32 to vector<8x128xf32>
    %500 = arith.select %496, %498, %499 : vector<8x128xi1>, vector<8x128xf32>
    %501 = arith.select %494, %500, %491 : vector<8x128xi1>, vector<8x128xf32>
    %502 = arith.subf %469, %466 : vector<8x128xf32>
    %503 = arith.mulf %483, %502 : vector<8x128xf32>
    %504 = arith.divf %503, %501 : vector<8x128xf32>
    %505 = arith.subf %466, %504 : vector<8x128xf32>
    %506 = arith.mulf %505, %297 : vector<8x128xf32>
    %507 = arith.addf %175, %506 : vector<8x128xf32>
    %508 = arith.mulf %505, %298 : vector<8x128xf32>
    %509 = arith.addf %177, %508 : vector<8x128xf32>
    %510 = arith.mulf %505, %299 : vector<8x128xf32>
    %511 = arith.addf %179, %510 : vector<8x128xf32>
    %512 = arith.mulf %507, %507 : vector<8x128xf32>
    %513 = arith.mulf %509, %509 : vector<8x128xf32>
    %514 = arith.addf %512, %513 : vector<8x128xf32>
    %515 = arith.mulf %511, %511 : vector<8x128xf32>
    %516 = arith.addf %514, %515 : vector<8x128xf32>
    %cst_139 = arith.constant 9.99999996E-13 : f32
    %517 = vector.broadcast %cst_139 : f32 to vector<8x128xf32>
    %518 = arith.maximumf %516, %517 : vector<8x128xf32>
    %519 = math.rsqrt %518 : vector<8x128xf32>
    %cst_140 = arith.constant 0.000000e+00 : f32
    %520 = vector.broadcast %cst_140 : f32 to vector<8x128xf32>
    %521 = arith.mulf %507, %519 : vector<8x128xf32>
    %522 = arith.select %476, %521, %520 : vector<8x128xi1>, vector<8x128xf32>
    %523 = arith.mulf %509, %519 : vector<8x128xf32>
    %524 = arith.select %476, %523, %520 : vector<8x128xi1>, vector<8x128xf32>
    %525 = arith.mulf %511, %519 : vector<8x128xf32>
    %526 = arith.select %476, %525, %520 : vector<8x128xi1>, vector<8x128xf32>
    %527 = arith.andi %345, %476 : vector<8x128xi1>
    %cst_141 = arith.constant 0.000000e+00 : f32
    %528 = vector.broadcast %cst_141 : f32 to vector<8x128xf32>
    %529 = arith.subf %528, %522 : vector<8x128xf32>
    %cst_142 = arith.constant 0.000000e+00 : f32
    %530 = vector.broadcast %cst_142 : f32 to vector<8x128xf32>
    %531 = arith.subf %530, %524 : vector<8x128xf32>
    %cst_143 = arith.constant 0.000000e+00 : f32
    %532 = vector.broadcast %cst_143 : f32 to vector<8x128xf32>
    %533 = arith.subf %532, %526 : vector<8x128xf32>
    %534 = arith.mulf %297, %529 : vector<8x128xf32>
    %535 = arith.mulf %298, %531 : vector<8x128xf32>
    %536 = arith.addf %534, %535 : vector<8x128xf32>
    %537 = arith.mulf %299, %533 : vector<8x128xf32>
    %538 = arith.addf %536, %537 : vector<8x128xf32>
    %cst_144 = arith.constant 0.000000e+00 : f32
    %539 = vector.broadcast %cst_144 : f32 to vector<8x128xf32>
    %540 = arith.subf %539, %538 : vector<8x128xf32>
    %541 = arith.mulf %529, %540 : vector<8x128xf32>
    %542 = arith.addf %297, %541 : vector<8x128xf32>
    %543 = arith.mulf %531, %540 : vector<8x128xf32>
    %544 = arith.addf %298, %543 : vector<8x128xf32>
    %545 = arith.mulf %533, %540 : vector<8x128xf32>
    %546 = arith.addf %299, %545 : vector<8x128xf32>
    %cst_145 = arith.constant 1.51954412 : f32
    %547 = vector.broadcast %cst_145 : f32 to vector<8x128xf32>
    %548 = arith.mulf %542, %547 : vector<8x128xf32>
    %cst_146 = arith.constant 1.51954412 : f32
    %549 = vector.broadcast %cst_146 : f32 to vector<8x128xf32>
    %550 = arith.mulf %544, %549 : vector<8x128xf32>
    %cst_147 = arith.constant 1.51954412 : f32
    %551 = vector.broadcast %cst_147 : f32 to vector<8x128xf32>
    %552 = arith.mulf %546, %551 : vector<8x128xf32>
    %553 = arith.mulf %548, %548 : vector<8x128xf32>
    %554 = arith.mulf %550, %550 : vector<8x128xf32>
    %555 = arith.addf %553, %554 : vector<8x128xf32>
    %556 = arith.mulf %552, %552 : vector<8x128xf32>
    %557 = arith.addf %555, %556 : vector<8x128xf32>
    %cst_148 = arith.constant 0.000000e+00 : f32
    %cst_149 = arith.constant 0.999998986 : f32
    %558 = vector.broadcast %cst_148 : f32 to vector<8x128xf32>
    %559 = arith.maximumf %558, %557 : vector<8x128xf32>
    %560 = vector.broadcast %cst_149 : f32 to vector<8x128xf32>
    %561 = arith.minimumf %560, %559 : vector<8x128xf32>
    %cst_150 = arith.constant 1.000000e+00 : f32
    %562 = vector.broadcast %cst_150 : f32 to vector<8x128xf32>
    %563 = arith.subf %562, %561 : vector<8x128xf32>
    %564 = math.sqrt %563 : vector<8x128xf32>
    %cst_151 = arith.constant 0.000000e+00 : f32
    %565 = vector.broadcast %cst_151 : f32 to vector<8x128xf32>
    %566 = arith.subf %565, %529 : vector<8x128xf32>
    %567 = arith.mulf %566, %564 : vector<8x128xf32>
    %568 = arith.addf %567, %548 : vector<8x128xf32>
    %cst_152 = arith.constant 0.000000e+00 : f32
    %569 = vector.broadcast %cst_152 : f32 to vector<8x128xf32>
    %570 = arith.subf %569, %531 : vector<8x128xf32>
    %571 = arith.mulf %570, %564 : vector<8x128xf32>
    %572 = arith.addf %571, %550 : vector<8x128xf32>
    %cst_153 = arith.constant 0.000000e+00 : f32
    %573 = vector.broadcast %cst_153 : f32 to vector<8x128xf32>
    %574 = arith.subf %573, %533 : vector<8x128xf32>
    %575 = arith.mulf %574, %564 : vector<8x128xf32>
    %576 = arith.addf %575, %552 : vector<8x128xf32>
    %577 = arith.mulf %568, %568 : vector<8x128xf32>
    %578 = arith.mulf %572, %572 : vector<8x128xf32>
    %579 = arith.addf %577, %578 : vector<8x128xf32>
    %580 = arith.mulf %576, %576 : vector<8x128xf32>
    %581 = arith.addf %579, %580 : vector<8x128xf32>
    %cst_154 = arith.constant 1.000000e-10 : f32
    %582 = vector.broadcast %cst_154 : f32 to vector<8x128xf32>
    %583 = arith.maximumf %581, %582 : vector<8x128xf32>
    %584 = math.rsqrt %583 : vector<8x128xf32>
    %585 = arith.mulf %568, %584 : vector<8x128xf32>
    %586 = arith.mulf %572, %584 : vector<8x128xf32>
    %587 = arith.mulf %576, %584 : vector<8x128xf32>
    %588 = arith.mulf %585, %529 : vector<8x128xf32>
    %589 = arith.mulf %586, %531 : vector<8x128xf32>
    %590 = arith.addf %588, %589 : vector<8x128xf32>
    %591 = arith.mulf %587, %533 : vector<8x128xf32>
    %592 = arith.addf %590, %591 : vector<8x128xf32>
    %cst_155 = arith.constant 0.000000e+00 : f32
    %593 = vector.broadcast %cst_155 : f32 to vector<8x128xf32>
    %594 = arith.subf %593, %592 : vector<8x128xf32>
    %cst_156 = arith.constant 1.000300e+00 : f32
    %595 = vector.broadcast %cst_156 : f32 to vector<8x128xf32>
    %596 = arith.mulf %594, %595 : vector<8x128xf32>
    %cst_157 = arith.constant 1.520000e+00 : f32
    %597 = vector.broadcast %cst_157 : f32 to vector<8x128xf32>
    %598 = arith.mulf %540, %597 : vector<8x128xf32>
    %599 = arith.subf %596, %598 : vector<8x128xf32>
    %cst_158 = arith.constant 1.000300e+00 : f32
    %600 = vector.broadcast %cst_158 : f32 to vector<8x128xf32>
    %601 = arith.mulf %594, %600 : vector<8x128xf32>
    %cst_159 = arith.constant 1.520000e+00 : f32
    %602 = vector.broadcast %cst_159 : f32 to vector<8x128xf32>
    %603 = arith.mulf %540, %602 : vector<8x128xf32>
    %604 = arith.addf %601, %603 : vector<8x128xf32>
    %cst_160 = arith.constant 1.000000e-10 : f32
    %605 = vector.broadcast %cst_160 : f32 to vector<8x128xf32>
    %606 = arith.maximumf %604, %605 : vector<8x128xf32>
    %607 = arith.divf %599, %606 : vector<8x128xf32>
    %cst_161 = arith.constant 1.520000e+00 : f32
    %608 = vector.broadcast %cst_161 : f32 to vector<8x128xf32>
    %609 = arith.mulf %594, %608 : vector<8x128xf32>
    %cst_162 = arith.constant 1.000300e+00 : f32
    %610 = vector.broadcast %cst_162 : f32 to vector<8x128xf32>
    %611 = arith.mulf %540, %610 : vector<8x128xf32>
    %612 = arith.subf %609, %611 : vector<8x128xf32>
    %cst_163 = arith.constant 1.520000e+00 : f32
    %613 = vector.broadcast %cst_163 : f32 to vector<8x128xf32>
    %614 = arith.mulf %594, %613 : vector<8x128xf32>
    %cst_164 = arith.constant 1.000300e+00 : f32
    %615 = vector.broadcast %cst_164 : f32 to vector<8x128xf32>
    %616 = arith.mulf %540, %615 : vector<8x128xf32>
    %617 = arith.addf %614, %616 : vector<8x128xf32>
    %cst_165 = arith.constant 1.000000e-10 : f32
    %618 = vector.broadcast %cst_165 : f32 to vector<8x128xf32>
    %619 = arith.maximumf %617, %618 : vector<8x128xf32>
    %620 = arith.divf %612, %619 : vector<8x128xf32>
    %621 = arith.mulf %607, %607 : vector<8x128xf32>
    %622 = arith.mulf %620, %620 : vector<8x128xf32>
    %623 = arith.addf %621, %622 : vector<8x128xf32>
    %cst_166 = arith.constant 5.000000e-01 : f32
    %624 = vector.broadcast %cst_166 : f32 to vector<8x128xf32>
    %625 = arith.mulf %624, %623 : vector<8x128xf32>
    %cst_167 = arith.constant 0.000000e+00 : f32
    %cst_168 = arith.constant 1.000000e+00 : f32
    %626 = vector.broadcast %cst_167 : f32 to vector<8x128xf32>
    %627 = arith.maximumf %626, %625 : vector<8x128xf32>
    %628 = vector.broadcast %cst_168 : f32 to vector<8x128xf32>
    %629 = arith.minimumf %628, %627 : vector<8x128xf32>
    %630 = arith.mulf %585, %585 : vector<8x128xf32>
    %631 = arith.mulf %586, %586 : vector<8x128xf32>
    %632 = arith.addf %630, %631 : vector<8x128xf32>
    %633 = arith.mulf %587, %587 : vector<8x128xf32>
    %634 = arith.addf %632, %633 : vector<8x128xf32>
    %635 = arith.mulf %507, %585 : vector<8x128xf32>
    %636 = arith.mulf %509, %586 : vector<8x128xf32>
    %637 = arith.addf %635, %636 : vector<8x128xf32>
    %638 = arith.mulf %511, %587 : vector<8x128xf32>
    %639 = arith.addf %637, %638 : vector<8x128xf32>
    %cst_169 = arith.constant 2.000000e+00 : f32
    %640 = vector.broadcast %cst_169 : f32 to vector<8x128xf32>
    %641 = arith.mulf %640, %639 : vector<8x128xf32>
    %642 = arith.mulf %507, %507 : vector<8x128xf32>
    %643 = arith.mulf %509, %509 : vector<8x128xf32>
    %644 = arith.addf %642, %643 : vector<8x128xf32>
    %645 = arith.mulf %511, %511 : vector<8x128xf32>
    %646 = arith.addf %644, %645 : vector<8x128xf32>
    %cst_170 = arith.constant 2.500000e-01 : f32
    %647 = vector.broadcast %cst_170 : f32 to vector<8x128xf32>
    %648 = arith.subf %646, %647 : vector<8x128xf32>
    %cst_171 = arith.constant 0.000000e+00 : f32
    %649 = vector.broadcast %cst_171 : f32 to vector<8x128xf32>
    %650 = arith.subf %649, %641 : vector<8x128xf32>
    %cst_172 = arith.constant 5.000000e-01 : f32
    %651 = vector.broadcast %cst_172 : f32 to vector<8x128xf32>
    %652 = arith.mulf %651, %650 : vector<8x128xf32>
    %653 = arith.divf %652, %634 : vector<8x128xf32>
    %cst_173 = arith.constant 1.000000e+00 : f32
    %654 = vector.broadcast %cst_173 : f32 to vector<8x128xf32>
    %655 = arith.subf %653, %654 : vector<8x128xf32>
    %cst_174 = arith.constant 0.000000e+00 : f32
    %656 = vector.broadcast %cst_174 : f32 to vector<8x128xf32>
    %657 = arith.maximumf %655, %656 : vector<8x128xf32>
    %cst_175 = arith.constant 1.000000e+00 : f32
    %658 = vector.broadcast %cst_175 : f32 to vector<8x128xf32>
    %659 = arith.addf %653, %658 : vector<8x128xf32>
    %660 = arith.subf %659, %657 : vector<8x128xf32>
    %661 = vector.shape_cast %660 : vector<8x128xf32> to vector<1x8x128xf32>
    %662 = vector.broadcast %661 : vector<1x8x128xf32> to vector<64x8x128xf32>
    %663 = arith.mulf %662, %0 : vector<64x8x128xf32>
    %664 = vector.shape_cast %657 : vector<8x128xf32> to vector<1x8x128xf32>
    %665 = vector.broadcast %664 : vector<1x8x128xf32> to vector<64x8x128xf32>
    %666 = arith.addf %665, %663 : vector<64x8x128xf32>
    %667 = vector.shape_cast %634 : vector<8x128xf32> to vector<1x8x128xf32>
    %668 = vector.broadcast %667 : vector<1x8x128xf32> to vector<64x8x128xf32>
    %669 = arith.mulf %668, %666 : vector<64x8x128xf32>
    %670 = vector.shape_cast %641 : vector<8x128xf32> to vector<1x8x128xf32>
    %671 = vector.broadcast %670 : vector<1x8x128xf32> to vector<64x8x128xf32>
    %672 = arith.addf %669, %671 : vector<64x8x128xf32>
    %673 = arith.mulf %672, %666 : vector<64x8x128xf32>
    %674 = vector.shape_cast %648 : vector<8x128xf32> to vector<1x8x128xf32>
    %675 = vector.broadcast %674 : vector<1x8x128xf32> to vector<64x8x128xf32>
    %676 = arith.addf %673, %675 : vector<64x8x128xf32>
    %677 = vector.extract_strided_slice %676 {offsets = [1, 0, 0], sizes = [63, 8, 128], strides = [1, 1, 1]} : vector<64x8x128xf32> to vector<63x8x128xf32>
    %678 = vector.extract_strided_slice %676 {offsets = [0, 0, 0], sizes = [63, 8, 128], strides = [1, 1, 1]} : vector<64x8x128xf32> to vector<63x8x128xf32>
    %679 = arith.mulf %677, %678 : vector<63x8x128xf32>
    %cst_176 = arith.constant 0.000000e+00 : f32
    %680 = vector.broadcast %cst_176 : f32 to vector<63x8x128xf32>
    %681 = arith.cmpf ole, %679, %680 : vector<63x8x128xf32>
    %c64_i32_177 = arith.constant 64 : i32
    %682 = vector.broadcast %c64_i32_177 : i32 to vector<63x8x128xi32>
    %683 = arith.select %681, %1, %682 : vector<63x8x128xi1>, vector<63x8x128xi32>
    %cst_178 = arith.constant dense<2147483647> : vector<8x128xi32>
    %684 = vector.multi_reduction <minsi>, %683, %cst_178 [0] : vector<63x8x128xi32> to vector<8x128xi32>
    %cst_179 = arith.constant 1.000000e+00 : f32
    %cst_180 = arith.constant 0.000000e+00 : f32
    %685 = vector.broadcast %cst_179 : f32 to vector<63x8x128xf32>
    %686 = vector.broadcast %cst_180 : f32 to vector<63x8x128xf32>
    %687 = arith.select %681, %685, %686 : vector<63x8x128xi1>, vector<63x8x128xf32>
    %cst_181 = arith.constant dense<0xFF800000> : vector<8x128xf32>
    %688 = vector.multi_reduction <maximumf>, %687, %cst_181 [0] : vector<63x8x128xf32> to vector<8x128xf32>
    %cst_182 = arith.constant 0.000000e+00 : f32
    %689 = vector.broadcast %cst_182 : f32 to vector<8x128xf32>
    %690 = arith.cmpf ogt, %688, %689 : vector<8x128xf32>
    %c0_i32_183 = arith.constant 0 : i32
    %691 = vector.broadcast %c0_i32_183 : i32 to vector<8x128xi32>
    %692 = arith.select %690, %684, %691 : vector<8x128xi1>, vector<8x128xi32>
    %693 = vector.shape_cast %692 : vector<8x128xi32> to vector<1x8x128xi32>
    %694 = vector.broadcast %693 : vector<1x8x128xi32> to vector<63x8x128xi32>
    %695 = arith.cmpi eq, %1, %694 : vector<63x8x128xi32>
    %696 = arith.extui %695 : vector<63x8x128xi1> to vector<63x8x128xi32>
    %697 = arith.sitofp %696 : vector<63x8x128xi32> to vector<63x8x128xf32>
    %698 = vector.extract_strided_slice %676 {offsets = [0, 0, 0], sizes = [63, 8, 128], strides = [1, 1, 1]} : vector<64x8x128xf32> to vector<63x8x128xf32>
    %699 = arith.mulf %698, %697 : vector<63x8x128xf32>
    %cst_184 = arith.constant dense<0.000000e+00> : vector<8x128xf32>
    %700 = vector.multi_reduction <add>, %699, %cst_184 [0] : vector<63x8x128xf32> to vector<8x128xf32>
    %701 = vector.extract_strided_slice %676 {offsets = [1, 0, 0], sizes = [63, 8, 128], strides = [1, 1, 1]} : vector<64x8x128xf32> to vector<63x8x128xf32>
    %702 = arith.mulf %701, %697 : vector<63x8x128xf32>
    %cst_185 = arith.constant dense<0.000000e+00> : vector<8x128xf32>
    %703 = vector.multi_reduction <add>, %702, %cst_185 [0] : vector<63x8x128xf32> to vector<8x128xf32>
    %cst_186 = arith.constant 0.000000e+00 : f32
    %704 = vector.broadcast %cst_186 : f32 to vector<8x128xf32>
    %705 = arith.cmpf oge, %700, %704 : vector<8x128xf32>
    %cst_187 = arith.constant 0.000000e+00 : f32
    %706 = vector.broadcast %cst_187 : f32 to vector<8x128xf32>
    %707 = arith.cmpf ole, %703, %706 : vector<8x128xf32>
    %708 = arith.andi %705, %707 : vector<8x128xi1>
    %709 = arith.andi %690, %708 : vector<8x128xi1>
    %cst_188 = arith.constant dense<true> : vector<8x128xi1>
    %710 = arith.xori %709, %cst_188 : vector<8x128xi1>
    %711 = arith.andi %527, %710 : vector<8x128xi1>
    %712 = arith.select %711, %507, %14 : vector<8x128xi1>, vector<8x128xf32>
    %713 = arith.select %711, %509, %14 : vector<8x128xi1>, vector<8x128xf32>
    %714 = arith.select %711, %511, %14 : vector<8x128xi1>, vector<8x128xf32>
    %715 = arith.select %711, %585, %14 : vector<8x128xi1>, vector<8x128xf32>
    %716 = arith.select %711, %586, %14 : vector<8x128xi1>, vector<8x128xf32>
    %717 = arith.select %711, %587, %14 : vector<8x128xi1>, vector<8x128xf32>
    %cst_189 = arith.constant 1.000000e+00 : f32
    %718 = vector.broadcast %cst_189 : f32 to vector<8x128xf32>
    %719 = arith.subf %718, %341 : vector<8x128xf32>
    %cst_190 = arith.constant 1.000000e+00 : f32
    %720 = vector.broadcast %cst_190 : f32 to vector<8x128xf32>
    %721 = arith.subf %720, %629 : vector<8x128xf32>
    %722 = arith.mulf %719, %721 : vector<8x128xf32>
    %723 = arith.select %711, %722, %14 : vector<8x128xi1>, vector<8x128xf32>
    %false = arith.constant false
    %724 = vector.broadcast %false : i1 to vector<8x128xi1>
    %725 = arith.extui %195 : vector<8x128xi1> to vector<8x128xi32>
    %726 = arith.sitofp %725 : vector<8x128xi32> to vector<8x128xf32>
    %c0_191 = arith.constant 0 : index
    %c0_192 = arith.constant 0 : index
    %c0_193 = arith.constant 0 : index
    %727 = vector.load %arg5[%c0_191, %c0_192, %c0_193] : memref<18x8x128xf32, #tpu.memory_space<vmem>>, vector<1x8x128xf32>
    %728 = vector.shape_cast %727 : vector<1x8x128xf32> to vector<8x128xf32>
    %729 = vector.shape_cast %726 : vector<8x128xf32> to vector<1x8x128xf32>
    tpu.vector_store %arg5[%c0_191, %c0_192, %c0_193], %729 {strides = array<i32>} : memref<18x8x128xf32, #tpu.memory_space<vmem>>, vector<1x8x128xf32>,
    %730 = arith.extui %342 : vector<8x128xi1> to vector<8x128xi32>
    %731 = arith.sitofp %730 : vector<8x128xi32> to vector<8x128xf32>
    %c1_194 = arith.constant 1 : index
    %c0_195 = arith.constant 0 : index
    %c0_196 = arith.constant 0 : index
    %732 = vector.load %arg5[%c1_194, %c0_195, %c0_196] : memref<18x8x128xf32, #tpu.memory_space<vmem>>, vector<1x8x128xf32>
    %733 = vector.shape_cast %732 : vector<1x8x128xf32> to vector<8x128xf32>
    %734 = vector.shape_cast %731 : vector<8x128xf32> to vector<1x8x128xf32>
    tpu.vector_store %arg5[%c1_194, %c0_195, %c0_196], %734 {strides = array<i32>} : memref<18x8x128xf32, #tpu.memory_space<vmem>>, vector<1x8x128xf32>,
    %735 = arith.extui %711 : vector<8x128xi1> to vector<8x128xi32>
    %736 = arith.sitofp %735 : vector<8x128xi32> to vector<8x128xf32>
    %c2_197 = arith.constant 2 : index
    %c0_198 = arith.constant 0 : index
    %c0_199 = arith.constant 0 : index
    %737 = vector.load %arg5[%c2_197, %c0_198, %c0_199] : memref<18x8x128xf32, #tpu.memory_space<vmem>>, vector<1x8x128xf32>
    %738 = vector.shape_cast %737 : vector<1x8x128xf32> to vector<8x128xf32>
    %739 = vector.shape_cast %736 : vector<8x128xf32> to vector<1x8x128xf32>
    tpu.vector_store %arg5[%c2_197, %c0_198, %c0_199], %739 {strides = array<i32>} : memref<18x8x128xf32, #tpu.memory_space<vmem>>, vector<1x8x128xf32>,
    %740 = arith.extui %724 : vector<8x128xi1> to vector<8x128xi32>
    %741 = arith.sitofp %740 : vector<8x128xi32> to vector<8x128xf32>
    %c3 = arith.constant 3 : index
    %c0_200 = arith.constant 0 : index
    %c0_201 = arith.constant 0 : index
    %742 = vector.load %arg5[%c3, %c0_200, %c0_201] : memref<18x8x128xf32, #tpu.memory_space<vmem>>, vector<1x8x128xf32>
    %743 = vector.shape_cast %742 : vector<1x8x128xf32> to vector<8x128xf32>
    %744 = vector.shape_cast %741 : vector<8x128xf32> to vector<1x8x128xf32>
    tpu.vector_store %arg5[%c3, %c0_200, %c0_201], %744 {strides = array<i32>} : memref<18x8x128xf32, #tpu.memory_space<vmem>>, vector<1x8x128xf32>,
    %c4 = arith.constant 4 : index
    %c0_202 = arith.constant 0 : index
    %c0_203 = arith.constant 0 : index
    %745 = vector.load %arg5[%c4, %c0_202, %c0_203] : memref<18x8x128xf32, #tpu.memory_space<vmem>>, vector<1x8x128xf32>
    %746 = vector.shape_cast %745 : vector<1x8x128xf32> to vector<8x128xf32>
    %747 = vector.shape_cast %238 : vector<8x128xf32> to vector<1x8x128xf32>
    tpu.vector_store %arg5[%c4, %c0_202, %c0_203], %747 {strides = array<i32>} : memref<18x8x128xf32, #tpu.memory_space<vmem>>, vector<1x8x128xf32>,
    %c7 = arith.constant 7 : index
    %c0_204 = arith.constant 0 : index
    %c0_205 = arith.constant 0 : index
    %748 = vector.load %arg5[%c7, %c0_204, %c0_205] : memref<18x8x128xf32, #tpu.memory_space<vmem>>, vector<1x8x128xf32>
    %749 = vector.shape_cast %748 : vector<1x8x128xf32> to vector<8x128xf32>
    %750 = vector.shape_cast %241 : vector<8x128xf32> to vector<1x8x128xf32>
    tpu.vector_store %arg5[%c7, %c0_204, %c0_205], %750 {strides = array<i32>} : memref<18x8x128xf32, #tpu.memory_space<vmem>>, vector<1x8x128xf32>,
    %c10 = arith.constant 10 : index
    %c0_206 = arith.constant 0 : index
    %c0_207 = arith.constant 0 : index
    %751 = vector.load %arg5[%c10, %c0_206, %c0_207] : memref<18x8x128xf32, #tpu.memory_space<vmem>>, vector<1x8x128xf32>
    %752 = vector.shape_cast %751 : vector<1x8x128xf32> to vector<8x128xf32>
    %753 = vector.shape_cast %712 : vector<8x128xf32> to vector<1x8x128xf32>
    tpu.vector_store %arg5[%c10, %c0_206, %c0_207], %753 {strides = array<i32>} : memref<18x8x128xf32, #tpu.memory_space<vmem>>, vector<1x8x128xf32>,
    %c13 = arith.constant 13 : index
    %c0_208 = arith.constant 0 : index
    %c0_209 = arith.constant 0 : index
    %754 = vector.load %arg5[%c13, %c0_208, %c0_209] : memref<18x8x128xf32, #tpu.memory_space<vmem>>, vector<1x8x128xf32>
    %755 = vector.shape_cast %754 : vector<1x8x128xf32> to vector<8x128xf32>
    %756 = vector.shape_cast %715 : vector<8x128xf32> to vector<1x8x128xf32>
    tpu.vector_store %arg5[%c13, %c0_208, %c0_209], %756 {strides = array<i32>} : memref<18x8x128xf32, #tpu.memory_space<vmem>>, vector<1x8x128xf32>,
    %c5 = arith.constant 5 : index
    %c0_210 = arith.constant 0 : index
    %c0_211 = arith.constant 0 : index
    %757 = vector.load %arg5[%c5, %c0_210, %c0_211] : memref<18x8x128xf32, #tpu.memory_space<vmem>>, vector<1x8x128xf32>
    %758 = vector.shape_cast %757 : vector<1x8x128xf32> to vector<8x128xf32>
    %759 = vector.shape_cast %239 : vector<8x128xf32> to vector<1x8x128xf32>
    tpu.vector_store %arg5[%c5, %c0_210, %c0_211], %759 {strides = array<i32>} : memref<18x8x128xf32, #tpu.memory_space<vmem>>, vector<1x8x128xf32>,
    %c8 = arith.constant 8 : index
    %c0_212 = arith.constant 0 : index
    %c0_213 = arith.constant 0 : index
    %760 = vector.load %arg5[%c8, %c0_212, %c0_213] : memref<18x8x128xf32, #tpu.memory_space<vmem>>, vector<1x8x128xf32>
    %761 = vector.shape_cast %760 : vector<1x8x128xf32> to vector<8x128xf32>
    %762 = vector.shape_cast %242 : vector<8x128xf32> to vector<1x8x128xf32>
    tpu.vector_store %arg5[%c8, %c0_212, %c0_213], %762 {strides = array<i32>} : memref<18x8x128xf32, #tpu.memory_space<vmem>>, vector<1x8x128xf32>,
    %c11 = arith.constant 11 : index
    %c0_214 = arith.constant 0 : index
    %c0_215 = arith.constant 0 : index
    %763 = vector.load %arg5[%c11, %c0_214, %c0_215] : memref<18x8x128xf32, #tpu.memory_space<vmem>>, vector<1x8x128xf32>
    %764 = vector.shape_cast %763 : vector<1x8x128xf32> to vector<8x128xf32>
    %765 = vector.shape_cast %713 : vector<8x128xf32> to vector<1x8x128xf32>
    tpu.vector_store %arg5[%c11, %c0_214, %c0_215], %765 {strides = array<i32>} : memref<18x8x128xf32, #tpu.memory_space<vmem>>, vector<1x8x128xf32>,
    %c14 = arith.constant 14 : index
    %c0_216 = arith.constant 0 : index
    %c0_217 = arith.constant 0 : index
    %766 = vector.load %arg5[%c14, %c0_216, %c0_217] : memref<18x8x128xf32, #tpu.memory_space<vmem>>, vector<1x8x128xf32>
    %767 = vector.shape_cast %766 : vector<1x8x128xf32> to vector<8x128xf32>
    %768 = vector.shape_cast %716 : vector<8x128xf32> to vector<1x8x128xf32>
    tpu.vector_store %arg5[%c14, %c0_216, %c0_217], %768 {strides = array<i32>} : memref<18x8x128xf32, #tpu.memory_space<vmem>>, vector<1x8x128xf32>,
    %c6 = arith.constant 6 : index
    %c0_218 = arith.constant 0 : index
    %c0_219 = arith.constant 0 : index
    %769 = vector.load %arg5[%c6, %c0_218, %c0_219] : memref<18x8x128xf32, #tpu.memory_space<vmem>>, vector<1x8x128xf32>
    %770 = vector.shape_cast %769 : vector<1x8x128xf32> to vector<8x128xf32>
    %771 = vector.shape_cast %240 : vector<8x128xf32> to vector<1x8x128xf32>
    tpu.vector_store %arg5[%c6, %c0_218, %c0_219], %771 {strides = array<i32>} : memref<18x8x128xf32, #tpu.memory_space<vmem>>, vector<1x8x128xf32>,
    %c9 = arith.constant 9 : index
    %c0_220 = arith.constant 0 : index
    %c0_221 = arith.constant 0 : index
    %772 = vector.load %arg5[%c9, %c0_220, %c0_221] : memref<18x8x128xf32, #tpu.memory_space<vmem>>, vector<1x8x128xf32>
    %773 = vector.shape_cast %772 : vector<1x8x128xf32> to vector<8x128xf32>
    %774 = vector.shape_cast %243 : vector<8x128xf32> to vector<1x8x128xf32>
    tpu.vector_store %arg5[%c9, %c0_220, %c0_221], %774 {strides = array<i32>} : memref<18x8x128xf32, #tpu.memory_space<vmem>>, vector<1x8x128xf32>,
    %c12 = arith.constant 12 : index
    %c0_222 = arith.constant 0 : index
    %c0_223 = arith.constant 0 : index
    %775 = vector.load %arg5[%c12, %c0_222, %c0_223] : memref<18x8x128xf32, #tpu.memory_space<vmem>>, vector<1x8x128xf32>
    %776 = vector.shape_cast %775 : vector<1x8x128xf32> to vector<8x128xf32>
    %777 = vector.shape_cast %714 : vector<8x128xf32> to vector<1x8x128xf32>
    tpu.vector_store %arg5[%c12, %c0_222, %c0_223], %777 {strides = array<i32>} : memref<18x8x128xf32, #tpu.memory_space<vmem>>, vector<1x8x128xf32>,
    %c15 = arith.constant 15 : index
    %c0_224 = arith.constant 0 : index
    %c0_225 = arith.constant 0 : index
    %778 = vector.load %arg5[%c15, %c0_224, %c0_225] : memref<18x8x128xf32, #tpu.memory_space<vmem>>, vector<1x8x128xf32>
    %779 = vector.shape_cast %778 : vector<1x8x128xf32> to vector<8x128xf32>
    %780 = vector.shape_cast %717 : vector<8x128xf32> to vector<1x8x128xf32>
    tpu.vector_store %arg5[%c15, %c0_224, %c0_225], %780 {strides = array<i32>} : memref<18x8x128xf32, #tpu.memory_space<vmem>>, vector<1x8x128xf32>,
    %c16 = arith.constant 16 : index
    %c0_226 = arith.constant 0 : index
    %c0_227 = arith.constant 0 : index
    %781 = vector.load %arg5[%c16, %c0_226, %c0_227] : memref<18x8x128xf32, #tpu.memory_space<vmem>>, vector<1x8x128xf32>
    %782 = vector.shape_cast %781 : vector<1x8x128xf32> to vector<8x128xf32>
    %783 = vector.shape_cast %343 : vector<8x128xf32> to vector<1x8x128xf32>
    tpu.vector_store %arg5[%c16, %c0_226, %c0_227], %783 {strides = array<i32>} : memref<18x8x128xf32, #tpu.memory_space<vmem>>, vector<1x8x128xf32>,
    %c17 = arith.constant 17 : index
    %c0_228 = arith.constant 0 : index
    %c0_229 = arith.constant 0 : index
    %784 = vector.load %arg5[%c17, %c0_228, %c0_229] : memref<18x8x128xf32, #tpu.memory_space<vmem>>, vector<1x8x128xf32>
    %785 = vector.shape_cast %784 : vector<1x8x128xf32> to vector<8x128xf32>
    %786 = vector.shape_cast %723 : vector<8x128xf32> to vector<1x8x128xf32>
    tpu.vector_store %arg5[%c17, %c0_228, %c0_229], %786 {strides = array<i32>} : memref<18x8x128xf32, #tpu.memory_space<vmem>>, vector<1x8x128xf32>,
    return
  }
  func.func @transform_0(%arg0: i32) -> (i32, i32, i32) {
    %c0_i32 = arith.constant 0 : i32
    %c0_i32_0 = arith.constant 0 : i32
    %c0_i32_1 = arith.constant 0 : i32
    %c0_i32_2 = arith.constant 0 : i32
    return %c0_i32, %c0_i32_0, %c0_i32_1 : i32, i32, i32
  }
  func.func @transform_1(%arg0: i32) -> (i32, i32, i32) {
    %c0_i32 = arith.constant 0 : i32
    %c0_i32_0 = arith.constant 0 : i32
    %c0_i32_1 = arith.constant 0 : i32
    %c0_i32_2 = arith.constant 0 : i32
    return %c0_i32, %c0_i32_0, %c0_i32_1 : i32, i32, i32
  }
  func.func @transform_2(%arg0: i32) -> (i32, i32, i32) {
    %c0_i32 = arith.constant 0 : i32
    %c0_i32_0 = arith.constant 0 : i32
    %c0_i32_1 = arith.constant 0 : i32
    return %c0_i32, %arg0, %c0_i32_0 : i32, i32, i32
  }
  func.func @transform_3(%arg0: i32) -> (i32, i32, i32) {
    %c0_i32 = arith.constant 0 : i32
    %c0_i32_0 = arith.constant 0 : i32
    %c0_i32_1 = arith.constant 0 : i32
    return %c0_i32, %arg0, %c0_i32_0 : i32, i32, i32
  }
  func.func @transform_4(%arg0: i32) -> (i32, i32, i32) {
    %c0_i32 = arith.constant 0 : i32
    %c0_i32_0 = arith.constant 0 : i32
    %c0_i32_1 = arith.constant 0 : i32
    return %c0_i32, %arg0, %c0_i32_0 : i32, i32, i32
  }
}

</mosaic_0001>

<llo_original>
// kernel: tpu_custom_call.1
$region0: #{tpu_custom_call.1}
  #allocation0 [shape = 'u32[]', space=smem, size = 0x4, offset = 0x4, fixed_abs, tag = 'smem constant byte address 0x4 - core index']
  #allocation1 [shape = 'u32[144,128]{1,0:T(1,128)}', space=vmem, size = 0x12000, scoped, tag = 'internal scratch']
  %s0 = inlined_call_operand.hbm [shape: f32[64,8,128], index: 0, kind: input, shape index: {}]
  %s1 = inlined_call_operand.hbm [shape: s32[63,8,128], index: 1, kind: input, shape index: {}]
  %s2 = inlined_call_operand.hbm [shape: f32[3,8,128], index: 2, kind: input, shape index: {}]
  %s3 = inlined_call_operand.hbm [shape: f32[3,8,128], index: 3, kind: input, shape index: {}]
  %s4 = inlined_call_operand.hbm [shape: f32[18,8,128], index: 4, kind: output, shape index: {}]
  %s5 = sld [smem:[#allocation0]]
  $region42: #{tpu_custom_call.1} parent=0
    _
  %s7 = ssub.s32 1, %s5
  %s8 = scalar_select 0, %s7, %s5
  $region1: #{tpu_custom_call.1} parent=0
    #allocation2 [shape = 'u8[262144]{0}', space=vmem, size = 0x40000, scoped, tag = 'input window, operand 0, single buffered']
    #allocation3 [shape = 's32[1]{0}', space=sflag, size = 0x4, scoped, tag = 'scoped memory for tpu_custom_call.1']
    #allocation4 [shape = 's32[1]{0}', space=sflag, size = 0x4, scoped, tag = 'scoped memory for tpu_custom_call.1']
    #allocation5 [shape = 'u8[258048]{0}', space=vmem, size = 0x3f000, scoped, tag = 'input window, operand 1, single buffered']
    #allocation6 [shape = 's32[1]{0}', space=sflag, size = 0x4, scoped, tag = 'scoped memory for tpu_custom_call.1']
    #allocation7 [shape = 'u8[12288]{0}', space=vmem, size = 0x3000, scoped, tag = 'input window, operand 2, single buffered']
    #allocation8 [shape = 'u8[12288]{0}', space=vmem, size = 0x3000, scoped, tag = 'input window, operand 3, single buffered']
    #allocation9 [shape = 's32[1]{0}', space=sflag, size = 0x4, scoped, tag = 'scoped memory for tpu_custom_call.1']
    #allocation10 [shape = 'u8[73728]{0}', space=vmem, size = 0x12000, scoped, tag = 'output window, operand 0, single buffered']
    %9 = vsyncpa [#allocation3], 0
    %10 = vsyncpa [#allocation6], 0
    %11 = vsyncpa [#allocation9], 0
    %12 = vsyncpa [#allocation4], 0
    // Predicated region
    $region2: #{tpu_custom_call.1} parent=1 // pred_check
      _
    $region3: #{tpu_custom_call.1} parent=1 // pred_check_branch
      %14 = sbr.rel (0) target = $region5
    $region4: #{tpu_custom_call.1} parent=1 // pred_region
      %s16 = ssub.s32 8192, 8192
      %17 = vsyncadd [#allocation3], %s16
      %s18 = sshll.u32 [#allocation2], 4
      %s19 = int_to_ptr.vmem [resolvable:$true] %s18
      %24 = dma.hbm_to_vmem [thread:$0]  %s0, 8192, %s19, [#allocation3], 128, 128, 8
    $region5: #{tpu_custom_call.1} parent=1 // pred_fallthru
      _
    // Predicated region
    $region6: #{tpu_custom_call.1} parent=1 // pred_check
      _
    $region7: #{tpu_custom_call.1} parent=1 // pred_check_branch
      %26 = sbr.rel (0) target = $region9
    $region8: #{tpu_custom_call.1} parent=1 // pred_region
      %s28 = ssub.s32 8064, 8064
      %29 = vsyncadd [#allocation6], %s28
      %s30 = sshll.u32 [#allocation5], 4
      %s31 = int_to_ptr.vmem [resolvable:$true] %s30
      %36 = dma.hbm_to_vmem [thread:$0]  %s1, 8064, %s31, [#allocation6], 128, 128, 8
    $region9: #{tpu_custom_call.1} parent=1 // pred_fallthru
      _
    // Predicated region
    $region10: #{tpu_custom_call.1} parent=1 // pred_check
      _
    $region11: #{tpu_custom_call.1} parent=1 // pred_check_branch
      %38 = sbr.rel (0) target = $region13
    $region12: #{tpu_custom_call.1} parent=1 // pred_region
      %s40 = ssub.s32 384, 384
      %41 = vsyncadd [#allocation6], %s40
      %s42 = sshll.u32 [#allocation7], 4
      %s43 = int_to_ptr.vmem [resolvable:$true] %s42
      %48 = dma.hbm_to_vmem [thread:$0]  %s2, 384, %s43, [#allocation6], 128, 128, 8
    $region13: #{tpu_custom_call.1} parent=1 // pred_fallthru
      _
    // Predicated region
    $region14: #{tpu_custom_call.1} parent=1 // pred_check
      _
    $region15: #{tpu_custom_call.1} parent=1 // pred_check_branch
      %50 = sbr.rel (0) target = $region17
    $region16: #{tpu_custom_call.1} parent=1 // pred_region
      %s52 = ssub.s32 384, 384
      %53 = vsyncadd [#allocation9], %s52
      %s54 = sshll.u32 [#allocation8], 4
      %s55 = int_to_ptr.vmem [resolvable:$true] %s54
      %60 = dma.hbm_to_vmem [thread:$0]  %s3, 384, %s55, [#allocation9], 128, 128, 8
    $region17: #{tpu_custom_call.1} parent=1 // pred_fallthru
      _
    // Predicated region
    $region18: #{tpu_custom_call.1} parent=1 // pred_check
      _
    $region19: #{tpu_custom_call.1} parent=1 // pred_check_branch
      %62 = sbr.rel (0) target = $region21
    $region20: #{tpu_custom_call.1} parent=1 // pred_region
      %63 = dma.done [#allocation3], 8192
    $region21: #{tpu_custom_call.1} parent=1 // pred_fallthru
      _
    // Predicated region
    $region22: #{tpu_custom_call.1} parent=1 // pred_check
      _
    $region23: #{tpu_custom_call.1} parent=1 // pred_check_branch
      %65 = sbr.rel (0) target = $region25
    $region24: #{tpu_custom_call.1} parent=1 // pred_region
      %66 = dma.done [#allocation6], 8064
    $region25: #{tpu_custom_call.1} parent=1 // pred_fallthru
      _
    // Predicated region
    $region26: #{tpu_custom_call.1} parent=1 // pred_check
      _
    $region27: #{tpu_custom_call.1} parent=1 // pred_check_branch
      %68 = sbr.rel (0) target = $region29
    $region28: #{tpu_custom_call.1} parent=1 // pred_region
      %69 = dma.done [#allocation6], 384
    $region29: #{tpu_custom_call.1} parent=1 // pred_fallthru
      _
    // Predicated region
    $region30: #{tpu_custom_call.1} parent=1 // pred_check
      _
    $region31: #{tpu_custom_call.1} parent=1 // pred_check_branch
      %71 = sbr.rel (0) target = $region33
    $region32: #{tpu_custom_call.1} parent=1 // pred_region
      %72 = dma.done [#allocation9], 384
    $region33: #{tpu_custom_call.1} parent=1 // pred_fallthru
      _
    %v73 = vld [vmem:[#allocation2] sm:$0xff]
    %v74 = vld [vmem:[#allocation2 + $0x8] sm:$0xff]
    %v75 = vld [vmem:[#allocation2 + $0x10] sm:$0xff]
    %v76 = vld [vmem:[#allocation2 + $0x18] sm:$0xff]
    %v77 = vld [vmem:[#allocation2 + $0x20] sm:$0xff]
    %v78 = vld [vmem:[#allocation2 + $0x28] sm:$0xff]
    %v79 = vld [vmem:[#allocation2 + $0x30] sm:$0xff]
    %v80 = vld [vmem:[#allocation2 + $0x38] sm:$0xff]
    %v81 = vld [vmem:[#allocation2 + $0x40] sm:$0xff]
    %v82 = vld [vmem:[#allocation2 + $0x48] sm:$0xff]
    %v83 = vld [vmem:[#allocation2 + $0x50] sm:$0xff]
    %v84 = vld [vmem:[#allocation2 + $0x58] sm:$0xff]
    %v85 = vld [vmem:[#allocation2 + $0x60] sm:$0xff]
    %v86 = vld [vmem:[#allocation2 + $0x68] sm:$0xff]
    %v87 = vld [vmem:[#allocation2 + $0x70] sm:$0xff]
    %v88 = vld [vmem:[#allocation2 + $0x78] sm:$0xff]
    %v89 = vld [vmem:[#allocation2 + $0x80] sm:$0xff]
    %v90 = vld [vmem:[#allocation2 + $0x88] sm:$0xff]
    %v91 = vld [vmem:[#allocation2 + $0x90] sm:$0xff]
    %v92 = vld [vmem:[#allocation2 + $0x98] sm:$0xff]
    %v93 = vld [vmem:[#allocation2 + $0xa0] sm:$0xff]
    %v94 = vld [vmem:[#allocation2 + $0xa8] sm:$0xff]
    %v95 = vld [vmem:[#allocation2 + $0xb0] sm:$0xff]
    %v96 = vld [vmem:[#allocation2 + $0xb8] sm:$0xff]
    %v97 = vld [vmem:[#allocation2 + $0xc0] sm:$0xff]
    %v98 = vld [vmem:[#allocation2 + $0xc8] sm:$0xff]
    %v99 = vld [vmem:[#allocation2 + $0xd0] sm:$0xff]
    %v100 = vld [vmem:[#allocation2 + $0xd8] sm:$0xff]
    %v101 = vld [vmem:[#allocation2 + $0xe0] sm:$0xff]
    %v102 = vld [vmem:[#allocation2 + $0xe8] sm:$0xff]
    %v103 = vld [vmem:[#allocation2 + $0xf0] sm:$0xff]
    %v104 = vld [vmem:[#allocation2 + $0xf8] sm:$0xff]
    %v105 = vld [vmem:[#allocation2 + $0x100] sm:$0xff]
    %v106 = vld [vmem:[#allocation2 + $0x108] sm:$0xff]
    %v107 = vld [vmem:[#allocation2 + $0x110] sm:$0xff]
    %v108 = vld [vmem:[#allocation2 + $0x118] sm:$0xff]
    %v109 = vld [vmem:[#allocation2 + $0x120] sm:$0xff]
    %v110 = vld [vmem:[#allocation2 + $0x128] sm:$0xff]
    %v111 = vld [vmem:[#allocation2 + $0x130] sm:$0xff]
    %v112 = vld [vmem:[#allocation2 + $0x138] sm:$0xff]
    %v113 = vld [vmem:[#allocation2 + $0x140] sm:$0xff]
    %v114 = vld [vmem:[#allocation2 + $0x148] sm:$0xff]
    %v115 = vld [vmem:[#allocation2 + $0x150] sm:$0xff]
    %v116 = vld [vmem:[#allocation2 + $0x158] sm:$0xff]
    %v117 = vld [vmem:[#allocation2 + $0x160] sm:$0xff]
    %v118 = vld [vmem:[#allocation2 + $0x168] sm:$0xff]
    %v119 = vld [vmem:[#allocation2 + $0x170] sm:$0xff]
    %v120 = vld [vmem:[#allocation2 + $0x178] sm:$0xff]
    %v121 = vld [vmem:[#allocation2 + $0x180] sm:$0xff]
    %v122 = vld [vmem:[#allocation2 + $0x188] sm:$0xff]
    %v123 = vld [vmem:[#allocation2 + $0x190] sm:$0xff]
    %v124 = vld [vmem:[#allocation2 + $0x198] sm:$0xff]
    %v125 = vld [vmem:[#allocation2 + $0x1a0] sm:$0xff]
    %v126 = vld [vmem:[#allocation2 + $0x1a8] sm:$0xff]
    %v127 = vld [vmem:[#allocation2 + $0x1b0] sm:$0xff]
    %v128 = vld [vmem:[#allocation2 + $0x1b8] sm:$0xff]
    %v129 = vld [vmem:[#allocation2 + $0x1c0] sm:$0xff]
    %v130 = vld [vmem:[#allocation2 + $0x1c8] sm:$0xff]
    %v131 = vld [vmem:[#allocation2 + $0x1d0] sm:$0xff]
    %v132 = vld [vmem:[#allocation2 + $0x1d8] sm:$0xff]
    %v133 = vld [vmem:[#allocation2 + $0x1e0] sm:$0xff]
    %v134 = vld [vmem:[#allocation2 + $0x1e8] sm:$0xff]
    %v135 = vld [vmem:[#allocation2 + $0x1f0] sm:$0xff]
    %v136 = vld [vmem:[#allocation2 + $0x1f8] sm:$0xff]
    %v137 = vld [vmem:[#allocation5] sm:$0xff]
    %v138 = vld [vmem:[#allocation5 + $0x8] sm:$0xff]
    %v139 = vld [vmem:[#allocation5 + $0x10] sm:$0xff]
    %v140 = vld [vmem:[#allocation5 + $0x18] sm:$0xff]
    %v141 = vld [vmem:[#allocation5 + $0x20] sm:$0xff]
    %v142 = vld [vmem:[#allocation5 + $0x28] sm:$0xff]
    %v143 = vld [vmem:[#allocation5 + $0x30] sm:$0xff]
    %v144 = vld [vmem:[#allocation5 + $0x38] sm:$0xff]
    %v145 = vld [vmem:[#allocation5 + $0x40] sm:$0xff]
    %v146 = vld [vmem:[#allocation5 + $0x48] sm:$0xff]
    %v147 = vld [vmem:[#allocation5 + $0x50] sm:$0xff]
    %v148 = vld [vmem:[#allocation5 + $0x58] sm:$0xff]
    %v149 = vld [vmem:[#allocation5 + $0x60] sm:$0xff]
    %v150 = vld [vmem:[#allocation5 + $0x68] sm:$0xff]
    %v151 = vld [vmem:[#allocation5 + $0x70] sm:$0xff]
    %v152 = vld [vmem:[#allocation5 + $0x78] sm:$0xff]
    %v153 = vld [vmem:[#allocation5 + $0x80] sm:$0xff]
    %v154 = vld [vmem:[#allocation5 + $0x88] sm:$0xff]
    %v155 = vld [vmem:[#allocation5 + $0x90] sm:$0xff]
    %v156 = vld [vmem:[#allocation5 + $0x98] sm:$0xff]
    %v157 = vld [vmem:[#allocation5 + $0xa0] sm:$0xff]
    %v158 = vld [vmem:[#allocation5 + $0xa8] sm:$0xff]
    %v159 = vld [vmem:[#allocation5 + $0xb0] sm:$0xff]
    %v160 = vld [vmem:[#allocation5 + $0xb8] sm:$0xff]
    %v161 = vld [vmem:[#allocation5 + $0xc0] sm:$0xff]
    %v162 = vld [vmem:[#allocation5 + $0xc8] sm:$0xff]
    %v163 = vld [vmem:[#allocation5 + $0xd0] sm:$0xff]
    %v164 = vld [vmem:[#allocation5 + $0xd8] sm:$0xff]
    %v165 = vld [vmem:[#allocation5 + $0xe0] sm:$0xff]
    %v166 = vld [vmem:[#allocation5 + $0xe8] sm:$0xff]
    %v167 = vld [vmem:[#allocation5 + $0xf0] sm:$0xff]
    %v168 = vld [vmem:[#allocation5 + $0xf8] sm:$0xff]
    %v169 = vld [vmem:[#allocation5 + $0x100] sm:$0xff]
    %v170 = vld [vmem:[#allocation5 + $0x108] sm:$0xff]
    %v171 = vld [vmem:[#allocation5 + $0x110] sm:$0xff]
    %v172 = vld [vmem:[#allocation5 + $0x118] sm:$0xff]
    %v173 = vld [vmem:[#allocation5 + $0x120] sm:$0xff]
    %v174 = vld [vmem:[#allocation5 + $0x128] sm:$0xff]
    %v175 = vld [vmem:[#allocation5 + $0x130] sm:$0xff]
    %v176 = vld [vmem:[#allocation5 + $0x138] sm:$0xff]
    %v177 = vld [vmem:[#allocation5 + $0x140] sm:$0xff]
    %v178 = vld [vmem:[#allocation5 + $0x148] sm:$0xff]
    %v179 = vld [vmem:[#allocation5 + $0x150] sm:$0xff]
    %v180 = vld [vmem:[#allocation5 + $0x158] sm:$0xff]
    %v181 = vld [vmem:[#allocation5 + $0x160] sm:$0xff]
    %v182 = vld [vmem:[#allocation5 + $0x168] sm:$0xff]
    %v183 = vld [vmem:[#allocation5 + $0x170] sm:$0xff]
    %v184 = vld [vmem:[#allocation5 + $0x178] sm:$0xff]
    %v185 = vld [vmem:[#allocation5 + $0x180] sm:$0xff]
    %v186 = vld [vmem:[#allocation5 + $0x188] sm:$0xff]
    %v187 = vld [vmem:[#allocation5 + $0x190] sm:$0xff]
    %v188 = vld [vmem:[#allocation5 + $0x198] sm:$0xff]
    %v189 = vld [vmem:[#allocation5 + $0x1a0] sm:$0xff]
    %v190 = vld [vmem:[#allocation5 + $0x1a8] sm:$0xff]
    %v191 = vld [vmem:[#allocation5 + $0x1b0] sm:$0xff]
    %v192 = vld [vmem:[#allocation5 + $0x1b8] sm:$0xff]
    %v193 = vld [vmem:[#allocation5 + $0x1c0] sm:$0xff]
    %v194 = vld [vmem:[#allocation5 + $0x1c8] sm:$0xff]
    %v195 = vld [vmem:[#allocation5 + $0x1d0] sm:$0xff]
    %v196 = vld [vmem:[#allocation5 + $0x1d8] sm:$0xff]
    %v197 = vld [vmem:[#allocation5 + $0x1e0] sm:$0xff]
    %v198 = vld [vmem:[#allocation5 + $0x1e8] sm:$0xff]
    %v199 = vld [vmem:[#allocation5 + $0x1f0] sm:$0xff]
    %v200 = vld [vmem:[#allocation7] sm:$0xff]
    %s201 = scalar_lea.vmem [#allocation7], 8
    %v202 = vld [vmem:[%s201] sm:$0xff]
    %s203 = scalar_lea.vmem [#allocation7], 16
    %v204 = vld [vmem:[%s203] sm:$0xff]
    %v205 = vld [vmem:[#allocation8] sm:$0xff]
    %s206 = scalar_lea.vmem [#allocation8], 8
    %v207 = vld [vmem:[%s206] sm:$0xff]
    %s208 = scalar_lea.vmem [#allocation8], 16
    %v209 = vld [vmem:[%s208] sm:$0xff]
    %v210 = vmul.f32 %v205, %v205
    %v211 = vmul.f32 %v207, %v207
    %v212 = vadd.f32 %v210, %v211
    %v213 = vmul.f32 %v209, %v209
    %v214 = vadd.f32 %v212, %v213
    %v215 = vmul.f32 %v200, %v205
    %v216 = vmul.f32 %v202, %v207
    %v217 = vadd.f32 %v215, %v216
    %v218 = vmul.f32 %v204, %v209
    %v219 = vadd.f32 %v217, %v218
    %v220 = vmul.f32 %v219, 2.0
    %v221 = vmul.f32 %v200, %v200
    %v222 = vmul.f32 %v202, %v202
    %v223 = vadd.f32 %v221, %v222
    %v224 = vmul.f32 %v204, %v204
    %v225 = vadd.f32 %v223, %v224
    %v226 = vsub.f32 %v225, 0.25
    %v227 = vsub.f32 0.0, %v220
    %v228 = vmul.f32 %v227, 0.5
    %v229 = vrcp.pop %v214
    %v230 = vmul.f32 %v228, %v229
    %v231 = vsub.f32 %v230, 1.0
    %v232 = vmax.f32 %v231, 0.0
    %v233 = vadd.f32 %v230, 1.0
    %v234 = vsub.f32 %v233, %v232
    %v235 = vmul.f32 %v234, %v73
    %v236 = vmul.f32 %v234, %v74
    %v237 = vmul.f32 %v234, %v75
    %v238 = vmul.f32 %v234, %v76
    %v239 = vmul.f32 %v234, %v77
    %v240 = vmul.f32 %v234, %v78
    %v241 = vmul.f32 %v234, %v79
    %v242 = vmul.f32 %v234, %v80
    %v243 = vmul.f32 %v234, %v81
    %v244 = vmul.f32 %v234, %v82
    %v245 = vmul.f32 %v234, %v83
    %v246 = vmul.f32 %v234, %v84
    %v247 = vmul.f32 %v234, %v85
    %v248 = vmul.f32 %v234, %v86
    %v249 = vmul.f32 %v234, %v87
    %v250 = vmul.f32 %v234, %v88
    %v251 = vmul.f32 %v234, %v89
    %v252 = vmul.f32 %v234, %v90
    %v253 = vmul.f32 %v234, %v91
    %v254 = vmul.f32 %v234, %v92
    %v255 = vmul.f32 %v234, %v93
    %v256 = vmul.f32 %v234, %v94
    %v257 = vmul.f32 %v234, %v95
    %v258 = vmul.f32 %v234, %v96
    %v259 = vmul.f32 %v234, %v97
    %v260 = vmul.f32 %v234, %v98
    %v261 = vmul.f32 %v234, %v99
    %v262 = vmul.f32 %v234, %v100
    %v263 = vmul.f32 %v234, %v101
    %v264 = vmul.f32 %v234, %v102
    %v265 = vmul.f32 %v234, %v103
    %v266 = vmul.f32 %v234, %v104
    %v267 = vmul.f32 %v234, %v105
    %v268 = vmul.f32 %v234, %v106
    %v269 = vmul.f32 %v234, %v107
    %v270 = vmul.f32 %v234, %v108
    %v271 = vmul.f32 %v234, %v109
    %v272 = vmul.f32 %v234, %v110
    %v273 = vmul.f32 %v234, %v111
    %v274 = vmul.f32 %v234, %v112
    %v275 = vmul.f32 %v234, %v113
    %v276 = vmul.f32 %v234, %v114
    %v277 = vmul.f32 %v234, %v115
    %v278 = vmul.f32 %v234, %v116
    %v279 = vmul.f32 %v234, %v117
    %v280 = vmul.f32 %v234, %v118
    %v281 = vmul.f32 %v234, %v119
    %v282 = vmul.f32 %v234, %v120
    %v283 = vmul.f32 %v234, %v121
    %v284 = vmul.f32 %v234, %v122
    %v285 = vmul.f32 %v234, %v123
    %v286 = vmul.f32 %v234, %v124
    %v287 = vmul.f32 %v234, %v125
    %v288 = vmul.f32 %v234, %v126
    %v289 = vmul.f32 %v234, %v127
    %v290 = vmul.f32 %v234, %v128
    %v291 = vmul.f32 %v234, %v129
    %v292 = vmul.f32 %v234, %v130
    %v293 = vmul.f32 %v234, %v131
    %v294 = vmul.f32 %v234, %v132
    %v295 = vmul.f32 %v234, %v133
    %v296 = vmul.f32 %v234, %v134
    %v297 = vmul.f32 %v234, %v135
    %v298 = vmul.f32 %v234, %v136
    %v299 = vadd.f32 %v232, %v235
    %v300 = vadd.f32 %v232, %v236
    %v301 = vadd.f32 %v232, %v237
    %v302 = vadd.f32 %v232, %v238
    %v303 = vadd.f32 %v232, %v239
    %v304 = vadd.f32 %v232, %v240
    %v305 = vadd.f32 %v232, %v241
    %v306 = vadd.f32 %v232, %v242
    %v307 = vadd.f32 %v232, %v243
    %v308 = vadd.f32 %v232, %v244
    %v309 = vadd.f32 %v232, %v245
    %v310 = vadd.f32 %v232, %v246
    %v311 = vadd.f32 %v232, %v247
    %v312 = vadd.f32 %v232, %v248
    %v313 = vadd.f32 %v232, %v249
    %v314 = vadd.f32 %v232, %v250
    %v315 = vadd.f32 %v232, %v251
    %v316 = vadd.f32 %v232, %v252
    %v317 = vadd.f32 %v232, %v253
    %v318 = vadd.f32 %v232, %v254
    %v319 = vadd.f32 %v232, %v255
    %v320 = vadd.f32 %v232, %v256
    %v321 = vadd.f32 %v232, %v257
    %v322 = vadd.f32 %v232, %v258
    %v323 = vadd.f32 %v232, %v259
    %v324 = vadd.f32 %v232, %v260
    %v325 = vadd.f32 %v232, %v261
    %v326 = vadd.f32 %v232, %v262
    %v327 = vadd.f32 %v232, %v263
    %v328 = vadd.f32 %v232, %v264
    %v329 = vadd.f32 %v232, %v265
    %v330 = vadd.f32 %v232, %v266
    %v331 = vadd.f32 %v232, %v267
    %v332 = vadd.f32 %v232, %v268
    %v333 = vadd.f32 %v232, %v269
    %v334 = vadd.f32 %v232, %v270
    %v335 = vadd.f32 %v232, %v271
    %v336 = vadd.f32 %v232, %v272
    %v337 = vadd.f32 %v232, %v273
    %v338 = vadd.f32 %v232, %v274
    %v339 = vadd.f32 %v232, %v275
    %v340 = vadd.f32 %v232, %v276
    %v341 = vadd.f32 %v232, %v277
    %v342 = vadd.f32 %v232, %v278
    %v343 = vadd.f32 %v232, %v279
    %v344 = vadd.f32 %v232, %v280
    %v345 = vadd.f32 %v232, %v281
    %v346 = vadd.f32 %v232, %v282
    %v347 = vadd.f32 %v232, %v283
    %v348 = vadd.f32 %v232, %v284
    %v349 = vadd.f32 %v232, %v285
    %v350 = vadd.f32 %v232, %v286
    %v351 = vadd.f32 %v232, %v287
    %v352 = vadd.f32 %v232, %v288
    %v353 = vadd.f32 %v232, %v289
    %v354 = vadd.f32 %v232, %v290
    %v355 = vadd.f32 %v232, %v291
    %v356 = vadd.f32 %v232, %v292
    %v357 = vadd.f32 %v232, %v293
    %v358 = vadd.f32 %v232, %v294
    %v359 = vadd.f32 %v232, %v295
    %v360 = vadd.f32 %v232, %v296
    %v361 = vadd.f32 %v232, %v297
    %v362 = vadd.f32 %v232, %v298
    %v363 = vmul.f32 %v214, %v299
    %v364 = vmul.f32 %v214, %v300
    %v365 = vmul.f32 %v214, %v301
    %v366 = vmul.f32 %v214, %v302
    %v367 = vmul.f32 %v214, %v303
    %v368 = vmul.f32 %v214, %v304
    %v369 = vmul.f32 %v214, %v305
    %v370 = vmul.f32 %v214, %v306
    %v371 = vmul.f32 %v214, %v307
    %v372 = vmul.f32 %v214, %v308
    %v373 = vmul.f32 %v214, %v309
    %v374 = vmul.f32 %v214, %v310
    %v375 = vmul.f32 %v214, %v311
    %v376 = vmul.f32 %v214, %v312
    %v377 = vmul.f32 %v214, %v313
    %v378 = vmul.f32 %v214, %v314
    %v379 = vmul.f32 %v214, %v315
    %v380 = vmul.f32 %v214, %v316
    %v381 = vmul.f32 %v214, %v317
    %v382 = vmul.f32 %v214, %v318
    %v383 = vmul.f32 %v214, %v319
    %v384 = vmul.f32 %v214, %v320
    %v385 = vmul.f32 %v214, %v321
    %v386 = vmul.f32 %v214, %v322
    %v387 = vmul.f32 %v214, %v323
    %v388 = vmul.f32 %v214, %v324
    %v389 = vmul.f32 %v214, %v325
    %v390 = vmul.f32 %v214, %v326
    %v391 = vmul.f32 %v214, %v327
    %v392 = vmul.f32 %v214, %v328
    %v393 = vmul.f32 %v214, %v329
    %v394 = vmul.f32 %v214, %v330
    %v395 = vmul.f32 %v214, %v331
    %v396 = vmul.f32 %v214, %v332
    %v397 = vmul.f32 %v214, %v333
    %v398 = vmul.f32 %v214, %v334
    %v399 = vmul.f32 %v214, %v335
    %v400 = vmul.f32 %v214, %v336
    %v401 = vmul.f32 %v214, %v337
    %v402 = vmul.f32 %v214, %v338
    %v403 = vmul.f32 %v214, %v339
    %v404 = vmul.f32 %v214, %v340
    %v405 = vmul.f32 %v214, %v341
    %v406 = vmul.f32 %v214, %v342
    %v407 = vmul.f32 %v214, %v343
    %v408 = vmul.f32 %v214, %v344
    %v409 = vmul.f32 %v214, %v345
    %v410 = vmul.f32 %v214, %v346
    %v411 = vmul.f32 %v214, %v347
    %v412 = vmul.f32 %v214, %v348
    %v413 = vmul.f32 %v214, %v349
    %v414 = vmul.f32 %v214, %v350
    %v415 = vmul.f32 %v214, %v351
    %v416 = vmul.f32 %v214, %v352
    %v417 = vmul.f32 %v214, %v353
    %v418 = vmul.f32 %v214, %v354
    %v419 = vmul.f32 %v214, %v355
    %v420 = vmul.f32 %v214, %v356
    %v421 = vmul.f32 %v214, %v357
    %v422 = vmul.f32 %v214, %v358
    %v423 = vmul.f32 %v214, %v359
    %v424 = vmul.f32 %v214, %v360
    %v425 = vmul.f32 %v214, %v361
    %v426 = vmul.f32 %v214, %v362
    %v427 = vadd.f32 %v363, %v220
    %v428 = vadd.f32 %v364, %v220
    %v429 = vadd.f32 %v365, %v220
    %v430 = vadd.f32 %v366, %v220
    %v431 = vadd.f32 %v367, %v220
    %v432 = vadd.f32 %v368, %v220
    %v433 = vadd.f32 %v369, %v220
    %v434 = vadd.f32 %v370, %v220
    %v435 = vadd.f32 %v371, %v220
    %v436 = vadd.f32 %v372, %v220
    %v437 = vadd.f32 %v373, %v220
    %v438 = vadd.f32 %v374, %v220
    %v439 = vadd.f32 %v375, %v220
    %v440 = vadd.f32 %v376, %v220
    %v441 = vadd.f32 %v377, %v220
    %v442 = vadd.f32 %v378, %v220
    %v443 = vadd.f32 %v379, %v220
    %v444 = vadd.f32 %v380, %v220
    %v445 = vadd.f32 %v381, %v220
    %v446 = vadd.f32 %v382, %v220
    %v447 = vadd.f32 %v383, %v220
    %v448 = vadd.f32 %v384, %v220
    %v449 = vadd.f32 %v385, %v220
    %v450 = vadd.f32 %v386, %v220
    %v451 = vadd.f32 %v387, %v220
    %v452 = vadd.f32 %v388, %v220
    %v453 = vadd.f32 %v389, %v220
    %v454 = vadd.f32 %v390, %v220
    %v455 = vadd.f32 %v391, %v220
    %v456 = vadd.f32 %v392, %v220
    %v457 = vadd.f32 %v393, %v220
    %v458 = vadd.f32 %v394, %v220
    %v459 = vadd.f32 %v395, %v220
    %v460 = vadd.f32 %v396, %v220
    %v461 = vadd.f32 %v397, %v220
    %v462 = vadd.f32 %v398, %v220
    %v463 = vadd.f32 %v399, %v220
    %v464 = vadd.f32 %v400, %v220
    %v465 = vadd.f32 %v401, %v220
    %v466 = vadd.f32 %v402, %v220
    %v467 = vadd.f32 %v403, %v220
    %v468 = vadd.f32 %v404, %v220
    %v469 = vadd.f32 %v405, %v220
    %v470 = vadd.f32 %v406, %v220
    %v471 = vadd.f32 %v407, %v220
    %v472 = vadd.f32 %v408, %v220
    %v473 = vadd.f32 %v409, %v220
    %v474 = vadd.f32 %v410, %v220
    %v475 = vadd.f32 %v411, %v220
    %v476 = vadd.f32 %v412, %v220
    %v477 = vadd.f32 %v413, %v220
    %v478 = vadd.f32 %v414, %v220
    %v479 = vadd.f32 %v415, %v220
    %v480 = vadd.f32 %v416, %v220
    %v481 = vadd.f32 %v417, %v220
    %v482 = vadd.f32 %v418, %v220
    %v483 = vadd.f32 %v419, %v220
    %v484 = vadd.f32 %v420, %v220
    %v485 = vadd.f32 %v421, %v220
    %v486 = vadd.f32 %v422, %v220
    %v487 = vadd.f32 %v423, %v220
    %v488 = vadd.f32 %v424, %v220
    %v489 = vadd.f32 %v425, %v220
    %v490 = vadd.f32 %v426, %v220
    %v491 = vmul.f32 %v427, %v299
    %v492 = vmul.f32 %v428, %v300
    %v493 = vmul.f32 %v429, %v301
    %v494 = vmul.f32 %v430, %v302
    %v495 = vmul.f32 %v431, %v303
    %v496 = vmul.f32 %v432, %v304
    %v497 = vmul.f32 %v433, %v305
    %v498 = vmul.f32 %v434, %v306
    %v499 = vmul.f32 %v435, %v307
    %v500 = vmul.f32 %v436, %v308
    %v501 = vmul.f32 %v437, %v309
    %v502 = vmul.f32 %v438, %v310
    %v503 = vmul.f32 %v439, %v311
    %v504 = vmul.f32 %v440, %v312
    %v505 = vmul.f32 %v441, %v313
    %v506 = vmul.f32 %v442, %v314
    %v507 = vmul.f32 %v443, %v315
    %v508 = vmul.f32 %v444, %v316
    %v509 = vmul.f32 %v445, %v317
    %v510 = vmul.f32 %v446, %v318
    %v511 = vmul.f32 %v447, %v319
    %v512 = vmul.f32 %v448, %v320
    %v513 = vmul.f32 %v449, %v321
    %v514 = vmul.f32 %v450, %v322
    %v515 = vmul.f32 %v451, %v323
    %v516 = vmul.f32 %v452, %v324
    %v517 = vmul.f32 %v453, %v325
    %v518 = vmul.f32 %v454, %v326
    %v519 = vmul.f32 %v455, %v327
    %v520 = vmul.f32 %v456, %v328
    %v521 = vmul.f32 %v457, %v329
    %v522 = vmul.f32 %v458, %v330
    %v523 = vmul.f32 %v459, %v331
    %v524 = vmul.f32 %v460, %v332
    %v525 = vmul.f32 %v461, %v333
    %v526 = vmul.f32 %v462, %v334
    %v527 = vmul.f32 %v463, %v335
    %v528 = vmul.f32 %v464, %v336
    %v529 = vmul.f32 %v465, %v337
    %v530 = vmul.f32 %v466, %v338
    %v531 = vmul.f32 %v467, %v339
    %v532 = vmul.f32 %v468, %v340
    %v533 = vmul.f32 %v469, %v341
    %v534 = vmul.f32 %v470, %v342
    %v535 = vmul.f32 %v471, %v343
    %v536 = vmul.f32 %v472, %v344
    %v537 = vmul.f32 %v473, %v345
    %v538 = vmul.f32 %v474, %v346
    %v539 = vmul.f32 %v475, %v347
    %v540 = vmul.f32 %v476, %v348
    %v541 = vmul.f32 %v477, %v349
    %v542 = vmul.f32 %v478, %v350
    %v543 = vmul.f32 %v479, %v351
    %v544 = vmul.f32 %v480, %v352
    %v545 = vmul.f32 %v481, %v353
    %v546 = vmul.f32 %v482, %v354
    %v547 = vmul.f32 %v483, %v355
    %v548 = vmul.f32 %v484, %v356
    %v549 = vmul.f32 %v485, %v357
    %v550 = vmul.f32 %v486, %v358
    %v551 = vmul.f32 %v487, %v359
    %v552 = vmul.f32 %v488, %v360
    %v553 = vmul.f32 %v489, %v361
    %v554 = vmul.f32 %v490, %v362
    %v555 = vadd.f32 %v491, %v226
    %v556 = vadd.f32 %v492, %v226
    %v557 = vadd.f32 %v493, %v226
    %v558 = vadd.f32 %v494, %v226
    %v559 = vadd.f32 %v495, %v226
    %v560 = vadd.f32 %v496, %v226
    %v561 = vadd.f32 %v497, %v226
    %v562 = vadd.f32 %v498, %v226
    %v563 = vadd.f32 %v499, %v226
    %v564 = vadd.f32 %v500, %v226
    %v565 = vadd.f32 %v501, %v226
    %v566 = vadd.f32 %v502, %v226
    %v567 = vadd.f32 %v503, %v226
    %v568 = vadd.f32 %v504, %v226
    %v569 = vadd.f32 %v505, %v226
    %v570 = vadd.f32 %v506, %v226
    %v571 = vadd.f32 %v507, %v226
    %v572 = vadd.f32 %v508, %v226
    %v573 = vadd.f32 %v509, %v226
    %v574 = vadd.f32 %v510, %v226
    %v575 = vadd.f32 %v511, %v226
    %v576 = vadd.f32 %v512, %v226
    %v577 = vadd.f32 %v513, %v226
    %v578 = vadd.f32 %v514, %v226
    %v579 = vadd.f32 %v515, %v226
    %v580 = vadd.f32 %v516, %v226
    %v581 = vadd.f32 %v517, %v226
    %v582 = vadd.f32 %v518, %v226
    %v583 = vadd.f32 %v519, %v226
    %v584 = vadd.f32 %v520, %v226
    %v585 = vadd.f32 %v521, %v226
    %v586 = vadd.f32 %v522, %v226
    %v587 = vadd.f32 %v523, %v226
    %v588 = vadd.f32 %v524, %v226
    %v589 = vadd.f32 %v525, %v226
    %v590 = vadd.f32 %v526, %v226
    %v591 = vadd.f32 %v527, %v226
    %v592 = vadd.f32 %v528, %v226
    %v593 = vadd.f32 %v529, %v226
    %v594 = vadd.f32 %v530, %v226
    %v595 = vadd.f32 %v531, %v226
    %v596 = vadd.f32 %v532, %v226
    %v597 = vadd.f32 %v533, %v226
    %v598 = vadd.f32 %v534, %v226
    %v599 = vadd.f32 %v535, %v226
    %v600 = vadd.f32 %v536, %v226
    %v601 = vadd.f32 %v537, %v226
    %v602 = vadd.f32 %v538, %v226
    %v603 = vadd.f32 %v539, %v226
    %v604 = vadd.f32 %v540, %v226
    %v605 = vadd.f32 %v541, %v226
    %v606 = vadd.f32 %v542, %v226
    %v607 = vadd.f32 %v543, %v226
    %v608 = vadd.f32 %v544, %v226
    %v609 = vadd.f32 %v545, %v226
    %v610 = vadd.f32 %v546, %v226
    %v611 = vadd.f32 %v547, %v226
    %v612 = vadd.f32 %v548, %v226
    %v613 = vadd.f32 %v549, %v226
    %v614 = vadd.f32 %v550, %v226
    %v615 = vadd.f32 %v551, %v226
    %v616 = vadd.f32 %v552, %v226
    %v617 = vadd.f32 %v553, %v226
    %v618 = vadd.f32 %v554, %v226
    %v619 = vmul.f32 %v556, %v555
    %v620 = vmul.f32 %v557, %v556
    %v621 = vmul.f32 %v558, %v557
    %v622 = vmul.f32 %v559, %v558
    %v623 = vmul.f32 %v560, %v559
    %v624 = vmul.f32 %v561, %v560
    %v625 = vmul.f32 %v562, %v561
    %v626 = vmul.f32 %v563, %v562
    %v627 = vmul.f32 %v564, %v563
    %v628 = vmul.f32 %v565, %v564
    %v629 = vmul.f32 %v566, %v565
    %v630 = vmul.f32 %v567, %v566
    %v631 = vmul.f32 %v568, %v567
    %v632 = vmul.f32 %v569, %v568
    %v633 = vmul.f32 %v570, %v569
    %v634 = vmul.f32 %v571, %v570
    %v635 = vmul.f32 %v572, %v571
    %v636 = vmul.f32 %v573, %v572
    %v637 = vmul.f32 %v574, %v573
    %v638 = vmul.f32 %v575, %v574
    %v639 = vmul.f32 %v576, %v575
    %v640 = vmul.f32 %v577, %v576
    %v641 = vmul.f32 %v578, %v577
    %v642 = vmul.f32 %v579, %v578
    %v643 = vmul.f32 %v580, %v579
    %v644 = vmul.f32 %v581, %v580
    %v645 = vmul.f32 %v582, %v581
    %v646 = vmul.f32 %v583, %v582
    %v647 = vmul.f32 %v584, %v583
    %v648 = vmul.f32 %v585, %v584
    %v649 = vmul.f32 %v586, %v585
    %v650 = vmul.f32 %v587, %v586
    %v651 = vmul.f32 %v588, %v587
    %v652 = vmul.f32 %v589, %v588
    %v653 = vmul.f32 %v590, %v589
    %v654 = vmul.f32 %v591, %v590
    %v655 = vmul.f32 %v592, %v591
    %v656 = vmul.f32 %v593, %v592
    %v657 = vmul.f32 %v594, %v593
    %v658 = vmul.f32 %v595, %v594
    %v659 = vmul.f32 %v596, %v595
    %v660 = vmul.f32 %v597, %v596
    %v661 = vmul.f32 %v598, %v597
    %v662 = vmul.f32 %v599, %v598
    %v663 = vmul.f32 %v600, %v599
    %v664 = vmul.f32 %v601, %v600
    %v665 = vmul.f32 %v602, %v601
    %v666 = vmul.f32 %v603, %v602
    %v667 = vmul.f32 %v604, %v603
    %v668 = vmul.f32 %v605, %v604
    %v669 = vmul.f32 %v606, %v605
    %v670 = vmul.f32 %v607, %v606
    %v671 = vmul.f32 %v608, %v607
    %v672 = vmul.f32 %v609, %v608
    %v673 = vmul.f32 %v610, %v609
    %v674 = vmul.f32 %v611, %v610
    %v675 = vmul.f32 %v612, %v611
    %v676 = vmul.f32 %v613, %v612
    %v677 = vmul.f32 %v614, %v613
    %v678 = vmul.f32 %v615, %v614
    %v679 = vmul.f32 %v616, %v615
    %v680 = vmul.f32 %v617, %v616
    %v681 = vmul.f32 %v618, %v617
    %vm682 = vcmp.le.f32.partialorder %v619, 0.0
    %vm683 = vcmp.le.f32.partialorder %v620, 0.0
    %vm684 = vcmp.le.f32.partialorder %v621, 0.0
    %vm685 = vcmp.le.f32.partialorder %v622, 0.0
    %vm686 = vcmp.le.f32.partialorder %v623, 0.0
    %vm687 = vcmp.le.f32.partialorder %v624, 0.0
    %vm688 = vcmp.le.f32.partialorder %v625, 0.0
    %vm689 = vcmp.le.f32.partialorder %v626, 0.0
    %vm690 = vcmp.le.f32.partialorder %v627, 0.0
    %vm691 = vcmp.le.f32.partialorder %v628, 0.0
    %vm692 = vcmp.le.f32.partialorder %v629, 0.0
    %vm693 = vcmp.le.f32.partialorder %v630, 0.0
    %vm694 = vcmp.le.f32.partialorder %v631, 0.0
    %vm695 = vcmp.le.f32.partialorder %v632, 0.0
    %vm696 = vcmp.le.f32.partialorder %v633, 0.0
    %vm697 = vcmp.le.f32.partialorder %v634, 0.0
    %vm698 = vcmp.le.f32.partialorder %v635, 0.0
    %vm699 = vcmp.le.f32.partialorder %v636, 0.0
    %vm700 = vcmp.le.f32.partialorder %v637, 0.0
    %vm701 = vcmp.le.f32.partialorder %v638, 0.0
    %vm702 = vcmp.le.f32.partialorder %v639, 0.0
    %vm703 = vcmp.le.f32.partialorder %v640, 0.0
    %vm704 = vcmp.le.f32.partialorder %v641, 0.0
    %vm705 = vcmp.le.f32.partialorder %v642, 0.0
    %vm706 = vcmp.le.f32.partialorder %v643, 0.0
    %vm707 = vcmp.le.f32.partialorder %v644, 0.0
    %vm708 = vcmp.le.f32.partialorder %v645, 0.0
    %vm709 = vcmp.le.f32.partialorder %v646, 0.0
    %vm710 = vcmp.le.f32.partialorder %v647, 0.0
    %vm711 = vcmp.le.f32.partialorder %v648, 0.0
    %vm712 = vcmp.le.f32.partialorder %v649, 0.0
    %vm713 = vcmp.le.f32.partialorder %v650, 0.0
    %vm714 = vcmp.le.f32.partialorder %v651, 0.0
    %vm715 = vcmp.le.f32.partialorder %v652, 0.0
    %vm716 = vcmp.le.f32.partialorder %v653, 0.0
    %vm717 = vcmp.le.f32.partialorder %v654, 0.0
    %vm718 = vcmp.le.f32.partialorder %v655, 0.0
    %vm719 = vcmp.le.f32.partialorder %v656, 0.0
    %vm720 = vcmp.le.f32.partialorder %v657, 0.0
    %vm721 = vcmp.le.f32.partialorder %v658, 0.0
    %vm722 = vcmp.le.f32.partialorder %v659, 0.0
    %vm723 = vcmp.le.f32.partialorder %v660, 0.0
    %vm724 = vcmp.le.f32.partialorder %v661, 0.0
    %vm725 = vcmp.le.f32.partialorder %v662, 0.0
    %vm726 = vcmp.le.f32.partialorder %v663, 0.0
    %vm727 = vcmp.le.f32.partialorder %v664, 0.0
    %vm728 = vcmp.le.f32.partialorder %v665, 0.0
    %vm729 = vcmp.le.f32.partialorder %v666, 0.0
    %vm730 = vcmp.le.f32.partialorder %v667, 0.0
    %vm731 = vcmp.le.f32.partialorder %v668, 0.0
    %vm732 = vcmp.le.f32.partialorder %v669, 0.0
    %vm733 = vcmp.le.f32.partialorder %v670, 0.0
    %vm734 = vcmp.le.f32.partialorder %v671, 0.0
    %vm735 = vcmp.le.f32.partialorder %v672, 0.0
    %vm736 = vcmp.le.f32.partialorder %v673, 0.0
    %vm737 = vcmp.le.f32.partialorder %v674, 0.0
    %vm738 = vcmp.le.f32.partialorder %v675, 0.0
    %vm739 = vcmp.le.f32.partialorder %v676, 0.0
    %vm740 = vcmp.le.f32.partialorder %v677, 0.0
    %vm741 = vcmp.le.f32.partialorder %v678, 0.0
    %vm742 = vcmp.le.f32.partialorder %v679, 0.0
    %vm743 = vcmp.le.f32.partialorder %v680, 0.0
    %vm744 = vcmp.le.f32.partialorder %v681, 0.0
    %v745 = vsel %vm682, %v137, 64
    %v746 = vsel %vm683, %v138, 64
    %v747 = vsel %vm684, %v139, 64
    %v748 = vsel %vm685, %v140, 64
    %v749 = vsel %vm686, %v141, 64
    %v750 = vsel %vm687, %v142, 64
    %v751 = vsel %vm688, %v143, 64
    %v752 = vsel %vm689, %v144, 64
    %v753 = vsel %vm690, %v145, 64
    %v754 = vsel %vm691, %v146, 64
    %v755 = vsel %vm692, %v147, 64
    %v756 = vsel %vm693, %v148, 64
    %v757 = vsel %vm694, %v149, 64
    %v758 = vsel %vm695, %v150, 64
    %v759 = vsel %vm696, %v151, 64
    %v760 = vsel %vm697, %v152, 64
    %v761 = vsel %vm698, %v153, 64
    %v762 = vsel %vm699, %v154, 64
    %v763 = vsel %vm700, %v155, 64
    %v764 = vsel %vm701, %v156, 64
    %v765 = vsel %vm702, %v157, 64
    %v766 = vsel %vm703, %v158, 64
    %v767 = vsel %vm704, %v159, 64
    %v768 = vsel %vm705, %v160, 64
    %v769 = vsel %vm706, %v161, 64
    %v770 = vsel %vm707, %v162, 64
    %v771 = vsel %vm708, %v163, 64
    %v772 = vsel %vm709, %v164, 64
    %v773 = vsel %vm710, %v165, 64
    %v774 = vsel %vm711, %v166, 64
    %v775 = vsel %vm712, %v167, 64
    %v776 = vsel %vm713, %v168, 64
    %v777 = vsel %vm714, %v169, 64
    %v778 = vsel %vm715, %v170, 64
    %v779 = vsel %vm716, %v171, 64
    %v780 = vsel %vm717, %v172, 64
    %v781 = vsel %vm718, %v173, 64
    %v782 = vsel %vm719, %v174, 64
    %v783 = vsel %vm720, %v175, 64
    %v784 = vsel %vm721, %v176, 64
    %v785 = vsel %vm722, %v177, 64
    %v786 = vsel %vm723, %v178, 64
    %v787 = vsel %vm724, %v179, 64
    %v788 = vsel %vm725, %v180, 64
    %v789 = vsel %vm726, %v181, 64
    %v790 = vsel %vm727, %v182, 64
    %v791 = vsel %vm728, %v183, 64
    %v792 = vsel %vm729, %v184, 64
    %v793 = vsel %vm730, %v185, 64
    %v794 = vsel %vm731, %v186, 64
    %v795 = vsel %vm732, %v187, 64
    %v796 = vsel %vm733, %v188, 64
    %v797 = vsel %vm734, %v189, 64
    %v798 = vsel %vm735, %v190, 64
    %v799 = vsel %vm736, %v191, 64
    %v800 = vsel %vm737, %v192, 64
    %v801 = vsel %vm738, %v193, 64
    %v802 = vsel %vm739, %v194, 64
    %v803 = vsel %vm740, %v195, 64
    %v804 = vsel %vm741, %v196, 64
    %v805 = vsel %vm742, %v197, 64
    %v806 = vsel %vm743, %v198, 64
    %v807 = vsel %vm744, %v199, 64
    %vm808 = vcmp.lt.s32.totalorder %v745, %v749
    %v809 = vsel %vm808, %v745, %v749
    %vm810 = vcmp.lt.s32.totalorder %v746, %v750
    %v811 = vsel %vm810, %v746, %v750
    %vm812 = vcmp.lt.s32.totalorder %v747, %v751
    %v813 = vsel %vm812, %v747, %v751
    %vm814 = vcmp.lt.s32.totalorder %v748, %v752
    %v815 = vsel %vm814, %v748, %v752
    %vm816 = vcmp.lt.s32.totalorder %v809, %v753
    %v817 = vsel %vm816, %v809, %v753
    %vm818 = vcmp.lt.s32.totalorder %v811, %v754
    %v819 = vsel %vm818, %v811, %v754
    %vm820 = vcmp.lt.s32.totalorder %v813, %v755
    %v821 = vsel %vm820, %v813, %v755
    %vm822 = vcmp.lt.s32.totalorder %v815, %v756
    %v823 = vsel %vm822, %v815, %v756
    %vm824 = vcmp.lt.s32.totalorder %v817, %v757
    %v825 = vsel %vm824, %v817, %v757
    %vm826 = vcmp.lt.s32.totalorder %v819, %v758
    %v827 = vsel %vm826, %v819, %v758
    %vm828 = vcmp.lt.s32.totalorder %v821, %v759
    %v829 = vsel %vm828, %v821, %v759
    %vm830 = vcmp.lt.s32.totalorder %v823, %v760
    %v831 = vsel %vm830, %v823, %v760
    %vm832 = vcmp.lt.s32.totalorder %v825, %v761
    %v833 = vsel %vm832, %v825, %v761
    %vm834 = vcmp.lt.s32.totalorder %v827, %v762
    %v835 = vsel %vm834, %v827, %v762
    %vm836 = vcmp.lt.s32.totalorder %v829, %v763
    %v837 = vsel %vm836, %v829, %v763
    %vm838 = vcmp.lt.s32.totalorder %v831, %v764
    %v839 = vsel %vm838, %v831, %v764
    %vm840 = vcmp.lt.s32.totalorder %v833, %v765
    %v841 = vsel %vm840, %v833, %v765
    %vm842 = vcmp.lt.s32.totalorder %v835, %v766
    %v843 = vsel %vm842, %v835, %v766
    %vm844 = vcmp.lt.s32.totalorder %v837, %v767
    %v845 = vsel %vm844, %v837, %v767
    %vm846 = vcmp.lt.s32.totalorder %v839, %v768
    %v847 = vsel %vm846, %v839, %v768
    %vm848 = vcmp.lt.s32.totalorder %v841, %v769
    %v849 = vsel %vm848, %v841, %v769
    %vm850 = vcmp.lt.s32.totalorder %v843, %v770
    %v851 = vsel %vm850, %v843, %v770
    %vm852 = vcmp.lt.s32.totalorder %v845, %v771
    %v853 = vsel %vm852, %v845, %v771
    %vm854 = vcmp.lt.s32.totalorder %v847, %v772
    %v855 = vsel %vm854, %v847, %v772
    %vm856 = vcmp.lt.s32.totalorder %v849, %v773
    %v857 = vsel %vm856, %v849, %v773
    %vm858 = vcmp.lt.s32.totalorder %v851, %v774
    %v859 = vsel %vm858, %v851, %v774
    %vm860 = vcmp.lt.s32.totalorder %v853, %v775
    %v861 = vsel %vm860, %v853, %v775
    %vm862 = vcmp.lt.s32.totalorder %v855, %v776
    %v863 = vsel %vm862, %v855, %v776
    %vm864 = vcmp.lt.s32.totalorder %v857, %v777
    %v865 = vsel %vm864, %v857, %v777
    %vm866 = vcmp.lt.s32.totalorder %v859, %v778
    %v867 = vsel %vm866, %v859, %v778
    %vm868 = vcmp.lt.s32.totalorder %v861, %v779
    %v869 = vsel %vm868, %v861, %v779
    %vm870 = vcmp.lt.s32.totalorder %v863, %v780
    %v871 = vsel %vm870, %v863, %v780
    %vm872 = vcmp.lt.s32.totalorder %v865, %v781
    %v873 = vsel %vm872, %v865, %v781
    %vm874 = vcmp.lt.s32.totalorder %v867, %v782
    %v875 = vsel %vm874, %v867, %v782
    %vm876 = vcmp.lt.s32.totalorder %v869, %v783
    %v877 = vsel %vm876, %v869, %v783
    %vm878 = vcmp.lt.s32.totalorder %v871, %v784
    %v879 = vsel %vm878, %v871, %v784
    %vm880 = vcmp.lt.s32.totalorder %v873, %v785
    %v881 = vsel %vm880, %v873, %v785
    %vm882 = vcmp.lt.s32.totalorder %v875, %v786
    %v883 = vsel %vm882, %v875, %v786
    %vm884 = vcmp.lt.s32.totalorder %v877, %v787
    %v885 = vsel %vm884, %v877, %v787
    %vm886 = vcmp.lt.s32.totalorder %v879, %v788
    %v887 = vsel %vm886, %v879, %v788
    %vm888 = vcmp.lt.s32.totalorder %v881, %v789
    %v889 = vsel %vm888, %v881, %v789
    %vm890 = vcmp.lt.s32.totalorder %v883, %v790
    %v891 = vsel %vm890, %v883, %v790
    %vm892 = vcmp.lt.s32.totalorder %v885, %v791
    %v893 = vsel %vm892, %v885, %v791
    %vm894 = vcmp.lt.s32.totalorder %v887, %v792
    %v895 = vsel %vm894, %v887, %v792
    %vm896 = vcmp.lt.s32.totalorder %v889, %v793
    %v897 = vsel %vm896, %v889, %v793
    %vm898 = vcmp.lt.s32.totalorder %v891, %v794
    %v899 = vsel %vm898, %v891, %v794
    %vm900 = vcmp.lt.s32.totalorder %v893, %v795
    %v901 = vsel %vm900, %v893, %v795
    %vm902 = vcmp.lt.s32.totalorder %v895, %v796
    %v903 = vsel %vm902, %v895, %v796
    %vm904 = vcmp.lt.s32.totalorder %v897, %v797
    %v905 = vsel %vm904, %v897, %v797
    %vm906 = vcmp.lt.s32.totalorder %v899, %v798
    %v907 = vsel %vm906, %v899, %v798
    %vm908 = vcmp.lt.s32.totalorder %v901, %v799
    %v909 = vsel %vm908, %v901, %v799
    %vm910 = vcmp.lt.s32.totalorder %v903, %v800
    %v911 = vsel %vm910, %v903, %v800
    %vm912 = vcmp.lt.s32.totalorder %v905, %v801
    %v913 = vsel %vm912, %v905, %v801
    %vm914 = vcmp.lt.s32.totalorder %v907, %v802
    %v915 = vsel %vm914, %v907, %v802
    %vm916 = vcmp.lt.s32.totalorder %v909, %v803
    %v917 = vsel %vm916, %v909, %v803
    %vm918 = vcmp.lt.s32.totalorder %v911, %v804
    %v919 = vsel %vm918, %v911, %v804
    %vm920 = vcmp.lt.s32.totalorder %v913, %v805
    %v921 = vsel %vm920, %v913, %v805
    %vm922 = vcmp.lt.s32.totalorder %v915, %v806
    %v923 = vsel %vm922, %v915, %v806
    %vm924 = vcmp.lt.s32.totalorder %v917, %v807
    %v925 = vsel %vm924, %v917, %v807
    %vm926 = vcmp.lt.s32.totalorder %v921, %v923
    %v927 = vsel %vm926, %v921, %v923
    %vm928 = vcmp.lt.s32.totalorder %v925, %v919
    %v929 = vsel %vm928, %v925, %v919
    %vm930 = vcmp.lt.s32.totalorder %v927, %v929
    %v931 = vsel %vm930, %v927, %v929
    %v932 = vsel %vm682, 1.0, 0.0
    %v933 = vsel %vm683, 1.0, 0.0
    %v934 = vsel %vm684, 1.0, 0.0
    %v935 = vsel %vm685, 1.0, 0.0
    %v936 = vsel %vm686, 1.0, 0.0
    %v937 = vsel %vm687, 1.0, 0.0
    %v938 = vsel %vm688, 1.0, 0.0
    %v939 = vsel %vm689, 1.0, 0.0
    %v940 = vsel %vm690, 1.0, 0.0
    %v941 = vsel %vm691, 1.0, 0.0
    %v942 = vsel %vm692, 1.0, 0.0
    %v943 = vsel %vm693, 1.0, 0.0
    %v944 = vsel %vm694, 1.0, 0.0
    %v945 = vsel %vm695, 1.0, 0.0
    %v946 = vsel %vm696, 1.0, 0.0
    %v947 = vsel %vm697, 1.0, 0.0
    %v948 = vsel %vm698, 1.0, 0.0
    %v949 = vsel %vm699, 1.0, 0.0
    %v950 = vsel %vm700, 1.0, 0.0
    %v951 = vsel %vm701, 1.0, 0.0
    %v952 = vsel %vm702, 1.0, 0.0
    %v953 = vsel %vm703, 1.0, 0.0
    %v954 = vsel %vm704, 1.0, 0.0
    %v955 = vsel %vm705, 1.0, 0.0
    %v956 = vsel %vm706, 1.0, 0.0
    %v957 = vsel %vm707, 1.0, 0.0
    %v958 = vsel %vm708, 1.0, 0.0
    %v959 = vsel %vm709, 1.0, 0.0
    %v960 = vsel %vm710, 1.0, 0.0
    %v961 = vsel %vm711, 1.0, 0.0
    %v962 = vsel %vm712, 1.0, 0.0
    %v963 = vsel %vm713, 1.0, 0.0
    %v964 = vsel %vm714, 1.0, 0.0
    %v965 = vsel %vm715, 1.0, 0.0
    %v966 = vsel %vm716, 1.0, 0.0
    %v967 = vsel %vm717, 1.0, 0.0
    %v968 = vsel %vm718, 1.0, 0.0
    %v969 = vsel %vm719, 1.0, 0.0
    %v970 = vsel %vm720, 1.0, 0.0
    %v971 = vsel %vm721, 1.0, 0.0
    %v972 = vsel %vm722, 1.0, 0.0
    %v973 = vsel %vm723, 1.0, 0.0
    %v974 = vsel %vm724, 1.0, 0.0
    %v975 = vsel %vm725, 1.0, 0.0
    %v976 = vsel %vm726, 1.0, 0.0
    %v977 = vsel %vm727, 1.0, 0.0
    %v978 = vsel %vm728, 1.0, 0.0
    %v979 = vsel %vm729, 1.0, 0.0
    %v980 = vsel %vm730, 1.0, 0.0
    %v981 = vsel %vm731, 1.0, 0.0
    %v982 = vsel %vm732, 1.0, 0.0
    %v983 = vsel %vm733, 1.0, 0.0
    %v984 = vsel %vm734, 1.0, 0.0
    %v985 = vsel %vm735, 1.0, 0.0
    %v986 = vsel %vm736, 1.0, 0.0
    %v987 = vsel %vm737, 1.0, 0.0
    %v988 = vsel %vm738, 1.0, 0.0
    %v989 = vsel %vm739, 1.0, 0.0
    %v990 = vsel %vm740, 1.0, 0.0
    %v991 = vsel %vm741, 1.0, 0.0
    %v992 = vsel %vm742, 1.0, 0.0
    %v993 = vsel %vm743, 1.0, 0.0
    %v994 = vsel %vm744, 1.0, 0.0
    %v995 = vmax.f32 %v932, %v936
    %v996 = vmax.f32 %v933, %v937
    %v997 = vmax.f32 %v934, %v938
    %v998 = vmax.f32 %v935, %v939
    %v999 = vmax.f32 %v995, %v940
    %v1000 = vmax.f32 %v996, %v941
    %v1001 = vmax.f32 %v997, %v942
    %v1002 = vmax.f32 %v998, %v943
    %v1003 = vmax.f32 %v999, %v944
    %v1004 = vmax.f32 %v1000, %v945
    %v1005 = vmax.f32 %v1001, %v946
    %v1006 = vmax.f32 %v1002, %v947
    %v1007 = vmax.f32 %v1003, %v948
    %v1008 = vmax.f32 %v1004, %v949
    %v1009 = vmax.f32 %v1005, %v950
    %v1010 = vmax.f32 %v1006, %v951
    %v1011 = vmax.f32 %v1007, %v952
    %v1012 = vmax.f32 %v1008, %v953
    %v1013 = vmax.f32 %v1009, %v954
    %v1014 = vmax.f32 %v1010, %v955
    %v1015 = vmax.f32 %v1011, %v956
    %v1016 = vmax.f32 %v1012, %v957
    %v1017 = vmax.f32 %v1013, %v958
    %v1018 = vmax.f32 %v1014, %v959
    %v1019 = vmax.f32 %v1015, %v960
    %v1020 = vmax.f32 %v1016, %v961
    %v1021 = vmax.f32 %v1017, %v962
    %v1022 = vmax.f32 %v1018, %v963
    %v1023 = vmax.f32 %v1019, %v964
    %v1024 = vmax.f32 %v1020, %v965
    %v1025 = vmax.f32 %v1021, %v966
    %v1026 = vmax.f32 %v1022, %v967
    %v1027 = vmax.f32 %v1023, %v968
    %v1028 = vmax.f32 %v1024, %v969
    %v1029 = vmax.f32 %v1025, %v970
    %v1030 = vmax.f32 %v1026, %v971
    %v1031 = vmax.f32 %v1027, %v972
    %v1032 = vmax.f32 %v1028, %v973
    %v1033 = vmax.f32 %v1029, %v974
    %v1034 = vmax.f32 %v1030, %v975
    %v1035 = vmax.f32 %v1031, %v976
    %v1036 = vmax.f32 %v1032, %v977
    %v1037 = vmax.f32 %v1033, %v978
    %v1038 = vmax.f32 %v1034, %v979
    %v1039 = vmax.f32 %v1035, %v980
    %v1040 = vmax.f32 %v1036, %v981
    %v1041 = vmax.f32 %v1037, %v982
    %v1042 = vmax.f32 %v1038, %v983
    %v1043 = vmax.f32 %v1039, %v984
    %v1044 = vmax.f32 %v1040, %v985
    %v1045 = vmax.f32 %v1041, %v986
    %v1046 = vmax.f32 %v1042, %v987
    %v1047 = vmax.f32 %v1043, %v988
    %v1048 = vmax.f32 %v1044, %v989
    %v1049 = vmax.f32 %v1045, %v990
    %v1050 = vmax.f32 %v1046, %v991
    %v1051 = vmax.f32 %v1047, %v992
    %v1052 = vmax.f32 %v1048, %v993
    %v1053 = vmax.f32 %v1049, %v994
    %v1054 = vmax.f32 %v1051, %v1052
    %v1055 = vmax.f32 %v1053, %v1050
    %v1056 = vmax.f32 %v1054, %v1055
    %vm1057 = vcmp.gt.f32.partialorder %v1056, 0.0
    %v1058 = vsel %vm1057, %v931, 0
    %vm1059 = vcmp.eq.s32.totalorder %v137, %v1058
    %vm1060 = vcmp.eq.s32.totalorder %v138, %v1058
    %vm1061 = vcmp.eq.s32.totalorder %v139, %v1058
    %vm1062 = vcmp.eq.s32.totalorder %v140, %v1058
    %vm1063 = vcmp.eq.s32.totalorder %v141, %v1058
    %vm1064 = vcmp.eq.s32.totalorder %v142, %v1058
    %vm1065 = vcmp.eq.s32.totalorder %v143, %v1058
    %vm1066 = vcmp.eq.s32.totalorder %v144, %v1058
    %vm1067 = vcmp.eq.s32.totalorder %v145, %v1058
    %vm1068 = vcmp.eq.s32.totalorder %v146, %v1058
    %vm1069 = vcmp.eq.s32.totalorder %v147, %v1058
    %vm1070 = vcmp.eq.s32.totalorder %v148, %v1058
    %vm1071 = vcmp.eq.s32.totalorder %v149, %v1058
    %vm1072 = vcmp.eq.s32.totalorder %v150, %v1058
    %vm1073 = vcmp.eq.s32.totalorder %v151, %v1058
    %vm1074 = vcmp.eq.s32.totalorder %v152, %v1058
    %vm1075 = vcmp.eq.s32.totalorder %v153, %v1058
    %vm1076 = vcmp.eq.s32.totalorder %v154, %v1058
    %vm1077 = vcmp.eq.s32.totalorder %v155, %v1058
    %vm1078 = vcmp.eq.s32.totalorder %v156, %v1058
    %vm1079 = vcmp.eq.s32.totalorder %v157, %v1058
    %vm1080 = vcmp.eq.s32.totalorder %v158, %v1058
    %vm1081 = vcmp.eq.s32.totalorder %v159, %v1058
    %vm1082 = vcmp.eq.s32.totalorder %v160, %v1058
    %vm1083 = vcmp.eq.s32.totalorder %v161, %v1058
    %vm1084 = vcmp.eq.s32.totalorder %v162, %v1058
    %vm1085 = vcmp.eq.s32.totalorder %v163, %v1058
    %vm1086 = vcmp.eq.s32.totalorder %v164, %v1058
    %vm1087 = vcmp.eq.s32.totalorder %v165, %v1058
    %vm1088 = vcmp.eq.s32.totalorder %v166, %v1058
    %vm1089 = vcmp.eq.s32.totalorder %v167, %v1058
    %vm1090 = vcmp.eq.s32.totalorder %v168, %v1058
    %vm1091 = vcmp.eq.s32.totalorder %v169, %v1058
    %vm1092 = vcmp.eq.s32.totalorder %v170, %v1058
    %vm1093 = vcmp.eq.s32.totalorder %v171, %v1058
    %vm1094 = vcmp.eq.s32.totalorder %v172, %v1058
    %vm1095 = vcmp.eq.s32.totalorder %v173, %v1058
    %vm1096 = vcmp.eq.s32.totalorder %v174, %v1058
    %vm1097 = vcmp.eq.s32.totalorder %v175, %v1058
    %vm1098 = vcmp.eq.s32.totalorder %v176, %v1058
    %vm1099 = vcmp.eq.s32.totalorder %v177, %v1058
    %vm1100 = vcmp.eq.s32.totalorder %v178, %v1058
    %vm1101 = vcmp.eq.s32.totalorder %v179, %v1058
    %vm1102 = vcmp.eq.s32.totalorder %v180, %v1058
    %vm1103 = vcmp.eq.s32.totalorder %v181, %v1058
    %vm1104 = vcmp.eq.s32.totalorder %v182, %v1058
    %vm1105 = vcmp.eq.s32.totalorder %v183, %v1058
    %vm1106 = vcmp.eq.s32.totalorder %v184, %v1058
    %vm1107 = vcmp.eq.s32.totalorder %v185, %v1058
    %vm1108 = vcmp.eq.s32.totalorder %v186, %v1058
    %vm1109 = vcmp.eq.s32.totalorder %v187, %v1058
    %vm1110 = vcmp.eq.s32.totalorder %v188, %v1058
    %vm1111 = vcmp.eq.s32.totalorder %v189, %v1058
    %vm1112 = vcmp.eq.s32.totalorder %v190, %v1058
    %vm1113 = vcmp.eq.s32.totalorder %v191, %v1058
    %vm1114 = vcmp.eq.s32.totalorder %v192, %v1058
    %vm1115 = vcmp.eq.s32.totalorder %v193, %v1058
    %vm1116 = vcmp.eq.s32.totalorder %v194, %v1058
    %vm1117 = vcmp.eq.s32.totalorder %v195, %v1058
    %vm1118 = vcmp.eq.s32.totalorder %v196, %v1058
    %vm1119 = vcmp.eq.s32.totalorder %v197, %v1058
    %vm1120 = vcmp.eq.s32.totalorder %v198, %v1058
    %vm1121 = vcmp.eq.s32.totalorder %v199, %v1058
    %v1122 = vsel %vm1059, 1, 0
    %v1123 = vsel %vm1060, 1, 0
    %v1124 = vsel %vm1061, 1, 0
    %v1125 = vsel %vm1062, 1, 0
    %v1126 = vsel %vm1063, 1, 0
    %v1127 = vsel %vm1064, 1, 0
    %v1128 = vsel %vm1065, 1, 0
    %v1129 = vsel %vm1066, 1, 0
    %v1130 = vsel %vm1067, 1, 0
    %v1131 = vsel %vm1068, 1, 0
    %v1132 = vsel %vm1069, 1, 0
    %v1133 = vsel %vm1070, 1, 0
    %v1134 = vsel %vm1071, 1, 0
    %v1135 = vsel %vm1072, 1, 0
    %v1136 = vsel %vm1073, 1, 0
    %v1137 = vsel %vm1074, 1, 0
    %v1138 = vsel %vm1075, 1, 0
    %v1139 = vsel %vm1076, 1, 0
    %v1140 = vsel %vm1077, 1, 0
    %v1141 = vsel %vm1078, 1, 0
    %v1142 = vsel %vm1079, 1, 0
    %v1143 = vsel %vm1080, 1, 0
    %v1144 = vsel %vm1081, 1, 0
    %v1145 = vsel %vm1082, 1, 0
    %v1146 = vsel %vm1083, 1, 0
    %v1147 = vsel %vm1084, 1, 0
    %v1148 = vsel %vm1085, 1, 0
    %v1149 = vsel %vm1086, 1, 0
    %v1150 = vsel %vm1087, 1, 0
    %v1151 = vsel %vm1088, 1, 0
    %v1152 = vsel %vm1089, 1, 0
    %v1153 = vsel %vm1090, 1, 0
    %v1154 = vsel %vm1091, 1, 0
    %v1155 = vsel %vm1092, 1, 0
    %v1156 = vsel %vm1093, 1, 0
    %v1157 = vsel %vm1094, 1, 0
    %v1158 = vsel %vm1095, 1, 0
    %v1159 = vsel %vm1096, 1, 0
    %v1160 = vsel %vm1097, 1, 0
    %v1161 = vsel %vm1098, 1, 0
    %v1162 = vsel %vm1099, 1, 0
    %v1163 = vsel %vm1100, 1, 0
    %v1164 = vsel %vm1101, 1, 0
    %v1165 = vsel %vm1102, 1, 0
    %v1166 = vsel %vm1103, 1, 0
    %v1167 = vsel %vm1104, 1, 0
    %v1168 = vsel %vm1105, 1, 0
    %v1169 = vsel %vm1106, 1, 0
    %v1170 = vsel %vm1107, 1, 0
    %v1171 = vsel %vm1108, 1, 0
    %v1172 = vsel %vm1109, 1, 0
    %v1173 = vsel %vm1110, 1, 0
    %v1174 = vsel %vm1111, 1, 0
    %v1175 = vsel %vm1112, 1, 0
    %v1176 = vsel %vm1113, 1, 0
    %v1177 = vsel %vm1114, 1, 0
    %v1178 = vsel %vm1115, 1, 0
    %v1179 = vsel %vm1116, 1, 0
    %v1180 = vsel %vm1117, 1, 0
    %v1181 = vsel %vm1118, 1, 0
    %v1182 = vsel %vm1119, 1, 0
    %v1183 = vsel %vm1120, 1, 0
    %v1184 = vsel %vm1121, 1, 0
    %v1185 = vcvt.s32.f32 %v1122
    %v1186 = vcvt.s32.f32 %v1123
    %v1187 = vcvt.s32.f32 %v1124
    %v1188 = vcvt.s32.f32 %v1125
    %v1189 = vcvt.s32.f32 %v1126
    %v1190 = vcvt.s32.f32 %v1127
    %v1191 = vcvt.s32.f32 %v1128
    %v1192 = vcvt.s32.f32 %v1129
    %v1193 = vcvt.s32.f32 %v1130
    %v1194 = vcvt.s32.f32 %v1131
    %v1195 = vcvt.s32.f32 %v1132
    %v1196 = vcvt.s32.f32 %v1133
    %v1197 = vcvt.s32.f32 %v1134
    %v1198 = vcvt.s32.f32 %v1135
    %v1199 = vcvt.s32.f32 %v1136
    %v1200 = vcvt.s32.f32 %v1137
    %v1201 = vcvt.s32.f32 %v1138
    %v1202 = vcvt.s32.f32 %v1139
    %v1203 = vcvt.s32.f32 %v1140
    %v1204 = vcvt.s32.f32 %v1141
    %v1205 = vcvt.s32.f32 %v1142
    %v1206 = vcvt.s32.f32 %v1143
    %v1207 = vcvt.s32.f32 %v1144
    %v1208 = vcvt.s32.f32 %v1145
    %v1209 = vcvt.s32.f32 %v1146
    %v1210 = vcvt.s32.f32 %v1147
    %v1211 = vcvt.s32.f32 %v1148
    %v1212 = vcvt.s32.f32 %v1149
    %v1213 = vcvt.s32.f32 %v1150
    %v1214 = vcvt.s32.f32 %v1151
    %v1215 = vcvt.s32.f32 %v1152
    %v1216 = vcvt.s32.f32 %v1153
    %v1217 = vcvt.s32.f32 %v1154
    %v1218 = vcvt.s32.f32 %v1155
    %v1219 = vcvt.s32.f32 %v1156
    %v1220 = vcvt.s32.f32 %v1157
    %v1221 = vcvt.s32.f32 %v1158
    %v1222 = vcvt.s32.f32 %v1159
    %v1223 = vcvt.s32.f32 %v1160
    %v1224 = vcvt.s32.f32 %v1161
    %v1225 = vcvt.s32.f32 %v1162
    %v1226 = vcvt.s32.f32 %v1163
    %v1227 = vcvt.s32.f32 %v1164
    %v1228 = vcvt.s32.f32 %v1165
    %v1229 = vcvt.s32.f32 %v1166
    %v1230 = vcvt.s32.f32 %v1167
    %v1231 = vcvt.s32.f32 %v1168
    %v1232 = vcvt.s32.f32 %v1169
    %v1233 = vcvt.s32.f32 %v1170
    %v1234 = vcvt.s32.f32 %v1171
    %v1235 = vcvt.s32.f32 %v1172
    %v1236 = vcvt.s32.f32 %v1173
    %v1237 = vcvt.s32.f32 %v1174
    %v1238 = vcvt.s32.f32 %v1175
    %v1239 = vcvt.s32.f32 %v1176
    %v1240 = vcvt.s32.f32 %v1177
    %v1241 = vcvt.s32.f32 %v1178
    %v1242 = vcvt.s32.f32 %v1179
    %v1243 = vcvt.s32.f32 %v1180
    %v1244 = vcvt.s32.f32 %v1181
    %v1245 = vcvt.s32.f32 %v1182
    %v1246 = vcvt.s32.f32 %v1183
    %v1247 = vcvt.s32.f32 %v1184
    %v1248 = vmul.f32 %v299, %v1185
    %v1249 = vmul.f32 %v300, %v1186
    %v1250 = vmul.f32 %v301, %v1187
    %v1251 = vmul.f32 %v302, %v1188
    %v1252 = vmul.f32 %v303, %v1189
    %v1253 = vmul.f32 %v304, %v1190
    %v1254 = vmul.f32 %v305, %v1191
    %v1255 = vmul.f32 %v306, %v1192
    %v1256 = vmul.f32 %v307, %v1193
    %v1257 = vmul.f32 %v308, %v1194
    %v1258 = vmul.f32 %v309, %v1195
    %v1259 = vmul.f32 %v310, %v1196
    %v1260 = vmul.f32 %v311, %v1197
    %v1261 = vmul.f32 %v312, %v1198
    %v1262 = vmul.f32 %v313, %v1199
    %v1263 = vmul.f32 %v314, %v1200
    %v1264 = vmul.f32 %v315, %v1201
    %v1265 = vmul.f32 %v316, %v1202
    %v1266 = vmul.f32 %v317, %v1203
    %v1267 = vmul.f32 %v318, %v1204
    %v1268 = vmul.f32 %v319, %v1205
    %v1269 = vmul.f32 %v320, %v1206
    %v1270 = vmul.f32 %v321, %v1207
    %v1271 = vmul.f32 %v322, %v1208
    %v1272 = vmul.f32 %v323, %v1209
    %v1273 = vmul.f32 %v324, %v1210
    %v1274 = vmul.f32 %v325, %v1211
    %v1275 = vmul.f32 %v326, %v1212
    %v1276 = vmul.f32 %v327, %v1213
    %v1277 = vmul.f32 %v328, %v1214
    %v1278 = vmul.f32 %v329, %v1215
    %v1279 = vmul.f32 %v330, %v1216
    %v1280 = vmul.f32 %v331, %v1217
    %v1281 = vmul.f32 %v332, %v1218
    %v1282 = vmul.f32 %v333, %v1219
    %v1283 = vmul.f32 %v334, %v1220
    %v1284 = vmul.f32 %v335, %v1221
    %v1285 = vmul.f32 %v336, %v1222
    %v1286 = vmul.f32 %v337, %v1223
    %v1287 = vmul.f32 %v338, %v1224
    %v1288 = vmul.f32 %v339, %v1225
    %v1289 = vmul.f32 %v340, %v1226
    %v1290 = vmul.f32 %v341, %v1227
    %v1291 = vmul.f32 %v342, %v1228
    %v1292 = vmul.f32 %v343, %v1229
    %v1293 = vmul.f32 %v344, %v1230
    %v1294 = vmul.f32 %v345, %v1231
    %v1295 = vmul.f32 %v346, %v1232
    %v1296 = vmul.f32 %v347, %v1233
    %v1297 = vmul.f32 %v348, %v1234
    %v1298 = vmul.f32 %v349, %v1235
    %v1299 = vmul.f32 %v350, %v1236
    %v1300 = vmul.f32 %v351, %v1237
    %v1301 = vmul.f32 %v352, %v1238
    %v1302 = vmul.f32 %v353, %v1239
    %v1303 = vmul.f32 %v354, %v1240
    %v1304 = vmul.f32 %v355, %v1241
    %v1305 = vmul.f32 %v356, %v1242
    %v1306 = vmul.f32 %v357, %v1243
    %v1307 = vmul.f32 %v358, %v1244
    %v1308 = vmul.f32 %v359, %v1245
    %v1309 = vmul.f32 %v360, %v1246
    %v1310 = vmul.f32 %v361, %v1247
    %v1311 = vadd.f32 %v1248, %v1249
    %v1312 = vadd.f32 %v1311, %v1250
    %v1313 = vadd.f32 %v1312, %v1251
    %v1314 = vadd.f32 %v1313, %v1252
    %v1315 = vadd.f32 %v1314, %v1253
    %v1316 = vadd.f32 %v1315, %v1254
    %v1317 = vadd.f32 %v1316, %v1255
    %v1318 = vadd.f32 %v1317, %v1256
    %v1319 = vadd.f32 %v1318, %v1257
    %v1320 = vadd.f32 %v1319, %v1258
    %v1321 = vadd.f32 %v1320, %v1259
    %v1322 = vadd.f32 %v1321, %v1260
    %v1323 = vadd.f32 %v1322, %v1261
    %v1324 = vadd.f32 %v1323, %v1262
    %v1325 = vadd.f32 %v1324, %v1263
    %v1326 = vadd.f32 %v1325, %v1264
    %v1327 = vadd.f32 %v1326, %v1265
    %v1328 = vadd.f32 %v1327, %v1266
    %v1329 = vadd.f32 %v1328, %v1267
    %v1330 = vadd.f32 %v1329, %v1268
    %v1331 = vadd.f32 %v1330, %v1269
    %v1332 = vadd.f32 %v1331, %v1270
    %v1333 = vadd.f32 %v1332, %v1271
    %v1334 = vadd.f32 %v1333, %v1272
    %v1335 = vadd.f32 %v1334, %v1273
    %v1336 = vadd.f32 %v1335, %v1274
    %v1337 = vadd.f32 %v1336, %v1275
    %v1338 = vadd.f32 %v1337, %v1276
    %v1339 = vadd.f32 %v1338, %v1277
    %v1340 = vadd.f32 %v1339, %v1278
    %v1341 = vadd.f32 %v1340, %v1279
    %v1342 = vadd.f32 %v1341, %v1280
    %v1343 = vadd.f32 %v1342, %v1281
    %v1344 = vadd.f32 %v1343, %v1282
    %v1345 = vadd.f32 %v1344, %v1283
    %v1346 = vadd.f32 %v1345, %v1284
    %v1347 = vadd.f32 %v1346, %v1285
    %v1348 = vadd.f32 %v1347, %v1286
    %v1349 = vadd.f32 %v1348, %v1287
    %v1350 = vadd.f32 %v1349, %v1288
    %v1351 = vadd.f32 %v1350, %v1289
    %v1352 = vadd.f32 %v1351, %v1290
    %v1353 = vadd.f32 %v1352, %v1291
    %v1354 = vadd.f32 %v1353, %v1292
    %v1355 = vadd.f32 %v1354, %v1293
    %v1356 = vadd.f32 %v1355, %v1294
    %v1357 = vadd.f32 %v1356, %v1295
    %v1358 = vadd.f32 %v1357, %v1296
    %v1359 = vadd.f32 %v1358, %v1297
    %v1360 = vadd.f32 %v1359, %v1298
    %v1361 = vadd.f32 %v1360, %v1299
    %v1362 = vadd.f32 %v1361, %v1300
    %v1363 = vadd.f32 %v1362, %v1301
    %v1364 = vadd.f32 %v1363, %v1302
    %v1365 = vadd.f32 %v1364, %v1303
    %v1366 = vadd.f32 %v1365, %v1304
    %v1367 = vadd.f32 %v1366, %v1305
    %v1368 = vadd.f32 %v1367, %v1306
    %v1369 = vadd.f32 %v1368, %v1307
    %v1370 = vadd.f32 %v1369, %v1308
    %v1371 = vadd.f32 %v1370, %v1309
    %v1372 = vadd.f32 %v1371, %v1310
    %v1373 = vmul.f32 %v300, %v1185
    %v1374 = vmul.f32 %v301, %v1186
    %v1375 = vmul.f32 %v302, %v1187
    %v1376 = vmul.f32 %v303, %v1188
    %v1377 = vmul.f32 %v304, %v1189
    %v1378 = vmul.f32 %v305, %v1190
    %v1379 = vmul.f32 %v306, %v1191
    %v1380 = vmul.f32 %v307, %v1192
    %v1381 = vmul.f32 %v308, %v1193
    %v1382 = vmul.f32 %v309, %v1194
    %v1383 = vmul.f32 %v310, %v1195
    %v1384 = vmul.f32 %v311, %v1196
    %v1385 = vmul.f32 %v312, %v1197
    %v1386 = vmul.f32 %v313, %v1198
    %v1387 = vmul.f32 %v314, %v1199
    %v1388 = vmul.f32 %v315, %v1200
    %v1389 = vmul.f32 %v316, %v1201
    %v1390 = vmul.f32 %v317, %v1202
    %v1391 = vmul.f32 %v318, %v1203
    %v1392 = vmul.f32 %v319, %v1204
    %v1393 = vmul.f32 %v320, %v1205
    %v1394 = vmul.f32 %v321, %v1206
    %v1395 = vmul.f32 %v322, %v1207
    %v1396 = vmul.f32 %v323, %v1208
    %v1397 = vmul.f32 %v324, %v1209
    %v1398 = vmul.f32 %v325, %v1210
    %v1399 = vmul.f32 %v326, %v1211
    %v1400 = vmul.f32 %v327, %v1212
    %v1401 = vmul.f32 %v328, %v1213
    %v1402 = vmul.f32 %v329, %v1214
    %v1403 = vmul.f32 %v330, %v1215
    %v1404 = vmul.f32 %v331, %v1216
    %v1405 = vmul.f32 %v332, %v1217
    %v1406 = vmul.f32 %v333, %v1218
    %v1407 = vmul.f32 %v334, %v1219
    %v1408 = vmul.f32 %v335, %v1220
    %v1409 = vmul.f32 %v336, %v1221
    %v1410 = vmul.f32 %v337, %v1222
    %v1411 = vmul.f32 %v338, %v1223
    %v1412 = vmul.f32 %v339, %v1224
    %v1413 = vmul.f32 %v340, %v1225
    %v1414 = vmul.f32 %v341, %v1226
    %v1415 = vmul.f32 %v342, %v1227
    %v1416 = vmul.f32 %v343, %v1228
    %v1417 = vmul.f32 %v344, %v1229
    %v1418 = vmul.f32 %v345, %v1230
    %v1419 = vmul.f32 %v346, %v1231
    %v1420 = vmul.f32 %v347, %v1232
    %v1421 = vmul.f32 %v348, %v1233
    %v1422 = vmul.f32 %v349, %v1234
    %v1423 = vmul.f32 %v350, %v1235
    %v1424 = vmul.f32 %v351, %v1236
    %v1425 = vmul.f32 %v352, %v1237
    %v1426 = vmul.f32 %v353, %v1238
    %v1427 = vmul.f32 %v354, %v1239
    %v1428 = vmul.f32 %v355, %v1240
    %v1429 = vmul.f32 %v356, %v1241
    %v1430 = vmul.f32 %v357, %v1242
    %v1431 = vmul.f32 %v358, %v1243
    %v1432 = vmul.f32 %v359, %v1244
    %v1433 = vmul.f32 %v360, %v1245
    %v1434 = vmul.f32 %v361, %v1246
    %v1435 = vmul.f32 %v362, %v1247
    %v1436 = vadd.f32 %v1373, %v1374
    %v1437 = vadd.f32 %v1436, %v1375
    %v1438 = vadd.f32 %v1437, %v1376
    %v1439 = vadd.f32 %v1438, %v1377
    %v1440 = vadd.f32 %v1439, %v1378
    %v1441 = vadd.f32 %v1440, %v1379
    %v1442 = vadd.f32 %v1441, %v1380
    %v1443 = vadd.f32 %v1442, %v1381
    %v1444 = vadd.f32 %v1443, %v1382
    %v1445 = vadd.f32 %v1444, %v1383
    %v1446 = vadd.f32 %v1445, %v1384
    %v1447 = vadd.f32 %v1446, %v1385
    %v1448 = vadd.f32 %v1447, %v1386
    %v1449 = vadd.f32 %v1448, %v1387
    %v1450 = vadd.f32 %v1449, %v1388
    %v1451 = vadd.f32 %v1450, %v1389
    %v1452 = vadd.f32 %v1451, %v1390
    %v1453 = vadd.f32 %v1452, %v1391
    %v1454 = vadd.f32 %v1453, %v1392
    %v1455 = vadd.f32 %v1454, %v1393
    %v1456 = vadd.f32 %v1455, %v1394
    %v1457 = vadd.f32 %v1456, %v1395
    %v1458 = vadd.f32 %v1457, %v1396
    %v1459 = vadd.f32 %v1458, %v1397
    %v1460 = vadd.f32 %v1459, %v1398
    %v1461 = vadd.f32 %v1460, %v1399
    %v1462 = vadd.f32 %v1461, %v1400
    %v1463 = vadd.f32 %v1462, %v1401
    %v1464 = vadd.f32 %v1463, %v1402
    %v1465 = vadd.f32 %v1464, %v1403
    %v1466 = vadd.f32 %v1465, %v1404
    %v1467 = vadd.f32 %v1466, %v1405
    %v1468 = vadd.f32 %v1467, %v1406
    %v1469 = vadd.f32 %v1468, %v1407
    %v1470 = vadd.f32 %v1469, %v1408
    %v1471 = vadd.f32 %v1470, %v1409
    %v1472 = vadd.f32 %v1471, %v1410
    %v1473 = vadd.f32 %v1472, %v1411
    %v1474 = vadd.f32 %v1473, %v1412
    %v1475 = vadd.f32 %v1474, %v1413
    %v1476 = vadd.f32 %v1475, %v1414
    %v1477 = vadd.f32 %v1476, %v1415
    %v1478 = vadd.f32 %v1477, %v1416
    %v1479 = vadd.f32 %v1478, %v1417
    %v1480 = vadd.f32 %v1479, %v1418
    %v1481 = vadd.f32 %v1480, %v1419
    %v1482 = vadd.f32 %v1481, %v1420
    %v1483 = vadd.f32 %v1482, %v1421
    %v1484 = vadd.f32 %v1483, %v1422
    %v1485 = vadd.f32 %v1484, %v1423
    %v1486 = vadd.f32 %v1485, %v1424
    %v1487 = vadd.f32 %v1486, %v1425
    %v1488 = vadd.f32 %v1487, %v1426
    %v1489 = vadd.f32 %v1488, %v1427
    %v1490 = vadd.f32 %v1489, %v1428
    %v1491 = vadd.f32 %v1490, %v1429
    %v1492 = vadd.f32 %v1491, %v1430
    %v1493 = vadd.f32 %v1492, %v1431
    %v1494 = vadd.f32 %v1493, %v1432
    %v1495 = vadd.f32 %v1494, %v1433
    %v1496 = vadd.f32 %v1495, %v1434
    %v1497 = vadd.f32 %v1496, %v1435
    %v1498 = vsub.f32 %v1497, %v1372
    %v1499 = vmul.f32 %v1498, %v73
    %v1500 = vmul.f32 %v1498, %v74
    %v1501 = vmul.f32 %v1498, %v75
    %v1502 = vmul.f32 %v1498, %v76
    %v1503 = vmul.f32 %v1498, %v77
    %v1504 = vmul.f32 %v1498, %v78
    %v1505 = vmul.f32 %v1498, %v79
    %v1506 = vmul.f32 %v1498, %v80
    %v1507 = vmul.f32 %v1498, %v81
    %v1508 = vmul.f32 %v1498, %v82
    %v1509 = vmul.f32 %v1498, %v83
    %v1510 = vmul.f32 %v1498, %v84
    %v1511 = vmul.f32 %v1498, %v85
    %v1512 = vmul.f32 %v1498, %v86
    %v1513 = vmul.f32 %v1498, %v87
    %v1514 = vmul.f32 %v1498, %v88
    %v1515 = vmul.f32 %v1498, %v89
    %v1516 = vmul.f32 %v1498, %v90
    %v1517 = vmul.f32 %v1498, %v91
    %v1518 = vmul.f32 %v1498, %v92
    %v1519 = vmul.f32 %v1498, %v93
    %v1520 = vmul.f32 %v1498, %v94
    %v1521 = vmul.f32 %v1498, %v95
    %v1522 = vmul.f32 %v1498, %v96
    %v1523 = vmul.f32 %v1498, %v97
    %v1524 = vmul.f32 %v1498, %v98
    %v1525 = vmul.f32 %v1498, %v99
    %v1526 = vmul.f32 %v1498, %v100
    %v1527 = vmul.f32 %v1498, %v101
    %v1528 = vmul.f32 %v1498, %v102
    %v1529 = vmul.f32 %v1498, %v103
    %v1530 = vmul.f32 %v1498, %v104
    %v1531 = vmul.f32 %v1498, %v105
    %v1532 = vmul.f32 %v1498, %v106
    %v1533 = vmul.f32 %v1498, %v107
    %v1534 = vmul.f32 %v1498, %v108
    %v1535 = vmul.f32 %v1498, %v109
    %v1536 = vmul.f32 %v1498, %v110
    %v1537 = vmul.f32 %v1498, %v111
    %v1538 = vmul.f32 %v1498, %v112
    %v1539 = vmul.f32 %v1498, %v113
    %v1540 = vmul.f32 %v1498, %v114
    %v1541 = vmul.f32 %v1498, %v115
    %v1542 = vmul.f32 %v1498, %v116
    %v1543 = vmul.f32 %v1498, %v117
    %v1544 = vmul.f32 %v1498, %v118
    %v1545 = vmul.f32 %v1498, %v119
    %v1546 = vmul.f32 %v1498, %v120
    %v1547 = vmul.f32 %v1498, %v121
    %v1548 = vmul.f32 %v1498, %v122
    %v1549 = vmul.f32 %v1498, %v123
    %v1550 = vmul.f32 %v1498, %v124
    %v1551 = vmul.f32 %v1498, %v125
    %v1552 = vmul.f32 %v1498, %v126
    %v1553 = vmul.f32 %v1498, %v127
    %v1554 = vmul.f32 %v1498, %v128
    %v1555 = vmul.f32 %v1498, %v129
    %v1556 = vmul.f32 %v1498, %v130
    %v1557 = vmul.f32 %v1498, %v131
    %v1558 = vmul.f32 %v1498, %v132
    %v1559 = vmul.f32 %v1498, %v133
    %v1560 = vmul.f32 %v1498, %v134
    %v1561 = vmul.f32 %v1498, %v135
    %v1562 = vmul.f32 %v1498, %v136
    %v1563 = vadd.f32 %v1372, %v1499
    %v1564 = vadd.f32 %v1372, %v1500
    %v1565 = vadd.f32 %v1372, %v1501
    %v1566 = vadd.f32 %v1372, %v1502
    %v1567 = vadd.f32 %v1372, %v1503
    %v1568 = vadd.f32 %v1372, %v1504
    %v1569 = vadd.f32 %v1372, %v1505
    %v1570 = vadd.f32 %v1372, %v1506
    %v1571 = vadd.f32 %v1372, %v1507
    %v1572 = vadd.f32 %v1372, %v1508
    %v1573 = vadd.f32 %v1372, %v1509
    %v1574 = vadd.f32 %v1372, %v1510
    %v1575 = vadd.f32 %v1372, %v1511
    %v1576 = vadd.f32 %v1372, %v1512
    %v1577 = vadd.f32 %v1372, %v1513
    %v1578 = vadd.f32 %v1372, %v1514
    %v1579 = vadd.f32 %v1372, %v1515
    %v1580 = vadd.f32 %v1372, %v1516
    %v1581 = vadd.f32 %v1372, %v1517
    %v1582 = vadd.f32 %v1372, %v1518
    %v1583 = vadd.f32 %v1372, %v1519
    %v1584 = vadd.f32 %v1372, %v1520
    %v1585 = vadd.f32 %v1372, %v1521
    %v1586 = vadd.f32 %v1372, %v1522
    %v1587 = vadd.f32 %v1372, %v1523
    %v1588 = vadd.f32 %v1372, %v1524
    %v1589 = vadd.f32 %v1372, %v1525
    %v1590 = vadd.f32 %v1372, %v1526
    %v1591 = vadd.f32 %v1372, %v1527
    %v1592 = vadd.f32 %v1372, %v1528
    %v1593 = vadd.f32 %v1372, %v1529
    %v1594 = vadd.f32 %v1372, %v1530
    %v1595 = vadd.f32 %v1372, %v1531
    %v1596 = vadd.f32 %v1372, %v1532
    %v1597 = vadd.f32 %v1372, %v1533
    %v1598 = vadd.f32 %v1372, %v1534
    %v1599 = vadd.f32 %v1372, %v1535
    %v1600 = vadd.f32 %v1372, %v1536
    %v1601 = vadd.f32 %v1372, %v1537
    %v1602 = vadd.f32 %v1372, %v1538
    %v1603 = vadd.f32 %v1372, %v1539
    %v1604 = vadd.f32 %v1372, %v1540
    %v1605 = vadd.f32 %v1372, %v1541
    %v1606 = vadd.f32 %v1372, %v1542
    %v1607 = vadd.f32 %v1372, %v1543
    %v1608 = vadd.f32 %v1372, %v1544
    %v1609 = vadd.f32 %v1372, %v1545
    %v1610 = vadd.f32 %v1372, %v1546
    %v1611 = vadd.f32 %v1372, %v1547
    %v1612 = vadd.f32 %v1372, %v1548
    %v1613 = vadd.f32 %v1372, %v1549
    %v1614 = vadd.f32 %v1372, %v1550
    %v1615 = vadd.f32 %v1372, %v1551
    %v1616 = vadd.f32 %v1372, %v1552
    %v1617 = vadd.f32 %v1372, %v1553
    %v1618 = vadd.f32 %v1372, %v1554
    %v1619 = vadd.f32 %v1372, %v1555
    %v1620 = vadd.f32 %v1372, %v1556
    %v1621 = vadd.f32 %v1372, %v1557
    %v1622 = vadd.f32 %v1372, %v1558
    %v1623 = vadd.f32 %v1372, %v1559
    %v1624 = vadd.f32 %v1372, %v1560
    %v1625 = vadd.f32 %v1372, %v1561
    %v1626 = vadd.f32 %v1372, %v1562
    %v1627 = vmul.f32 %v214, %v1563
    %v1628 = vmul.f32 %v214, %v1564
    %v1629 = vmul.f32 %v214, %v1565
    %v1630 = vmul.f32 %v214, %v1566
    %v1631 = vmul.f32 %v214, %v1567
    %v1632 = vmul.f32 %v214, %v1568
    %v1633 = vmul.f32 %v214, %v1569
    %v1634 = vmul.f32 %v214, %v1570
    %v1635 = vmul.f32 %v214, %v1571
    %v1636 = vmul.f32 %v214, %v1572
    %v1637 = vmul.f32 %v214, %v1573
    %v1638 = vmul.f32 %v214, %v1574
    %v1639 = vmul.f32 %v214, %v1575
    %v1640 = vmul.f32 %v214, %v1576
    %v1641 = vmul.f32 %v214, %v1577
    %v1642 = vmul.f32 %v214, %v1578
    %v1643 = vmul.f32 %v214, %v1579
    %v1644 = vmul.f32 %v214, %v1580
    %v1645 = vmul.f32 %v214, %v1581
    %v1646 = vmul.f32 %v214, %v1582
    %v1647 = vmul.f32 %v214, %v1583
    %v1648 = vmul.f32 %v214, %v1584
    %v1649 = vmul.f32 %v214, %v1585
    %v1650 = vmul.f32 %v214, %v1586
    %v1651 = vmul.f32 %v214, %v1587
    %v1652 = vmul.f32 %v214, %v1588
    %v1653 = vmul.f32 %v214, %v1589
    %v1654 = vmul.f32 %v214, %v1590
    %v1655 = vmul.f32 %v214, %v1591
    %v1656 = vmul.f32 %v214, %v1592
    %v1657 = vmul.f32 %v214, %v1593
    %v1658 = vmul.f32 %v214, %v1594
    %v1659 = vmul.f32 %v214, %v1595
    %v1660 = vmul.f32 %v214, %v1596
    %v1661 = vmul.f32 %v214, %v1597
    %v1662 = vmul.f32 %v214, %v1598
    %v1663 = vmul.f32 %v214, %v1599
    %v1664 = vmul.f32 %v214, %v1600
    %v1665 = vmul.f32 %v214, %v1601
    %v1666 = vmul.f32 %v214, %v1602
    %v1667 = vmul.f32 %v214, %v1603
    %v1668 = vmul.f32 %v214, %v1604
    %v1669 = vmul.f32 %v214, %v1605
    %v1670 = vmul.f32 %v214, %v1606
    %v1671 = vmul.f32 %v214, %v1607
    %v1672 = vmul.f32 %v214, %v1608
    %v1673 = vmul.f32 %v214, %v1609
    %v1674 = vmul.f32 %v214, %v1610
    %v1675 = vmul.f32 %v214, %v1611
    %v1676 = vmul.f32 %v214, %v1612
    %v1677 = vmul.f32 %v214, %v1613
    %v1678 = vmul.f32 %v214, %v1614
    %v1679 = vmul.f32 %v214, %v1615
    %v1680 = vmul.f32 %v214, %v1616
    %v1681 = vmul.f32 %v214, %v1617
    %v1682 = vmul.f32 %v214, %v1618
    %v1683 = vmul.f32 %v214, %v1619
    %v1684 = vmul.f32 %v214, %v1620
    %v1685 = vmul.f32 %v214, %v1621
    %v1686 = vmul.f32 %v214, %v1622
    %v1687 = vmul.f32 %v214, %v1623
    %v1688 = vmul.f32 %v214, %v1624
    %v1689 = vmul.f32 %v214, %v1625
    %v1690 = vmul.f32 %v214, %v1626
    %v1691 = vadd.f32 %v1627, %v220
    %v1692 = vadd.f32 %v1628, %v220
    %v1693 = vadd.f32 %v1629, %v220
    %v1694 = vadd.f32 %v1630, %v220
    %v1695 = vadd.f32 %v1631, %v220
    %v1696 = vadd.f32 %v1632, %v220
    %v1697 = vadd.f32 %v1633, %v220
    %v1698 = vadd.f32 %v1634, %v220
    %v1699 = vadd.f32 %v1635, %v220
    %v1700 = vadd.f32 %v1636, %v220
    %v1701 = vadd.f32 %v1637, %v220
    %v1702 = vadd.f32 %v1638, %v220
    %v1703 = vadd.f32 %v1639, %v220
    %v1704 = vadd.f32 %v1640, %v220
    %v1705 = vadd.f32 %v1641, %v220
    %v1706 = vadd.f32 %v1642, %v220
    %v1707 = vadd.f32 %v1643, %v220
    %v1708 = vadd.f32 %v1644, %v220
    %v1709 = vadd.f32 %v1645, %v220
    %v1710 = vadd.f32 %v1646, %v220
    %v1711 = vadd.f32 %v1647, %v220
    %v1712 = vadd.f32 %v1648, %v220
    %v1713 = vadd.f32 %v1649, %v220
    %v1714 = vadd.f32 %v1650, %v220
    %v1715 = vadd.f32 %v1651, %v220
    %v1716 = vadd.f32 %v1652, %v220
    %v1717 = vadd.f32 %v1653, %v220
    %v1718 = vadd.f32 %v1654, %v220
    %v1719 = vadd.f32 %v1655, %v220
    %v1720 = vadd.f32 %v1656, %v220
    %v1721 = vadd.f32 %v1657, %v220
    %v1722 = vadd.f32 %v1658, %v220
    %v1723 = vadd.f32 %v1659, %v220
    %v1724 = vadd.f32 %v1660, %v220
    %v1725 = vadd.f32 %v1661, %v220
    %v1726 = vadd.f32 %v1662, %v220
    %v1727 = vadd.f32 %v1663, %v220
    %v1728 = vadd.f32 %v1664, %v220
    %v1729 = vadd.f32 %v1665, %v220
    %v1730 = vadd.f32 %v1666, %v220
    %v1731 = vadd.f32 %v1667, %v220
    %v1732 = vadd.f32 %v1668, %v220
    %v1733 = vadd.f32 %v1669, %v220
    %v1734 = vadd.f32 %v1670, %v220
    %v1735 = vadd.f32 %v1671, %v220
    %v1736 = vadd.f32 %v1672, %v220
    %v1737 = vadd.f32 %v1673, %v220
    %v1738 = vadd.f32 %v1674, %v220
    %v1739 = vadd.f32 %v1675, %v220
    %v1740 = vadd.f32 %v1676, %v220
    %v1741 = vadd.f32 %v1677, %v220
    %v1742 = vadd.f32 %v1678, %v220
    %v1743 = vadd.f32 %v1679, %v220
    %v1744 = vadd.f32 %v1680, %v220
    %v1745 = vadd.f32 %v1681, %v220
    %v1746 = vadd.f32 %v1682, %v220
    %v1747 = vadd.f32 %v1683, %v220
    %v1748 = vadd.f32 %v1684, %v220
    %v1749 = vadd.f32 %v1685, %v220
    %v1750 = vadd.f32 %v1686, %v220
    %v1751 = vadd.f32 %v1687, %v220
    %v1752 = vadd.f32 %v1688, %v220
    %v1753 = vadd.f32 %v1689, %v220
    %v1754 = vadd.f32 %v1690, %v220
    %v1755 = vmul.f32 %v1691, %v1563
    %v1756 = vmul.f32 %v1692, %v1564
    %v1757 = vmul.f32 %v1693, %v1565
    %v1758 = vmul.f32 %v1694, %v1566
    %v1759 = vmul.f32 %v1695, %v1567
    %v1760 = vmul.f32 %v1696, %v1568
    %v1761 = vmul.f32 %v1697, %v1569
    %v1762 = vmul.f32 %v1698, %v1570
    %v1763 = vmul.f32 %v1699, %v1571
    %v1764 = vmul.f32 %v1700, %v1572
    %v1765 = vmul.f32 %v1701, %v1573
    %v1766 = vmul.f32 %v1702, %v1574
    %v1767 = vmul.f32 %v1703, %v1575
    %v1768 = vmul.f32 %v1704, %v1576
    %v1769 = vmul.f32 %v1705, %v1577
    %v1770 = vmul.f32 %v1706, %v1578
    %v1771 = vmul.f32 %v1707, %v1579
    %v1772 = vmul.f32 %v1708, %v1580
    %v1773 = vmul.f32 %v1709, %v1581
    %v1774 = vmul.f32 %v1710, %v1582
    %v1775 = vmul.f32 %v1711, %v1583
    %v1776 = vmul.f32 %v1712, %v1584
    %v1777 = vmul.f32 %v1713, %v1585
    %v1778 = vmul.f32 %v1714, %v1586
    %v1779 = vmul.f32 %v1715, %v1587
    %v1780 = vmul.f32 %v1716, %v1588
    %v1781 = vmul.f32 %v1717, %v1589
    %v1782 = vmul.f32 %v1718, %v1590
    %v1783 = vmul.f32 %v1719, %v1591
    %v1784 = vmul.f32 %v1720, %v1592
    %v1785 = vmul.f32 %v1721, %v1593
    %v1786 = vmul.f32 %v1722, %v1594
    %v1787 = vmul.f32 %v1723, %v1595
    %v1788 = vmul.f32 %v1724, %v1596
    %v1789 = vmul.f32 %v1725, %v1597
    %v1790 = vmul.f32 %v1726, %v1598
    %v1791 = vmul.f32 %v1727, %v1599
    %v1792 = vmul.f32 %v1728, %v1600
    %v1793 = vmul.f32 %v1729, %v1601
    %v1794 = vmul.f32 %v1730, %v1602
    %v1795 = vmul.f32 %v1731, %v1603
    %v1796 = vmul.f32 %v1732, %v1604
    %v1797 = vmul.f32 %v1733, %v1605
    %v1798 = vmul.f32 %v1734, %v1606
    %v1799 = vmul.f32 %v1735, %v1607
    %v1800 = vmul.f32 %v1736, %v1608
    %v1801 = vmul.f32 %v1737, %v1609
    %v1802 = vmul.f32 %v1738, %v1610
    %v1803 = vmul.f32 %v1739, %v1611
    %v1804 = vmul.f32 %v1740, %v1612
    %v1805 = vmul.f32 %v1741, %v1613
    %v1806 = vmul.f32 %v1742, %v1614
    %v1807 = vmul.f32 %v1743, %v1615
    %v1808 = vmul.f32 %v1744, %v1616
    %v1809 = vmul.f32 %v1745, %v1617
    %v1810 = vmul.f32 %v1746, %v1618
    %v1811 = vmul.f32 %v1747, %v1619
    %v1812 = vmul.f32 %v1748, %v1620
    %v1813 = vmul.f32 %v1749, %v1621
    %v1814 = vmul.f32 %v1750, %v1622
    %v1815 = vmul.f32 %v1751, %v1623
    %v1816 = vmul.f32 %v1752, %v1624
    %v1817 = vmul.f32 %v1753, %v1625
    %v1818 = vmul.f32 %v1754, %v1626
    %v1819 = vadd.f32 %v1755, %v226
    %v1820 = vadd.f32 %v1756, %v226
    %v1821 = vadd.f32 %v1757, %v226
    %v1822 = vadd.f32 %v1758, %v226
    %v1823 = vadd.f32 %v1759, %v226
    %v1824 = vadd.f32 %v1760, %v226
    %v1825 = vadd.f32 %v1761, %v226
    %v1826 = vadd.f32 %v1762, %v226
    %v1827 = vadd.f32 %v1763, %v226
    %v1828 = vadd.f32 %v1764, %v226
    %v1829 = vadd.f32 %v1765, %v226
    %v1830 = vadd.f32 %v1766, %v226
    %v1831 = vadd.f32 %v1767, %v226
    %v1832 = vadd.f32 %v1768, %v226
    %v1833 = vadd.f32 %v1769, %v226
    %v1834 = vadd.f32 %v1770, %v226
    %v1835 = vadd.f32 %v1771, %v226
    %v1836 = vadd.f32 %v1772, %v226
    %v1837 = vadd.f32 %v1773, %v226
    %v1838 = vadd.f32 %v1774, %v226
    %v1839 = vadd.f32 %v1775, %v226
    %v1840 = vadd.f32 %v1776, %v226
    %v1841 = vadd.f32 %v1777, %v226
    %v1842 = vadd.f32 %v1778, %v226
    %v1843 = vadd.f32 %v1779, %v226
    %v1844 = vadd.f32 %v1780, %v226
    %v1845 = vadd.f32 %v1781, %v226
    %v1846 = vadd.f32 %v1782, %v226
    %v1847 = vadd.f32 %v1783, %v226
    %v1848 = vadd.f32 %v1784, %v226
    %v1849 = vadd.f32 %v1785, %v226
    %v1850 = vadd.f32 %v1786, %v226
    %v1851 = vadd.f32 %v1787, %v226
    %v1852 = vadd.f32 %v1788, %v226
    %v1853 = vadd.f32 %v1789, %v226
    %v1854 = vadd.f32 %v1790, %v226
    %v1855 = vadd.f32 %v1791, %v226
    %v1856 = vadd.f32 %v1792, %v226
    %v1857 = vadd.f32 %v1793, %v226
    %v1858 = vadd.f32 %v1794, %v226
    %v1859 = vadd.f32 %v1795, %v226
    %v1860 = vadd.f32 %v1796, %v226
    %v1861 = vadd.f32 %v1797, %v226
    %v1862 = vadd.f32 %v1798, %v226
    %v1863 = vadd.f32 %v1799, %v226
    %v1864 = vadd.f32 %v1800, %v226
    %v1865 = vadd.f32 %v1801, %v226
    %v1866 = vadd.f32 %v1802, %v226
    %v1867 = vadd.f32 %v1803, %v226
    %v1868 = vadd.f32 %v1804, %v226
    %v1869 = vadd.f32 %v1805, %v226
    %v1870 = vadd.f32 %v1806, %v226
    %v1871 = vadd.f32 %v1807, %v226
    %v1872 = vadd.f32 %v1808, %v226
    %v1873 = vadd.f32 %v1809, %v226
    %v1874 = vadd.f32 %v1810, %v226
    %v1875 = vadd.f32 %v1811, %v226
    %v1876 = vadd.f32 %v1812, %v226
    %v1877 = vadd.f32 %v1813, %v226
    %v1878 = vadd.f32 %v1814, %v226
    %v1879 = vadd.f32 %v1815, %v226
    %v1880 = vadd.f32 %v1816, %v226
    %v1881 = vadd.f32 %v1817, %v226
    %v1882 = vadd.f32 %v1818, %v226
    %v1883 = vmul.f32 %v1820, %v1819
    %v1884 = vmul.f32 %v1821, %v1820
    %v1885 = vmul.f32 %v1822, %v1821
    %v1886 = vmul.f32 %v1823, %v1822
    %v1887 = vmul.f32 %v1824, %v1823
    %v1888 = vmul.f32 %v1825, %v1824
    %v1889 = vmul.f32 %v1826, %v1825
    %v1890 = vmul.f32 %v1827, %v1826
    %v1891 = vmul.f32 %v1828, %v1827
    %v1892 = vmul.f32 %v1829, %v1828
    %v1893 = vmul.f32 %v1830, %v1829
    %v1894 = vmul.f32 %v1831, %v1830
    %v1895 = vmul.f32 %v1832, %v1831
    %v1896 = vmul.f32 %v1833, %v1832
    %v1897 = vmul.f32 %v1834, %v1833
    %v1898 = vmul.f32 %v1835, %v1834
    %v1899 = vmul.f32 %v1836, %v1835
    %v1900 = vmul.f32 %v1837, %v1836
    %v1901 = vmul.f32 %v1838, %v1837
    %v1902 = vmul.f32 %v1839, %v1838
    %v1903 = vmul.f32 %v1840, %v1839
    %v1904 = vmul.f32 %v1841, %v1840
    %v1905 = vmul.f32 %v1842, %v1841
    %v1906 = vmul.f32 %v1843, %v1842
    %v1907 = vmul.f32 %v1844, %v1843
    %v1908 = vmul.f32 %v1845, %v1844
    %v1909 = vmul.f32 %v1846, %v1845
    %v1910 = vmul.f32 %v1847, %v1846
    %v1911 = vmul.f32 %v1848, %v1847
    %v1912 = vmul.f32 %v1849, %v1848
    %v1913 = vmul.f32 %v1850, %v1849
    %v1914 = vmul.f32 %v1851, %v1850
    %v1915 = vmul.f32 %v1852, %v1851
    %v1916 = vmul.f32 %v1853, %v1852
    %v1917 = vmul.f32 %v1854, %v1853
    %v1918 = vmul.f32 %v1855, %v1854
    %v1919 = vmul.f32 %v1856, %v1855
    %v1920 = vmul.f32 %v1857, %v1856
    %v1921 = vmul.f32 %v1858, %v1857
    %v1922 = vmul.f32 %v1859, %v1858
    %v1923 = vmul.f32 %v1860, %v1859
    %v1924 = vmul.f32 %v1861, %v1860
    %v1925 = vmul.f32 %v1862, %v1861
    %v1926 = vmul.f32 %v1863, %v1862
    %v1927 = vmul.f32 %v1864, %v1863
    %v1928 = vmul.f32 %v1865, %v1864
    %v1929 = vmul.f32 %v1866, %v1865
    %v1930 = vmul.f32 %v1867, %v1866
    %v1931 = vmul.f32 %v1868, %v1867
    %v1932 = vmul.f32 %v1869, %v1868
    %v1933 = vmul.f32 %v1870, %v1869
    %v1934 = vmul.f32 %v1871, %v1870
    %v1935 = vmul.f32 %v1872, %v1871
    %v1936 = vmul.f32 %v1873, %v1872
    %v1937 = vmul.f32 %v1874, %v1873
    %v1938 = vmul.f32 %v1875, %v1874
    %v1939 = vmul.f32 %v1876, %v1875
    %v1940 = vmul.f32 %v1877, %v1876
    %v1941 = vmul.f32 %v1878, %v1877
    %v1942 = vmul.f32 %v1879, %v1878
    %v1943 = vmul.f32 %v1880, %v1879
    %v1944 = vmul.f32 %v1881, %v1880
    %v1945 = vmul.f32 %v1882, %v1881
    %vm1946 = vcmp.le.f32.partialorder %v1883, 0.0
    %vm1947 = vcmp.le.f32.partialorder %v1884, 0.0
    %vm1948 = vcmp.le.f32.partialorder %v1885, 0.0
    %vm1949 = vcmp.le.f32.partialorder %v1886, 0.0
    %vm1950 = vcmp.le.f32.partialorder %v1887, 0.0
    %vm1951 = vcmp.le.f32.partialorder %v1888, 0.0
    %vm1952 = vcmp.le.f32.partialorder %v1889, 0.0
    %vm1953 = vcmp.le.f32.partialorder %v1890, 0.0
    %vm1954 = vcmp.le.f32.partialorder %v1891, 0.0
    %vm1955 = vcmp.le.f32.partialorder %v1892, 0.0
    %vm1956 = vcmp.le.f32.partialorder %v1893, 0.0
    %vm1957 = vcmp.le.f32.partialorder %v1894, 0.0
    %vm1958 = vcmp.le.f32.partialorder %v1895, 0.0
    %vm1959 = vcmp.le.f32.partialorder %v1896, 0.0
    %vm1960 = vcmp.le.f32.partialorder %v1897, 0.0
    %vm1961 = vcmp.le.f32.partialorder %v1898, 0.0
    %vm1962 = vcmp.le.f32.partialorder %v1899, 0.0
    %vm1963 = vcmp.le.f32.partialorder %v1900, 0.0
    %vm1964 = vcmp.le.f32.partialorder %v1901, 0.0
    %vm1965 = vcmp.le.f32.partialorder %v1902, 0.0
    %vm1966 = vcmp.le.f32.partialorder %v1903, 0.0
    %vm1967 = vcmp.le.f32.partialorder %v1904, 0.0
    %vm1968 = vcmp.le.f32.partialorder %v1905, 0.0
    %vm1969 = vcmp.le.f32.partialorder %v1906, 0.0
    %vm1970 = vcmp.le.f32.partialorder %v1907, 0.0
    %vm1971 = vcmp.le.f32.partialorder %v1908, 0.0
    %vm1972 = vcmp.le.f32.partialorder %v1909, 0.0
    %vm1973 = vcmp.le.f32.partialorder %v1910, 0.0
    %vm1974 = vcmp.le.f32.partialorder %v1911, 0.0
    %vm1975 = vcmp.le.f32.partialorder %v1912, 0.0
    %vm1976 = vcmp.le.f32.partialorder %v1913, 0.0
    %vm1977 = vcmp.le.f32.partialorder %v1914, 0.0
    %vm1978 = vcmp.le.f32.partialorder %v1915, 0.0
    %vm1979 = vcmp.le.f32.partialorder %v1916, 0.0
    %vm1980 = vcmp.le.f32.partialorder %v1917, 0.0
    %vm1981 = vcmp.le.f32.partialorder %v1918, 0.0
    %vm1982 = vcmp.le.f32.partialorder %v1919, 0.0
    %vm1983 = vcmp.le.f32.partialorder %v1920, 0.0
    %vm1984 = vcmp.le.f32.partialorder %v1921, 0.0
    %vm1985 = vcmp.le.f32.partialorder %v1922, 0.0
    %vm1986 = vcmp.le.f32.partialorder %v1923, 0.0
    %vm1987 = vcmp.le.f32.partialorder %v1924, 0.0
    %vm1988 = vcmp.le.f32.partialorder %v1925, 0.0
    %vm1989 = vcmp.le.f32.partialorder %v1926, 0.0
    %vm1990 = vcmp.le.f32.partialorder %v1927, 0.0
    %vm1991 = vcmp.le.f32.partialorder %v1928, 0.0
    %vm1992 = vcmp.le.f32.partialorder %v1929, 0.0
    %vm1993 = vcmp.le.f32.partialorder %v1930, 0.0
    %vm1994 = vcmp.le.f32.partialorder %v1931, 0.0
    %vm1995 = vcmp.le.f32.partialorder %v1932, 0.0
    %vm1996 = vcmp.le.f32.partialorder %v1933, 0.0
    %vm1997 = vcmp.le.f32.partialorder %v1934, 0.0
    %vm1998 = vcmp.le.f32.partialorder %v1935, 0.0
    %vm1999 = vcmp.le.f32.partialorder %v1936, 0.0
    %vm2000 = vcmp.le.f32.partialorder %v1937, 0.0
    %vm2001 = vcmp.le.f32.partialorder %v1938, 0.0
    %vm2002 = vcmp.le.f32.partialorder %v1939, 0.0
    %vm2003 = vcmp.le.f32.partialorder %v1940, 0.0
    %vm2004 = vcmp.le.f32.partialorder %v1941, 0.0
    %vm2005 = vcmp.le.f32.partialorder %v1942, 0.0
    %vm2006 = vcmp.le.f32.partialorder %v1943, 0.0
    %vm2007 = vcmp.le.f32.partialorder %v1944, 0.0
    %vm2008 = vcmp.le.f32.partialorder %v1945, 0.0
    %v2009 = vsel %vm1946, %v137, 64
    %v2010 = vsel %vm1947, %v138, 64
    %v2011 = vsel %vm1948, %v139, 64
    %v2012 = vsel %vm1949, %v140, 64
    %v2013 = vsel %vm1950, %v141, 64
    %v2014 = vsel %vm1951, %v142, 64
    %v2015 = vsel %vm1952, %v143, 64
    %v2016 = vsel %vm1953, %v144, 64
    %v2017 = vsel %vm1954, %v145, 64
    %v2018 = vsel %vm1955, %v146, 64
    %v2019 = vsel %vm1956, %v147, 64
    %v2020 = vsel %vm1957, %v148, 64
    %v2021 = vsel %vm1958, %v149, 64
    %v2022 = vsel %vm1959, %v150, 64
    %v2023 = vsel %vm1960, %v151, 64
    %v2024 = vsel %vm1961, %v152, 64
    %v2025 = vsel %vm1962, %v153, 64
    %v2026 = vsel %vm1963, %v154, 64
    %v2027 = vsel %vm1964, %v155, 64
    %v2028 = vsel %vm1965, %v156, 64
    %v2029 = vsel %vm1966, %v157, 64
    %v2030 = vsel %vm1967, %v158, 64
    %v2031 = vsel %vm1968, %v159, 64
    %v2032 = vsel %vm1969, %v160, 64
    %v2033 = vsel %vm1970, %v161, 64
    %v2034 = vsel %vm1971, %v162, 64
    %v2035 = vsel %vm1972, %v163, 64
    %v2036 = vsel %vm1973, %v164, 64
    %v2037 = vsel %vm1974, %v165, 64
    %v2038 = vsel %vm1975, %v166, 64
    %v2039 = vsel %vm1976, %v167, 64
    %v2040 = vsel %vm1977, %v168, 64
    %v2041 = vsel %vm1978, %v169, 64
    %v2042 = vsel %vm1979, %v170, 64
    %v2043 = vsel %vm1980, %v171, 64
    %v2044 = vsel %vm1981, %v172, 64
    %v2045 = vsel %vm1982, %v173, 64
    %v2046 = vsel %vm1983, %v174, 64
    %v2047 = vsel %vm1984, %v175, 64
    %v2048 = vsel %vm1985, %v176, 64
    %v2049 = vsel %vm1986, %v177, 64
    %v2050 = vsel %vm1987, %v178, 64
    %v2051 = vsel %vm1988, %v179, 64
    %v2052 = vsel %vm1989, %v180, 64
    %v2053 = vsel %vm1990, %v181, 64
    %v2054 = vsel %vm1991, %v182, 64
    %v2055 = vsel %vm1992, %v183, 64
    %v2056 = vsel %vm1993, %v184, 64
    %v2057 = vsel %vm1994, %v185, 64
    %v2058 = vsel %vm1995, %v186, 64
    %v2059 = vsel %vm1996, %v187, 64
    %v2060 = vsel %vm1997, %v188, 64
    %v2061 = vsel %vm1998, %v189, 64
    %v2062 = vsel %vm1999, %v190, 64
    %v2063 = vsel %vm2000, %v191, 64
    %v2064 = vsel %vm2001, %v192, 64
    %v2065 = vsel %vm2002, %v193, 64
    %v2066 = vsel %vm2003, %v194, 64
    %v2067 = vsel %vm2004, %v195, 64
    %v2068 = vsel %vm2005, %v196, 64
    %v2069 = vsel %vm2006, %v197, 64
    %v2070 = vsel %vm2007, %v198, 64
    %v2071 = vsel %vm2008, %v199, 64
    %vm2072 = vcmp.lt.s32.totalorder %v2009, %v2013
    %v2073 = vsel %vm2072, %v2009, %v2013
    %vm2074 = vcmp.lt.s32.totalorder %v2010, %v2014
    %v2075 = vsel %vm2074, %v2010, %v2014
    %vm2076 = vcmp.lt.s32.totalorder %v2011, %v2015
    %v2077 = vsel %vm2076, %v2011, %v2015
    %vm2078 = vcmp.lt.s32.totalorder %v2012, %v2016
    %v2079 = vsel %vm2078, %v2012, %v2016
    %vm2080 = vcmp.lt.s32.totalorder %v2073, %v2017
    %v2081 = vsel %vm2080, %v2073, %v2017
    %vm2082 = vcmp.lt.s32.totalorder %v2075, %v2018
    %v2083 = vsel %vm2082, %v2075, %v2018
    %vm2084 = vcmp.lt.s32.totalorder %v2077, %v2019
    %v2085 = vsel %vm2084, %v2077, %v2019
    %vm2086 = vcmp.lt.s32.totalorder %v2079, %v2020
    %v2087 = vsel %vm2086, %v2079, %v2020
    %vm2088 = vcmp.lt.s32.totalorder %v2081, %v2021
    %v2089 = vsel %vm2088, %v2081, %v2021
    %vm2090 = vcmp.lt.s32.totalorder %v2083, %v2022
    %v2091 = vsel %vm2090, %v2083, %v2022
    %vm2092 = vcmp.lt.s32.totalorder %v2085, %v2023
    %v2093 = vsel %vm2092, %v2085, %v2023
    %vm2094 = vcmp.lt.s32.totalorder %v2087, %v2024
    %v2095 = vsel %vm2094, %v2087, %v2024
    %vm2096 = vcmp.lt.s32.totalorder %v2089, %v2025
    %v2097 = vsel %vm2096, %v2089, %v2025
    %vm2098 = vcmp.lt.s32.totalorder %v2091, %v2026
    %v2099 = vsel %vm2098, %v2091, %v2026
    %vm2100 = vcmp.lt.s32.totalorder %v2093, %v2027
    %v2101 = vsel %vm2100, %v2093, %v2027
    %vm2102 = vcmp.lt.s32.totalorder %v2095, %v2028
    %v2103 = vsel %vm2102, %v2095, %v2028
    %vm2104 = vcmp.lt.s32.totalorder %v2097, %v2029
    %v2105 = vsel %vm2104, %v2097, %v2029
    %vm2106 = vcmp.lt.s32.totalorder %v2099, %v2030
    %v2107 = vsel %vm2106, %v2099, %v2030
    %vm2108 = vcmp.lt.s32.totalorder %v2101, %v2031
    %v2109 = vsel %vm2108, %v2101, %v2031
    %vm2110 = vcmp.lt.s32.totalorder %v2103, %v2032
    %v2111 = vsel %vm2110, %v2103, %v2032
    %vm2112 = vcmp.lt.s32.totalorder %v2105, %v2033
    %v2113 = vsel %vm2112, %v2105, %v2033
    %vm2114 = vcmp.lt.s32.totalorder %v2107, %v2034
    %v2115 = vsel %vm2114, %v2107, %v2034
    %vm2116 = vcmp.lt.s32.totalorder %v2109, %v2035
    %v2117 = vsel %vm2116, %v2109, %v2035
    %vm2118 = vcmp.lt.s32.totalorder %v2111, %v2036
    %v2119 = vsel %vm2118, %v2111, %v2036
    %vm2120 = vcmp.lt.s32.totalorder %v2113, %v2037
    %v2121 = vsel %vm2120, %v2113, %v2037
    %vm2122 = vcmp.lt.s32.totalorder %v2115, %v2038
    %v2123 = vsel %vm2122, %v2115, %v2038
    %vm2124 = vcmp.lt.s32.totalorder %v2117, %v2039
    %v2125 = vsel %vm2124, %v2117, %v2039
    %vm2126 = vcmp.lt.s32.totalorder %v2119, %v2040
    %v2127 = vsel %vm2126, %v2119, %v2040
    %vm2128 = vcmp.lt.s32.totalorder %v2121, %v2041
    %v2129 = vsel %vm2128, %v2121, %v2041
    %vm2130 = vcmp.lt.s32.totalorder %v2123, %v2042
    %v2131 = vsel %vm2130, %v2123, %v2042
    %vm2132 = vcmp.lt.s32.totalorder %v2125, %v2043
    %v2133 = vsel %vm2132, %v2125, %v2043
    %vm2134 = vcmp.lt.s32.totalorder %v2127, %v2044
    %v2135 = vsel %vm2134, %v2127, %v2044
    %vm2136 = vcmp.lt.s32.totalorder %v2129, %v2045
    %v2137 = vsel %vm2136, %v2129, %v2045
    %vm2138 = vcmp.lt.s32.totalorder %v2131, %v2046
    %v2139 = vsel %vm2138, %v2131, %v2046
    %vm2140 = vcmp.lt.s32.totalorder %v2133, %v2047
    %v2141 = vsel %vm2140, %v2133, %v2047
    %vm2142 = vcmp.lt.s32.totalorder %v2135, %v2048
    %v2143 = vsel %vm2142, %v2135, %v2048
    %vm2144 = vcmp.lt.s32.totalorder %v2137, %v2049
    %v2145 = vsel %vm2144, %v2137, %v2049
    %vm2146 = vcmp.lt.s32.totalorder %v2139, %v2050
    %v2147 = vsel %vm2146, %v2139, %v2050
    %vm2148 = vcmp.lt.s32.totalorder %v2141, %v2051
    %v2149 = vsel %vm2148, %v2141, %v2051
    %vm2150 = vcmp.lt.s32.totalorder %v2143, %v2052
    %v2151 = vsel %vm2150, %v2143, %v2052
    %vm2152 = vcmp.lt.s32.totalorder %v2145, %v2053
    %v2153 = vsel %vm2152, %v2145, %v2053
    %vm2154 = vcmp.lt.s32.totalorder %v2147, %v2054
    %v2155 = vsel %vm2154, %v2147, %v2054
    %vm2156 = vcmp.lt.s32.totalorder %v2149, %v2055
    %v2157 = vsel %vm2156, %v2149, %v2055
    %vm2158 = vcmp.lt.s32.totalorder %v2151, %v2056
    %v2159 = vsel %vm2158, %v2151, %v2056
    %vm2160 = vcmp.lt.s32.totalorder %v2153, %v2057
    %v2161 = vsel %vm2160, %v2153, %v2057
    %vm2162 = vcmp.lt.s32.totalorder %v2155, %v2058
    %v2163 = vsel %vm2162, %v2155, %v2058
    %vm2164 = vcmp.lt.s32.totalorder %v2157, %v2059
    %v2165 = vsel %vm2164, %v2157, %v2059
    %vm2166 = vcmp.lt.s32.totalorder %v2159, %v2060
    %v2167 = vsel %vm2166, %v2159, %v2060
    %vm2168 = vcmp.lt.s32.totalorder %v2161, %v2061
    %v2169 = vsel %vm2168, %v2161, %v2061
    %vm2170 = vcmp.lt.s32.totalorder %v2163, %v2062
    %v2171 = vsel %vm2170, %v2163, %v2062
    %vm2172 = vcmp.lt.s32.totalorder %v2165, %v2063
    %v2173 = vsel %vm2172, %v2165, %v2063
    %vm2174 = vcmp.lt.s32.totalorder %v2167, %v2064
    %v2175 = vsel %vm2174, %v2167, %v2064
    %vm2176 = vcmp.lt.s32.totalorder %v2169, %v2065
    %v2177 = vsel %vm2176, %v2169, %v2065
    %vm2178 = vcmp.lt.s32.totalorder %v2171, %v2066
    %v2179 = vsel %vm2178, %v2171, %v2066
    %vm2180 = vcmp.lt.s32.totalorder %v2173, %v2067
    %v2181 = vsel %vm2180, %v2173, %v2067
    %vm2182 = vcmp.lt.s32.totalorder %v2175, %v2068
    %v2183 = vsel %vm2182, %v2175, %v2068
    %vm2184 = vcmp.lt.s32.totalorder %v2177, %v2069
    %v2185 = vsel %vm2184, %v2177, %v2069
    %vm2186 = vcmp.lt.s32.totalorder %v2179, %v2070
    %v2187 = vsel %vm2186, %v2179, %v2070
    %vm2188 = vcmp.lt.s32.totalorder %v2181, %v2071
    %v2189 = vsel %vm2188, %v2181, %v2071
    %vm2190 = vcmp.lt.s32.totalorder %v2185, %v2187
    %v2191 = vsel %vm2190, %v2185, %v2187
    %vm2192 = vcmp.lt.s32.totalorder %v2189, %v2183
    %v2193 = vsel %vm2192, %v2189, %v2183
    %vm2194 = vcmp.lt.s32.totalorder %v2191, %v2193
    %v2195 = vsel %vm2194, %v2191, %v2193
    %v2196 = vsel %vm1946, 1.0, 0.0
    %v2197 = vsel %vm1947, 1.0, 0.0
    %v2198 = vsel %vm1948, 1.0, 0.0
    %v2199 = vsel %vm1949, 1.0, 0.0
    %v2200 = vsel %vm1950, 1.0, 0.0
    %v2201 = vsel %vm1951, 1.0, 0.0
    %v2202 = vsel %vm1952, 1.0, 0.0
    %v2203 = vsel %vm1953, 1.0, 0.0
    %v2204 = vsel %vm1954, 1.0, 0.0
    %v2205 = vsel %vm1955, 1.0, 0.0
    %v2206 = vsel %vm1956, 1.0, 0.0
    %v2207 = vsel %vm1957, 1.0, 0.0
    %v2208 = vsel %vm1958, 1.0, 0.0
    %v2209 = vsel %vm1959, 1.0, 0.0
    %v2210 = vsel %vm1960, 1.0, 0.0
    %v2211 = vsel %vm1961, 1.0, 0.0
    %v2212 = vsel %vm1962, 1.0, 0.0
    %v2213 = vsel %vm1963, 1.0, 0.0
    %v2214 = vsel %vm1964, 1.0, 0.0
    %v2215 = vsel %vm1965, 1.0, 0.0
    %v2216 = vsel %vm1966, 1.0, 0.0
    %v2217 = vsel %vm1967, 1.0, 0.0
    %v2218 = vsel %vm1968, 1.0, 0.0
    %v2219 = vsel %vm1969, 1.0, 0.0
    %v2220 = vsel %vm1970, 1.0, 0.0
    %v2221 = vsel %vm1971, 1.0, 0.0
    %v2222 = vsel %vm1972, 1.0, 0.0
    %v2223 = vsel %vm1973, 1.0, 0.0
    %v2224 = vsel %vm1974, 1.0, 0.0
    %v2225 = vsel %vm1975, 1.0, 0.0
    %v2226 = vsel %vm1976, 1.0, 0.0
    %v2227 = vsel %vm1977, 1.0, 0.0
    %v2228 = vsel %vm1978, 1.0, 0.0
    %v2229 = vsel %vm1979, 1.0, 0.0
    %v2230 = vsel %vm1980, 1.0, 0.0
    %v2231 = vsel %vm1981, 1.0, 0.0
    %v2232 = vsel %vm1982, 1.0, 0.0
    %v2233 = vsel %vm1983, 1.0, 0.0
    %v2234 = vsel %vm1984, 1.0, 0.0
    %v2235 = vsel %vm1985, 1.0, 0.0
    %v2236 = vsel %vm1986, 1.0, 0.0
    %v2237 = vsel %vm1987, 1.0, 0.0
    %v2238 = vsel %vm1988, 1.0, 0.0
    %v2239 = vsel %vm1989, 1.0, 0.0
    %v2240 = vsel %vm1990, 1.0, 0.0
    %v2241 = vsel %vm1991, 1.0, 0.0
    %v2242 = vsel %vm1992, 1.0, 0.0
    %v2243 = vsel %vm1993, 1.0, 0.0
    %v2244 = vsel %vm1994, 1.0, 0.0
    %v2245 = vsel %vm1995, 1.0, 0.0
    %v2246 = vsel %vm1996, 1.0, 0.0
    %v2247 = vsel %vm1997, 1.0, 0.0
    %v2248 = vsel %vm1998, 1.0, 0.0
    %v2249 = vsel %vm1999, 1.0, 0.0
    %v2250 = vsel %vm2000, 1.0, 0.0
    %v2251 = vsel %vm2001, 1.0, 0.0
    %v2252 = vsel %vm2002, 1.0, 0.0
    %v2253 = vsel %vm2003, 1.0, 0.0
    %v2254 = vsel %vm2004, 1.0, 0.0
    %v2255 = vsel %vm2005, 1.0, 0.0
    %v2256 = vsel %vm2006, 1.0, 0.0
    %v2257 = vsel %vm2007, 1.0, 0.0
    %v2258 = vsel %vm2008, 1.0, 0.0
    %v2259 = vmax.f32 %v2196, %v2200
    %v2260 = vmax.f32 %v2197, %v2201
    %v2261 = vmax.f32 %v2198, %v2202
    %v2262 = vmax.f32 %v2199, %v2203
    %v2263 = vmax.f32 %v2259, %v2204
    %v2264 = vmax.f32 %v2260, %v2205
    %v2265 = vmax.f32 %v2261, %v2206
    %v2266 = vmax.f32 %v2262, %v2207
    %v2267 = vmax.f32 %v2263, %v2208
    %v2268 = vmax.f32 %v2264, %v2209
    %v2269 = vmax.f32 %v2265, %v2210
    %v2270 = vmax.f32 %v2266, %v2211
    %v2271 = vmax.f32 %v2267, %v2212
    %v2272 = vmax.f32 %v2268, %v2213
    %v2273 = vmax.f32 %v2269, %v2214
    %v2274 = vmax.f32 %v2270, %v2215
    %v2275 = vmax.f32 %v2271, %v2216
    %v2276 = vmax.f32 %v2272, %v2217
    %v2277 = vmax.f32 %v2273, %v2218
    %v2278 = vmax.f32 %v2274, %v2219
    %v2279 = vmax.f32 %v2275, %v2220
    %v2280 = vmax.f32 %v2276, %v2221
    %v2281 = vmax.f32 %v2277, %v2222
    %v2282 = vmax.f32 %v2278, %v2223
    %v2283 = vmax.f32 %v2279, %v2224
    %v2284 = vmax.f32 %v2280, %v2225
    %v2285 = vmax.f32 %v2281, %v2226
    %v2286 = vmax.f32 %v2282, %v2227
    %v2287 = vmax.f32 %v2283, %v2228
    %v2288 = vmax.f32 %v2284, %v2229
    %v2289 = vmax.f32 %v2285, %v2230
    %v2290 = vmax.f32 %v2286, %v2231
    %v2291 = vmax.f32 %v2287, %v2232
    %v2292 = vmax.f32 %v2288, %v2233
    %v2293 = vmax.f32 %v2289, %v2234
    %v2294 = vmax.f32 %v2290, %v2235
    %v2295 = vmax.f32 %v2291, %v2236
    %v2296 = vmax.f32 %v2292, %v2237
    %v2297 = vmax.f32 %v2293, %v2238
    %v2298 = vmax.f32 %v2294, %v2239
    %v2299 = vmax.f32 %v2295, %v2240
    %v2300 = vmax.f32 %v2296, %v2241
    %v2301 = vmax.f32 %v2297, %v2242
    %v2302 = vmax.f32 %v2298, %v2243
    %v2303 = vmax.f32 %v2299, %v2244
    %v2304 = vmax.f32 %v2300, %v2245
    %v2305 = vmax.f32 %v2301, %v2246
    %v2306 = vmax.f32 %v2302, %v2247
    %v2307 = vmax.f32 %v2303, %v2248
    %v2308 = vmax.f32 %v2304, %v2249
    %v2309 = vmax.f32 %v2305, %v2250
    %v2310 = vmax.f32 %v2306, %v2251
    %v2311 = vmax.f32 %v2307, %v2252
    %v2312 = vmax.f32 %v2308, %v2253
    %v2313 = vmax.f32 %v2309, %v2254
    %v2314 = vmax.f32 %v2310, %v2255
    %v2315 = vmax.f32 %v2311, %v2256
    %v2316 = vmax.f32 %v2312, %v2257
    %v2317 = vmax.f32 %v2313, %v2258
    %v2318 = vmax.f32 %v2315, %v2316
    %v2319 = vmax.f32 %v2317, %v2314
    %v2320 = vmax.f32 %v2318, %v2319
    %vm2321 = vcmp.gt.f32.partialorder %v2320, 0.0
    %v2322 = vsel %vm2321, %v2195, 0
    %vm2323 = vcmp.eq.s32.totalorder %v137, %v2322
    %vm2324 = vcmp.eq.s32.totalorder %v138, %v2322
    %vm2325 = vcmp.eq.s32.totalorder %v139, %v2322
    %vm2326 = vcmp.eq.s32.totalorder %v140, %v2322
    %vm2327 = vcmp.eq.s32.totalorder %v141, %v2322
    %vm2328 = vcmp.eq.s32.totalorder %v142, %v2322
    %vm2329 = vcmp.eq.s32.totalorder %v143, %v2322
    %vm2330 = vcmp.eq.s32.totalorder %v144, %v2322
    %vm2331 = vcmp.eq.s32.totalorder %v145, %v2322
    %vm2332 = vcmp.eq.s32.totalorder %v146, %v2322
    %vm2333 = vcmp.eq.s32.totalorder %v147, %v2322
    %vm2334 = vcmp.eq.s32.totalorder %v148, %v2322
    %vm2335 = vcmp.eq.s32.totalorder %v149, %v2322
    %vm2336 = vcmp.eq.s32.totalorder %v150, %v2322
    %vm2337 = vcmp.eq.s32.totalorder %v151, %v2322
    %vm2338 = vcmp.eq.s32.totalorder %v152, %v2322
    %vm2339 = vcmp.eq.s32.totalorder %v153, %v2322
    %vm2340 = vcmp.eq.s32.totalorder %v154, %v2322
    %vm2341 = vcmp.eq.s32.totalorder %v155, %v2322
    %vm2342 = vcmp.eq.s32.totalorder %v156, %v2322
    %vm2343 = vcmp.eq.s32.totalorder %v157, %v2322
    %vm2344 = vcmp.eq.s32.totalorder %v158, %v2322
    %vm2345 = vcmp.eq.s32.totalorder %v159, %v2322
    %vm2346 = vcmp.eq.s32.totalorder %v160, %v2322
    %vm2347 = vcmp.eq.s32.totalorder %v161, %v2322
    %vm2348 = vcmp.eq.s32.totalorder %v162, %v2322
    %vm2349 = vcmp.eq.s32.totalorder %v163, %v2322
    %vm2350 = vcmp.eq.s32.totalorder %v164, %v2322
    %vm2351 = vcmp.eq.s32.totalorder %v165, %v2322
    %vm2352 = vcmp.eq.s32.totalorder %v166, %v2322
    %vm2353 = vcmp.eq.s32.totalorder %v167, %v2322
    %vm2354 = vcmp.eq.s32.totalorder %v168, %v2322
    %vm2355 = vcmp.eq.s32.totalorder %v169, %v2322
    %vm2356 = vcmp.eq.s32.totalorder %v170, %v2322
    %vm2357 = vcmp.eq.s32.totalorder %v171, %v2322
    %vm2358 = vcmp.eq.s32.totalorder %v172, %v2322
    %vm2359 = vcmp.eq.s32.totalorder %v173, %v2322
    %vm2360 = vcmp.eq.s32.totalorder %v174, %v2322
    %vm2361 = vcmp.eq.s32.totalorder %v175, %v2322
    %vm2362 = vcmp.eq.s32.totalorder %v176, %v2322
    %vm2363 = vcmp.eq.s32.totalorder %v177, %v2322
    %vm2364 = vcmp.eq.s32.totalorder %v178, %v2322
    %vm2365 = vcmp.eq.s32.totalorder %v179, %v2322
    %vm2366 = vcmp.eq.s32.totalorder %v180, %v2322
    %vm2367 = vcmp.eq.s32.totalorder %v181, %v2322
    %vm2368 = vcmp.eq.s32.totalorder %v182, %v2322
    %vm2369 = vcmp.eq.s32.totalorder %v183, %v2322
    %vm2370 = vcmp.eq.s32.totalorder %v184, %v2322
    %vm2371 = vcmp.eq.s32.totalorder %v185, %v2322
    %vm2372 = vcmp.eq.s32.totalorder %v186, %v2322
    %vm2373 = vcmp.eq.s32.totalorder %v187, %v2322
    %vm2374 = vcmp.eq.s32.totalorder %v188, %v2322
    %vm2375 = vcmp.eq.s32.totalorder %v189, %v2322
    %vm2376 = vcmp.eq.s32.totalorder %v190, %v2322
    %vm2377 = vcmp.eq.s32.totalorder %v191, %v2322
    %vm2378 = vcmp.eq.s32.totalorder %v192, %v2322
    %vm2379 = vcmp.eq.s32.totalorder %v193, %v2322
    %vm2380 = vcmp.eq.s32.totalorder %v194, %v2322
    %vm2381 = vcmp.eq.s32.totalorder %v195, %v2322
    %vm2382 = vcmp.eq.s32.totalorder %v196, %v2322
    %vm2383 = vcmp.eq.s32.totalorder %v197, %v2322
    %vm2384 = vcmp.eq.s32.totalorder %v198, %v2322
    %vm2385 = vcmp.eq.s32.totalorder %v199, %v2322
    %v2386 = vsel %vm2323, 1, 0
    %v2387 = vsel %vm2324, 1, 0
    %v2388 = vsel %vm2325, 1, 0
    %v2389 = vsel %vm2326, 1, 0
    %v2390 = vsel %vm2327, 1, 0
    %v2391 = vsel %vm2328, 1, 0
    %v2392 = vsel %vm2329, 1, 0
    %v2393 = vsel %vm2330, 1, 0
    %v2394 = vsel %vm2331, 1, 0
    %v2395 = vsel %vm2332, 1, 0
    %v2396 = vsel %vm2333, 1, 0
    %v2397 = vsel %vm2334, 1, 0
    %v2398 = vsel %vm2335, 1, 0
    %v2399 = vsel %vm2336, 1, 0
    %v2400 = vsel %vm2337, 1, 0
    %v2401 = vsel %vm2338, 1, 0
    %v2402 = vsel %vm2339, 1, 0
    %v2403 = vsel %vm2340, 1, 0
    %v2404 = vsel %vm2341, 1, 0
    %v2405 = vsel %vm2342, 1, 0
    %v2406 = vsel %vm2343, 1, 0
    %v2407 = vsel %vm2344, 1, 0
    %v2408 = vsel %vm2345, 1, 0
    %v2409 = vsel %vm2346, 1, 0
    %v2410 = vsel %vm2347, 1, 0
    %v2411 = vsel %vm2348, 1, 0
    %v2412 = vsel %vm2349, 1, 0
    %v2413 = vsel %vm2350, 1, 0
    %v2414 = vsel %vm2351, 1, 0
    %v2415 = vsel %vm2352, 1, 0
    %v2416 = vsel %vm2353, 1, 0
    %v2417 = vsel %vm2354, 1, 0
    %v2418 = vsel %vm2355, 1, 0
    %v2419 = vsel %vm2356, 1, 0
    %v2420 = vsel %vm2357, 1, 0
    %v2421 = vsel %vm2358, 1, 0
    %v2422 = vsel %vm2359, 1, 0
    %v2423 = vsel %vm2360, 1, 0
    %v2424 = vsel %vm2361, 1, 0
    %v2425 = vsel %vm2362, 1, 0
    %v2426 = vsel %vm2363, 1, 0
    %v2427 = vsel %vm2364, 1, 0
    %v2428 = vsel %vm2365, 1, 0
    %v2429 = vsel %vm2366, 1, 0
    %v2430 = vsel %vm2367, 1, 0
    %v2431 = vsel %vm2368, 1, 0
    %v2432 = vsel %vm2369, 1, 0
    %v2433 = vsel %vm2370, 1, 0
    %v2434 = vsel %vm2371, 1, 0
    %v2435 = vsel %vm2372, 1, 0
    %v2436 = vsel %vm2373, 1, 0
    %v2437 = vsel %vm2374, 1, 0
    %v2438 = vsel %vm2375, 1, 0
    %v2439 = vsel %vm2376, 1, 0
    %v2440 = vsel %vm2377, 1, 0
    %v2441 = vsel %vm2378, 1, 0
    %v2442 = vsel %vm2379, 1, 0
    %v2443 = vsel %vm2380, 1, 0
    %v2444 = vsel %vm2381, 1, 0
    %v2445 = vsel %vm2382, 1, 0
    %v2446 = vsel %vm2383, 1, 0
    %v2447 = vsel %vm2384, 1, 0
    %v2448 = vsel %vm2385, 1, 0
    %v2449 = vcvt.s32.f32 %v2386
    %v2450 = vcvt.s32.f32 %v2387
    %v2451 = vcvt.s32.f32 %v2388
    %v2452 = vcvt.s32.f32 %v2389
    %v2453 = vcvt.s32.f32 %v2390
    %v2454 = vcvt.s32.f32 %v2391
    %v2455 = vcvt.s32.f32 %v2392
    %v2456 = vcvt.s32.f32 %v2393
    %v2457 = vcvt.s32.f32 %v2394
    %v2458 = vcvt.s32.f32 %v2395
    %v2459 = vcvt.s32.f32 %v2396
    %v2460 = vcvt.s32.f32 %v2397
    %v2461 = vcvt.s32.f32 %v2398
    %v2462 = vcvt.s32.f32 %v2399
    %v2463 = vcvt.s32.f32 %v2400
    %v2464 = vcvt.s32.f32 %v2401
    %v2465 = vcvt.s32.f32 %v2402
    %v2466 = vcvt.s32.f32 %v2403
    %v2467 = vcvt.s32.f32 %v2404
    %v2468 = vcvt.s32.f32 %v2405
    %v2469 = vcvt.s32.f32 %v2406
    %v2470 = vcvt.s32.f32 %v2407
    %v2471 = vcvt.s32.f32 %v2408
    %v2472 = vcvt.s32.f32 %v2409
    %v2473 = vcvt.s32.f32 %v2410
    %v2474 = vcvt.s32.f32 %v2411
    %v2475 = vcvt.s32.f32 %v2412
    %v2476 = vcvt.s32.f32 %v2413
    %v2477 = vcvt.s32.f32 %v2414
    %v2478 = vcvt.s32.f32 %v2415
    %v2479 = vcvt.s32.f32 %v2416
    %v2480 = vcvt.s32.f32 %v2417
    %v2481 = vcvt.s32.f32 %v2418
    %v2482 = vcvt.s32.f32 %v2419
    %v2483 = vcvt.s32.f32 %v2420
    %v2484 = vcvt.s32.f32 %v2421
    %v2485 = vcvt.s32.f32 %v2422
    %v2486 = vcvt.s32.f32 %v2423
    %v2487 = vcvt.s32.f32 %v2424
    %v2488 = vcvt.s32.f32 %v2425
    %v2489 = vcvt.s32.f32 %v2426
    %v2490 = vcvt.s32.f32 %v2427
    %v2491 = vcvt.s32.f32 %v2428
    %v2492 = vcvt.s32.f32 %v2429
    %v2493 = vcvt.s32.f32 %v2430
    %v2494 = vcvt.s32.f32 %v2431
    %v2495 = vcvt.s32.f32 %v2432
    %v2496 = vcvt.s32.f32 %v2433
    %v2497 = vcvt.s32.f32 %v2434
    %v2498 = vcvt.s32.f32 %v2435
    %v2499 = vcvt.s32.f32 %v2436
    %v2500 = vcvt.s32.f32 %v2437
    %v2501 = vcvt.s32.f32 %v2438
    %v2502 = vcvt.s32.f32 %v2439
    %v2503 = vcvt.s32.f32 %v2440
    %v2504 = vcvt.s32.f32 %v2441
    %v2505 = vcvt.s32.f32 %v2442
    %v2506 = vcvt.s32.f32 %v2443
    %v2507 = vcvt.s32.f32 %v2444
    %v2508 = vcvt.s32.f32 %v2445
    %v2509 = vcvt.s32.f32 %v2446
    %v2510 = vcvt.s32.f32 %v2447
    %v2511 = vcvt.s32.f32 %v2448
    %v2512 = vmul.f32 %v1819, %v2449
    %v2513 = vmul.f32 %v1820, %v2450
    %v2514 = vmul.f32 %v1821, %v2451
    %v2515 = vmul.f32 %v1822, %v2452
    %v2516 = vmul.f32 %v1823, %v2453
    %v2517 = vmul.f32 %v1824, %v2454
    %v2518 = vmul.f32 %v1825, %v2455
    %v2519 = vmul.f32 %v1826, %v2456
    %v2520 = vmul.f32 %v1827, %v2457
    %v2521 = vmul.f32 %v1828, %v2458
    %v2522 = vmul.f32 %v1829, %v2459
    %v2523 = vmul.f32 %v1830, %v2460
    %v2524 = vmul.f32 %v1831, %v2461
    %v2525 = vmul.f32 %v1832, %v2462
    %v2526 = vmul.f32 %v1833, %v2463
    %v2527 = vmul.f32 %v1834, %v2464
    %v2528 = vmul.f32 %v1835, %v2465
    %v2529 = vmul.f32 %v1836, %v2466
    %v2530 = vmul.f32 %v1837, %v2467
    %v2531 = vmul.f32 %v1838, %v2468
    %v2532 = vmul.f32 %v1839, %v2469
    %v2533 = vmul.f32 %v1840, %v2470
    %v2534 = vmul.f32 %v1841, %v2471
    %v2535 = vmul.f32 %v1842, %v2472
    %v2536 = vmul.f32 %v1843, %v2473
    %v2537 = vmul.f32 %v1844, %v2474
    %v2538 = vmul.f32 %v1845, %v2475
    %v2539 = vmul.f32 %v1846, %v2476
    %v2540 = vmul.f32 %v1847, %v2477
    %v2541 = vmul.f32 %v1848, %v2478
    %v2542 = vmul.f32 %v1849, %v2479
    %v2543 = vmul.f32 %v1850, %v2480
    %v2544 = vmul.f32 %v1851, %v2481
    %v2545 = vmul.f32 %v1852, %v2482
    %v2546 = vmul.f32 %v1853, %v2483
    %v2547 = vmul.f32 %v1854, %v2484
    %v2548 = vmul.f32 %v1855, %v2485
    %v2549 = vmul.f32 %v1856, %v2486
    %v2550 = vmul.f32 %v1857, %v2487
    %v2551 = vmul.f32 %v1858, %v2488
    %v2552 = vmul.f32 %v1859, %v2489
    %v2553 = vmul.f32 %v1860, %v2490
    %v2554 = vmul.f32 %v1861, %v2491
    %v2555 = vmul.f32 %v1862, %v2492
    %v2556 = vmul.f32 %v1863, %v2493
    %v2557 = vmul.f32 %v1864, %v2494
    %v2558 = vmul.f32 %v1865, %v2495
    %v2559 = vmul.f32 %v1866, %v2496
    %v2560 = vmul.f32 %v1867, %v2497
    %v2561 = vmul.f32 %v1868, %v2498
    %v2562 = vmul.f32 %v1869, %v2499
    %v2563 = vmul.f32 %v1870, %v2500
    %v2564 = vmul.f32 %v1871, %v2501
    %v2565 = vmul.f32 %v1872, %v2502
    %v2566 = vmul.f32 %v1873, %v2503
    %v2567 = vmul.f32 %v1874, %v2504
    %v2568 = vmul.f32 %v1875, %v2505
    %v2569 = vmul.f32 %v1876, %v2506
    %v2570 = vmul.f32 %v1877, %v2507
    %v2571 = vmul.f32 %v1878, %v2508
    %v2572 = vmul.f32 %v1879, %v2509
    %v2573 = vmul.f32 %v1880, %v2510
    %v2574 = vmul.f32 %v1881, %v2511
    %v2575 = vadd.f32 %v2512, %v2513
    %v2576 = vadd.f32 %v2575, %v2514
    %v2577 = vadd.f32 %v2576, %v2515
    %v2578 = vadd.f32 %v2577, %v2516
    %v2579 = vadd.f32 %v2578, %v2517
    %v2580 = vadd.f32 %v2579, %v2518
    %v2581 = vadd.f32 %v2580, %v2519
    %v2582 = vadd.f32 %v2581, %v2520
    %v2583 = vadd.f32 %v2582, %v2521
    %v2584 = vadd.f32 %v2583, %v2522
    %v2585 = vadd.f32 %v2584, %v2523
    %v2586 = vadd.f32 %v2585, %v2524
    %v2587 = vadd.f32 %v2586, %v2525
    %v2588 = vadd.f32 %v2587, %v2526
    %v2589 = vadd.f32 %v2588, %v2527
    %v2590 = vadd.f32 %v2589, %v2528
    %v2591 = vadd.f32 %v2590, %v2529
    %v2592 = vadd.f32 %v2591, %v2530
    %v2593 = vadd.f32 %v2592, %v2531
    %v2594 = vadd.f32 %v2593, %v2532
    %v2595 = vadd.f32 %v2594, %v2533
    %v2596 = vadd.f32 %v2595, %v2534
    %v2597 = vadd.f32 %v2596, %v2535
    %v2598 = vadd.f32 %v2597, %v2536
    %v2599 = vadd.f32 %v2598, %v2537
    %v2600 = vadd.f32 %v2599, %v2538
    %v2601 = vadd.f32 %v2600, %v2539
    %v2602 = vadd.f32 %v2601, %v2540
    %v2603 = vadd.f32 %v2602, %v2541
    %v2604 = vadd.f32 %v2603, %v2542
    %v2605 = vadd.f32 %v2604, %v2543
    %v2606 = vadd.f32 %v2605, %v2544
    %v2607 = vadd.f32 %v2606, %v2545
    %v2608 = vadd.f32 %v2607, %v2546
    %v2609 = vadd.f32 %v2608, %v2547
    %v2610 = vadd.f32 %v2609, %v2548
    %v2611 = vadd.f32 %v2610, %v2549
    %v2612 = vadd.f32 %v2611, %v2550
    %v2613 = vadd.f32 %v2612, %v2551
    %v2614 = vadd.f32 %v2613, %v2552
    %v2615 = vadd.f32 %v2614, %v2553
    %v2616 = vadd.f32 %v2615, %v2554
    %v2617 = vadd.f32 %v2616, %v2555
    %v2618 = vadd.f32 %v2617, %v2556
    %v2619 = vadd.f32 %v2618, %v2557
    %v2620 = vadd.f32 %v2619, %v2558
    %v2621 = vadd.f32 %v2620, %v2559
    %v2622 = vadd.f32 %v2621, %v2560
    %v2623 = vadd.f32 %v2622, %v2561
    %v2624 = vadd.f32 %v2623, %v2562
    %v2625 = vadd.f32 %v2624, %v2563
    %v2626 = vadd.f32 %v2625, %v2564
    %v2627 = vadd.f32 %v2626, %v2565
    %v2628 = vadd.f32 %v2627, %v2566
    %v2629 = vadd.f32 %v2628, %v2567
    %v2630 = vadd.f32 %v2629, %v2568
    %v2631 = vadd.f32 %v2630, %v2569
    %v2632 = vadd.f32 %v2631, %v2570
    %v2633 = vadd.f32 %v2632, %v2571
    %v2634 = vadd.f32 %v2633, %v2572
    %v2635 = vadd.f32 %v2634, %v2573
    %v2636 = vadd.f32 %v2635, %v2574
    %v2637 = vmul.f32 %v1820, %v2449
    %v2638 = vmul.f32 %v1821, %v2450
    %v2639 = vmul.f32 %v1822, %v2451
    %v2640 = vmul.f32 %v1823, %v2452
    %v2641 = vmul.f32 %v1824, %v2453
    %v2642 = vmul.f32 %v1825, %v2454
    %v2643 = vmul.f32 %v1826, %v2455
    %v2644 = vmul.f32 %v1827, %v2456
    %v2645 = vmul.f32 %v1828, %v2457
    %v2646 = vmul.f32 %v1829, %v2458
    %v2647 = vmul.f32 %v1830, %v2459
    %v2648 = vmul.f32 %v1831, %v2460
    %v2649 = vmul.f32 %v1832, %v2461
    %v2650 = vmul.f32 %v1833, %v2462
    %v2651 = vmul.f32 %v1834, %v2463
    %v2652 = vmul.f32 %v1835, %v2464
    %v2653 = vmul.f32 %v1836, %v2465
    %v2654 = vmul.f32 %v1837, %v2466
    %v2655 = vmul.f32 %v1838, %v2467
    %v2656 = vmul.f32 %v1839, %v2468
    %v2657 = vmul.f32 %v1840, %v2469
    %v2658 = vmul.f32 %v1841, %v2470
    %v2659 = vmul.f32 %v1842, %v2471
    %v2660 = vmul.f32 %v1843, %v2472
    %v2661 = vmul.f32 %v1844, %v2473
    %v2662 = vmul.f32 %v1845, %v2474
    %v2663 = vmul.f32 %v1846, %v2475
    %v2664 = vmul.f32 %v1847, %v2476
    %v2665 = vmul.f32 %v1848, %v2477
    %v2666 = vmul.f32 %v1849, %v2478
    %v2667 = vmul.f32 %v1850, %v2479
    %v2668 = vmul.f32 %v1851, %v2480
    %v2669 = vmul.f32 %v1852, %v2481
    %v2670 = vmul.f32 %v1853, %v2482
    %v2671 = vmul.f32 %v1854, %v2483
    %v2672 = vmul.f32 %v1855, %v2484
    %v2673 = vmul.f32 %v1856, %v2485
    %v2674 = vmul.f32 %v1857, %v2486
    %v2675 = vmul.f32 %v1858, %v2487
    %v2676 = vmul.f32 %v1859, %v2488
    %v2677 = vmul.f32 %v1860, %v2489
    %v2678 = vmul.f32 %v1861, %v2490
    %v2679 = vmul.f32 %v1862, %v2491
    %v2680 = vmul.f32 %v1863, %v2492
    %v2681 = vmul.f32 %v1864, %v2493
    %v2682 = vmul.f32 %v1865, %v2494
    %v2683 = vmul.f32 %v1866, %v2495
    %v2684 = vmul.f32 %v1867, %v2496
    %v2685 = vmul.f32 %v1868, %v2497
    %v2686 = vmul.f32 %v1869, %v2498
    %v2687 = vmul.f32 %v1870, %v2499
    %v2688 = vmul.f32 %v1871, %v2500
    %v2689 = vmul.f32 %v1872, %v2501
    %v2690 = vmul.f32 %v1873, %v2502
    %v2691 = vmul.f32 %v1874, %v2503
    %v2692 = vmul.f32 %v1875, %v2504
    %v2693 = vmul.f32 %v1876, %v2505
    %v2694 = vmul.f32 %v1877, %v2506
    %v2695 = vmul.f32 %v1878, %v2507
    %v2696 = vmul.f32 %v1879, %v2508
    %v2697 = vmul.f32 %v1880, %v2509
    %v2698 = vmul.f32 %v1881, %v2510
    %v2699 = vmul.f32 %v1882, %v2511
    %v2700 = vadd.f32 %v2637, %v2638
    %v2701 = vadd.f32 %v2700, %v2639
    %v2702 = vadd.f32 %v2701, %v2640
    %v2703 = vadd.f32 %v2702, %v2641
    %v2704 = vadd.f32 %v2703, %v2642
    %v2705 = vadd.f32 %v2704, %v2643
    %v2706 = vadd.f32 %v2705, %v2644
    %v2707 = vadd.f32 %v2706, %v2645
    %v2708 = vadd.f32 %v2707, %v2646
    %v2709 = vadd.f32 %v2708, %v2647
    %v2710 = vadd.f32 %v2709, %v2648
    %v2711 = vadd.f32 %v2710, %v2649
    %v2712 = vadd.f32 %v2711, %v2650
    %v2713 = vadd.f32 %v2712, %v2651
    %v2714 = vadd.f32 %v2713, %v2652
    %v2715 = vadd.f32 %v2714, %v2653
    %v2716 = vadd.f32 %v2715, %v2654
    %v2717 = vadd.f32 %v2716, %v2655
    %v2718 = vadd.f32 %v2717, %v2656
    %v2719 = vadd.f32 %v2718, %v2657
    %v2720 = vadd.f32 %v2719, %v2658
    %v2721 = vadd.f32 %v2720, %v2659
    %v2722 = vadd.f32 %v2721, %v2660
    %v2723 = vadd.f32 %v2722, %v2661
    %v2724 = vadd.f32 %v2723, %v2662
    %v2725 = vadd.f32 %v2724, %v2663
    %v2726 = vadd.f32 %v2725, %v2664
    %v2727 = vadd.f32 %v2726, %v2665
    %v2728 = vadd.f32 %v2727, %v2666
    %v2729 = vadd.f32 %v2728, %v2667
    %v2730 = vadd.f32 %v2729, %v2668
    %v2731 = vadd.f32 %v2730, %v2669
    %v2732 = vadd.f32 %v2731, %v2670
    %v2733 = vadd.f32 %v2732, %v2671
    %v2734 = vadd.f32 %v2733, %v2672
    %v2735 = vadd.f32 %v2734, %v2673
    %v2736 = vadd.f32 %v2735, %v2674
    %v2737 = vadd.f32 %v2736, %v2675
    %v2738 = vadd.f32 %v2737, %v2676
    %v2739 = vadd.f32 %v2738, %v2677
    %v2740 = vadd.f32 %v2739, %v2678
    %v2741 = vadd.f32 %v2740, %v2679
    %v2742 = vadd.f32 %v2741, %v2680
    %v2743 = vadd.f32 %v2742, %v2681
    %v2744 = vadd.f32 %v2743, %v2682
    %v2745 = vadd.f32 %v2744, %v2683
    %v2746 = vadd.f32 %v2745, %v2684
    %v2747 = vadd.f32 %v2746, %v2685
    %v2748 = vadd.f32 %v2747, %v2686
    %v2749 = vadd.f32 %v2748, %v2687
    %v2750 = vadd.f32 %v2749, %v2688
    %v2751 = vadd.f32 %v2750, %v2689
    %v2752 = vadd.f32 %v2751, %v2690
    %v2753 = vadd.f32 %v2752, %v2691
    %v2754 = vadd.f32 %v2753, %v2692
    %v2755 = vadd.f32 %v2754, %v2693
    %v2756 = vadd.f32 %v2755, %v2694
    %v2757 = vadd.f32 %v2756, %v2695
    %v2758 = vadd.f32 %v2757, %v2696
    %v2759 = vadd.f32 %v2758, %v2697
    %v2760 = vadd.f32 %v2759, %v2698
    %v2761 = vadd.f32 %v2760, %v2699
    %v2762 = vmul.f32 %v1563, %v2449
    %v2763 = vmul.f32 %v1564, %v2450
    %v2764 = vmul.f32 %v1565, %v2451
    %v2765 = vmul.f32 %v1566, %v2452
    %v2766 = vmul.f32 %v1567, %v2453
    %v2767 = vmul.f32 %v1568, %v2454
    %v2768 = vmul.f32 %v1569, %v2455
    %v2769 = vmul.f32 %v1570, %v2456
    %v2770 = vmul.f32 %v1571, %v2457
    %v2771 = vmul.f32 %v1572, %v2458
    %v2772 = vmul.f32 %v1573, %v2459
    %v2773 = vmul.f32 %v1574, %v2460
    %v2774 = vmul.f32 %v1575, %v2461
    %v2775 = vmul.f32 %v1576, %v2462
    %v2776 = vmul.f32 %v1577, %v2463
    %v2777 = vmul.f32 %v1578, %v2464
    %v2778 = vmul.f32 %v1579, %v2465
    %v2779 = vmul.f32 %v1580, %v2466
    %v2780 = vmul.f32 %v1581, %v2467
    %v2781 = vmul.f32 %v1582, %v2468
    %v2782 = vmul.f32 %v1583, %v2469
    %v2783 = vmul.f32 %v1584, %v2470
    %v2784 = vmul.f32 %v1585, %v2471
    %v2785 = vmul.f32 %v1586, %v2472
    %v2786 = vmul.f32 %v1587, %v2473
    %v2787 = vmul.f32 %v1588, %v2474
    %v2788 = vmul.f32 %v1589, %v2475
    %v2789 = vmul.f32 %v1590, %v2476
    %v2790 = vmul.f32 %v1591, %v2477
    %v2791 = vmul.f32 %v1592, %v2478
    %v2792 = vmul.f32 %v1593, %v2479
    %v2793 = vmul.f32 %v1594, %v2480
    %v2794 = vmul.f32 %v1595, %v2481
    %v2795 = vmul.f32 %v1596, %v2482
    %v2796 = vmul.f32 %v1597, %v2483
    %v2797 = vmul.f32 %v1598, %v2484
    %v2798 = vmul.f32 %v1599, %v2485
    %v2799 = vmul.f32 %v1600, %v2486
    %v2800 = vmul.f32 %v1601, %v2487
    %v2801 = vmul.f32 %v1602, %v2488
    %v2802 = vmul.f32 %v1603, %v2489
    %v2803 = vmul.f32 %v1604, %v2490
    %v2804 = vmul.f32 %v1605, %v2491
    %v2805 = vmul.f32 %v1606, %v2492
    %v2806 = vmul.f32 %v1607, %v2493
    %v2807 = vmul.f32 %v1608, %v2494
    %v2808 = vmul.f32 %v1609, %v2495
    %v2809 = vmul.f32 %v1610, %v2496
    %v2810 = vmul.f32 %v1611, %v2497
    %v2811 = vmul.f32 %v1612, %v2498
    %v2812 = vmul.f32 %v1613, %v2499
    %v2813 = vmul.f32 %v1614, %v2500
    %v2814 = vmul.f32 %v1615, %v2501
    %v2815 = vmul.f32 %v1616, %v2502
    %v2816 = vmul.f32 %v1617, %v2503
    %v2817 = vmul.f32 %v1618, %v2504
    %v2818 = vmul.f32 %v1619, %v2505
    %v2819 = vmul.f32 %v1620, %v2506
    %v2820 = vmul.f32 %v1621, %v2507
    %v2821 = vmul.f32 %v1622, %v2508
    %v2822 = vmul.f32 %v1623, %v2509
    %v2823 = vmul.f32 %v1624, %v2510
    %v2824 = vmul.f32 %v1625, %v2511
    %v2825 = vadd.f32 %v2762, %v2763
    %v2826 = vadd.f32 %v2825, %v2764
    %v2827 = vadd.f32 %v2826, %v2765
    %v2828 = vadd.f32 %v2827, %v2766
    %v2829 = vadd.f32 %v2828, %v2767
    %v2830 = vadd.f32 %v2829, %v2768
    %v2831 = vadd.f32 %v2830, %v2769
    %v2832 = vadd.f32 %v2831, %v2770
    %v2833 = vadd.f32 %v2832, %v2771
    %v2834 = vadd.f32 %v2833, %v2772
    %v2835 = vadd.f32 %v2834, %v2773
    %v2836 = vadd.f32 %v2835, %v2774
    %v2837 = vadd.f32 %v2836, %v2775
    %v2838 = vadd.f32 %v2837, %v2776
    %v2839 = vadd.f32 %v2838, %v2777
    %v2840 = vadd.f32 %v2839, %v2778
    %v2841 = vadd.f32 %v2840, %v2779
    %v2842 = vadd.f32 %v2841, %v2780
    %v2843 = vadd.f32 %v2842, %v2781
    %v2844 = vadd.f32 %v2843, %v2782
    %v2845 = vadd.f32 %v2844, %v2783
    %v2846 = vadd.f32 %v2845, %v2784
    %v2847 = vadd.f32 %v2846, %v2785
    %v2848 = vadd.f32 %v2847, %v2786
    %v2849 = vadd.f32 %v2848, %v2787
    %v2850 = vadd.f32 %v2849, %v2788
    %v2851 = vadd.f32 %v2850, %v2789
    %v2852 = vadd.f32 %v2851, %v2790
    %v2853 = vadd.f32 %v2852, %v2791
    %v2854 = vadd.f32 %v2853, %v2792
    %v2855 = vadd.f32 %v2854, %v2793
    %v2856 = vadd.f32 %v2855, %v2794
    %v2857 = vadd.f32 %v2856, %v2795
    %v2858 = vadd.f32 %v2857, %v2796
    %v2859 = vadd.f32 %v2858, %v2797
    %v2860 = vadd.f32 %v2859, %v2798
    %v2861 = vadd.f32 %v2860, %v2799
    %v2862 = vadd.f32 %v2861, %v2800
    %v2863 = vadd.f32 %v2862, %v2801
    %v2864 = vadd.f32 %v2863, %v2802
    %v2865 = vadd.f32 %v2864, %v2803
    %v2866 = vadd.f32 %v2865, %v2804
    %v2867 = vadd.f32 %v2866, %v2805
    %v2868 = vadd.f32 %v2867, %v2806
    %v2869 = vadd.f32 %v2868, %v2807
    %v2870 = vadd.f32 %v2869, %v2808
    %v2871 = vadd.f32 %v2870, %v2809
    %v2872 = vadd.f32 %v2871, %v2810
    %v2873 = vadd.f32 %v2872, %v2811
    %v2874 = vadd.f32 %v2873, %v2812
    %v2875 = vadd.f32 %v2874, %v2813
    %v2876 = vadd.f32 %v2875, %v2814
    %v2877 = vadd.f32 %v2876, %v2815
    %v2878 = vadd.f32 %v2877, %v2816
    %v2879 = vadd.f32 %v2878, %v2817
    %v2880 = vadd.f32 %v2879, %v2818
    %v2881 = vadd.f32 %v2880, %v2819
    %v2882 = vadd.f32 %v2881, %v2820
    %v2883 = vadd.f32 %v2882, %v2821
    %v2884 = vadd.f32 %v2883, %v2822
    %v2885 = vadd.f32 %v2884, %v2823
    %v2886 = vadd.f32 %v2885, %v2824
    %v2887 = vmul.f32 %v1564, %v2449
    %v2888 = vmul.f32 %v1565, %v2450
    %v2889 = vmul.f32 %v1566, %v2451
    %v2890 = vmul.f32 %v1567, %v2452
    %v2891 = vmul.f32 %v1568, %v2453
    %v2892 = vmul.f32 %v1569, %v2454
    %v2893 = vmul.f32 %v1570, %v2455
    %v2894 = vmul.f32 %v1571, %v2456
    %v2895 = vmul.f32 %v1572, %v2457
    %v2896 = vmul.f32 %v1573, %v2458
    %v2897 = vmul.f32 %v1574, %v2459
    %v2898 = vmul.f32 %v1575, %v2460
    %v2899 = vmul.f32 %v1576, %v2461
    %v2900 = vmul.f32 %v1577, %v2462
    %v2901 = vmul.f32 %v1578, %v2463
    %v2902 = vmul.f32 %v1579, %v2464
    %v2903 = vmul.f32 %v1580, %v2465
    %v2904 = vmul.f32 %v1581, %v2466
    %v2905 = vmul.f32 %v1582, %v2467
    %v2906 = vmul.f32 %v1583, %v2468
    %v2907 = vmul.f32 %v1584, %v2469
    %v2908 = vmul.f32 %v1585, %v2470
    %v2909 = vmul.f32 %v1586, %v2471
    %v2910 = vmul.f32 %v1587, %v2472
    %v2911 = vmul.f32 %v1588, %v2473
    %v2912 = vmul.f32 %v1589, %v2474
    %v2913 = vmul.f32 %v1590, %v2475
    %v2914 = vmul.f32 %v1591, %v2476
    %v2915 = vmul.f32 %v1592, %v2477
    %v2916 = vmul.f32 %v1593, %v2478
    %v2917 = vmul.f32 %v1594, %v2479
    %v2918 = vmul.f32 %v1595, %v2480
    %v2919 = vmul.f32 %v1596, %v2481
    %v2920 = vmul.f32 %v1597, %v2482
    %v2921 = vmul.f32 %v1598, %v2483
    %v2922 = vmul.f32 %v1599, %v2484
    %v2923 = vmul.f32 %v1600, %v2485
    %v2924 = vmul.f32 %v1601, %v2486
    %v2925 = vmul.f32 %v1602, %v2487
    %v2926 = vmul.f32 %v1603, %v2488
    %v2927 = vmul.f32 %v1604, %v2489
    %v2928 = vmul.f32 %v1605, %v2490
    %v2929 = vmul.f32 %v1606, %v2491
    %v2930 = vmul.f32 %v1607, %v2492
    %v2931 = vmul.f32 %v1608, %v2493
    %v2932 = vmul.f32 %v1609, %v2494
    %v2933 = vmul.f32 %v1610, %v2495
    %v2934 = vmul.f32 %v1611, %v2496
    %v2935 = vmul.f32 %v1612, %v2497
    %v2936 = vmul.f32 %v1613, %v2498
    %v2937 = vmul.f32 %v1614, %v2499
    %v2938 = vmul.f32 %v1615, %v2500
    %v2939 = vmul.f32 %v1616, %v2501
    %v2940 = vmul.f32 %v1617, %v2502
    %v2941 = vmul.f32 %v1618, %v2503
    %v2942 = vmul.f32 %v1619, %v2504
    %v2943 = vmul.f32 %v1620, %v2505
    %v2944 = vmul.f32 %v1621, %v2506
    %v2945 = vmul.f32 %v1622, %v2507
    %v2946 = vmul.f32 %v1623, %v2508
    %v2947 = vmul.f32 %v1624, %v2509
    %v2948 = vmul.f32 %v1625, %v2510
    %v2949 = vmul.f32 %v1626, %v2511
    %v2950 = vadd.f32 %v2887, %v2888
    %v2951 = vadd.f32 %v2950, %v2889
    %v2952 = vadd.f32 %v2951, %v2890
    %v2953 = vadd.f32 %v2952, %v2891
    %v2954 = vadd.f32 %v2953, %v2892
    %v2955 = vadd.f32 %v2954, %v2893
    %v2956 = vadd.f32 %v2955, %v2894
    %v2957 = vadd.f32 %v2956, %v2895
    %v2958 = vadd.f32 %v2957, %v2896
    %v2959 = vadd.f32 %v2958, %v2897
    %v2960 = vadd.f32 %v2959, %v2898
    %v2961 = vadd.f32 %v2960, %v2899
    %v2962 = vadd.f32 %v2961, %v2900
    %v2963 = vadd.f32 %v2962, %v2901
    %v2964 = vadd.f32 %v2963, %v2902
    %v2965 = vadd.f32 %v2964, %v2903
    %v2966 = vadd.f32 %v2965, %v2904
    %v2967 = vadd.f32 %v2966, %v2905
    %v2968 = vadd.f32 %v2967, %v2906
    %v2969 = vadd.f32 %v2968, %v2907
    %v2970 = vadd.f32 %v2969, %v2908
    %v2971 = vadd.f32 %v2970, %v2909
    %v2972 = vadd.f32 %v2971, %v2910
    %v2973 = vadd.f32 %v2972, %v2911
    %v2974 = vadd.f32 %v2973, %v2912
    %v2975 = vadd.f32 %v2974, %v2913
    %v2976 = vadd.f32 %v2975, %v2914
    %v2977 = vadd.f32 %v2976, %v2915
    %v2978 = vadd.f32 %v2977, %v2916
    %v2979 = vadd.f32 %v2978, %v2917
    %v2980 = vadd.f32 %v2979, %v2918
    %v2981 = vadd.f32 %v2980, %v2919
    %v2982 = vadd.f32 %v2981, %v2920
    %v2983 = vadd.f32 %v2982, %v2921
    %v2984 = vadd.f32 %v2983, %v2922
    %v2985 = vadd.f32 %v2984, %v2923
    %v2986 = vadd.f32 %v2985, %v2924
    %v2987 = vadd.f32 %v2986, %v2925
    %v2988 = vadd.f32 %v2987, %v2926
    %v2989 = vadd.f32 %v2988, %v2927
    %v2990 = vadd.f32 %v2989, %v2928
    %v2991 = vadd.f32 %v2990, %v2929
    %v2992 = vadd.f32 %v2991, %v2930
    %v2993 = vadd.f32 %v2992, %v2931
    %v2994 = vadd.f32 %v2993, %v2932
    %v2995 = vadd.f32 %v2994, %v2933
    %v2996 = vadd.f32 %v2995, %v2934
    %v2997 = vadd.f32 %v2996, %v2935
    %v2998 = vadd.f32 %v2997, %v2936
    %v2999 = vadd.f32 %v2998, %v2937
    %v3000 = vadd.f32 %v2999, %v2938
    %v3001 = vadd.f32 %v3000, %v2939
    %v3002 = vadd.f32 %v3001, %v2940
    %v3003 = vadd.f32 %v3002, %v2941
    %v3004 = vadd.f32 %v3003, %v2942
    %v3005 = vadd.f32 %v3004, %v2943
    %v3006 = vadd.f32 %v3005, %v2944
    %v3007 = vadd.f32 %v3006, %v2945
    %v3008 = vadd.f32 %v3007, %v2946
    %v3009 = vadd.f32 %v3008, %v2947
    %v3010 = vadd.f32 %v3009, %v2948
    %v3011 = vadd.f32 %v3010, %v2949
    %vm3012 = vcmp.ge.f32.partialorder %v2636, 0.0
    %vm3013 = vcmp.le.f32.partialorder %v2761, 0.0
    %vm3014 = vmand %vm3012, %vm3013
    %vm3015 = vmand %vm1057, %vm3014
    %v3016 = vadd.f32 %v2636, 0.25
    %v3017 = vmax.f32 %v3016, 0.0
    %v3018 = vrsqrt.pop %v3017
    %v3019 = vmul.f32 %v3017, %v3018
    %vm3020 = vcmp.eq.f32.partialorder %v3017, inf
    %v3021 = vsel %vm3020, %v3017, %v3019
    %vm3022 = vcmp.eq.f32.partialorder %v3017, 0.0
    %v3023 = vand.u32 %v3017, 2147483648
    %v3024 = vsel %vm3022, %v3023, %v3021
    %v3025 = vsub.f32 %v3024, 0.5
    %v3026 = vadd.f32 %v2761, 0.25
    %v3027 = vmax.f32 %v3026, 0.0
    %v3028 = vrsqrt.pop %v3027
    %v3029 = vmul.f32 %v3027, %v3028
    %vm3030 = vcmp.eq.f32.partialorder %v3027, inf
    %v3031 = vsel %vm3030, %v3027, %v3029
    %vm3032 = vcmp.eq.f32.partialorder %v3027, 0.0
    %v3033 = vand.u32 %v3027, 2147483648
    %v3034 = vsel %vm3032, %v3033, %v3031
    %v3035 = vsub.f32 %v3034, 0.5
    %v3036 = vsub.f32 %v3035, %v3025
    %v3037 = vand.u32 2147483647, %v3036
    %vm3038 = vcmp.lt.f32.partialorder %v3037, 1e-10
    %vm3039 = vcmp.lt.f32.partialorder %v3036, 0.0
    %v3040 = vsel %vm3039, -1e-10, 1e-10
    %v3041 = vsel %vm3038, %v3040, %v3036
    %v3042 = vsub.f32 %v3011, %v2886
    %v3043 = vmul.f32 %v3025, %v3042
    %v3044 = vrcp.pop %v3041
    %v3045 = vmul.f32 %v3043, %v3044
    %v3046 = vsub.f32 %v2886, %v3045
    %v3047 = vmul.f32 %v3046, %v205
    %v3048 = vadd.f32 %v200, %v3047
    %v3049 = vmul.f32 %v3046, %v207
    %v3050 = vadd.f32 %v202, %v3049
    %v3051 = vmul.f32 %v3046, %v209
    %v3052 = vadd.f32 %v204, %v3051
    %v3053 = vmul.f32 %v3048, %v3048
    %v3054 = vmul.f32 %v3050, %v3050
    %v3055 = vadd.f32 %v3053, %v3054
    %v3056 = vmul.f32 %v3052, %v3052
    %v3057 = vadd.f32 %v3055, %v3056
    %v3058 = vmax.f32 %v3057, 1e-12
    %v3059 = vrsqrt.pop %v3058
    %v3060 = vmul.f32 %v3048, %v3059
    %v3061 = vsel %vm3015, %v3060, 0.0
    %v3062 = vmul.f32 %v3050, %v3059
    %v3063 = vsel %vm3015, %v3062, 0.0
    %v3064 = vmul.f32 %v3052, %v3059
    %v3065 = vsel %vm3015, %v3064, 0.0
    %vm3066 = vmxor %vm3015, 1
    %v3067 = vmul.f32 %v205, %v3061
    %v3068 = vmul.f32 %v207, %v3063
    %v3069 = vadd.f32 %v3067, %v3068
    %v3070 = vmul.f32 %v209, %v3065
    %v3071 = vadd.f32 %v3069, %v3070
    %v3072 = vsub.f32 0.0, %v3071
    %v3073 = vmul.f32 %v3061, %v3072
    %v3074 = vadd.f32 %v205, %v3073
    %v3075 = vmul.f32 %v3063, %v3072
    %v3076 = vadd.f32 %v207, %v3075
    %v3077 = vmul.f32 %v3065, %v3072
    %v3078 = vadd.f32 %v209, %v3077
    %v3079 = vmul.f32 %v3074, %v3074
    %v3080 = vmul.f32 %v3076, %v3076
    %v3081 = vadd.f32 %v3079, %v3080
    %v3082 = vmul.f32 %v3078, %v3078
    %v3083 = vadd.f32 %v3081, %v3082
    %v3084 = vmax.f32 %v3083, 0.0
    %v3085 = vmin.f32 %v3084, 0.999999
    %v3086 = vsub.f32 1.0, %v3085
    %v3087 = vrsqrt.pop %v3086
    %v3088 = vmul.f32 %v3086, %v3087
    %vm3089 = vcmp.eq.f32.partialorder %v3086, inf
    %v3090 = vsel %vm3089, %v3086, %v3088
    %vm3091 = vcmp.eq.f32.partialorder %v3086, 0.0
    %v3092 = vand.u32 %v3086, 2147483648
    %v3093 = vsel %vm3091, %v3092, %v3090
    %v3094 = vmul.f32 %v3061, %v3093
    %v3095 = vadd.f32 %v3074, %v3094
    %v3096 = vmul.f32 %v3063, %v3093
    %v3097 = vadd.f32 %v3076, %v3096
    %v3098 = vmul.f32 %v3065, %v3093
    %v3099 = vadd.f32 %v3078, %v3098
    %v3100 = vmul.f32 %v3095, %v3095
    %v3101 = vmul.f32 %v3097, %v3097
    %v3102 = vadd.f32 %v3100, %v3101
    %v3103 = vmul.f32 %v3099, %v3099
    %v3104 = vadd.f32 %v3102, %v3103
    %v3105 = vmax.f32 %v3104, 1e-10
    %v3106 = vrsqrt.pop %v3105
    %v3107 = vmul.f32 %v3095, %v3106
    %v3108 = vmul.f32 %v3097, %v3106
    %v3109 = vmul.f32 %v3099, %v3106
    %v3110 = vsel %vm3015, %v3048, 0.0
    %v3111 = vsel %vm3015, %v3050, 0.0
    %v3112 = vsel %vm3015, %v3052, 0.0
    %v3113 = vsel %vm3015, %v3107, 0.0
    %v3114 = vsel %vm3015, %v3108, 0.0
    %v3115 = vsel %vm3015, %v3109, 0.0
    %v3116 = vmul.f32 %v3074, 0.6580921
    %v3117 = vmul.f32 %v3076, 0.6580921
    %v3118 = vmul.f32 %v3078, 0.6580921
    %v3119 = vmul.f32 %v3116, %v3116
    %v3120 = vmul.f32 %v3117, %v3117
    %v3121 = vadd.f32 %v3119, %v3120
    %v3122 = vmul.f32 %v3118, %v3118
    %v3123 = vadd.f32 %v3121, %v3122
    %vm3124 = vcmp.gt.f32.partialorder %v3123, 0.999999
    %v3125 = vmax.f32 %v3123, 0.0
    %v3126 = vmin.f32 %v3125, 0.999999
    %v3127 = vsub.f32 1.0, %v3126
    %v3128 = vrsqrt.pop %v3127
    %v3129 = vmul.f32 %v3127, %v3128
    %vm3130 = vcmp.eq.f32.partialorder %v3127, inf
    %v3131 = vsel %vm3130, %v3127, %v3129
    %vm3132 = vcmp.eq.f32.partialorder %v3127, 0.0
    %v3133 = vand.u32 %v3127, 2147483648
    %v3134 = vsel %vm3132, %v3133, %v3131
    %v3135 = vsub.f32 0.0, %v3061
    %v3136 = vmul.f32 %v3135, %v3134
    %v3137 = vadd.f32 %v3136, %v3116
    %v3138 = vsub.f32 0.0, %v3063
    %v3139 = vmul.f32 %v3138, %v3134
    %v3140 = vadd.f32 %v3139, %v3117
    %v3141 = vsub.f32 0.0, %v3065
    %v3142 = vmul.f32 %v3141, %v3134
    %v3143 = vadd.f32 %v3142, %v3118
    %v3144 = vmul.f32 %v3137, %v3137
    %v3145 = vmul.f32 %v3140, %v3140
    %v3146 = vadd.f32 %v3144, %v3145
    %v3147 = vmul.f32 %v3143, %v3143
    %v3148 = vadd.f32 %v3146, %v3147
    %v3149 = vmax.f32 %v3148, 1e-10
    %v3150 = vrsqrt.pop %v3149
    %v3151 = vmul.f32 %v3137, %v3150
    %v3152 = vmul.f32 %v3140, %v3150
    %v3153 = vmul.f32 %v3143, %v3150
    %v3154 = vmul.f32 %v3151, %v3061
    %v3155 = vmul.f32 %v3152, %v3063
    %v3156 = vadd.f32 %v3154, %v3155
    %v3157 = vmul.f32 %v3153, %v3065
    %v3158 = vadd.f32 %v3156, %v3157
    %v3159 = vsub.f32 0.0, %v3158
    %v3160 = vmul.f32 %v3159, 1.52
    %v3161 = vmul.f32 %v3072, 1.0003
    %v3162 = vsub.f32 %v3160, %v3161
    %v3163 = vadd.f32 %v3160, %v3161
    %v3164 = vmax.f32 %v3163, 1e-10
    %v3165 = vrcp.pop %v3164
    %v3166 = vmul.f32 %v3162, %v3165
    %v3167 = vmul.f32 %v3159, 1.0003
    %v3168 = vmul.f32 %v3072, 1.52
    %v3169 = vsub.f32 %v3167, %v3168
    %v3170 = vadd.f32 %v3167, %v3168
    %v3171 = vmax.f32 %v3170, 1e-10
    %v3172 = vrcp.pop %v3171
    %v3173 = vmul.f32 %v3169, %v3172
    %v3174 = vmul.f32 %v3166, %v3166
    %v3175 = vmul.f32 %v3173, %v3173
    %v3176 = vadd.f32 %v3174, %v3175
    %v3177 = vmul.f32 %v3176, 0.5
    %v3178 = vmax.f32 %v3177, 0.0
    %v3179 = vmin.f32 %v3178, 1.0
    %vm3180 = vmand %vm3015, %vm3124
    %v3181 = vsel %vm3015, %v3179, 0.0
    %vm3182 = vmxor %vm3180, 1
    %vm3183 = vmand %vm3015, %vm3182
    %v3184 = vmul.f32 %v3151, %v3151
    %v3185 = vmul.f32 %v3152, %v3152
    %v3186 = vadd.f32 %v3184, %v3185
    %v3187 = vmul.f32 %v3153, %v3153
    %v3188 = vadd.f32 %v3186, %v3187
    %v3189 = vmul.f32 %v3048, %v3151
    %v3190 = vmul.f32 %v3050, %v3152
    %v3191 = vadd.f32 %v3189, %v3190
    %v3192 = vmul.f32 %v3052, %v3153
    %v3193 = vadd.f32 %v3191, %v3192
    %v3194 = vmul.f32 %v3193, 2.0
    %v3195 = vsub.f32 %v3057, 0.25
    %v3196 = vsub.f32 0.0, %v3194
    %v3197 = vmul.f32 %v3196, 0.5
    %v3198 = vrcp.pop %v3188
    %v3199 = vmul.f32 %v3197, %v3198
    %v3200 = vsub.f32 %v3199, 1.0
    %v3201 = vmax.f32 %v3200, 0.0
    %v3202 = vadd.f32 %v3199, 1.0
    %v3203 = vsub.f32 %v3202, %v3201
    %v3204 = vmul.f32 %v3203, %v73
    %v3205 = vmul.f32 %v3203, %v74
    %v3206 = vmul.f32 %v3203, %v75
    %v3207 = vmul.f32 %v3203, %v76
    %v3208 = vmul.f32 %v3203, %v77
    %v3209 = vmul.f32 %v3203, %v78
    %v3210 = vmul.f32 %v3203, %v79
    %v3211 = vmul.f32 %v3203, %v80
    %v3212 = vmul.f32 %v3203, %v81
    %v3213 = vmul.f32 %v3203, %v82
    %v3214 = vmul.f32 %v3203, %v83
    %v3215 = vmul.f32 %v3203, %v84
    %v3216 = vmul.f32 %v3203, %v85
    %v3217 = vmul.f32 %v3203, %v86
    %v3218 = vmul.f32 %v3203, %v87
    %v3219 = vmul.f32 %v3203, %v88
    %v3220 = vmul.f32 %v3203, %v89
    %v3221 = vmul.f32 %v3203, %v90
    %v3222 = vmul.f32 %v3203, %v91
    %v3223 = vmul.f32 %v3203, %v92
    %v3224 = vmul.f32 %v3203, %v93
    %v3225 = vmul.f32 %v3203, %v94
    %v3226 = vmul.f32 %v3203, %v95
    %v3227 = vmul.f32 %v3203, %v96
    %v3228 = vmul.f32 %v3203, %v97
    %v3229 = vmul.f32 %v3203, %v98
    %v3230 = vmul.f32 %v3203, %v99
    %v3231 = vmul.f32 %v3203, %v100
    %v3232 = vmul.f32 %v3203, %v101
    %v3233 = vmul.f32 %v3203, %v102
    %v3234 = vmul.f32 %v3203, %v103
    %v3235 = vmul.f32 %v3203, %v104
    %v3236 = vmul.f32 %v3203, %v105
    %v3237 = vmul.f32 %v3203, %v106
    %v3238 = vmul.f32 %v3203, %v107
    %v3239 = vmul.f32 %v3203, %v108
    %v3240 = vmul.f32 %v3203, %v109
    %v3241 = vmul.f32 %v3203, %v110
    %v3242 = vmul.f32 %v3203, %v111
    %v3243 = vmul.f32 %v3203, %v112
    %v3244 = vmul.f32 %v3203, %v113
    %v3245 = vmul.f32 %v3203, %v114
    %v3246 = vmul.f32 %v3203, %v115
    %v3247 = vmul.f32 %v3203, %v116
    %v3248 = vmul.f32 %v3203, %v117
    %v3249 = vmul.f32 %v3203, %v118
    %v3250 = vmul.f32 %v3203, %v119
    %v3251 = vmul.f32 %v3203, %v120
    %v3252 = vmul.f32 %v3203, %v121
    %v3253 = vmul.f32 %v3203, %v122
    %v3254 = vmul.f32 %v3203, %v123
    %v3255 = vmul.f32 %v3203, %v124
    %v3256 = vmul.f32 %v3203, %v125
    %v3257 = vmul.f32 %v3203, %v126
    %v3258 = vmul.f32 %v3203, %v127
    %v3259 = vmul.f32 %v3203, %v128
    %v3260 = vmul.f32 %v3203, %v129
    %v3261 = vmul.f32 %v3203, %v130
    %v3262 = vmul.f32 %v3203, %v131
    %v3263 = vmul.f32 %v3203, %v132
    %v3264 = vmul.f32 %v3203, %v133
    %v3265 = vmul.f32 %v3203, %v134
    %v3266 = vmul.f32 %v3203, %v135
    %v3267 = vmul.f32 %v3203, %v136
    %v3268 = vadd.f32 %v3201, %v3204
    %v3269 = vadd.f32 %v3201, %v3205
    %v3270 = vadd.f32 %v3201, %v3206
    %v3271 = vadd.f32 %v3201, %v3207
    %v3272 = vadd.f32 %v3201, %v3208
    %v3273 = vadd.f32 %v3201, %v3209
    %v3274 = vadd.f32 %v3201, %v3210
    %v3275 = vadd.f32 %v3201, %v3211
    %v3276 = vadd.f32 %v3201, %v3212
    %v3277 = vadd.f32 %v3201, %v3213
    %v3278 = vadd.f32 %v3201, %v3214
    %v3279 = vadd.f32 %v3201, %v3215
    %v3280 = vadd.f32 %v3201, %v3216
    %v3281 = vadd.f32 %v3201, %v3217
    %v3282 = vadd.f32 %v3201, %v3218
    %v3283 = vadd.f32 %v3201, %v3219
    %v3284 = vadd.f32 %v3201, %v3220
    %v3285 = vadd.f32 %v3201, %v3221
    %v3286 = vadd.f32 %v3201, %v3222
    %v3287 = vadd.f32 %v3201, %v3223
    %v3288 = vadd.f32 %v3201, %v3224
    %v3289 = vadd.f32 %v3201, %v3225
    %v3290 = vadd.f32 %v3201, %v3226
    %v3291 = vadd.f32 %v3201, %v3227
    %v3292 = vadd.f32 %v3201, %v3228
    %v3293 = vadd.f32 %v3201, %v3229
    %v3294 = vadd.f32 %v3201, %v3230
    %v3295 = vadd.f32 %v3201, %v3231
    %v3296 = vadd.f32 %v3201, %v3232
    %v3297 = vadd.f32 %v3201, %v3233
    %v3298 = vadd.f32 %v3201, %v3234
    %v3299 = vadd.f32 %v3201, %v3235
    %v3300 = vadd.f32 %v3201, %v3236
    %v3301 = vadd.f32 %v3201, %v3237
    %v3302 = vadd.f32 %v3201, %v3238
    %v3303 = vadd.f32 %v3201, %v3239
    %v3304 = vadd.f32 %v3201, %v3240
    %v3305 = vadd.f32 %v3201, %v3241
    %v3306 = vadd.f32 %v3201, %v3242
    %v3307 = vadd.f32 %v3201, %v3243
    %v3308 = vadd.f32 %v3201, %v3244
    %v3309 = vadd.f32 %v3201, %v3245
    %v3310 = vadd.f32 %v3201, %v3246
    %v3311 = vadd.f32 %v3201, %v3247
    %v3312 = vadd.f32 %v3201, %v3248
    %v3313 = vadd.f32 %v3201, %v3249
    %v3314 = vadd.f32 %v3201, %v3250
    %v3315 = vadd.f32 %v3201, %v3251
    %v3316 = vadd.f32 %v3201, %v3252
    %v3317 = vadd.f32 %v3201, %v3253
    %v3318 = vadd.f32 %v3201, %v3254
    %v3319 = vadd.f32 %v3201, %v3255
    %v3320 = vadd.f32 %v3201, %v3256
    %v3321 = vadd.f32 %v3201, %v3257
    %v3322 = vadd.f32 %v3201, %v3258
    %v3323 = vadd.f32 %v3201, %v3259
    %v3324 = vadd.f32 %v3201, %v3260
    %v3325 = vadd.f32 %v3201, %v3261
    %v3326 = vadd.f32 %v3201, %v3262
    %v3327 = vadd.f32 %v3201, %v3263
    %v3328 = vadd.f32 %v3201, %v3264
    %v3329 = vadd.f32 %v3201, %v3265
    %v3330 = vadd.f32 %v3201, %v3266
    %v3331 = vadd.f32 %v3201, %v3267
    %v3332 = vmul.f32 %v3188, %v3268
    %v3333 = vmul.f32 %v3188, %v3269
    %v3334 = vmul.f32 %v3188, %v3270
    %v3335 = vmul.f32 %v3188, %v3271
    %v3336 = vmul.f32 %v3188, %v3272
    %v3337 = vmul.f32 %v3188, %v3273
    %v3338 = vmul.f32 %v3188, %v3274
    %v3339 = vmul.f32 %v3188, %v3275
    %v3340 = vmul.f32 %v3188, %v3276
    %v3341 = vmul.f32 %v3188, %v3277
    %v3342 = vmul.f32 %v3188, %v3278
    %v3343 = vmul.f32 %v3188, %v3279
    %v3344 = vmul.f32 %v3188, %v3280
    %v3345 = vmul.f32 %v3188, %v3281
    %v3346 = vmul.f32 %v3188, %v3282
    %v3347 = vmul.f32 %v3188, %v3283
    %v3348 = vmul.f32 %v3188, %v3284
    %v3349 = vmul.f32 %v3188, %v3285
    %v3350 = vmul.f32 %v3188, %v3286
    %v3351 = vmul.f32 %v3188, %v3287
    %v3352 = vmul.f32 %v3188, %v3288
    %v3353 = vmul.f32 %v3188, %v3289
    %v3354 = vmul.f32 %v3188, %v3290
    %v3355 = vmul.f32 %v3188, %v3291
    %v3356 = vmul.f32 %v3188, %v3292
    %v3357 = vmul.f32 %v3188, %v3293
    %v3358 = vmul.f32 %v3188, %v3294
    %v3359 = vmul.f32 %v3188, %v3295
    %v3360 = vmul.f32 %v3188, %v3296
    %v3361 = vmul.f32 %v3188, %v3297
    %v3362 = vmul.f32 %v3188, %v3298
    %v3363 = vmul.f32 %v3188, %v3299
    %v3364 = vmul.f32 %v3188, %v3300
    %v3365 = vmul.f32 %v3188, %v3301
    %v3366 = vmul.f32 %v3188, %v3302
    %v3367 = vmul.f32 %v3188, %v3303
    %v3368 = vmul.f32 %v3188, %v3304
    %v3369 = vmul.f32 %v3188, %v3305
    %v3370 = vmul.f32 %v3188, %v3306
    %v3371 = vmul.f32 %v3188, %v3307
    %v3372 = vmul.f32 %v3188, %v3308
    %v3373 = vmul.f32 %v3188, %v3309
    %v3374 = vmul.f32 %v3188, %v3310
    %v3375 = vmul.f32 %v3188, %v3311
    %v3376 = vmul.f32 %v3188, %v3312
    %v3377 = vmul.f32 %v3188, %v3313
    %v3378 = vmul.f32 %v3188, %v3314
    %v3379 = vmul.f32 %v3188, %v3315
    %v3380 = vmul.f32 %v3188, %v3316
    %v3381 = vmul.f32 %v3188, %v3317
    %v3382 = vmul.f32 %v3188, %v3318
    %v3383 = vmul.f32 %v3188, %v3319
    %v3384 = vmul.f32 %v3188, %v3320
    %v3385 = vmul.f32 %v3188, %v3321
    %v3386 = vmul.f32 %v3188, %v3322
    %v3387 = vmul.f32 %v3188, %v3323
    %v3388 = vmul.f32 %v3188, %v3324
    %v3389 = vmul.f32 %v3188, %v3325
    %v3390 = vmul.f32 %v3188, %v3326
    %v3391 = vmul.f32 %v3188, %v3327
    %v3392 = vmul.f32 %v3188, %v3328
    %v3393 = vmul.f32 %v3188, %v3329
    %v3394 = vmul.f32 %v3188, %v3330
    %v3395 = vmul.f32 %v3188, %v3331
    %v3396 = vadd.f32 %v3332, %v3194
    %v3397 = vadd.f32 %v3333, %v3194
    %v3398 = vadd.f32 %v3334, %v3194
    %v3399 = vadd.f32 %v3335, %v3194
    %v3400 = vadd.f32 %v3336, %v3194
    %v3401 = vadd.f32 %v3337, %v3194
    %v3402 = vadd.f32 %v3338, %v3194
    %v3403 = vadd.f32 %v3339, %v3194
    %v3404 = vadd.f32 %v3340, %v3194
    %v3405 = vadd.f32 %v3341, %v3194
    %v3406 = vadd.f32 %v3342, %v3194
    %v3407 = vadd.f32 %v3343, %v3194
    %v3408 = vadd.f32 %v3344, %v3194
    %v3409 = vadd.f32 %v3345, %v3194
    %v3410 = vadd.f32 %v3346, %v3194
    %v3411 = vadd.f32 %v3347, %v3194
    %v3412 = vadd.f32 %v3348, %v3194
    %v3413 = vadd.f32 %v3349, %v3194
    %v3414 = vadd.f32 %v3350, %v3194
    %v3415 = vadd.f32 %v3351, %v3194
    %v3416 = vadd.f32 %v3352, %v3194
    %v3417 = vadd.f32 %v3353, %v3194
    %v3418 = vadd.f32 %v3354, %v3194
    %v3419 = vadd.f32 %v3355, %v3194
    %v3420 = vadd.f32 %v3356, %v3194
    %v3421 = vadd.f32 %v3357, %v3194
    %v3422 = vadd.f32 %v3358, %v3194
    %v3423 = vadd.f32 %v3359, %v3194
    %v3424 = vadd.f32 %v3360, %v3194
    %v3425 = vadd.f32 %v3361, %v3194
    %v3426 = vadd.f32 %v3362, %v3194
    %v3427 = vadd.f32 %v3363, %v3194
    %v3428 = vadd.f32 %v3364, %v3194
    %v3429 = vadd.f32 %v3365, %v3194
    %v3430 = vadd.f32 %v3366, %v3194
    %v3431 = vadd.f32 %v3367, %v3194
    %v3432 = vadd.f32 %v3368, %v3194
    %v3433 = vadd.f32 %v3369, %v3194
    %v3434 = vadd.f32 %v3370, %v3194
    %v3435 = vadd.f32 %v3371, %v3194
    %v3436 = vadd.f32 %v3372, %v3194
    %v3437 = vadd.f32 %v3373, %v3194
    %v3438 = vadd.f32 %v3374, %v3194
    %v3439 = vadd.f32 %v3375, %v3194
    %v3440 = vadd.f32 %v3376, %v3194
    %v3441 = vadd.f32 %v3377, %v3194
    %v3442 = vadd.f32 %v3378, %v3194
    %v3443 = vadd.f32 %v3379, %v3194
    %v3444 = vadd.f32 %v3380, %v3194
    %v3445 = vadd.f32 %v3381, %v3194
    %v3446 = vadd.f32 %v3382, %v3194
    %v3447 = vadd.f32 %v3383, %v3194
    %v3448 = vadd.f32 %v3384, %v3194
    %v3449 = vadd.f32 %v3385, %v3194
    %v3450 = vadd.f32 %v3386, %v3194
    %v3451 = vadd.f32 %v3387, %v3194
    %v3452 = vadd.f32 %v3388, %v3194
    %v3453 = vadd.f32 %v3389, %v3194
    %v3454 = vadd.f32 %v3390, %v3194
    %v3455 = vadd.f32 %v3391, %v3194
    %v3456 = vadd.f32 %v3392, %v3194
    %v3457 = vadd.f32 %v3393, %v3194
    %v3458 = vadd.f32 %v3394, %v3194
    %v3459 = vadd.f32 %v3395, %v3194
    %v3460 = vmul.f32 %v3396, %v3268
    %v3461 = vmul.f32 %v3397, %v3269
    %v3462 = vmul.f32 %v3398, %v3270
    %v3463 = vmul.f32 %v3399, %v3271
    %v3464 = vmul.f32 %v3400, %v3272
    %v3465 = vmul.f32 %v3401, %v3273
    %v3466 = vmul.f32 %v3402, %v3274
    %v3467 = vmul.f32 %v3403, %v3275
    %v3468 = vmul.f32 %v3404, %v3276
    %v3469 = vmul.f32 %v3405, %v3277
    %v3470 = vmul.f32 %v3406, %v3278
    %v3471 = vmul.f32 %v3407, %v3279
    %v3472 = vmul.f32 %v3408, %v3280
    %v3473 = vmul.f32 %v3409, %v3281
    %v3474 = vmul.f32 %v3410, %v3282
    %v3475 = vmul.f32 %v3411, %v3283
    %v3476 = vmul.f32 %v3412, %v3284
    %v3477 = vmul.f32 %v3413, %v3285
    %v3478 = vmul.f32 %v3414, %v3286
    %v3479 = vmul.f32 %v3415, %v3287
    %v3480 = vmul.f32 %v3416, %v3288
    %v3481 = vmul.f32 %v3417, %v3289
    %v3482 = vmul.f32 %v3418, %v3290
    %v3483 = vmul.f32 %v3419, %v3291
    %v3484 = vmul.f32 %v3420, %v3292
    %v3485 = vmul.f32 %v3421, %v3293
    %v3486 = vmul.f32 %v3422, %v3294
    %v3487 = vmul.f32 %v3423, %v3295
    %v3488 = vmul.f32 %v3424, %v3296
    %v3489 = vmul.f32 %v3425, %v3297
    %v3490 = vmul.f32 %v3426, %v3298
    %v3491 = vmul.f32 %v3427, %v3299
    %v3492 = vmul.f32 %v3428, %v3300
    %v3493 = vmul.f32 %v3429, %v3301
    %v3494 = vmul.f32 %v3430, %v3302
    %v3495 = vmul.f32 %v3431, %v3303
    %v3496 = vmul.f32 %v3432, %v3304
    %v3497 = vmul.f32 %v3433, %v3305
    %v3498 = vmul.f32 %v3434, %v3306
    %v3499 = vmul.f32 %v3435, %v3307
    %v3500 = vmul.f32 %v3436, %v3308
    %v3501 = vmul.f32 %v3437, %v3309
    %v3502 = vmul.f32 %v3438, %v3310
    %v3503 = vmul.f32 %v3439, %v3311
    %v3504 = vmul.f32 %v3440, %v3312
    %v3505 = vmul.f32 %v3441, %v3313
    %v3506 = vmul.f32 %v3442, %v3314
    %v3507 = vmul.f32 %v3443, %v3315
    %v3508 = vmul.f32 %v3444, %v3316
    %v3509 = vmul.f32 %v3445, %v3317
    %v3510 = vmul.f32 %v3446, %v3318
    %v3511 = vmul.f32 %v3447, %v3319
    %v3512 = vmul.f32 %v3448, %v3320
    %v3513 = vmul.f32 %v3449, %v3321
    %v3514 = vmul.f32 %v3450, %v3322
    %v3515 = vmul.f32 %v3451, %v3323
    %v3516 = vmul.f32 %v3452, %v3324
    %v3517 = vmul.f32 %v3453, %v3325
    %v3518 = vmul.f32 %v3454, %v3326
    %v3519 = vmul.f32 %v3455, %v3327
    %v3520 = vmul.f32 %v3456, %v3328
    %v3521 = vmul.f32 %v3457, %v3329
    %v3522 = vmul.f32 %v3458, %v3330
    %v3523 = vmul.f32 %v3459, %v3331
    %v3524 = vadd.f32 %v3460, %v3195
    %v3525 = vadd.f32 %v3461, %v3195
    %v3526 = vadd.f32 %v3462, %v3195
    %v3527 = vadd.f32 %v3463, %v3195
    %v3528 = vadd.f32 %v3464, %v3195
    %v3529 = vadd.f32 %v3465, %v3195
    %v3530 = vadd.f32 %v3466, %v3195
    %v3531 = vadd.f32 %v3467, %v3195
    %v3532 = vadd.f32 %v3468, %v3195
    %v3533 = vadd.f32 %v3469, %v3195
    %v3534 = vadd.f32 %v3470, %v3195
    %v3535 = vadd.f32 %v3471, %v3195
    %v3536 = vadd.f32 %v3472, %v3195
    %v3537 = vadd.f32 %v3473, %v3195
    %v3538 = vadd.f32 %v3474, %v3195
    %v3539 = vadd.f32 %v3475, %v3195
    %v3540 = vadd.f32 %v3476, %v3195
    %v3541 = vadd.f32 %v3477, %v3195
    %v3542 = vadd.f32 %v3478, %v3195
    %v3543 = vadd.f32 %v3479, %v3195
    %v3544 = vadd.f32 %v3480, %v3195
    %v3545 = vadd.f32 %v3481, %v3195
    %v3546 = vadd.f32 %v3482, %v3195
    %v3547 = vadd.f32 %v3483, %v3195
    %v3548 = vadd.f32 %v3484, %v3195
    %v3549 = vadd.f32 %v3485, %v3195
    %v3550 = vadd.f32 %v3486, %v3195
    %v3551 = vadd.f32 %v3487, %v3195
    %v3552 = vadd.f32 %v3488, %v3195
    %v3553 = vadd.f32 %v3489, %v3195
    %v3554 = vadd.f32 %v3490, %v3195
    %v3555 = vadd.f32 %v3491, %v3195
    %v3556 = vadd.f32 %v3492, %v3195
    %v3557 = vadd.f32 %v3493, %v3195
    %v3558 = vadd.f32 %v3494, %v3195
    %v3559 = vadd.f32 %v3495, %v3195
    %v3560 = vadd.f32 %v3496, %v3195
    %v3561 = vadd.f32 %v3497, %v3195
    %v3562 = vadd.f32 %v3498, %v3195
    %v3563 = vadd.f32 %v3499, %v3195
    %v3564 = vadd.f32 %v3500, %v3195
    %v3565 = vadd.f32 %v3501, %v3195
    %v3566 = vadd.f32 %v3502, %v3195
    %v3567 = vadd.f32 %v3503, %v3195
    %v3568 = vadd.f32 %v3504, %v3195
    %v3569 = vadd.f32 %v3505, %v3195
    %v3570 = vadd.f32 %v3506, %v3195
    %v3571 = vadd.f32 %v3507, %v3195
    %v3572 = vadd.f32 %v3508, %v3195
    %v3573 = vadd.f32 %v3509, %v3195
    %v3574 = vadd.f32 %v3510, %v3195
    %v3575 = vadd.f32 %v3511, %v3195
    %v3576 = vadd.f32 %v3512, %v3195
    %v3577 = vadd.f32 %v3513, %v3195
    %v3578 = vadd.f32 %v3514, %v3195
    %v3579 = vadd.f32 %v3515, %v3195
    %v3580 = vadd.f32 %v3516, %v3195
    %v3581 = vadd.f32 %v3517, %v3195
    %v3582 = vadd.f32 %v3518, %v3195
    %v3583 = vadd.f32 %v3519, %v3195
    %v3584 = vadd.f32 %v3520, %v3195
    %v3585 = vadd.f32 %v3521, %v3195
    %v3586 = vadd.f32 %v3522, %v3195
    %v3587 = vadd.f32 %v3523, %v3195
    %v3588 = vmul.f32 %v3525, %v3524
    %v3589 = vmul.f32 %v3526, %v3525
    %v3590 = vmul.f32 %v3527, %v3526
    %v3591 = vmul.f32 %v3528, %v3527
    %v3592 = vmul.f32 %v3529, %v3528
    %v3593 = vmul.f32 %v3530, %v3529
    %v3594 = vmul.f32 %v3531, %v3530
    %v3595 = vmul.f32 %v3532, %v3531
    %v3596 = vmul.f32 %v3533, %v3532
    %v3597 = vmul.f32 %v3534, %v3533
    %v3598 = vmul.f32 %v3535, %v3534
    %v3599 = vmul.f32 %v3536, %v3535
    %v3600 = vmul.f32 %v3537, %v3536
    %v3601 = vmul.f32 %v3538, %v3537
    %v3602 = vmul.f32 %v3539, %v3538
    %v3603 = vmul.f32 %v3540, %v3539
    %v3604 = vmul.f32 %v3541, %v3540
    %v3605 = vmul.f32 %v3542, %v3541
    %v3606 = vmul.f32 %v3543, %v3542
    %v3607 = vmul.f32 %v3544, %v3543
    %v3608 = vmul.f32 %v3545, %v3544
    %v3609 = vmul.f32 %v3546, %v3545
    %v3610 = vmul.f32 %v3547, %v3546
    %v3611 = vmul.f32 %v3548, %v3547
    %v3612 = vmul.f32 %v3549, %v3548
    %v3613 = vmul.f32 %v3550, %v3549
    %v3614 = vmul.f32 %v3551, %v3550
    %v3615 = vmul.f32 %v3552, %v3551
    %v3616 = vmul.f32 %v3553, %v3552
    %v3617 = vmul.f32 %v3554, %v3553
    %v3618 = vmul.f32 %v3555, %v3554
    %v3619 = vmul.f32 %v3556, %v3555
    %v3620 = vmul.f32 %v3557, %v3556
    %v3621 = vmul.f32 %v3558, %v3557
    %v3622 = vmul.f32 %v3559, %v3558
    %v3623 = vmul.f32 %v3560, %v3559
    %v3624 = vmul.f32 %v3561, %v3560
    %v3625 = vmul.f32 %v3562, %v3561
    %v3626 = vmul.f32 %v3563, %v3562
    %v3627 = vmul.f32 %v3564, %v3563
    %v3628 = vmul.f32 %v3565, %v3564
    %v3629 = vmul.f32 %v3566, %v3565
    %v3630 = vmul.f32 %v3567, %v3566
    %v3631 = vmul.f32 %v3568, %v3567
    %v3632 = vmul.f32 %v3569, %v3568
    %v3633 = vmul.f32 %v3570, %v3569
    %v3634 = vmul.f32 %v3571, %v3570
    %v3635 = vmul.f32 %v3572, %v3571
    %v3636 = vmul.f32 %v3573, %v3572
    %v3637 = vmul.f32 %v3574, %v3573
    %v3638 = vmul.f32 %v3575, %v3574
    %v3639 = vmul.f32 %v3576, %v3575
    %v3640 = vmul.f32 %v3577, %v3576
    %v3641 = vmul.f32 %v3578, %v3577
    %v3642 = vmul.f32 %v3579, %v3578
    %v3643 = vmul.f32 %v3580, %v3579
    %v3644 = vmul.f32 %v3581, %v3580
    %v3645 = vmul.f32 %v3582, %v3581
    %v3646 = vmul.f32 %v3583, %v3582
    %v3647 = vmul.f32 %v3584, %v3583
    %v3648 = vmul.f32 %v3585, %v3584
    %v3649 = vmul.f32 %v3586, %v3585
    %v3650 = vmul.f32 %v3587, %v3586
    %vm3651 = vcmp.le.f32.partialorder %v3588, 0.0
    %vm3652 = vcmp.le.f32.partialorder %v3589, 0.0
    %vm3653 = vcmp.le.f32.partialorder %v3590, 0.0
    %vm3654 = vcmp.le.f32.partialorder %v3591, 0.0
    %vm3655 = vcmp.le.f32.partialorder %v3592, 0.0
    %vm3656 = vcmp.le.f32.partialorder %v3593, 0.0
    %vm3657 = vcmp.le.f32.partialorder %v3594, 0.0
    %vm3658 = vcmp.le.f32.partialorder %v3595, 0.0
    %vm3659 = vcmp.le.f32.partialorder %v3596, 0.0
    %vm3660 = vcmp.le.f32.partialorder %v3597, 0.0
    %vm3661 = vcmp.le.f32.partialorder %v3598, 0.0
    %vm3662 = vcmp.le.f32.partialorder %v3599, 0.0
    %vm3663 = vcmp.le.f32.partialorder %v3600, 0.0
    %vm3664 = vcmp.le.f32.partialorder %v3601, 0.0
    %vm3665 = vcmp.le.f32.partialorder %v3602, 0.0
    %vm3666 = vcmp.le.f32.partialorder %v3603, 0.0
    %vm3667 = vcmp.le.f32.partialorder %v3604, 0.0
    %vm3668 = vcmp.le.f32.partialorder %v3605, 0.0
    %vm3669 = vcmp.le.f32.partialorder %v3606, 0.0
    %vm3670 = vcmp.le.f32.partialorder %v3607, 0.0
    %vm3671 = vcmp.le.f32.partialorder %v3608, 0.0
    %vm3672 = vcmp.le.f32.partialorder %v3609, 0.0
    %vm3673 = vcmp.le.f32.partialorder %v3610, 0.0
    %vm3674 = vcmp.le.f32.partialorder %v3611, 0.0
    %vm3675 = vcmp.le.f32.partialorder %v3612, 0.0
    %vm3676 = vcmp.le.f32.partialorder %v3613, 0.0
    %vm3677 = vcmp.le.f32.partialorder %v3614, 0.0
    %vm3678 = vcmp.le.f32.partialorder %v3615, 0.0
    %vm3679 = vcmp.le.f32.partialorder %v3616, 0.0
    %vm3680 = vcmp.le.f32.partialorder %v3617, 0.0
    %vm3681 = vcmp.le.f32.partialorder %v3618, 0.0
    %vm3682 = vcmp.le.f32.partialorder %v3619, 0.0
    %vm3683 = vcmp.le.f32.partialorder %v3620, 0.0
    %vm3684 = vcmp.le.f32.partialorder %v3621, 0.0
    %vm3685 = vcmp.le.f32.partialorder %v3622, 0.0
    %vm3686 = vcmp.le.f32.partialorder %v3623, 0.0
    %vm3687 = vcmp.le.f32.partialorder %v3624, 0.0
    %vm3688 = vcmp.le.f32.partialorder %v3625, 0.0
    %vm3689 = vcmp.le.f32.partialorder %v3626, 0.0
    %vm3690 = vcmp.le.f32.partialorder %v3627, 0.0
    %vm3691 = vcmp.le.f32.partialorder %v3628, 0.0
    %vm3692 = vcmp.le.f32.partialorder %v3629, 0.0
    %vm3693 = vcmp.le.f32.partialorder %v3630, 0.0
    %vm3694 = vcmp.le.f32.partialorder %v3631, 0.0
    %vm3695 = vcmp.le.f32.partialorder %v3632, 0.0
    %vm3696 = vcmp.le.f32.partialorder %v3633, 0.0
    %vm3697 = vcmp.le.f32.partialorder %v3634, 0.0
    %vm3698 = vcmp.le.f32.partialorder %v3635, 0.0
    %vm3699 = vcmp.le.f32.partialorder %v3636, 0.0
    %vm3700 = vcmp.le.f32.partialorder %v3637, 0.0
    %vm3701 = vcmp.le.f32.partialorder %v3638, 0.0
    %vm3702 = vcmp.le.f32.partialorder %v3639, 0.0
    %vm3703 = vcmp.le.f32.partialorder %v3640, 0.0
    %vm3704 = vcmp.le.f32.partialorder %v3641, 0.0
    %vm3705 = vcmp.le.f32.partialorder %v3642, 0.0
    %vm3706 = vcmp.le.f32.partialorder %v3643, 0.0
    %vm3707 = vcmp.le.f32.partialorder %v3644, 0.0
    %vm3708 = vcmp.le.f32.partialorder %v3645, 0.0
    %vm3709 = vcmp.le.f32.partialorder %v3646, 0.0
    %vm3710 = vcmp.le.f32.partialorder %v3647, 0.0
    %vm3711 = vcmp.le.f32.partialorder %v3648, 0.0
    %vm3712 = vcmp.le.f32.partialorder %v3649, 0.0
    %vm3713 = vcmp.le.f32.partialorder %v3650, 0.0
    %v3714 = vsel %vm3651, %v137, 64
    %v3715 = vsel %vm3652, %v138, 64
    %v3716 = vsel %vm3653, %v139, 64
    %v3717 = vsel %vm3654, %v140, 64
    %v3718 = vsel %vm3655, %v141, 64
    %v3719 = vsel %vm3656, %v142, 64
    %v3720 = vsel %vm3657, %v143, 64
    %v3721 = vsel %vm3658, %v144, 64
    %v3722 = vsel %vm3659, %v145, 64
    %v3723 = vsel %vm3660, %v146, 64
    %v3724 = vsel %vm3661, %v147, 64
    %v3725 = vsel %vm3662, %v148, 64
    %v3726 = vsel %vm3663, %v149, 64
    %v3727 = vsel %vm3664, %v150, 64
    %v3728 = vsel %vm3665, %v151, 64
    %v3729 = vsel %vm3666, %v152, 64
    %v3730 = vsel %vm3667, %v153, 64
    %v3731 = vsel %vm3668, %v154, 64
    %v3732 = vsel %vm3669, %v155, 64
    %v3733 = vsel %vm3670, %v156, 64
    %v3734 = vsel %vm3671, %v157, 64
    %v3735 = vsel %vm3672, %v158, 64
    %v3736 = vsel %vm3673, %v159, 64
    %v3737 = vsel %vm3674, %v160, 64
    %v3738 = vsel %vm3675, %v161, 64
    %v3739 = vsel %vm3676, %v162, 64
    %v3740 = vsel %vm3677, %v163, 64
    %v3741 = vsel %vm3678, %v164, 64
    %v3742 = vsel %vm3679, %v165, 64
    %v3743 = vsel %vm3680, %v166, 64
    %v3744 = vsel %vm3681, %v167, 64
    %v3745 = vsel %vm3682, %v168, 64
    %v3746 = vsel %vm3683, %v169, 64
    %v3747 = vsel %vm3684, %v170, 64
    %v3748 = vsel %vm3685, %v171, 64
    %v3749 = vsel %vm3686, %v172, 64
    %v3750 = vsel %vm3687, %v173, 64
    %v3751 = vsel %vm3688, %v174, 64
    %v3752 = vsel %vm3689, %v175, 64
    %v3753 = vsel %vm3690, %v176, 64
    %v3754 = vsel %vm3691, %v177, 64
    %v3755 = vsel %vm3692, %v178, 64
    %v3756 = vsel %vm3693, %v179, 64
    %v3757 = vsel %vm3694, %v180, 64
    %v3758 = vsel %vm3695, %v181, 64
    %v3759 = vsel %vm3696, %v182, 64
    %v3760 = vsel %vm3697, %v183, 64
    %v3761 = vsel %vm3698, %v184, 64
    %v3762 = vsel %vm3699, %v185, 64
    %v3763 = vsel %vm3700, %v186, 64
    %v3764 = vsel %vm3701, %v187, 64
    %v3765 = vsel %vm3702, %v188, 64
    %v3766 = vsel %vm3703, %v189, 64
    %v3767 = vsel %vm3704, %v190, 64
    %v3768 = vsel %vm3705, %v191, 64
    %v3769 = vsel %vm3706, %v192, 64
    %v3770 = vsel %vm3707, %v193, 64
    %v3771 = vsel %vm3708, %v194, 64
    %v3772 = vsel %vm3709, %v195, 64
    %v3773 = vsel %vm3710, %v196, 64
    %v3774 = vsel %vm3711, %v197, 64
    %v3775 = vsel %vm3712, %v198, 64
    %v3776 = vsel %vm3713, %v199, 64
    %vm3777 = vcmp.lt.s32.totalorder %v3714, %v3718
    %v3778 = vsel %vm3777, %v3714, %v3718
    %vm3779 = vcmp.lt.s32.totalorder %v3715, %v3719
    %v3780 = vsel %vm3779, %v3715, %v3719
    %vm3781 = vcmp.lt.s32.totalorder %v3716, %v3720
    %v3782 = vsel %vm3781, %v3716, %v3720
    %vm3783 = vcmp.lt.s32.totalorder %v3717, %v3721
    %v3784 = vsel %vm3783, %v3717, %v3721
    %vm3785 = vcmp.lt.s32.totalorder %v3778, %v3722
    %v3786 = vsel %vm3785, %v3778, %v3722
    %vm3787 = vcmp.lt.s32.totalorder %v3780, %v3723
    %v3788 = vsel %vm3787, %v3780, %v3723
    %vm3789 = vcmp.lt.s32.totalorder %v3782, %v3724
    %v3790 = vsel %vm3789, %v3782, %v3724
    %vm3791 = vcmp.lt.s32.totalorder %v3784, %v3725
    %v3792 = vsel %vm3791, %v3784, %v3725
    %vm3793 = vcmp.lt.s32.totalorder %v3786, %v3726
    %v3794 = vsel %vm3793, %v3786, %v3726
    %vm3795 = vcmp.lt.s32.totalorder %v3788, %v3727
    %v3796 = vsel %vm3795, %v3788, %v3727
    %vm3797 = vcmp.lt.s32.totalorder %v3790, %v3728
    %v3798 = vsel %vm3797, %v3790, %v3728
    %vm3799 = vcmp.lt.s32.totalorder %v3792, %v3729
    %v3800 = vsel %vm3799, %v3792, %v3729
    %vm3801 = vcmp.lt.s32.totalorder %v3794, %v3730
    %v3802 = vsel %vm3801, %v3794, %v3730
    %vm3803 = vcmp.lt.s32.totalorder %v3796, %v3731
    %v3804 = vsel %vm3803, %v3796, %v3731
    %vm3805 = vcmp.lt.s32.totalorder %v3798, %v3732
    %v3806 = vsel %vm3805, %v3798, %v3732
    %vm3807 = vcmp.lt.s32.totalorder %v3800, %v3733
    %v3808 = vsel %vm3807, %v3800, %v3733
    %vm3809 = vcmp.lt.s32.totalorder %v3802, %v3734
    %v3810 = vsel %vm3809, %v3802, %v3734
    %vm3811 = vcmp.lt.s32.totalorder %v3804, %v3735
    %v3812 = vsel %vm3811, %v3804, %v3735
    %vm3813 = vcmp.lt.s32.totalorder %v3806, %v3736
    %v3814 = vsel %vm3813, %v3806, %v3736
    %vm3815 = vcmp.lt.s32.totalorder %v3808, %v3737
    %v3816 = vsel %vm3815, %v3808, %v3737
    %vm3817 = vcmp.lt.s32.totalorder %v3810, %v3738
    %v3818 = vsel %vm3817, %v3810, %v3738
    %vm3819 = vcmp.lt.s32.totalorder %v3812, %v3739
    %v3820 = vsel %vm3819, %v3812, %v3739
    %vm3821 = vcmp.lt.s32.totalorder %v3814, %v3740
    %v3822 = vsel %vm3821, %v3814, %v3740
    %vm3823 = vcmp.lt.s32.totalorder %v3816, %v3741
    %v3824 = vsel %vm3823, %v3816, %v3741
    %vm3825 = vcmp.lt.s32.totalorder %v3818, %v3742
    %v3826 = vsel %vm3825, %v3818, %v3742
    %vm3827 = vcmp.lt.s32.totalorder %v3820, %v3743
    %v3828 = vsel %vm3827, %v3820, %v3743
    %vm3829 = vcmp.lt.s32.totalorder %v3822, %v3744
    %v3830 = vsel %vm3829, %v3822, %v3744
    %vm3831 = vcmp.lt.s32.totalorder %v3824, %v3745
    %v3832 = vsel %vm3831, %v3824, %v3745
    %vm3833 = vcmp.lt.s32.totalorder %v3826, %v3746
    %v3834 = vsel %vm3833, %v3826, %v3746
    %vm3835 = vcmp.lt.s32.totalorder %v3828, %v3747
    %v3836 = vsel %vm3835, %v3828, %v3747
    %vm3837 = vcmp.lt.s32.totalorder %v3830, %v3748
    %v3838 = vsel %vm3837, %v3830, %v3748
    %vm3839 = vcmp.lt.s32.totalorder %v3832, %v3749
    %v3840 = vsel %vm3839, %v3832, %v3749
    %vm3841 = vcmp.lt.s32.totalorder %v3834, %v3750
    %v3842 = vsel %vm3841, %v3834, %v3750
    %vm3843 = vcmp.lt.s32.totalorder %v3836, %v3751
    %v3844 = vsel %vm3843, %v3836, %v3751
    %vm3845 = vcmp.lt.s32.totalorder %v3838, %v3752
    %v3846 = vsel %vm3845, %v3838, %v3752
    %vm3847 = vcmp.lt.s32.totalorder %v3840, %v3753
    %v3848 = vsel %vm3847, %v3840, %v3753
    %vm3849 = vcmp.lt.s32.totalorder %v3842, %v3754
    %v3850 = vsel %vm3849, %v3842, %v3754
    %vm3851 = vcmp.lt.s32.totalorder %v3844, %v3755
    %v3852 = vsel %vm3851, %v3844, %v3755
    %vm3853 = vcmp.lt.s32.totalorder %v3846, %v3756
    %v3854 = vsel %vm3853, %v3846, %v3756
    %vm3855 = vcmp.lt.s32.totalorder %v3848, %v3757
    %v3856 = vsel %vm3855, %v3848, %v3757
    %vm3857 = vcmp.lt.s32.totalorder %v3850, %v3758
    %v3858 = vsel %vm3857, %v3850, %v3758
    %vm3859 = vcmp.lt.s32.totalorder %v3852, %v3759
    %v3860 = vsel %vm3859, %v3852, %v3759
    %vm3861 = vcmp.lt.s32.totalorder %v3854, %v3760
    %v3862 = vsel %vm3861, %v3854, %v3760
    %vm3863 = vcmp.lt.s32.totalorder %v3856, %v3761
    %v3864 = vsel %vm3863, %v3856, %v3761
    %vm3865 = vcmp.lt.s32.totalorder %v3858, %v3762
    %v3866 = vsel %vm3865, %v3858, %v3762
    %vm3867 = vcmp.lt.s32.totalorder %v3860, %v3763
    %v3868 = vsel %vm3867, %v3860, %v3763
    %vm3869 = vcmp.lt.s32.totalorder %v3862, %v3764
    %v3870 = vsel %vm3869, %v3862, %v3764
    %vm3871 = vcmp.lt.s32.totalorder %v3864, %v3765
    %v3872 = vsel %vm3871, %v3864, %v3765
    %vm3873 = vcmp.lt.s32.totalorder %v3866, %v3766
    %v3874 = vsel %vm3873, %v3866, %v3766
    %vm3875 = vcmp.lt.s32.totalorder %v3868, %v3767
    %v3876 = vsel %vm3875, %v3868, %v3767
    %vm3877 = vcmp.lt.s32.totalorder %v3870, %v3768
    %v3878 = vsel %vm3877, %v3870, %v3768
    %vm3879 = vcmp.lt.s32.totalorder %v3872, %v3769
    %v3880 = vsel %vm3879, %v3872, %v3769
    %vm3881 = vcmp.lt.s32.totalorder %v3874, %v3770
    %v3882 = vsel %vm3881, %v3874, %v3770
    %vm3883 = vcmp.lt.s32.totalorder %v3876, %v3771
    %v3884 = vsel %vm3883, %v3876, %v3771
    %vm3885 = vcmp.lt.s32.totalorder %v3878, %v3772
    %v3886 = vsel %vm3885, %v3878, %v3772
    %vm3887 = vcmp.lt.s32.totalorder %v3880, %v3773
    %v3888 = vsel %vm3887, %v3880, %v3773
    %vm3889 = vcmp.lt.s32.totalorder %v3882, %v3774
    %v3890 = vsel %vm3889, %v3882, %v3774
    %vm3891 = vcmp.lt.s32.totalorder %v3884, %v3775
    %v3892 = vsel %vm3891, %v3884, %v3775
    %vm3893 = vcmp.lt.s32.totalorder %v3886, %v3776
    %v3894 = vsel %vm3893, %v3886, %v3776
    %vm3895 = vcmp.lt.s32.totalorder %v3890, %v3892
    %v3896 = vsel %vm3895, %v3890, %v3892
    %vm3897 = vcmp.lt.s32.totalorder %v3894, %v3888
    %v3898 = vsel %vm3897, %v3894, %v3888
    %vm3899 = vcmp.lt.s32.totalorder %v3896, %v3898
    %v3900 = vsel %vm3899, %v3896, %v3898
    %v3901 = vsel %vm3651, 1.0, 0.0
    %v3902 = vsel %vm3652, 1.0, 0.0
    %v3903 = vsel %vm3653, 1.0, 0.0
    %v3904 = vsel %vm3654, 1.0, 0.0
    %v3905 = vsel %vm3655, 1.0, 0.0
    %v3906 = vsel %vm3656, 1.0, 0.0
    %v3907 = vsel %vm3657, 1.0, 0.0
    %v3908 = vsel %vm3658, 1.0, 0.0
    %v3909 = vsel %vm3659, 1.0, 0.0
    %v3910 = vsel %vm3660, 1.0, 0.0
    %v3911 = vsel %vm3661, 1.0, 0.0
    %v3912 = vsel %vm3662, 1.0, 0.0
    %v3913 = vsel %vm3663, 1.0, 0.0
    %v3914 = vsel %vm3664, 1.0, 0.0
    %v3915 = vsel %vm3665, 1.0, 0.0
    %v3916 = vsel %vm3666, 1.0, 0.0
    %v3917 = vsel %vm3667, 1.0, 0.0
    %v3918 = vsel %vm3668, 1.0, 0.0
    %v3919 = vsel %vm3669, 1.0, 0.0
    %v3920 = vsel %vm3670, 1.0, 0.0
    %v3921 = vsel %vm3671, 1.0, 0.0
    %v3922 = vsel %vm3672, 1.0, 0.0
    %v3923 = vsel %vm3673, 1.0, 0.0
    %v3924 = vsel %vm3674, 1.0, 0.0
    %v3925 = vsel %vm3675, 1.0, 0.0
    %v3926 = vsel %vm3676, 1.0, 0.0
    %v3927 = vsel %vm3677, 1.0, 0.0
    %v3928 = vsel %vm3678, 1.0, 0.0
    %v3929 = vsel %vm3679, 1.0, 0.0
    %v3930 = vsel %vm3680, 1.0, 0.0
    %v3931 = vsel %vm3681, 1.0, 0.0
    %v3932 = vsel %vm3682, 1.0, 0.0
    %v3933 = vsel %vm3683, 1.0, 0.0
    %v3934 = vsel %vm3684, 1.0, 0.0
    %v3935 = vsel %vm3685, 1.0, 0.0
    %v3936 = vsel %vm3686, 1.0, 0.0
    %v3937 = vsel %vm3687, 1.0, 0.0
    %v3938 = vsel %vm3688, 1.0, 0.0
    %v3939 = vsel %vm3689, 1.0, 0.0
    %v3940 = vsel %vm3690, 1.0, 0.0
    %v3941 = vsel %vm3691, 1.0, 0.0
    %v3942 = vsel %vm3692, 1.0, 0.0
    %v3943 = vsel %vm3693, 1.0, 0.0
    %v3944 = vsel %vm3694, 1.0, 0.0
    %v3945 = vsel %vm3695, 1.0, 0.0
    %v3946 = vsel %vm3696, 1.0, 0.0
    %v3947 = vsel %vm3697, 1.0, 0.0
    %v3948 = vsel %vm3698, 1.0, 0.0
    %v3949 = vsel %vm3699, 1.0, 0.0
    %v3950 = vsel %vm3700, 1.0, 0.0
    %v3951 = vsel %vm3701, 1.0, 0.0
    %v3952 = vsel %vm3702, 1.0, 0.0
    %v3953 = vsel %vm3703, 1.0, 0.0
    %v3954 = vsel %vm3704, 1.0, 0.0
    %v3955 = vsel %vm3705, 1.0, 0.0
    %v3956 = vsel %vm3706, 1.0, 0.0
    %v3957 = vsel %vm3707, 1.0, 0.0
    %v3958 = vsel %vm3708, 1.0, 0.0
    %v3959 = vsel %vm3709, 1.0, 0.0
    %v3960 = vsel %vm3710, 1.0, 0.0
    %v3961 = vsel %vm3711, 1.0, 0.0
    %v3962 = vsel %vm3712, 1.0, 0.0
    %v3963 = vsel %vm3713, 1.0, 0.0
    %v3964 = vmax.f32 %v3901, %v3905
    %v3965 = vmax.f32 %v3902, %v3906
    %v3966 = vmax.f32 %v3903, %v3907
    %v3967 = vmax.f32 %v3904, %v3908
    %v3968 = vmax.f32 %v3964, %v3909
    %v3969 = vmax.f32 %v3965, %v3910
    %v3970 = vmax.f32 %v3966, %v3911
    %v3971 = vmax.f32 %v3967, %v3912
    %v3972 = vmax.f32 %v3968, %v3913
    %v3973 = vmax.f32 %v3969, %v3914
    %v3974 = vmax.f32 %v3970, %v3915
    %v3975 = vmax.f32 %v3971, %v3916
    %v3976 = vmax.f32 %v3972, %v3917
    %v3977 = vmax.f32 %v3973, %v3918
    %v3978 = vmax.f32 %v3974, %v3919
    %v3979 = vmax.f32 %v3975, %v3920
    %v3980 = vmax.f32 %v3976, %v3921
    %v3981 = vmax.f32 %v3977, %v3922
    %v3982 = vmax.f32 %v3978, %v3923
    %v3983 = vmax.f32 %v3979, %v3924
    %v3984 = vmax.f32 %v3980, %v3925
    %v3985 = vmax.f32 %v3981, %v3926
    %v3986 = vmax.f32 %v3982, %v3927
    %v3987 = vmax.f32 %v3983, %v3928
    %v3988 = vmax.f32 %v3984, %v3929
    %v3989 = vmax.f32 %v3985, %v3930
    %v3990 = vmax.f32 %v3986, %v3931
    %v3991 = vmax.f32 %v3987, %v3932
    %v3992 = vmax.f32 %v3988, %v3933
    %v3993 = vmax.f32 %v3989, %v3934
    %v3994 = vmax.f32 %v3990, %v3935
    %v3995 = vmax.f32 %v3991, %v3936
    %v3996 = vmax.f32 %v3992, %v3937
    %v3997 = vmax.f32 %v3993, %v3938
    %v3998 = vmax.f32 %v3994, %v3939
    %v3999 = vmax.f32 %v3995, %v3940
    %v4000 = vmax.f32 %v3996, %v3941
    %v4001 = vmax.f32 %v3997, %v3942
    %v4002 = vmax.f32 %v3998, %v3943
    %v4003 = vmax.f32 %v3999, %v3944
    %v4004 = vmax.f32 %v4000, %v3945
    %v4005 = vmax.f32 %v4001, %v3946
    %v4006 = vmax.f32 %v4002, %v3947
    %v4007 = vmax.f32 %v4003, %v3948
    %v4008 = vmax.f32 %v4004, %v3949
    %v4009 = vmax.f32 %v4005, %v3950
    %v4010 = vmax.f32 %v4006, %v3951
    %v4011 = vmax.f32 %v4007, %v3952
    %v4012 = vmax.f32 %v4008, %v3953
    %v4013 = vmax.f32 %v4009, %v3954
    %v4014 = vmax.f32 %v4010, %v3955
    %v4015 = vmax.f32 %v4011, %v3956
    %v4016 = vmax.f32 %v4012, %v3957
    %v4017 = vmax.f32 %v4013, %v3958
    %v4018 = vmax.f32 %v4014, %v3959
    %v4019 = vmax.f32 %v4015, %v3960
    %v4020 = vmax.f32 %v4016, %v3961
    %v4021 = vmax.f32 %v4017, %v3962
    %v4022 = vmax.f32 %v4018, %v3963
    %v4023 = vmax.f32 %v4020, %v4021
    %v4024 = vmax.f32 %v4022, %v4019
    %v4025 = vmax.f32 %v4023, %v4024
    %vm4026 = vcmp.gt.f32.partialorder %v4025, 0.0
    %v4027 = vsel %vm4026, %v3900, 0
    %vm4028 = vcmp.eq.s32.totalorder %v137, %v4027
    %vm4029 = vcmp.eq.s32.totalorder %v138, %v4027
    %vm4030 = vcmp.eq.s32.totalorder %v139, %v4027
    %vm4031 = vcmp.eq.s32.totalorder %v140, %v4027
    %vm4032 = vcmp.eq.s32.totalorder %v141, %v4027
    %vm4033 = vcmp.eq.s32.totalorder %v142, %v4027
    %vm4034 = vcmp.eq.s32.totalorder %v143, %v4027
    %vm4035 = vcmp.eq.s32.totalorder %v144, %v4027
    %vm4036 = vcmp.eq.s32.totalorder %v145, %v4027
    %vm4037 = vcmp.eq.s32.totalorder %v146, %v4027
    %vm4038 = vcmp.eq.s32.totalorder %v147, %v4027
    %vm4039 = vcmp.eq.s32.totalorder %v148, %v4027
    %vm4040 = vcmp.eq.s32.totalorder %v149, %v4027
    %vm4041 = vcmp.eq.s32.totalorder %v150, %v4027
    %vm4042 = vcmp.eq.s32.totalorder %v151, %v4027
    %vm4043 = vcmp.eq.s32.totalorder %v152, %v4027
    %vm4044 = vcmp.eq.s32.totalorder %v153, %v4027
    %vm4045 = vcmp.eq.s32.totalorder %v154, %v4027
    %vm4046 = vcmp.eq.s32.totalorder %v155, %v4027
    %vm4047 = vcmp.eq.s32.totalorder %v156, %v4027
    %vm4048 = vcmp.eq.s32.totalorder %v157, %v4027
    %vm4049 = vcmp.eq.s32.totalorder %v158, %v4027
    %vm4050 = vcmp.eq.s32.totalorder %v159, %v4027
    %vm4051 = vcmp.eq.s32.totalorder %v160, %v4027
    %vm4052 = vcmp.eq.s32.totalorder %v161, %v4027
    %vm4053 = vcmp.eq.s32.totalorder %v162, %v4027
    %vm4054 = vcmp.eq.s32.totalorder %v163, %v4027
    %vm4055 = vcmp.eq.s32.totalorder %v164, %v4027
    %vm4056 = vcmp.eq.s32.totalorder %v165, %v4027
    %vm4057 = vcmp.eq.s32.totalorder %v166, %v4027
    %vm4058 = vcmp.eq.s32.totalorder %v167, %v4027
    %vm4059 = vcmp.eq.s32.totalorder %v168, %v4027
    %vm4060 = vcmp.eq.s32.totalorder %v169, %v4027
    %vm4061 = vcmp.eq.s32.totalorder %v170, %v4027
    %vm4062 = vcmp.eq.s32.totalorder %v171, %v4027
    %vm4063 = vcmp.eq.s32.totalorder %v172, %v4027
    %vm4064 = vcmp.eq.s32.totalorder %v173, %v4027
    %vm4065 = vcmp.eq.s32.totalorder %v174, %v4027
    %vm4066 = vcmp.eq.s32.totalorder %v175, %v4027
    %vm4067 = vcmp.eq.s32.totalorder %v176, %v4027
    %vm4068 = vcmp.eq.s32.totalorder %v177, %v4027
    %vm4069 = vcmp.eq.s32.totalorder %v178, %v4027
    %vm4070 = vcmp.eq.s32.totalorder %v179, %v4027
    %vm4071 = vcmp.eq.s32.totalorder %v180, %v4027
    %vm4072 = vcmp.eq.s32.totalorder %v181, %v4027
    %vm4073 = vcmp.eq.s32.totalorder %v182, %v4027
    %vm4074 = vcmp.eq.s32.totalorder %v183, %v4027
    %vm4075 = vcmp.eq.s32.totalorder %v184, %v4027
    %vm4076 = vcmp.eq.s32.totalorder %v185, %v4027
    %vm4077 = vcmp.eq.s32.totalorder %v186, %v4027
    %vm4078 = vcmp.eq.s32.totalorder %v187, %v4027
    %vm4079 = vcmp.eq.s32.totalorder %v188, %v4027
    %vm4080 = vcmp.eq.s32.totalorder %v189, %v4027
    %vm4081 = vcmp.eq.s32.totalorder %v190, %v4027
    %vm4082 = vcmp.eq.s32.totalorder %v191, %v4027
    %vm4083 = vcmp.eq.s32.totalorder %v192, %v4027
    %vm4084 = vcmp.eq.s32.totalorder %v193, %v4027
    %vm4085 = vcmp.eq.s32.totalorder %v194, %v4027
    %vm4086 = vcmp.eq.s32.totalorder %v195, %v4027
    %vm4087 = vcmp.eq.s32.totalorder %v196, %v4027
    %vm4088 = vcmp.eq.s32.totalorder %v197, %v4027
    %vm4089 = vcmp.eq.s32.totalorder %v198, %v4027
    %vm4090 = vcmp.eq.s32.totalorder %v199, %v4027
    %v4091 = vsel %vm4028, 1, 0
    %v4092 = vsel %vm4029, 1, 0
    %v4093 = vsel %vm4030, 1, 0
    %v4094 = vsel %vm4031, 1, 0
    %v4095 = vsel %vm4032, 1, 0
    %v4096 = vsel %vm4033, 1, 0
    %v4097 = vsel %vm4034, 1, 0
    %v4098 = vsel %vm4035, 1, 0
    %v4099 = vsel %vm4036, 1, 0
    %v4100 = vsel %vm4037, 1, 0
    %v4101 = vsel %vm4038, 1, 0
    %v4102 = vsel %vm4039, 1, 0
    %v4103 = vsel %vm4040, 1, 0
    %v4104 = vsel %vm4041, 1, 0
    %v4105 = vsel %vm4042, 1, 0
    %v4106 = vsel %vm4043, 1, 0
    %v4107 = vsel %vm4044, 1, 0
    %v4108 = vsel %vm4045, 1, 0
    %v4109 = vsel %vm4046, 1, 0
    %v4110 = vsel %vm4047, 1, 0
    %v4111 = vsel %vm4048, 1, 0
    %v4112 = vsel %vm4049, 1, 0
    %v4113 = vsel %vm4050, 1, 0
    %v4114 = vsel %vm4051, 1, 0
    %v4115 = vsel %vm4052, 1, 0
    %v4116 = vsel %vm4053, 1, 0
    %v4117 = vsel %vm4054, 1, 0
    %v4118 = vsel %vm4055, 1, 0
    %v4119 = vsel %vm4056, 1, 0
    %v4120 = vsel %vm4057, 1, 0
    %v4121 = vsel %vm4058, 1, 0
    %v4122 = vsel %vm4059, 1, 0
    %v4123 = vsel %vm4060, 1, 0
    %v4124 = vsel %vm4061, 1, 0
    %v4125 = vsel %vm4062, 1, 0
    %v4126 = vsel %vm4063, 1, 0
    %v4127 = vsel %vm4064, 1, 0
    %v4128 = vsel %vm4065, 1, 0
    %v4129 = vsel %vm4066, 1, 0
    %v4130 = vsel %vm4067, 1, 0
    %v4131 = vsel %vm4068, 1, 0
    %v4132 = vsel %vm4069, 1, 0
    %v4133 = vsel %vm4070, 1, 0
    %v4134 = vsel %vm4071, 1, 0
    %v4135 = vsel %vm4072, 1, 0
    %v4136 = vsel %vm4073, 1, 0
    %v4137 = vsel %vm4074, 1, 0
    %v4138 = vsel %vm4075, 1, 0
    %v4139 = vsel %vm4076, 1, 0
    %v4140 = vsel %vm4077, 1, 0
    %v4141 = vsel %vm4078, 1, 0
    %v4142 = vsel %vm4079, 1, 0
    %v4143 = vsel %vm4080, 1, 0
    %v4144 = vsel %vm4081, 1, 0
    %v4145 = vsel %vm4082, 1, 0
    %v4146 = vsel %vm4083, 1, 0
    %v4147 = vsel %vm4084, 1, 0
    %v4148 = vsel %vm4085, 1, 0
    %v4149 = vsel %vm4086, 1, 0
    %v4150 = vsel %vm4087, 1, 0
    %v4151 = vsel %vm4088, 1, 0
    %v4152 = vsel %vm4089, 1, 0
    %v4153 = vsel %vm4090, 1, 0
    %v4154 = vcvt.s32.f32 %v4091
    %v4155 = vcvt.s32.f32 %v4092
    %v4156 = vcvt.s32.f32 %v4093
    %v4157 = vcvt.s32.f32 %v4094
    %v4158 = vcvt.s32.f32 %v4095
    %v4159 = vcvt.s32.f32 %v4096
    %v4160 = vcvt.s32.f32 %v4097
    %v4161 = vcvt.s32.f32 %v4098
    %v4162 = vcvt.s32.f32 %v4099
    %v4163 = vcvt.s32.f32 %v4100
    %v4164 = vcvt.s32.f32 %v4101
    %v4165 = vcvt.s32.f32 %v4102
    %v4166 = vcvt.s32.f32 %v4103
    %v4167 = vcvt.s32.f32 %v4104
    %v4168 = vcvt.s32.f32 %v4105
    %v4169 = vcvt.s32.f32 %v4106
    %v4170 = vcvt.s32.f32 %v4107
    %v4171 = vcvt.s32.f32 %v4108
    %v4172 = vcvt.s32.f32 %v4109
    %v4173 = vcvt.s32.f32 %v4110
    %v4174 = vcvt.s32.f32 %v4111
    %v4175 = vcvt.s32.f32 %v4112
    %v4176 = vcvt.s32.f32 %v4113
    %v4177 = vcvt.s32.f32 %v4114
    %v4178 = vcvt.s32.f32 %v4115
    %v4179 = vcvt.s32.f32 %v4116
    %v4180 = vcvt.s32.f32 %v4117
    %v4181 = vcvt.s32.f32 %v4118
    %v4182 = vcvt.s32.f32 %v4119
    %v4183 = vcvt.s32.f32 %v4120
    %v4184 = vcvt.s32.f32 %v4121
    %v4185 = vcvt.s32.f32 %v4122
    %v4186 = vcvt.s32.f32 %v4123
    %v4187 = vcvt.s32.f32 %v4124
    %v4188 = vcvt.s32.f32 %v4125
    %v4189 = vcvt.s32.f32 %v4126
    %v4190 = vcvt.s32.f32 %v4127
    %v4191 = vcvt.s32.f32 %v4128
    %v4192 = vcvt.s32.f32 %v4129
    %v4193 = vcvt.s32.f32 %v4130
    %v4194 = vcvt.s32.f32 %v4131
    %v4195 = vcvt.s32.f32 %v4132
    %v4196 = vcvt.s32.f32 %v4133
    %v4197 = vcvt.s32.f32 %v4134
    %v4198 = vcvt.s32.f32 %v4135
    %v4199 = vcvt.s32.f32 %v4136
    %v4200 = vcvt.s32.f32 %v4137
    %v4201 = vcvt.s32.f32 %v4138
    %v4202 = vcvt.s32.f32 %v4139
    %v4203 = vcvt.s32.f32 %v4140
    %v4204 = vcvt.s32.f32 %v4141
    %v4205 = vcvt.s32.f32 %v4142
    %v4206 = vcvt.s32.f32 %v4143
    %v4207 = vcvt.s32.f32 %v4144
    %v4208 = vcvt.s32.f32 %v4145
    %v4209 = vcvt.s32.f32 %v4146
    %v4210 = vcvt.s32.f32 %v4147
    %v4211 = vcvt.s32.f32 %v4148
    %v4212 = vcvt.s32.f32 %v4149
    %v4213 = vcvt.s32.f32 %v4150
    %v4214 = vcvt.s32.f32 %v4151
    %v4215 = vcvt.s32.f32 %v4152
    %v4216 = vcvt.s32.f32 %v4153
    %v4217 = vmul.f32 %v3268, %v4154
    %v4218 = vmul.f32 %v3269, %v4155
    %v4219 = vmul.f32 %v3270, %v4156
    %v4220 = vmul.f32 %v3271, %v4157
    %v4221 = vmul.f32 %v3272, %v4158
    %v4222 = vmul.f32 %v3273, %v4159
    %v4223 = vmul.f32 %v3274, %v4160
    %v4224 = vmul.f32 %v3275, %v4161
    %v4225 = vmul.f32 %v3276, %v4162
    %v4226 = vmul.f32 %v3277, %v4163
    %v4227 = vmul.f32 %v3278, %v4164
    %v4228 = vmul.f32 %v3279, %v4165
    %v4229 = vmul.f32 %v3280, %v4166
    %v4230 = vmul.f32 %v3281, %v4167
    %v4231 = vmul.f32 %v3282, %v4168
    %v4232 = vmul.f32 %v3283, %v4169
    %v4233 = vmul.f32 %v3284, %v4170
    %v4234 = vmul.f32 %v3285, %v4171
    %v4235 = vmul.f32 %v3286, %v4172
    %v4236 = vmul.f32 %v3287, %v4173
    %v4237 = vmul.f32 %v3288, %v4174
    %v4238 = vmul.f32 %v3289, %v4175
    %v4239 = vmul.f32 %v3290, %v4176
    %v4240 = vmul.f32 %v3291, %v4177
    %v4241 = vmul.f32 %v3292, %v4178
    %v4242 = vmul.f32 %v3293, %v4179
    %v4243 = vmul.f32 %v3294, %v4180
    %v4244 = vmul.f32 %v3295, %v4181
    %v4245 = vmul.f32 %v3296, %v4182
    %v4246 = vmul.f32 %v3297, %v4183
    %v4247 = vmul.f32 %v3298, %v4184
    %v4248 = vmul.f32 %v3299, %v4185
    %v4249 = vmul.f32 %v3300, %v4186
    %v4250 = vmul.f32 %v3301, %v4187
    %v4251 = vmul.f32 %v3302, %v4188
    %v4252 = vmul.f32 %v3303, %v4189
    %v4253 = vmul.f32 %v3304, %v4190
    %v4254 = vmul.f32 %v3305, %v4191
    %v4255 = vmul.f32 %v3306, %v4192
    %v4256 = vmul.f32 %v3307, %v4193
    %v4257 = vmul.f32 %v3308, %v4194
    %v4258 = vmul.f32 %v3309, %v4195
    %v4259 = vmul.f32 %v3310, %v4196
    %v4260 = vmul.f32 %v3311, %v4197
    %v4261 = vmul.f32 %v3312, %v4198
    %v4262 = vmul.f32 %v3313, %v4199
    %v4263 = vmul.f32 %v3314, %v4200
    %v4264 = vmul.f32 %v3315, %v4201
    %v4265 = vmul.f32 %v3316, %v4202
    %v4266 = vmul.f32 %v3317, %v4203
    %v4267 = vmul.f32 %v3318, %v4204
    %v4268 = vmul.f32 %v3319, %v4205
    %v4269 = vmul.f32 %v3320, %v4206
    %v4270 = vmul.f32 %v3321, %v4207
    %v4271 = vmul.f32 %v3322, %v4208
    %v4272 = vmul.f32 %v3323, %v4209
    %v4273 = vmul.f32 %v3324, %v4210
    %v4274 = vmul.f32 %v3325, %v4211
    %v4275 = vmul.f32 %v3326, %v4212
    %v4276 = vmul.f32 %v3327, %v4213
    %v4277 = vmul.f32 %v3328, %v4214
    %v4278 = vmul.f32 %v3329, %v4215
    %v4279 = vmul.f32 %v3330, %v4216
    %v4280 = vadd.f32 %v4217, %v4218
    %v4281 = vadd.f32 %v4280, %v4219
    %v4282 = vadd.f32 %v4281, %v4220
    %v4283 = vadd.f32 %v4282, %v4221
    %v4284 = vadd.f32 %v4283, %v4222
    %v4285 = vadd.f32 %v4284, %v4223
    %v4286 = vadd.f32 %v4285, %v4224
    %v4287 = vadd.f32 %v4286, %v4225
    %v4288 = vadd.f32 %v4287, %v4226
    %v4289 = vadd.f32 %v4288, %v4227
    %v4290 = vadd.f32 %v4289, %v4228
    %v4291 = vadd.f32 %v4290, %v4229
    %v4292 = vadd.f32 %v4291, %v4230
    %v4293 = vadd.f32 %v4292, %v4231
    %v4294 = vadd.f32 %v4293, %v4232
    %v4295 = vadd.f32 %v4294, %v4233
    %v4296 = vadd.f32 %v4295, %v4234
    %v4297 = vadd.f32 %v4296, %v4235
    %v4298 = vadd.f32 %v4297, %v4236
    %v4299 = vadd.f32 %v4298, %v4237
    %v4300 = vadd.f32 %v4299, %v4238
    %v4301 = vadd.f32 %v4300, %v4239
    %v4302 = vadd.f32 %v4301, %v4240
    %v4303 = vadd.f32 %v4302, %v4241
    %v4304 = vadd.f32 %v4303, %v4242
    %v4305 = vadd.f32 %v4304, %v4243
    %v4306 = vadd.f32 %v4305, %v4244
    %v4307 = vadd.f32 %v4306, %v4245
    %v4308 = vadd.f32 %v4307, %v4246
    %v4309 = vadd.f32 %v4308, %v4247
    %v4310 = vadd.f32 %v4309, %v4248
    %v4311 = vadd.f32 %v4310, %v4249
    %v4312 = vadd.f32 %v4311, %v4250
    %v4313 = vadd.f32 %v4312, %v4251
    %v4314 = vadd.f32 %v4313, %v4252
    %v4315 = vadd.f32 %v4314, %v4253
    %v4316 = vadd.f32 %v4315, %v4254
    %v4317 = vadd.f32 %v4316, %v4255
    %v4318 = vadd.f32 %v4317, %v4256
    %v4319 = vadd.f32 %v4318, %v4257
    %v4320 = vadd.f32 %v4319, %v4258
    %v4321 = vadd.f32 %v4320, %v4259
    %v4322 = vadd.f32 %v4321, %v4260
    %v4323 = vadd.f32 %v4322, %v4261
    %v4324 = vadd.f32 %v4323, %v4262
    %v4325 = vadd.f32 %v4324, %v4263
    %v4326 = vadd.f32 %v4325, %v4264
    %v4327 = vadd.f32 %v4326, %v4265
    %v4328 = vadd.f32 %v4327, %v4266
    %v4329 = vadd.f32 %v4328, %v4267
    %v4330 = vadd.f32 %v4329, %v4268
    %v4331 = vadd.f32 %v4330, %v4269
    %v4332 = vadd.f32 %v4331, %v4270
    %v4333 = vadd.f32 %v4332, %v4271
    %v4334 = vadd.f32 %v4333, %v4272
    %v4335 = vadd.f32 %v4334, %v4273
    %v4336 = vadd.f32 %v4335, %v4274
    %v4337 = vadd.f32 %v4336, %v4275
    %v4338 = vadd.f32 %v4337, %v4276
    %v4339 = vadd.f32 %v4338, %v4277
    %v4340 = vadd.f32 %v4339, %v4278
    %v4341 = vadd.f32 %v4340, %v4279
    %v4342 = vmul.f32 %v3269, %v4154
    %v4343 = vmul.f32 %v3270, %v4155
    %v4344 = vmul.f32 %v3271, %v4156
    %v4345 = vmul.f32 %v3272, %v4157
    %v4346 = vmul.f32 %v3273, %v4158
    %v4347 = vmul.f32 %v3274, %v4159
    %v4348 = vmul.f32 %v3275, %v4160
    %v4349 = vmul.f32 %v3276, %v4161
    %v4350 = vmul.f32 %v3277, %v4162
    %v4351 = vmul.f32 %v3278, %v4163
    %v4352 = vmul.f32 %v3279, %v4164
    %v4353 = vmul.f32 %v3280, %v4165
    %v4354 = vmul.f32 %v3281, %v4166
    %v4355 = vmul.f32 %v3282, %v4167
    %v4356 = vmul.f32 %v3283, %v4168
    %v4357 = vmul.f32 %v3284, %v4169
    %v4358 = vmul.f32 %v3285, %v4170
    %v4359 = vmul.f32 %v3286, %v4171
    %v4360 = vmul.f32 %v3287, %v4172
    %v4361 = vmul.f32 %v3288, %v4173
    %v4362 = vmul.f32 %v3289, %v4174
    %v4363 = vmul.f32 %v3290, %v4175
    %v4364 = vmul.f32 %v3291, %v4176
    %v4365 = vmul.f32 %v3292, %v4177
    %v4366 = vmul.f32 %v3293, %v4178
    %v4367 = vmul.f32 %v3294, %v4179
    %v4368 = vmul.f32 %v3295, %v4180
    %v4369 = vmul.f32 %v3296, %v4181
    %v4370 = vmul.f32 %v3297, %v4182
    %v4371 = vmul.f32 %v3298, %v4183
    %v4372 = vmul.f32 %v3299, %v4184
    %v4373 = vmul.f32 %v3300, %v4185
    %v4374 = vmul.f32 %v3301, %v4186
    %v4375 = vmul.f32 %v3302, %v4187
    %v4376 = vmul.f32 %v3303, %v4188
    %v4377 = vmul.f32 %v3304, %v4189
    %v4378 = vmul.f32 %v3305, %v4190
    %v4379 = vmul.f32 %v3306, %v4191
    %v4380 = vmul.f32 %v3307, %v4192
    %v4381 = vmul.f32 %v3308, %v4193
    %v4382 = vmul.f32 %v3309, %v4194
    %v4383 = vmul.f32 %v3310, %v4195
    %v4384 = vmul.f32 %v3311, %v4196
    %v4385 = vmul.f32 %v3312, %v4197
    %v4386 = vmul.f32 %v3313, %v4198
    %v4387 = vmul.f32 %v3314, %v4199
    %v4388 = vmul.f32 %v3315, %v4200
    %v4389 = vmul.f32 %v3316, %v4201
    %v4390 = vmul.f32 %v3317, %v4202
    %v4391 = vmul.f32 %v3318, %v4203
    %v4392 = vmul.f32 %v3319, %v4204
    %v4393 = vmul.f32 %v3320, %v4205
    %v4394 = vmul.f32 %v3321, %v4206
    %v4395 = vmul.f32 %v3322, %v4207
    %v4396 = vmul.f32 %v3323, %v4208
    %v4397 = vmul.f32 %v3324, %v4209
    %v4398 = vmul.f32 %v3325, %v4210
    %v4399 = vmul.f32 %v3326, %v4211
    %v4400 = vmul.f32 %v3327, %v4212
    %v4401 = vmul.f32 %v3328, %v4213
    %v4402 = vmul.f32 %v3329, %v4214
    %v4403 = vmul.f32 %v3330, %v4215
    %v4404 = vmul.f32 %v3331, %v4216
    %v4405 = vadd.f32 %v4342, %v4343
    %v4406 = vadd.f32 %v4405, %v4344
    %v4407 = vadd.f32 %v4406, %v4345
    %v4408 = vadd.f32 %v4407, %v4346
    %v4409 = vadd.f32 %v4408, %v4347
    %v4410 = vadd.f32 %v4409, %v4348
    %v4411 = vadd.f32 %v4410, %v4349
    %v4412 = vadd.f32 %v4411, %v4350
    %v4413 = vadd.f32 %v4412, %v4351
    %v4414 = vadd.f32 %v4413, %v4352
    %v4415 = vadd.f32 %v4414, %v4353
    %v4416 = vadd.f32 %v4415, %v4354
    %v4417 = vadd.f32 %v4416, %v4355
    %v4418 = vadd.f32 %v4417, %v4356
    %v4419 = vadd.f32 %v4418, %v4357
    %v4420 = vadd.f32 %v4419, %v4358
    %v4421 = vadd.f32 %v4420, %v4359
    %v4422 = vadd.f32 %v4421, %v4360
    %v4423 = vadd.f32 %v4422, %v4361
    %v4424 = vadd.f32 %v4423, %v4362
    %v4425 = vadd.f32 %v4424, %v4363
    %v4426 = vadd.f32 %v4425, %v4364
    %v4427 = vadd.f32 %v4426, %v4365
    %v4428 = vadd.f32 %v4427, %v4366
    %v4429 = vadd.f32 %v4428, %v4367
    %v4430 = vadd.f32 %v4429, %v4368
    %v4431 = vadd.f32 %v4430, %v4369
    %v4432 = vadd.f32 %v4431, %v4370
    %v4433 = vadd.f32 %v4432, %v4371
    %v4434 = vadd.f32 %v4433, %v4372
    %v4435 = vadd.f32 %v4434, %v4373
    %v4436 = vadd.f32 %v4435, %v4374
    %v4437 = vadd.f32 %v4436, %v4375
    %v4438 = vadd.f32 %v4437, %v4376
    %v4439 = vadd.f32 %v4438, %v4377
    %v4440 = vadd.f32 %v4439, %v4378
    %v4441 = vadd.f32 %v4440, %v4379
    %v4442 = vadd.f32 %v4441, %v4380
    %v4443 = vadd.f32 %v4442, %v4381
    %v4444 = vadd.f32 %v4443, %v4382
    %v4445 = vadd.f32 %v4444, %v4383
    %v4446 = vadd.f32 %v4445, %v4384
    %v4447 = vadd.f32 %v4446, %v4385
    %v4448 = vadd.f32 %v4447, %v4386
    %v4449 = vadd.f32 %v4448, %v4387
    %v4450 = vadd.f32 %v4449, %v4388
    %v4451 = vadd.f32 %v4450, %v4389
    %v4452 = vadd.f32 %v4451, %v4390
    %v4453 = vadd.f32 %v4452, %v4391
    %v4454 = vadd.f32 %v4453, %v4392
    %v4455 = vadd.f32 %v4454, %v4393
    %v4456 = vadd.f32 %v4455, %v4394
    %v4457 = vadd.f32 %v4456, %v4395
    %v4458 = vadd.f32 %v4457, %v4396
    %v4459 = vadd.f32 %v4458, %v4397
    %v4460 = vadd.f32 %v4459, %v4398
    %v4461 = vadd.f32 %v4460, %v4399
    %v4462 = vadd.f32 %v4461, %v4400
    %v4463 = vadd.f32 %v4462, %v4401
    %v4464 = vadd.f32 %v4463, %v4402
    %v4465 = vadd.f32 %v4464, %v4403
    %v4466 = vadd.f32 %v4465, %v4404
    %v4467 = vsub.f32 %v4466, %v4341
    %v4468 = vmul.f32 %v4467, %v73
    %v4469 = vmul.f32 %v4467, %v74
    %v4470 = vmul.f32 %v4467, %v75
    %v4471 = vmul.f32 %v4467, %v76
    %v4472 = vmul.f32 %v4467, %v77
    %v4473 = vmul.f32 %v4467, %v78
    %v4474 = vmul.f32 %v4467, %v79
    %v4475 = vmul.f32 %v4467, %v80
    %v4476 = vmul.f32 %v4467, %v81
    %v4477 = vmul.f32 %v4467, %v82
    %v4478 = vmul.f32 %v4467, %v83
    %v4479 = vmul.f32 %v4467, %v84
    %v4480 = vmul.f32 %v4467, %v85
    %v4481 = vmul.f32 %v4467, %v86
    %v4482 = vmul.f32 %v4467, %v87
    %v4483 = vmul.f32 %v4467, %v88
    %v4484 = vmul.f32 %v4467, %v89
    %v4485 = vmul.f32 %v4467, %v90
    %v4486 = vmul.f32 %v4467, %v91
    %v4487 = vmul.f32 %v4467, %v92
    %v4488 = vmul.f32 %v4467, %v93
    %v4489 = vmul.f32 %v4467, %v94
    %v4490 = vmul.f32 %v4467, %v95
    %v4491 = vmul.f32 %v4467, %v96
    %v4492 = vmul.f32 %v4467, %v97
    %v4493 = vmul.f32 %v4467, %v98
    %v4494 = vmul.f32 %v4467, %v99
    %v4495 = vmul.f32 %v4467, %v100
    %v4496 = vmul.f32 %v4467, %v101
    %v4497 = vmul.f32 %v4467, %v102
    %v4498 = vmul.f32 %v4467, %v103
    %v4499 = vmul.f32 %v4467, %v104
    %v4500 = vmul.f32 %v4467, %v105
    %v4501 = vmul.f32 %v4467, %v106
    %v4502 = vmul.f32 %v4467, %v107
    %v4503 = vmul.f32 %v4467, %v108
    %v4504 = vmul.f32 %v4467, %v109
    %v4505 = vmul.f32 %v4467, %v110
    %v4506 = vmul.f32 %v4467, %v111
    %v4507 = vmul.f32 %v4467, %v112
    %v4508 = vmul.f32 %v4467, %v113
    %v4509 = vmul.f32 %v4467, %v114
    %v4510 = vmul.f32 %v4467, %v115
    %v4511 = vmul.f32 %v4467, %v116
    %v4512 = vmul.f32 %v4467, %v117
    %v4513 = vmul.f32 %v4467, %v118
    %v4514 = vmul.f32 %v4467, %v119
    %v4515 = vmul.f32 %v4467, %v120
    %v4516 = vmul.f32 %v4467, %v121
    %v4517 = vmul.f32 %v4467, %v122
    %v4518 = vmul.f32 %v4467, %v123
    %v4519 = vmul.f32 %v4467, %v124
    %v4520 = vmul.f32 %v4467, %v125
    %v4521 = vmul.f32 %v4467, %v126
    %v4522 = vmul.f32 %v4467, %v127
    %v4523 = vmul.f32 %v4467, %v128
    %v4524 = vmul.f32 %v4467, %v129
    %v4525 = vmul.f32 %v4467, %v130
    %v4526 = vmul.f32 %v4467, %v131
    %v4527 = vmul.f32 %v4467, %v132
    %v4528 = vmul.f32 %v4467, %v133
    %v4529 = vmul.f32 %v4467, %v134
    %v4530 = vmul.f32 %v4467, %v135
    %v4531 = vmul.f32 %v4467, %v136
    %v4532 = vadd.f32 %v4341, %v4468
    %v4533 = vadd.f32 %v4341, %v4469
    %v4534 = vadd.f32 %v4341, %v4470
    %v4535 = vadd.f32 %v4341, %v4471
    %v4536 = vadd.f32 %v4341, %v4472
    %v4537 = vadd.f32 %v4341, %v4473
    %v4538 = vadd.f32 %v4341, %v4474
    %v4539 = vadd.f32 %v4341, %v4475
    %v4540 = vadd.f32 %v4341, %v4476
    %v4541 = vadd.f32 %v4341, %v4477
    %v4542 = vadd.f32 %v4341, %v4478
    %v4543 = vadd.f32 %v4341, %v4479
    %v4544 = vadd.f32 %v4341, %v4480
    %v4545 = vadd.f32 %v4341, %v4481
    %v4546 = vadd.f32 %v4341, %v4482
    %v4547 = vadd.f32 %v4341, %v4483
    %v4548 = vadd.f32 %v4341, %v4484
    %v4549 = vadd.f32 %v4341, %v4485
    %v4550 = vadd.f32 %v4341, %v4486
    %v4551 = vadd.f32 %v4341, %v4487
    %v4552 = vadd.f32 %v4341, %v4488
    %v4553 = vadd.f32 %v4341, %v4489
    %v4554 = vadd.f32 %v4341, %v4490
    %v4555 = vadd.f32 %v4341, %v4491
    %v4556 = vadd.f32 %v4341, %v4492
    %v4557 = vadd.f32 %v4341, %v4493
    %v4558 = vadd.f32 %v4341, %v4494
    %v4559 = vadd.f32 %v4341, %v4495
    %v4560 = vadd.f32 %v4341, %v4496
    %v4561 = vadd.f32 %v4341, %v4497
    %v4562 = vadd.f32 %v4341, %v4498
    %v4563 = vadd.f32 %v4341, %v4499
    %v4564 = vadd.f32 %v4341, %v4500
    %v4565 = vadd.f32 %v4341, %v4501
    %v4566 = vadd.f32 %v4341, %v4502
    %v4567 = vadd.f32 %v4341, %v4503
    %v4568 = vadd.f32 %v4341, %v4504
    %v4569 = vadd.f32 %v4341, %v4505
    %v4570 = vadd.f32 %v4341, %v4506
    %v4571 = vadd.f32 %v4341, %v4507
    %v4572 = vadd.f32 %v4341, %v4508
    %v4573 = vadd.f32 %v4341, %v4509
    %v4574 = vadd.f32 %v4341, %v4510
    %v4575 = vadd.f32 %v4341, %v4511
    %v4576 = vadd.f32 %v4341, %v4512
    %v4577 = vadd.f32 %v4341, %v4513
    %v4578 = vadd.f32 %v4341, %v4514
    %v4579 = vadd.f32 %v4341, %v4515
    %v4580 = vadd.f32 %v4341, %v4516
    %v4581 = vadd.f32 %v4341, %v4517
    %v4582 = vadd.f32 %v4341, %v4518
    %v4583 = vadd.f32 %v4341, %v4519
    %v4584 = vadd.f32 %v4341, %v4520
    %v4585 = vadd.f32 %v4341, %v4521
    %v4586 = vadd.f32 %v4341, %v4522
    %v4587 = vadd.f32 %v4341, %v4523
    %v4588 = vadd.f32 %v4341, %v4524
    %v4589 = vadd.f32 %v4341, %v4525
    %v4590 = vadd.f32 %v4341, %v4526
    %v4591 = vadd.f32 %v4341, %v4527
    %v4592 = vadd.f32 %v4341, %v4528
    %v4593 = vadd.f32 %v4341, %v4529
    %v4594 = vadd.f32 %v4341, %v4530
    %v4595 = vadd.f32 %v4341, %v4531
    %v4596 = vmul.f32 %v3188, %v4532
    %v4597 = vmul.f32 %v3188, %v4533
    %v4598 = vmul.f32 %v3188, %v4534
    %v4599 = vmul.f32 %v3188, %v4535
    %v4600 = vmul.f32 %v3188, %v4536
    %v4601 = vmul.f32 %v3188, %v4537
    %v4602 = vmul.f32 %v3188, %v4538
    %v4603 = vmul.f32 %v3188, %v4539
    %v4604 = vmul.f32 %v3188, %v4540
    %v4605 = vmul.f32 %v3188, %v4541
    %v4606 = vmul.f32 %v3188, %v4542
    %v4607 = vmul.f32 %v3188, %v4543
    %v4608 = vmul.f32 %v3188, %v4544
    %v4609 = vmul.f32 %v3188, %v4545
    %v4610 = vmul.f32 %v3188, %v4546
    %v4611 = vmul.f32 %v3188, %v4547
    %v4612 = vmul.f32 %v3188, %v4548
    %v4613 = vmul.f32 %v3188, %v4549
    %v4614 = vmul.f32 %v3188, %v4550
    %v4615 = vmul.f32 %v3188, %v4551
    %v4616 = vmul.f32 %v3188, %v4552
    %v4617 = vmul.f32 %v3188, %v4553
    %v4618 = vmul.f32 %v3188, %v4554
    %v4619 = vmul.f32 %v3188, %v4555
    %v4620 = vmul.f32 %v3188, %v4556
    %v4621 = vmul.f32 %v3188, %v4557
    %v4622 = vmul.f32 %v3188, %v4558
    %v4623 = vmul.f32 %v3188, %v4559
    %v4624 = vmul.f32 %v3188, %v4560
    %v4625 = vmul.f32 %v3188, %v4561
    %v4626 = vmul.f32 %v3188, %v4562
    %v4627 = vmul.f32 %v3188, %v4563
    %v4628 = vmul.f32 %v3188, %v4564
    %v4629 = vmul.f32 %v3188, %v4565
    %v4630 = vmul.f32 %v3188, %v4566
    %v4631 = vmul.f32 %v3188, %v4567
    %v4632 = vmul.f32 %v3188, %v4568
    %v4633 = vmul.f32 %v3188, %v4569
    %v4634 = vmul.f32 %v3188, %v4570
    %v4635 = vmul.f32 %v3188, %v4571
    %v4636 = vmul.f32 %v3188, %v4572
    %v4637 = vmul.f32 %v3188, %v4573
    %v4638 = vmul.f32 %v3188, %v4574
    %v4639 = vmul.f32 %v3188, %v4575
    %v4640 = vmul.f32 %v3188, %v4576
    %v4641 = vmul.f32 %v3188, %v4577
    %v4642 = vmul.f32 %v3188, %v4578
    %v4643 = vmul.f32 %v3188, %v4579
    %v4644 = vmul.f32 %v3188, %v4580
    %v4645 = vmul.f32 %v3188, %v4581
    %v4646 = vmul.f32 %v3188, %v4582
    %v4647 = vmul.f32 %v3188, %v4583
    %v4648 = vmul.f32 %v3188, %v4584
    %v4649 = vmul.f32 %v3188, %v4585
    %v4650 = vmul.f32 %v3188, %v4586
    %v4651 = vmul.f32 %v3188, %v4587
    %v4652 = vmul.f32 %v3188, %v4588
    %v4653 = vmul.f32 %v3188, %v4589
    %v4654 = vmul.f32 %v3188, %v4590
    %v4655 = vmul.f32 %v3188, %v4591
    %v4656 = vmul.f32 %v3188, %v4592
    %v4657 = vmul.f32 %v3188, %v4593
    %v4658 = vmul.f32 %v3188, %v4594
    %v4659 = vmul.f32 %v3188, %v4595
    %v4660 = vadd.f32 %v4596, %v3194
    %v4661 = vadd.f32 %v4597, %v3194
    %v4662 = vadd.f32 %v4598, %v3194
    %v4663 = vadd.f32 %v4599, %v3194
    %v4664 = vadd.f32 %v4600, %v3194
    %v4665 = vadd.f32 %v4601, %v3194
    %v4666 = vadd.f32 %v4602, %v3194
    %v4667 = vadd.f32 %v4603, %v3194
    %v4668 = vadd.f32 %v4604, %v3194
    %v4669 = vadd.f32 %v4605, %v3194
    %v4670 = vadd.f32 %v4606, %v3194
    %v4671 = vadd.f32 %v4607, %v3194
    %v4672 = vadd.f32 %v4608, %v3194
    %v4673 = vadd.f32 %v4609, %v3194
    %v4674 = vadd.f32 %v4610, %v3194
    %v4675 = vadd.f32 %v4611, %v3194
    %v4676 = vadd.f32 %v4612, %v3194
    %v4677 = vadd.f32 %v4613, %v3194
    %v4678 = vadd.f32 %v4614, %v3194
    %v4679 = vadd.f32 %v4615, %v3194
    %v4680 = vadd.f32 %v4616, %v3194
    %v4681 = vadd.f32 %v4617, %v3194
    %v4682 = vadd.f32 %v4618, %v3194
    %v4683 = vadd.f32 %v4619, %v3194
    %v4684 = vadd.f32 %v4620, %v3194
    %v4685 = vadd.f32 %v4621, %v3194
    %v4686 = vadd.f32 %v4622, %v3194
    %v4687 = vadd.f32 %v4623, %v3194
    %v4688 = vadd.f32 %v4624, %v3194
    %v4689 = vadd.f32 %v4625, %v3194
    %v4690 = vadd.f32 %v4626, %v3194
    %v4691 = vadd.f32 %v4627, %v3194
    %v4692 = vadd.f32 %v4628, %v3194
    %v4693 = vadd.f32 %v4629, %v3194
    %v4694 = vadd.f32 %v4630, %v3194
    %v4695 = vadd.f32 %v4631, %v3194
    %v4696 = vadd.f32 %v4632, %v3194
    %v4697 = vadd.f32 %v4633, %v3194
    %v4698 = vadd.f32 %v4634, %v3194
    %v4699 = vadd.f32 %v4635, %v3194
    %v4700 = vadd.f32 %v4636, %v3194
    %v4701 = vadd.f32 %v4637, %v3194
    %v4702 = vadd.f32 %v4638, %v3194
    %v4703 = vadd.f32 %v4639, %v3194
    %v4704 = vadd.f32 %v4640, %v3194
    %v4705 = vadd.f32 %v4641, %v3194
    %v4706 = vadd.f32 %v4642, %v3194
    %v4707 = vadd.f32 %v4643, %v3194
    %v4708 = vadd.f32 %v4644, %v3194
    %v4709 = vadd.f32 %v4645, %v3194
    %v4710 = vadd.f32 %v4646, %v3194
    %v4711 = vadd.f32 %v4647, %v3194
    %v4712 = vadd.f32 %v4648, %v3194
    %v4713 = vadd.f32 %v4649, %v3194
    %v4714 = vadd.f32 %v4650, %v3194
    %v4715 = vadd.f32 %v4651, %v3194
    %v4716 = vadd.f32 %v4652, %v3194
    %v4717 = vadd.f32 %v4653, %v3194
    %v4718 = vadd.f32 %v4654, %v3194
    %v4719 = vadd.f32 %v4655, %v3194
    %v4720 = vadd.f32 %v4656, %v3194
    %v4721 = vadd.f32 %v4657, %v3194
    %v4722 = vadd.f32 %v4658, %v3194
    %v4723 = vadd.f32 %v4659, %v3194
    %v4724 = vmul.f32 %v4660, %v4532
    %v4725 = vmul.f32 %v4661, %v4533
    %v4726 = vmul.f32 %v4662, %v4534
    %v4727 = vmul.f32 %v4663, %v4535
    %v4728 = vmul.f32 %v4664, %v4536
    %v4729 = vmul.f32 %v4665, %v4537
    %v4730 = vmul.f32 %v4666, %v4538
    %v4731 = vmul.f32 %v4667, %v4539
    %v4732 = vmul.f32 %v4668, %v4540
    %v4733 = vmul.f32 %v4669, %v4541
    %v4734 = vmul.f32 %v4670, %v4542
    %v4735 = vmul.f32 %v4671, %v4543
    %v4736 = vmul.f32 %v4672, %v4544
    %v4737 = vmul.f32 %v4673, %v4545
    %v4738 = vmul.f32 %v4674, %v4546
    %v4739 = vmul.f32 %v4675, %v4547
    %v4740 = vmul.f32 %v4676, %v4548
    %v4741 = vmul.f32 %v4677, %v4549
    %v4742 = vmul.f32 %v4678, %v4550
    %v4743 = vmul.f32 %v4679, %v4551
    %v4744 = vmul.f32 %v4680, %v4552
    %v4745 = vmul.f32 %v4681, %v4553
    %v4746 = vmul.f32 %v4682, %v4554
    %v4747 = vmul.f32 %v4683, %v4555
    %v4748 = vmul.f32 %v4684, %v4556
    %v4749 = vmul.f32 %v4685, %v4557
    %v4750 = vmul.f32 %v4686, %v4558
    %v4751 = vmul.f32 %v4687, %v4559
    %v4752 = vmul.f32 %v4688, %v4560
    %v4753 = vmul.f32 %v4689, %v4561
    %v4754 = vmul.f32 %v4690, %v4562
    %v4755 = vmul.f32 %v4691, %v4563
    %v4756 = vmul.f32 %v4692, %v4564
    %v4757 = vmul.f32 %v4693, %v4565
    %v4758 = vmul.f32 %v4694, %v4566
    %v4759 = vmul.f32 %v4695, %v4567
    %v4760 = vmul.f32 %v4696, %v4568
    %v4761 = vmul.f32 %v4697, %v4569
    %v4762 = vmul.f32 %v4698, %v4570
    %v4763 = vmul.f32 %v4699, %v4571
    %v4764 = vmul.f32 %v4700, %v4572
    %v4765 = vmul.f32 %v4701, %v4573
    %v4766 = vmul.f32 %v4702, %v4574
    %v4767 = vmul.f32 %v4703, %v4575
    %v4768 = vmul.f32 %v4704, %v4576
    %v4769 = vmul.f32 %v4705, %v4577
    %v4770 = vmul.f32 %v4706, %v4578
    %v4771 = vmul.f32 %v4707, %v4579
    %v4772 = vmul.f32 %v4708, %v4580
    %v4773 = vmul.f32 %v4709, %v4581
    %v4774 = vmul.f32 %v4710, %v4582
    %v4775 = vmul.f32 %v4711, %v4583
    %v4776 = vmul.f32 %v4712, %v4584
    %v4777 = vmul.f32 %v4713, %v4585
    %v4778 = vmul.f32 %v4714, %v4586
    %v4779 = vmul.f32 %v4715, %v4587
    %v4780 = vmul.f32 %v4716, %v4588
    %v4781 = vmul.f32 %v4717, %v4589
    %v4782 = vmul.f32 %v4718, %v4590
    %v4783 = vmul.f32 %v4719, %v4591
    %v4784 = vmul.f32 %v4720, %v4592
    %v4785 = vmul.f32 %v4721, %v4593
    %v4786 = vmul.f32 %v4722, %v4594
    %v4787 = vmul.f32 %v4723, %v4595
    %v4788 = vadd.f32 %v4724, %v3195
    %v4789 = vadd.f32 %v4725, %v3195
    %v4790 = vadd.f32 %v4726, %v3195
    %v4791 = vadd.f32 %v4727, %v3195
    %v4792 = vadd.f32 %v4728, %v3195
    %v4793 = vadd.f32 %v4729, %v3195
    %v4794 = vadd.f32 %v4730, %v3195
    %v4795 = vadd.f32 %v4731, %v3195
    %v4796 = vadd.f32 %v4732, %v3195
    %v4797 = vadd.f32 %v4733, %v3195
    %v4798 = vadd.f32 %v4734, %v3195
    %v4799 = vadd.f32 %v4735, %v3195
    %v4800 = vadd.f32 %v4736, %v3195
    %v4801 = vadd.f32 %v4737, %v3195
    %v4802 = vadd.f32 %v4738, %v3195
    %v4803 = vadd.f32 %v4739, %v3195
    %v4804 = vadd.f32 %v4740, %v3195
    %v4805 = vadd.f32 %v4741, %v3195
    %v4806 = vadd.f32 %v4742, %v3195
    %v4807 = vadd.f32 %v4743, %v3195
    %v4808 = vadd.f32 %v4744, %v3195
    %v4809 = vadd.f32 %v4745, %v3195
    %v4810 = vadd.f32 %v4746, %v3195
    %v4811 = vadd.f32 %v4747, %v3195
    %v4812 = vadd.f32 %v4748, %v3195
    %v4813 = vadd.f32 %v4749, %v3195
    %v4814 = vadd.f32 %v4750, %v3195
    %v4815 = vadd.f32 %v4751, %v3195
    %v4816 = vadd.f32 %v4752, %v3195
    %v4817 = vadd.f32 %v4753, %v3195
    %v4818 = vadd.f32 %v4754, %v3195
    %v4819 = vadd.f32 %v4755, %v3195
    %v4820 = vadd.f32 %v4756, %v3195
    %v4821 = vadd.f32 %v4757, %v3195
    %v4822 = vadd.f32 %v4758, %v3195
    %v4823 = vadd.f32 %v4759, %v3195
    %v4824 = vadd.f32 %v4760, %v3195
    %v4825 = vadd.f32 %v4761, %v3195
    %v4826 = vadd.f32 %v4762, %v3195
    %v4827 = vadd.f32 %v4763, %v3195
    %v4828 = vadd.f32 %v4764, %v3195
    %v4829 = vadd.f32 %v4765, %v3195
    %v4830 = vadd.f32 %v4766, %v3195
    %v4831 = vadd.f32 %v4767, %v3195
    %v4832 = vadd.f32 %v4768, %v3195
    %v4833 = vadd.f32 %v4769, %v3195
    %v4834 = vadd.f32 %v4770, %v3195
    %v4835 = vadd.f32 %v4771, %v3195
    %v4836 = vadd.f32 %v4772, %v3195
    %v4837 = vadd.f32 %v4773, %v3195
    %v4838 = vadd.f32 %v4774, %v3195
    %v4839 = vadd.f32 %v4775, %v3195
    %v4840 = vadd.f32 %v4776, %v3195
    %v4841 = vadd.f32 %v4777, %v3195
    %v4842 = vadd.f32 %v4778, %v3195
    %v4843 = vadd.f32 %v4779, %v3195
    %v4844 = vadd.f32 %v4780, %v3195
    %v4845 = vadd.f32 %v4781, %v3195
    %v4846 = vadd.f32 %v4782, %v3195
    %v4847 = vadd.f32 %v4783, %v3195
    %v4848 = vadd.f32 %v4784, %v3195
    %v4849 = vadd.f32 %v4785, %v3195
    %v4850 = vadd.f32 %v4786, %v3195
    %v4851 = vadd.f32 %v4787, %v3195
    %v4852 = vmul.f32 %v4789, %v4788
    %v4853 = vmul.f32 %v4790, %v4789
    %v4854 = vmul.f32 %v4791, %v4790
    %v4855 = vmul.f32 %v4792, %v4791
    %v4856 = vmul.f32 %v4793, %v4792
    %v4857 = vmul.f32 %v4794, %v4793
    %v4858 = vmul.f32 %v4795, %v4794
    %v4859 = vmul.f32 %v4796, %v4795
    %v4860 = vmul.f32 %v4797, %v4796
    %v4861 = vmul.f32 %v4798, %v4797
    %v4862 = vmul.f32 %v4799, %v4798
    %v4863 = vmul.f32 %v4800, %v4799
    %v4864 = vmul.f32 %v4801, %v4800
    %v4865 = vmul.f32 %v4802, %v4801
    %v4866 = vmul.f32 %v4803, %v4802
    %v4867 = vmul.f32 %v4804, %v4803
    %v4868 = vmul.f32 %v4805, %v4804
    %v4869 = vmul.f32 %v4806, %v4805
    %v4870 = vmul.f32 %v4807, %v4806
    %v4871 = vmul.f32 %v4808, %v4807
    %v4872 = vmul.f32 %v4809, %v4808
    %v4873 = vmul.f32 %v4810, %v4809
    %v4874 = vmul.f32 %v4811, %v4810
    %v4875 = vmul.f32 %v4812, %v4811
    %v4876 = vmul.f32 %v4813, %v4812
    %v4877 = vmul.f32 %v4814, %v4813
    %v4878 = vmul.f32 %v4815, %v4814
    %v4879 = vmul.f32 %v4816, %v4815
    %v4880 = vmul.f32 %v4817, %v4816
    %v4881 = vmul.f32 %v4818, %v4817
    %v4882 = vmul.f32 %v4819, %v4818
    %v4883 = vmul.f32 %v4820, %v4819
    %v4884 = vmul.f32 %v4821, %v4820
    %v4885 = vmul.f32 %v4822, %v4821
    %v4886 = vmul.f32 %v4823, %v4822
    %v4887 = vmul.f32 %v4824, %v4823
    %v4888 = vmul.f32 %v4825, %v4824
    %v4889 = vmul.f32 %v4826, %v4825
    %v4890 = vmul.f32 %v4827, %v4826
    %v4891 = vmul.f32 %v4828, %v4827
    %v4892 = vmul.f32 %v4829, %v4828
    %v4893 = vmul.f32 %v4830, %v4829
    %v4894 = vmul.f32 %v4831, %v4830
    %v4895 = vmul.f32 %v4832, %v4831
    %v4896 = vmul.f32 %v4833, %v4832
    %v4897 = vmul.f32 %v4834, %v4833
    %v4898 = vmul.f32 %v4835, %v4834
    %v4899 = vmul.f32 %v4836, %v4835
    %v4900 = vmul.f32 %v4837, %v4836
    %v4901 = vmul.f32 %v4838, %v4837
    %v4902 = vmul.f32 %v4839, %v4838
    %v4903 = vmul.f32 %v4840, %v4839
    %v4904 = vmul.f32 %v4841, %v4840
    %v4905 = vmul.f32 %v4842, %v4841
    %v4906 = vmul.f32 %v4843, %v4842
    %v4907 = vmul.f32 %v4844, %v4843
    %v4908 = vmul.f32 %v4845, %v4844
    %v4909 = vmul.f32 %v4846, %v4845
    %v4910 = vmul.f32 %v4847, %v4846
    %v4911 = vmul.f32 %v4848, %v4847
    %v4912 = vmul.f32 %v4849, %v4848
    %v4913 = vmul.f32 %v4850, %v4849
    %v4914 = vmul.f32 %v4851, %v4850
    %vm4915 = vcmp.le.f32.partialorder %v4852, 0.0
    %vm4916 = vcmp.le.f32.partialorder %v4853, 0.0
    %vm4917 = vcmp.le.f32.partialorder %v4854, 0.0
    %vm4918 = vcmp.le.f32.partialorder %v4855, 0.0
    %vm4919 = vcmp.le.f32.partialorder %v4856, 0.0
    %vm4920 = vcmp.le.f32.partialorder %v4857, 0.0
    %vm4921 = vcmp.le.f32.partialorder %v4858, 0.0
    %vm4922 = vcmp.le.f32.partialorder %v4859, 0.0
    %vm4923 = vcmp.le.f32.partialorder %v4860, 0.0
    %vm4924 = vcmp.le.f32.partialorder %v4861, 0.0
    %vm4925 = vcmp.le.f32.partialorder %v4862, 0.0
    %vm4926 = vcmp.le.f32.partialorder %v4863, 0.0
    %vm4927 = vcmp.le.f32.partialorder %v4864, 0.0
    %vm4928 = vcmp.le.f32.partialorder %v4865, 0.0
    %vm4929 = vcmp.le.f32.partialorder %v4866, 0.0
    %vm4930 = vcmp.le.f32.partialorder %v4867, 0.0
    %vm4931 = vcmp.le.f32.partialorder %v4868, 0.0
    %vm4932 = vcmp.le.f32.partialorder %v4869, 0.0
    %vm4933 = vcmp.le.f32.partialorder %v4870, 0.0
    %vm4934 = vcmp.le.f32.partialorder %v4871, 0.0
    %vm4935 = vcmp.le.f32.partialorder %v4872, 0.0
    %vm4936 = vcmp.le.f32.partialorder %v4873, 0.0
    %vm4937 = vcmp.le.f32.partialorder %v4874, 0.0
    %vm4938 = vcmp.le.f32.partialorder %v4875, 0.0
    %vm4939 = vcmp.le.f32.partialorder %v4876, 0.0
    %vm4940 = vcmp.le.f32.partialorder %v4877, 0.0
    %vm4941 = vcmp.le.f32.partialorder %v4878, 0.0
    %vm4942 = vcmp.le.f32.partialorder %v4879, 0.0
    %vm4943 = vcmp.le.f32.partialorder %v4880, 0.0
    %vm4944 = vcmp.le.f32.partialorder %v4881, 0.0
    %vm4945 = vcmp.le.f32.partialorder %v4882, 0.0
    %vm4946 = vcmp.le.f32.partialorder %v4883, 0.0
    %vm4947 = vcmp.le.f32.partialorder %v4884, 0.0
    %vm4948 = vcmp.le.f32.partialorder %v4885, 0.0
    %vm4949 = vcmp.le.f32.partialorder %v4886, 0.0
    %vm4950 = vcmp.le.f32.partialorder %v4887, 0.0
    %vm4951 = vcmp.le.f32.partialorder %v4888, 0.0
    %vm4952 = vcmp.le.f32.partialorder %v4889, 0.0
    %vm4953 = vcmp.le.f32.partialorder %v4890, 0.0
    %vm4954 = vcmp.le.f32.partialorder %v4891, 0.0
    %vm4955 = vcmp.le.f32.partialorder %v4892, 0.0
    %vm4956 = vcmp.le.f32.partialorder %v4893, 0.0
    %vm4957 = vcmp.le.f32.partialorder %v4894, 0.0
    %vm4958 = vcmp.le.f32.partialorder %v4895, 0.0
    %vm4959 = vcmp.le.f32.partialorder %v4896, 0.0
    %vm4960 = vcmp.le.f32.partialorder %v4897, 0.0
    %vm4961 = vcmp.le.f32.partialorder %v4898, 0.0
    %vm4962 = vcmp.le.f32.partialorder %v4899, 0.0
    %vm4963 = vcmp.le.f32.partialorder %v4900, 0.0
    %vm4964 = vcmp.le.f32.partialorder %v4901, 0.0
    %vm4965 = vcmp.le.f32.partialorder %v4902, 0.0
    %vm4966 = vcmp.le.f32.partialorder %v4903, 0.0
    %vm4967 = vcmp.le.f32.partialorder %v4904, 0.0
    %vm4968 = vcmp.le.f32.partialorder %v4905, 0.0
    %vm4969 = vcmp.le.f32.partialorder %v4906, 0.0
    %vm4970 = vcmp.le.f32.partialorder %v4907, 0.0
    %vm4971 = vcmp.le.f32.partialorder %v4908, 0.0
    %vm4972 = vcmp.le.f32.partialorder %v4909, 0.0
    %vm4973 = vcmp.le.f32.partialorder %v4910, 0.0
    %vm4974 = vcmp.le.f32.partialorder %v4911, 0.0
    %vm4975 = vcmp.le.f32.partialorder %v4912, 0.0
    %vm4976 = vcmp.le.f32.partialorder %v4913, 0.0
    %vm4977 = vcmp.le.f32.partialorder %v4914, 0.0
    %v4978 = vsel %vm4915, %v137, 64
    %v4979 = vsel %vm4916, %v138, 64
    %v4980 = vsel %vm4917, %v139, 64
    %v4981 = vsel %vm4918, %v140, 64
    %v4982 = vsel %vm4919, %v141, 64
    %v4983 = vsel %vm4920, %v142, 64
    %v4984 = vsel %vm4921, %v143, 64
    %v4985 = vsel %vm4922, %v144, 64
    %v4986 = vsel %vm4923, %v145, 64
    %v4987 = vsel %vm4924, %v146, 64
    %v4988 = vsel %vm4925, %v147, 64
    %v4989 = vsel %vm4926, %v148, 64
    %v4990 = vsel %vm4927, %v149, 64
    %v4991 = vsel %vm4928, %v150, 64
    %v4992 = vsel %vm4929, %v151, 64
    %v4993 = vsel %vm4930, %v152, 64
    %v4994 = vsel %vm4931, %v153, 64
    %v4995 = vsel %vm4932, %v154, 64
    %v4996 = vsel %vm4933, %v155, 64
    %v4997 = vsel %vm4934, %v156, 64
    %v4998 = vsel %vm4935, %v157, 64
    %v4999 = vsel %vm4936, %v158, 64
    %v5000 = vsel %vm4937, %v159, 64
    %v5001 = vsel %vm4938, %v160, 64
    %v5002 = vsel %vm4939, %v161, 64
    %v5003 = vsel %vm4940, %v162, 64
    %v5004 = vsel %vm4941, %v163, 64
    %v5005 = vsel %vm4942, %v164, 64
    %v5006 = vsel %vm4943, %v165, 64
    %v5007 = vsel %vm4944, %v166, 64
    %v5008 = vsel %vm4945, %v167, 64
    %v5009 = vsel %vm4946, %v168, 64
    %v5010 = vsel %vm4947, %v169, 64
    %v5011 = vsel %vm4948, %v170, 64
    %v5012 = vsel %vm4949, %v171, 64
    %v5013 = vsel %vm4950, %v172, 64
    %v5014 = vsel %vm4951, %v173, 64
    %v5015 = vsel %vm4952, %v174, 64
    %v5016 = vsel %vm4953, %v175, 64
    %v5017 = vsel %vm4954, %v176, 64
    %v5018 = vsel %vm4955, %v177, 64
    %v5019 = vsel %vm4956, %v178, 64
    %v5020 = vsel %vm4957, %v179, 64
    %v5021 = vsel %vm4958, %v180, 64
    %v5022 = vsel %vm4959, %v181, 64
    %v5023 = vsel %vm4960, %v182, 64
    %v5024 = vsel %vm4961, %v183, 64
    %v5025 = vsel %vm4962, %v184, 64
    %v5026 = vsel %vm4963, %v185, 64
    %v5027 = vsel %vm4964, %v186, 64
    %v5028 = vsel %vm4965, %v187, 64
    %v5029 = vsel %vm4966, %v188, 64
    %v5030 = vsel %vm4967, %v189, 64
    %v5031 = vsel %vm4968, %v190, 64
    %v5032 = vsel %vm4969, %v191, 64
    %v5033 = vsel %vm4970, %v192, 64
    %v5034 = vsel %vm4971, %v193, 64
    %v5035 = vsel %vm4972, %v194, 64
    %v5036 = vsel %vm4973, %v195, 64
    %v5037 = vsel %vm4974, %v196, 64
    %v5038 = vsel %vm4975, %v197, 64
    %v5039 = vsel %vm4976, %v198, 64
    %v5040 = vsel %vm4977, %v199, 64
    %vm5041 = vcmp.lt.s32.totalorder %v4978, %v4982
    %v5042 = vsel %vm5041, %v4978, %v4982
    %vm5043 = vcmp.lt.s32.totalorder %v4979, %v4983
    %v5044 = vsel %vm5043, %v4979, %v4983
    %vm5045 = vcmp.lt.s32.totalorder %v4980, %v4984
    %v5046 = vsel %vm5045, %v4980, %v4984
    %vm5047 = vcmp.lt.s32.totalorder %v4981, %v4985
    %v5048 = vsel %vm5047, %v4981, %v4985
    %vm5049 = vcmp.lt.s32.totalorder %v5042, %v4986
    %v5050 = vsel %vm5049, %v5042, %v4986
    %vm5051 = vcmp.lt.s32.totalorder %v5044, %v4987
    %v5052 = vsel %vm5051, %v5044, %v4987
    %vm5053 = vcmp.lt.s32.totalorder %v5046, %v4988
    %v5054 = vsel %vm5053, %v5046, %v4988
    %vm5055 = vcmp.lt.s32.totalorder %v5048, %v4989
    %v5056 = vsel %vm5055, %v5048, %v4989
    %vm5057 = vcmp.lt.s32.totalorder %v5050, %v4990
    %v5058 = vsel %vm5057, %v5050, %v4990
    %vm5059 = vcmp.lt.s32.totalorder %v5052, %v4991
    %v5060 = vsel %vm5059, %v5052, %v4991
    %vm5061 = vcmp.lt.s32.totalorder %v5054, %v4992
    %v5062 = vsel %vm5061, %v5054, %v4992
    %vm5063 = vcmp.lt.s32.totalorder %v5056, %v4993
    %v5064 = vsel %vm5063, %v5056, %v4993
    %vm5065 = vcmp.lt.s32.totalorder %v5058, %v4994
    %v5066 = vsel %vm5065, %v5058, %v4994
    %vm5067 = vcmp.lt.s32.totalorder %v5060, %v4995
    %v5068 = vsel %vm5067, %v5060, %v4995
    %vm5069 = vcmp.lt.s32.totalorder %v5062, %v4996
    %v5070 = vsel %vm5069, %v5062, %v4996
    %vm5071 = vcmp.lt.s32.totalorder %v5064, %v4997
    %v5072 = vsel %vm5071, %v5064, %v4997
    %vm5073 = vcmp.lt.s32.totalorder %v5066, %v4998
    %v5074 = vsel %vm5073, %v5066, %v4998
    %vm5075 = vcmp.lt.s32.totalorder %v5068, %v4999
    %v5076 = vsel %vm5075, %v5068, %v4999
    %vm5077 = vcmp.lt.s32.totalorder %v5070, %v5000
    %v5078 = vsel %vm5077, %v5070, %v5000
    %vm5079 = vcmp.lt.s32.totalorder %v5072, %v5001
    %v5080 = vsel %vm5079, %v5072, %v5001
    %vm5081 = vcmp.lt.s32.totalorder %v5074, %v5002
    %v5082 = vsel %vm5081, %v5074, %v5002
    %vm5083 = vcmp.lt.s32.totalorder %v5076, %v5003
    %v5084 = vsel %vm5083, %v5076, %v5003
    %vm5085 = vcmp.lt.s32.totalorder %v5078, %v5004
    %v5086 = vsel %vm5085, %v5078, %v5004
    %vm5087 = vcmp.lt.s32.totalorder %v5080, %v5005
    %v5088 = vsel %vm5087, %v5080, %v5005
    %vm5089 = vcmp.lt.s32.totalorder %v5082, %v5006
    %v5090 = vsel %vm5089, %v5082, %v5006
    %vm5091 = vcmp.lt.s32.totalorder %v5084, %v5007
    %v5092 = vsel %vm5091, %v5084, %v5007
    %vm5093 = vcmp.lt.s32.totalorder %v5086, %v5008
    %v5094 = vsel %vm5093, %v5086, %v5008
    %vm5095 = vcmp.lt.s32.totalorder %v5088, %v5009
    %v5096 = vsel %vm5095, %v5088, %v5009
    %vm5097 = vcmp.lt.s32.totalorder %v5090, %v5010
    %v5098 = vsel %vm5097, %v5090, %v5010
    %vm5099 = vcmp.lt.s32.totalorder %v5092, %v5011
    %v5100 = vsel %vm5099, %v5092, %v5011
    %vm5101 = vcmp.lt.s32.totalorder %v5094, %v5012
    %v5102 = vsel %vm5101, %v5094, %v5012
    %vm5103 = vcmp.lt.s32.totalorder %v5096, %v5013
    %v5104 = vsel %vm5103, %v5096, %v5013
    %vm5105 = vcmp.lt.s32.totalorder %v5098, %v5014
    %v5106 = vsel %vm5105, %v5098, %v5014
    %vm5107 = vcmp.lt.s32.totalorder %v5100, %v5015
    %v5108 = vsel %vm5107, %v5100, %v5015
    %vm5109 = vcmp.lt.s32.totalorder %v5102, %v5016
    %v5110 = vsel %vm5109, %v5102, %v5016
    %vm5111 = vcmp.lt.s32.totalorder %v5104, %v5017
    %v5112 = vsel %vm5111, %v5104, %v5017
    %vm5113 = vcmp.lt.s32.totalorder %v5106, %v5018
    %v5114 = vsel %vm5113, %v5106, %v5018
    %vm5115 = vcmp.lt.s32.totalorder %v5108, %v5019
    %v5116 = vsel %vm5115, %v5108, %v5019
    %vm5117 = vcmp.lt.s32.totalorder %v5110, %v5020
    %v5118 = vsel %vm5117, %v5110, %v5020
    %vm5119 = vcmp.lt.s32.totalorder %v5112, %v5021
    %v5120 = vsel %vm5119, %v5112, %v5021
    %vm5121 = vcmp.lt.s32.totalorder %v5114, %v5022
    %v5122 = vsel %vm5121, %v5114, %v5022
    %vm5123 = vcmp.lt.s32.totalorder %v5116, %v5023
    %v5124 = vsel %vm5123, %v5116, %v5023
    %vm5125 = vcmp.lt.s32.totalorder %v5118, %v5024
    %v5126 = vsel %vm5125, %v5118, %v5024
    %vm5127 = vcmp.lt.s32.totalorder %v5120, %v5025
    %v5128 = vsel %vm5127, %v5120, %v5025
    %vm5129 = vcmp.lt.s32.totalorder %v5122, %v5026
    %v5130 = vsel %vm5129, %v5122, %v5026
    %vm5131 = vcmp.lt.s32.totalorder %v5124, %v5027
    %v5132 = vsel %vm5131, %v5124, %v5027
    %vm5133 = vcmp.lt.s32.totalorder %v5126, %v5028
    %v5134 = vsel %vm5133, %v5126, %v5028
    %vm5135 = vcmp.lt.s32.totalorder %v5128, %v5029
    %v5136 = vsel %vm5135, %v5128, %v5029
    %vm5137 = vcmp.lt.s32.totalorder %v5130, %v5030
    %v5138 = vsel %vm5137, %v5130, %v5030
    %vm5139 = vcmp.lt.s32.totalorder %v5132, %v5031
    %v5140 = vsel %vm5139, %v5132, %v5031
    %vm5141 = vcmp.lt.s32.totalorder %v5134, %v5032
    %v5142 = vsel %vm5141, %v5134, %v5032
    %vm5143 = vcmp.lt.s32.totalorder %v5136, %v5033
    %v5144 = vsel %vm5143, %v5136, %v5033
    %vm5145 = vcmp.lt.s32.totalorder %v5138, %v5034
    %v5146 = vsel %vm5145, %v5138, %v5034
    %vm5147 = vcmp.lt.s32.totalorder %v5140, %v5035
    %v5148 = vsel %vm5147, %v5140, %v5035
    %vm5149 = vcmp.lt.s32.totalorder %v5142, %v5036
    %v5150 = vsel %vm5149, %v5142, %v5036
    %vm5151 = vcmp.lt.s32.totalorder %v5144, %v5037
    %v5152 = vsel %vm5151, %v5144, %v5037
    %vm5153 = vcmp.lt.s32.totalorder %v5146, %v5038
    %v5154 = vsel %vm5153, %v5146, %v5038
    %vm5155 = vcmp.lt.s32.totalorder %v5148, %v5039
    %v5156 = vsel %vm5155, %v5148, %v5039
    %vm5157 = vcmp.lt.s32.totalorder %v5150, %v5040
    %v5158 = vsel %vm5157, %v5150, %v5040
    %vm5159 = vcmp.lt.s32.totalorder %v5154, %v5156
    %v5160 = vsel %vm5159, %v5154, %v5156
    %vm5161 = vcmp.lt.s32.totalorder %v5158, %v5152
    %v5162 = vsel %vm5161, %v5158, %v5152
    %vm5163 = vcmp.lt.s32.totalorder %v5160, %v5162
    %v5164 = vsel %vm5163, %v5160, %v5162
    %v5165 = vsel %vm4915, 1.0, 0.0
    %v5166 = vsel %vm4916, 1.0, 0.0
    %v5167 = vsel %vm4917, 1.0, 0.0
    %v5168 = vsel %vm4918, 1.0, 0.0
    %v5169 = vsel %vm4919, 1.0, 0.0
    %v5170 = vsel %vm4920, 1.0, 0.0
    %v5171 = vsel %vm4921, 1.0, 0.0
    %v5172 = vsel %vm4922, 1.0, 0.0
    %v5173 = vsel %vm4923, 1.0, 0.0
    %v5174 = vsel %vm4924, 1.0, 0.0
    %v5175 = vsel %vm4925, 1.0, 0.0
    %v5176 = vsel %vm4926, 1.0, 0.0
    %v5177 = vsel %vm4927, 1.0, 0.0
    %v5178 = vsel %vm4928, 1.0, 0.0
    %v5179 = vsel %vm4929, 1.0, 0.0
    %v5180 = vsel %vm4930, 1.0, 0.0
    %v5181 = vsel %vm4931, 1.0, 0.0
    %v5182 = vsel %vm4932, 1.0, 0.0
    %v5183 = vsel %vm4933, 1.0, 0.0
    %v5184 = vsel %vm4934, 1.0, 0.0
    %v5185 = vsel %vm4935, 1.0, 0.0
    %v5186 = vsel %vm4936, 1.0, 0.0
    %v5187 = vsel %vm4937, 1.0, 0.0
    %v5188 = vsel %vm4938, 1.0, 0.0
    %v5189 = vsel %vm4939, 1.0, 0.0
    %v5190 = vsel %vm4940, 1.0, 0.0
    %v5191 = vsel %vm4941, 1.0, 0.0
    %v5192 = vsel %vm4942, 1.0, 0.0
    %v5193 = vsel %vm4943, 1.0, 0.0
    %v5194 = vsel %vm4944, 1.0, 0.0
    %v5195 = vsel %vm4945, 1.0, 0.0
    %v5196 = vsel %vm4946, 1.0, 0.0
    %v5197 = vsel %vm4947, 1.0, 0.0
    %v5198 = vsel %vm4948, 1.0, 0.0
    %v5199 = vsel %vm4949, 1.0, 0.0
    %v5200 = vsel %vm4950, 1.0, 0.0
    %v5201 = vsel %vm4951, 1.0, 0.0
    %v5202 = vsel %vm4952, 1.0, 0.0
    %v5203 = vsel %vm4953, 1.0, 0.0
    %v5204 = vsel %vm4954, 1.0, 0.0
    %v5205 = vsel %vm4955, 1.0, 0.0
    %v5206 = vsel %vm4956, 1.0, 0.0
    %v5207 = vsel %vm4957, 1.0, 0.0
    %v5208 = vsel %vm4958, 1.0, 0.0
    %v5209 = vsel %vm4959, 1.0, 0.0
    %v5210 = vsel %vm4960, 1.0, 0.0
    %v5211 = vsel %vm4961, 1.0, 0.0
    %v5212 = vsel %vm4962, 1.0, 0.0
    %v5213 = vsel %vm4963, 1.0, 0.0
    %v5214 = vsel %vm4964, 1.0, 0.0
    %v5215 = vsel %vm4965, 1.0, 0.0
    %v5216 = vsel %vm4966, 1.0, 0.0
    %v5217 = vsel %vm4967, 1.0, 0.0
    %v5218 = vsel %vm4968, 1.0, 0.0
    %v5219 = vsel %vm4969, 1.0, 0.0
    %v5220 = vsel %vm4970, 1.0, 0.0
    %v5221 = vsel %vm4971, 1.0, 0.0
    %v5222 = vsel %vm4972, 1.0, 0.0
    %v5223 = vsel %vm4973, 1.0, 0.0
    %v5224 = vsel %vm4974, 1.0, 0.0
    %v5225 = vsel %vm4975, 1.0, 0.0
    %v5226 = vsel %vm4976, 1.0, 0.0
    %v5227 = vsel %vm4977, 1.0, 0.0
    %v5228 = vmax.f32 %v5165, %v5169
    %v5229 = vmax.f32 %v5166, %v5170
    %v5230 = vmax.f32 %v5167, %v5171
    %v5231 = vmax.f32 %v5168, %v5172
    %v5232 = vmax.f32 %v5228, %v5173
    %v5233 = vmax.f32 %v5229, %v5174
    %v5234 = vmax.f32 %v5230, %v5175
    %v5235 = vmax.f32 %v5231, %v5176
    %v5236 = vmax.f32 %v5232, %v5177
    %v5237 = vmax.f32 %v5233, %v5178
    %v5238 = vmax.f32 %v5234, %v5179
    %v5239 = vmax.f32 %v5235, %v5180
    %v5240 = vmax.f32 %v5236, %v5181
    %v5241 = vmax.f32 %v5237, %v5182
    %v5242 = vmax.f32 %v5238, %v5183
    %v5243 = vmax.f32 %v5239, %v5184
    %v5244 = vmax.f32 %v5240, %v5185
    %v5245 = vmax.f32 %v5241, %v5186
    %v5246 = vmax.f32 %v5242, %v5187
    %v5247 = vmax.f32 %v5243, %v5188
    %v5248 = vmax.f32 %v5244, %v5189
    %v5249 = vmax.f32 %v5245, %v5190
    %v5250 = vmax.f32 %v5246, %v5191
    %v5251 = vmax.f32 %v5247, %v5192
    %v5252 = vmax.f32 %v5248, %v5193
    %v5253 = vmax.f32 %v5249, %v5194
    %v5254 = vmax.f32 %v5250, %v5195
    %v5255 = vmax.f32 %v5251, %v5196
    %v5256 = vmax.f32 %v5252, %v5197
    %v5257 = vmax.f32 %v5253, %v5198
    %v5258 = vmax.f32 %v5254, %v5199
    %v5259 = vmax.f32 %v5255, %v5200
    %v5260 = vmax.f32 %v5256, %v5201
    %v5261 = vmax.f32 %v5257, %v5202
    %v5262 = vmax.f32 %v5258, %v5203
    %v5263 = vmax.f32 %v5259, %v5204
    %v5264 = vmax.f32 %v5260, %v5205
    %v5265 = vmax.f32 %v5261, %v5206
    %v5266 = vmax.f32 %v5262, %v5207
    %v5267 = vmax.f32 %v5263, %v5208
    %v5268 = vmax.f32 %v5264, %v5209
    %v5269 = vmax.f32 %v5265, %v5210
    %v5270 = vmax.f32 %v5266, %v5211
    %v5271 = vmax.f32 %v5267, %v5212
    %v5272 = vmax.f32 %v5268, %v5213
    %v5273 = vmax.f32 %v5269, %v5214
    %v5274 = vmax.f32 %v5270, %v5215
    %v5275 = vmax.f32 %v5271, %v5216
    %v5276 = vmax.f32 %v5272, %v5217
    %v5277 = vmax.f32 %v5273, %v5218
    %v5278 = vmax.f32 %v5274, %v5219
    %v5279 = vmax.f32 %v5275, %v5220
    %v5280 = vmax.f32 %v5276, %v5221
    %v5281 = vmax.f32 %v5277, %v5222
    %v5282 = vmax.f32 %v5278, %v5223
    %v5283 = vmax.f32 %v5279, %v5224
    %v5284 = vmax.f32 %v5280, %v5225
    %v5285 = vmax.f32 %v5281, %v5226
    %v5286 = vmax.f32 %v5282, %v5227
    %v5287 = vmax.f32 %v5284, %v5285
    %v5288 = vmax.f32 %v5286, %v5283
    %v5289 = vmax.f32 %v5287, %v5288
    %vm5290 = vcmp.gt.f32.partialorder %v5289, 0.0
    %v5291 = vsel %vm5290, %v5164, 0
    %vm5292 = vcmp.eq.s32.totalorder %v137, %v5291
    %vm5293 = vcmp.eq.s32.totalorder %v138, %v5291
    %vm5294 = vcmp.eq.s32.totalorder %v139, %v5291
    %vm5295 = vcmp.eq.s32.totalorder %v140, %v5291
    %vm5296 = vcmp.eq.s32.totalorder %v141, %v5291
    %vm5297 = vcmp.eq.s32.totalorder %v142, %v5291
    %vm5298 = vcmp.eq.s32.totalorder %v143, %v5291
    %vm5299 = vcmp.eq.s32.totalorder %v144, %v5291
    %vm5300 = vcmp.eq.s32.totalorder %v145, %v5291
    %vm5301 = vcmp.eq.s32.totalorder %v146, %v5291
    %vm5302 = vcmp.eq.s32.totalorder %v147, %v5291
    %vm5303 = vcmp.eq.s32.totalorder %v148, %v5291
    %vm5304 = vcmp.eq.s32.totalorder %v149, %v5291
    %vm5305 = vcmp.eq.s32.totalorder %v150, %v5291
    %vm5306 = vcmp.eq.s32.totalorder %v151, %v5291
    %vm5307 = vcmp.eq.s32.totalorder %v152, %v5291
    %vm5308 = vcmp.eq.s32.totalorder %v153, %v5291
    %vm5309 = vcmp.eq.s32.totalorder %v154, %v5291
    %vm5310 = vcmp.eq.s32.totalorder %v155, %v5291
    %vm5311 = vcmp.eq.s32.totalorder %v156, %v5291
    %vm5312 = vcmp.eq.s32.totalorder %v157, %v5291
    %vm5313 = vcmp.eq.s32.totalorder %v158, %v5291
    %vm5314 = vcmp.eq.s32.totalorder %v159, %v5291
    %vm5315 = vcmp.eq.s32.totalorder %v160, %v5291
    %vm5316 = vcmp.eq.s32.totalorder %v161, %v5291
    %vm5317 = vcmp.eq.s32.totalorder %v162, %v5291
    %vm5318 = vcmp.eq.s32.totalorder %v163, %v5291
    %vm5319 = vcmp.eq.s32.totalorder %v164, %v5291
    %vm5320 = vcmp.eq.s32.totalorder %v165, %v5291
    %vm5321 = vcmp.eq.s32.totalorder %v166, %v5291
    %vm5322 = vcmp.eq.s32.totalorder %v167, %v5291
    %vm5323 = vcmp.eq.s32.totalorder %v168, %v5291
    %vm5324 = vcmp.eq.s32.totalorder %v169, %v5291
    %vm5325 = vcmp.eq.s32.totalorder %v170, %v5291
    %vm5326 = vcmp.eq.s32.totalorder %v171, %v5291
    %vm5327 = vcmp.eq.s32.totalorder %v172, %v5291
    %vm5328 = vcmp.eq.s32.totalorder %v173, %v5291
    %vm5329 = vcmp.eq.s32.totalorder %v174, %v5291
    %vm5330 = vcmp.eq.s32.totalorder %v175, %v5291
    %vm5331 = vcmp.eq.s32.totalorder %v176, %v5291
    %vm5332 = vcmp.eq.s32.totalorder %v177, %v5291
    %vm5333 = vcmp.eq.s32.totalorder %v178, %v5291
    %vm5334 = vcmp.eq.s32.totalorder %v179, %v5291
    %vm5335 = vcmp.eq.s32.totalorder %v180, %v5291
    %vm5336 = vcmp.eq.s32.totalorder %v181, %v5291
    %vm5337 = vcmp.eq.s32.totalorder %v182, %v5291
    %vm5338 = vcmp.eq.s32.totalorder %v183, %v5291
    %vm5339 = vcmp.eq.s32.totalorder %v184, %v5291
    %vm5340 = vcmp.eq.s32.totalorder %v185, %v5291
    %vm5341 = vcmp.eq.s32.totalorder %v186, %v5291
    %vm5342 = vcmp.eq.s32.totalorder %v187, %v5291
    %vm5343 = vcmp.eq.s32.totalorder %v188, %v5291
    %vm5344 = vcmp.eq.s32.totalorder %v189, %v5291
    %vm5345 = vcmp.eq.s32.totalorder %v190, %v5291
    %vm5346 = vcmp.eq.s32.totalorder %v191, %v5291
    %vm5347 = vcmp.eq.s32.totalorder %v192, %v5291
    %vm5348 = vcmp.eq.s32.totalorder %v193, %v5291
    %vm5349 = vcmp.eq.s32.totalorder %v194, %v5291
    %vm5350 = vcmp.eq.s32.totalorder %v195, %v5291
    %vm5351 = vcmp.eq.s32.totalorder %v196, %v5291
    %vm5352 = vcmp.eq.s32.totalorder %v197, %v5291
    %vm5353 = vcmp.eq.s32.totalorder %v198, %v5291
    %vm5354 = vcmp.eq.s32.totalorder %v199, %v5291
    %v5355 = vsel %vm5292, 1, 0
    %v5356 = vsel %vm5293, 1, 0
    %v5357 = vsel %vm5294, 1, 0
    %v5358 = vsel %vm5295, 1, 0
    %v5359 = vsel %vm5296, 1, 0
    %v5360 = vsel %vm5297, 1, 0
    %v5361 = vsel %vm5298, 1, 0
    %v5362 = vsel %vm5299, 1, 0
    %v5363 = vsel %vm5300, 1, 0
    %v5364 = vsel %vm5301, 1, 0
    %v5365 = vsel %vm5302, 1, 0
    %v5366 = vsel %vm5303, 1, 0
    %v5367 = vsel %vm5304, 1, 0
    %v5368 = vsel %vm5305, 1, 0
    %v5369 = vsel %vm5306, 1, 0
    %v5370 = vsel %vm5307, 1, 0
    %v5371 = vsel %vm5308, 1, 0
    %v5372 = vsel %vm5309, 1, 0
    %v5373 = vsel %vm5310, 1, 0
    %v5374 = vsel %vm5311, 1, 0
    %v5375 = vsel %vm5312, 1, 0
    %v5376 = vsel %vm5313, 1, 0
    %v5377 = vsel %vm5314, 1, 0
    %v5378 = vsel %vm5315, 1, 0
    %v5379 = vsel %vm5316, 1, 0
    %v5380 = vsel %vm5317, 1, 0
    %v5381 = vsel %vm5318, 1, 0
    %v5382 = vsel %vm5319, 1, 0
    %v5383 = vsel %vm5320, 1, 0
    %v5384 = vsel %vm5321, 1, 0
    %v5385 = vsel %vm5322, 1, 0
    %v5386 = vsel %vm5323, 1, 0
    %v5387 = vsel %vm5324, 1, 0
    %v5388 = vsel %vm5325, 1, 0
    %v5389 = vsel %vm5326, 1, 0
    %v5390 = vsel %vm5327, 1, 0
    %v5391 = vsel %vm5328, 1, 0
    %v5392 = vsel %vm5329, 1, 0
    %v5393 = vsel %vm5330, 1, 0
    %v5394 = vsel %vm5331, 1, 0
    %v5395 = vsel %vm5332, 1, 0
    %v5396 = vsel %vm5333, 1, 0
    %v5397 = vsel %vm5334, 1, 0
    %v5398 = vsel %vm5335, 1, 0
    %v5399 = vsel %vm5336, 1, 0
    %v5400 = vsel %vm5337, 1, 0
    %v5401 = vsel %vm5338, 1, 0
    %v5402 = vsel %vm5339, 1, 0
    %v5403 = vsel %vm5340, 1, 0
    %v5404 = vsel %vm5341, 1, 0
    %v5405 = vsel %vm5342, 1, 0
    %v5406 = vsel %vm5343, 1, 0
    %v5407 = vsel %vm5344, 1, 0
    %v5408 = vsel %vm5345, 1, 0
    %v5409 = vsel %vm5346, 1, 0
    %v5410 = vsel %vm5347, 1, 0
    %v5411 = vsel %vm5348, 1, 0
    %v5412 = vsel %vm5349, 1, 0
    %v5413 = vsel %vm5350, 1, 0
    %v5414 = vsel %vm5351, 1, 0
    %v5415 = vsel %vm5352, 1, 0
    %v5416 = vsel %vm5353, 1, 0
    %v5417 = vsel %vm5354, 1, 0
    %v5418 = vcvt.s32.f32 %v5355
    %v5419 = vcvt.s32.f32 %v5356
    %v5420 = vcvt.s32.f32 %v5357
    %v5421 = vcvt.s32.f32 %v5358
    %v5422 = vcvt.s32.f32 %v5359
    %v5423 = vcvt.s32.f32 %v5360
    %v5424 = vcvt.s32.f32 %v5361
    %v5425 = vcvt.s32.f32 %v5362
    %v5426 = vcvt.s32.f32 %v5363
    %v5427 = vcvt.s32.f32 %v5364
    %v5428 = vcvt.s32.f32 %v5365
    %v5429 = vcvt.s32.f32 %v5366
    %v5430 = vcvt.s32.f32 %v5367
    %v5431 = vcvt.s32.f32 %v5368
    %v5432 = vcvt.s32.f32 %v5369
    %v5433 = vcvt.s32.f32 %v5370
    %v5434 = vcvt.s32.f32 %v5371
    %v5435 = vcvt.s32.f32 %v5372
    %v5436 = vcvt.s32.f32 %v5373
    %v5437 = vcvt.s32.f32 %v5374
    %v5438 = vcvt.s32.f32 %v5375
    %v5439 = vcvt.s32.f32 %v5376
    %v5440 = vcvt.s32.f32 %v5377
    %v5441 = vcvt.s32.f32 %v5378
    %v5442 = vcvt.s32.f32 %v5379
    %v5443 = vcvt.s32.f32 %v5380
    %v5444 = vcvt.s32.f32 %v5381
    %v5445 = vcvt.s32.f32 %v5382
    %v5446 = vcvt.s32.f32 %v5383
    %v5447 = vcvt.s32.f32 %v5384
    %v5448 = vcvt.s32.f32 %v5385
    %v5449 = vcvt.s32.f32 %v5386
    %v5450 = vcvt.s32.f32 %v5387
    %v5451 = vcvt.s32.f32 %v5388
    %v5452 = vcvt.s32.f32 %v5389
    %v5453 = vcvt.s32.f32 %v5390
    %v5454 = vcvt.s32.f32 %v5391
    %v5455 = vcvt.s32.f32 %v5392
    %v5456 = vcvt.s32.f32 %v5393
    %v5457 = vcvt.s32.f32 %v5394
    %v5458 = vcvt.s32.f32 %v5395
    %v5459 = vcvt.s32.f32 %v5396
    %v5460 = vcvt.s32.f32 %v5397
    %v5461 = vcvt.s32.f32 %v5398
    %v5462 = vcvt.s32.f32 %v5399
    %v5463 = vcvt.s32.f32 %v5400
    %v5464 = vcvt.s32.f32 %v5401
    %v5465 = vcvt.s32.f32 %v5402
    %v5466 = vcvt.s32.f32 %v5403
    %v5467 = vcvt.s32.f32 %v5404
    %v5468 = vcvt.s32.f32 %v5405
    %v5469 = vcvt.s32.f32 %v5406
    %v5470 = vcvt.s32.f32 %v5407
    %v5471 = vcvt.s32.f32 %v5408
    %v5472 = vcvt.s32.f32 %v5409
    %v5473 = vcvt.s32.f32 %v5410
    %v5474 = vcvt.s32.f32 %v5411
    %v5475 = vcvt.s32.f32 %v5412
    %v5476 = vcvt.s32.f32 %v5413
    %v5477 = vcvt.s32.f32 %v5414
    %v5478 = vcvt.s32.f32 %v5415
    %v5479 = vcvt.s32.f32 %v5416
    %v5480 = vcvt.s32.f32 %v5417
    %v5481 = vmul.f32 %v4788, %v5418
    %v5482 = vmul.f32 %v4789, %v5419
    %v5483 = vmul.f32 %v4790, %v5420
    %v5484 = vmul.f32 %v4791, %v5421
    %v5485 = vmul.f32 %v4792, %v5422
    %v5486 = vmul.f32 %v4793, %v5423
    %v5487 = vmul.f32 %v4794, %v5424
    %v5488 = vmul.f32 %v4795, %v5425
    %v5489 = vmul.f32 %v4796, %v5426
    %v5490 = vmul.f32 %v4797, %v5427
    %v5491 = vmul.f32 %v4798, %v5428
    %v5492 = vmul.f32 %v4799, %v5429
    %v5493 = vmul.f32 %v4800, %v5430
    %v5494 = vmul.f32 %v4801, %v5431
    %v5495 = vmul.f32 %v4802, %v5432
    %v5496 = vmul.f32 %v4803, %v5433
    %v5497 = vmul.f32 %v4804, %v5434
    %v5498 = vmul.f32 %v4805, %v5435
    %v5499 = vmul.f32 %v4806, %v5436
    %v5500 = vmul.f32 %v4807, %v5437
    %v5501 = vmul.f32 %v4808, %v5438
    %v5502 = vmul.f32 %v4809, %v5439
    %v5503 = vmul.f32 %v4810, %v5440
    %v5504 = vmul.f32 %v4811, %v5441
    %v5505 = vmul.f32 %v4812, %v5442
    %v5506 = vmul.f32 %v4813, %v5443
    %v5507 = vmul.f32 %v4814, %v5444
    %v5508 = vmul.f32 %v4815, %v5445
    %v5509 = vmul.f32 %v4816, %v5446
    %v5510 = vmul.f32 %v4817, %v5447
    %v5511 = vmul.f32 %v4818, %v5448
    %v5512 = vmul.f32 %v4819, %v5449
    %v5513 = vmul.f32 %v4820, %v5450
    %v5514 = vmul.f32 %v4821, %v5451
    %v5515 = vmul.f32 %v4822, %v5452
    %v5516 = vmul.f32 %v4823, %v5453
    %v5517 = vmul.f32 %v4824, %v5454
    %v5518 = vmul.f32 %v4825, %v5455
    %v5519 = vmul.f32 %v4826, %v5456
    %v5520 = vmul.f32 %v4827, %v5457
    %v5521 = vmul.f32 %v4828, %v5458
    %v5522 = vmul.f32 %v4829, %v5459
    %v5523 = vmul.f32 %v4830, %v5460
    %v5524 = vmul.f32 %v4831, %v5461
    %v5525 = vmul.f32 %v4832, %v5462
    %v5526 = vmul.f32 %v4833, %v5463
    %v5527 = vmul.f32 %v4834, %v5464
    %v5528 = vmul.f32 %v4835, %v5465
    %v5529 = vmul.f32 %v4836, %v5466
    %v5530 = vmul.f32 %v4837, %v5467
    %v5531 = vmul.f32 %v4838, %v5468
    %v5532 = vmul.f32 %v4839, %v5469
    %v5533 = vmul.f32 %v4840, %v5470
    %v5534 = vmul.f32 %v4841, %v5471
    %v5535 = vmul.f32 %v4842, %v5472
    %v5536 = vmul.f32 %v4843, %v5473
    %v5537 = vmul.f32 %v4844, %v5474
    %v5538 = vmul.f32 %v4845, %v5475
    %v5539 = vmul.f32 %v4846, %v5476
    %v5540 = vmul.f32 %v4847, %v5477
    %v5541 = vmul.f32 %v4848, %v5478
    %v5542 = vmul.f32 %v4849, %v5479
    %v5543 = vmul.f32 %v4850, %v5480
    %v5544 = vadd.f32 %v5481, %v5482
    %v5545 = vadd.f32 %v5544, %v5483
    %v5546 = vadd.f32 %v5545, %v5484
    %v5547 = vadd.f32 %v5546, %v5485
    %v5548 = vadd.f32 %v5547, %v5486
    %v5549 = vadd.f32 %v5548, %v5487
    %v5550 = vadd.f32 %v5549, %v5488
    %v5551 = vadd.f32 %v5550, %v5489
    %v5552 = vadd.f32 %v5551, %v5490
    %v5553 = vadd.f32 %v5552, %v5491
    %v5554 = vadd.f32 %v5553, %v5492
    %v5555 = vadd.f32 %v5554, %v5493
    %v5556 = vadd.f32 %v5555, %v5494
    %v5557 = vadd.f32 %v5556, %v5495
    %v5558 = vadd.f32 %v5557, %v5496
    %v5559 = vadd.f32 %v5558, %v5497
    %v5560 = vadd.f32 %v5559, %v5498
    %v5561 = vadd.f32 %v5560, %v5499
    %v5562 = vadd.f32 %v5561, %v5500
    %v5563 = vadd.f32 %v5562, %v5501
    %v5564 = vadd.f32 %v5563, %v5502
    %v5565 = vadd.f32 %v5564, %v5503
    %v5566 = vadd.f32 %v5565, %v5504
    %v5567 = vadd.f32 %v5566, %v5505
    %v5568 = vadd.f32 %v5567, %v5506
    %v5569 = vadd.f32 %v5568, %v5507
    %v5570 = vadd.f32 %v5569, %v5508
    %v5571 = vadd.f32 %v5570, %v5509
    %v5572 = vadd.f32 %v5571, %v5510
    %v5573 = vadd.f32 %v5572, %v5511
    %v5574 = vadd.f32 %v5573, %v5512
    %v5575 = vadd.f32 %v5574, %v5513
    %v5576 = vadd.f32 %v5575, %v5514
    %v5577 = vadd.f32 %v5576, %v5515
    %v5578 = vadd.f32 %v5577, %v5516
    %v5579 = vadd.f32 %v5578, %v5517
    %v5580 = vadd.f32 %v5579, %v5518
    %v5581 = vadd.f32 %v5580, %v5519
    %v5582 = vadd.f32 %v5581, %v5520
    %v5583 = vadd.f32 %v5582, %v5521
    %v5584 = vadd.f32 %v5583, %v5522
    %v5585 = vadd.f32 %v5584, %v5523
    %v5586 = vadd.f32 %v5585, %v5524
    %v5587 = vadd.f32 %v5586, %v5525
    %v5588 = vadd.f32 %v5587, %v5526
    %v5589 = vadd.f32 %v5588, %v5527
    %v5590 = vadd.f32 %v5589, %v5528
    %v5591 = vadd.f32 %v5590, %v5529
    %v5592 = vadd.f32 %v5591, %v5530
    %v5593 = vadd.f32 %v5592, %v5531
    %v5594 = vadd.f32 %v5593, %v5532
    %v5595 = vadd.f32 %v5594, %v5533
    %v5596 = vadd.f32 %v5595, %v5534
    %v5597 = vadd.f32 %v5596, %v5535
    %v5598 = vadd.f32 %v5597, %v5536
    %v5599 = vadd.f32 %v5598, %v5537
    %v5600 = vadd.f32 %v5599, %v5538
    %v5601 = vadd.f32 %v5600, %v5539
    %v5602 = vadd.f32 %v5601, %v5540
    %v5603 = vadd.f32 %v5602, %v5541
    %v5604 = vadd.f32 %v5603, %v5542
    %v5605 = vadd.f32 %v5604, %v5543
    %v5606 = vmul.f32 %v4789, %v5418
    %v5607 = vmul.f32 %v4790, %v5419
    %v5608 = vmul.f32 %v4791, %v5420
    %v5609 = vmul.f32 %v4792, %v5421
    %v5610 = vmul.f32 %v4793, %v5422
    %v5611 = vmul.f32 %v4794, %v5423
    %v5612 = vmul.f32 %v4795, %v5424
    %v5613 = vmul.f32 %v4796, %v5425
    %v5614 = vmul.f32 %v4797, %v5426
    %v5615 = vmul.f32 %v4798, %v5427
    %v5616 = vmul.f32 %v4799, %v5428
    %v5617 = vmul.f32 %v4800, %v5429
    %v5618 = vmul.f32 %v4801, %v5430
    %v5619 = vmul.f32 %v4802, %v5431
    %v5620 = vmul.f32 %v4803, %v5432
    %v5621 = vmul.f32 %v4804, %v5433
    %v5622 = vmul.f32 %v4805, %v5434
    %v5623 = vmul.f32 %v4806, %v5435
    %v5624 = vmul.f32 %v4807, %v5436
    %v5625 = vmul.f32 %v4808, %v5437
    %v5626 = vmul.f32 %v4809, %v5438
    %v5627 = vmul.f32 %v4810, %v5439
    %v5628 = vmul.f32 %v4811, %v5440
    %v5629 = vmul.f32 %v4812, %v5441
    %v5630 = vmul.f32 %v4813, %v5442
    %v5631 = vmul.f32 %v4814, %v5443
    %v5632 = vmul.f32 %v4815, %v5444
    %v5633 = vmul.f32 %v4816, %v5445
    %v5634 = vmul.f32 %v4817, %v5446
    %v5635 = vmul.f32 %v4818, %v5447
    %v5636 = vmul.f32 %v4819, %v5448
    %v5637 = vmul.f32 %v4820, %v5449
    %v5638 = vmul.f32 %v4821, %v5450
    %v5639 = vmul.f32 %v4822, %v5451
    %v5640 = vmul.f32 %v4823, %v5452
    %v5641 = vmul.f32 %v4824, %v5453
    %v5642 = vmul.f32 %v4825, %v5454
    %v5643 = vmul.f32 %v4826, %v5455
    %v5644 = vmul.f32 %v4827, %v5456
    %v5645 = vmul.f32 %v4828, %v5457
    %v5646 = vmul.f32 %v4829, %v5458
    %v5647 = vmul.f32 %v4830, %v5459
    %v5648 = vmul.f32 %v4831, %v5460
    %v5649 = vmul.f32 %v4832, %v5461
    %v5650 = vmul.f32 %v4833, %v5462
    %v5651 = vmul.f32 %v4834, %v5463
    %v5652 = vmul.f32 %v4835, %v5464
    %v5653 = vmul.f32 %v4836, %v5465
    %v5654 = vmul.f32 %v4837, %v5466
    %v5655 = vmul.f32 %v4838, %v5467
    %v5656 = vmul.f32 %v4839, %v5468
    %v5657 = vmul.f32 %v4840, %v5469
    %v5658 = vmul.f32 %v4841, %v5470
    %v5659 = vmul.f32 %v4842, %v5471
    %v5660 = vmul.f32 %v4843, %v5472
    %v5661 = vmul.f32 %v4844, %v5473
    %v5662 = vmul.f32 %v4845, %v5474
    %v5663 = vmul.f32 %v4846, %v5475
    %v5664 = vmul.f32 %v4847, %v5476
    %v5665 = vmul.f32 %v4848, %v5477
    %v5666 = vmul.f32 %v4849, %v5478
    %v5667 = vmul.f32 %v4850, %v5479
    %v5668 = vmul.f32 %v4851, %v5480
    %v5669 = vadd.f32 %v5606, %v5607
    %v5670 = vadd.f32 %v5669, %v5608
    %v5671 = vadd.f32 %v5670, %v5609
    %v5672 = vadd.f32 %v5671, %v5610
    %v5673 = vadd.f32 %v5672, %v5611
    %v5674 = vadd.f32 %v5673, %v5612
    %v5675 = vadd.f32 %v5674, %v5613
    %v5676 = vadd.f32 %v5675, %v5614
    %v5677 = vadd.f32 %v5676, %v5615
    %v5678 = vadd.f32 %v5677, %v5616
    %v5679 = vadd.f32 %v5678, %v5617
    %v5680 = vadd.f32 %v5679, %v5618
    %v5681 = vadd.f32 %v5680, %v5619
    %v5682 = vadd.f32 %v5681, %v5620
    %v5683 = vadd.f32 %v5682, %v5621
    %v5684 = vadd.f32 %v5683, %v5622
    %v5685 = vadd.f32 %v5684, %v5623
    %v5686 = vadd.f32 %v5685, %v5624
    %v5687 = vadd.f32 %v5686, %v5625
    %v5688 = vadd.f32 %v5687, %v5626
    %v5689 = vadd.f32 %v5688, %v5627
    %v5690 = vadd.f32 %v5689, %v5628
    %v5691 = vadd.f32 %v5690, %v5629
    %v5692 = vadd.f32 %v5691, %v5630
    %v5693 = vadd.f32 %v5692, %v5631
    %v5694 = vadd.f32 %v5693, %v5632
    %v5695 = vadd.f32 %v5694, %v5633
    %v5696 = vadd.f32 %v5695, %v5634
    %v5697 = vadd.f32 %v5696, %v5635
    %v5698 = vadd.f32 %v5697, %v5636
    %v5699 = vadd.f32 %v5698, %v5637
    %v5700 = vadd.f32 %v5699, %v5638
    %v5701 = vadd.f32 %v5700, %v5639
    %v5702 = vadd.f32 %v5701, %v5640
    %v5703 = vadd.f32 %v5702, %v5641
    %v5704 = vadd.f32 %v5703, %v5642
    %v5705 = vadd.f32 %v5704, %v5643
    %v5706 = vadd.f32 %v5705, %v5644
    %v5707 = vadd.f32 %v5706, %v5645
    %v5708 = vadd.f32 %v5707, %v5646
    %v5709 = vadd.f32 %v5708, %v5647
    %v5710 = vadd.f32 %v5709, %v5648
    %v5711 = vadd.f32 %v5710, %v5649
    %v5712 = vadd.f32 %v5711, %v5650
    %v5713 = vadd.f32 %v5712, %v5651
    %v5714 = vadd.f32 %v5713, %v5652
    %v5715 = vadd.f32 %v5714, %v5653
    %v5716 = vadd.f32 %v5715, %v5654
    %v5717 = vadd.f32 %v5716, %v5655
    %v5718 = vadd.f32 %v5717, %v5656
    %v5719 = vadd.f32 %v5718, %v5657
    %v5720 = vadd.f32 %v5719, %v5658
    %v5721 = vadd.f32 %v5720, %v5659
    %v5722 = vadd.f32 %v5721, %v5660
    %v5723 = vadd.f32 %v5722, %v5661
    %v5724 = vadd.f32 %v5723, %v5662
    %v5725 = vadd.f32 %v5724, %v5663
    %v5726 = vadd.f32 %v5725, %v5664
    %v5727 = vadd.f32 %v5726, %v5665
    %v5728 = vadd.f32 %v5727, %v5666
    %v5729 = vadd.f32 %v5728, %v5667
    %v5730 = vadd.f32 %v5729, %v5668
    %v5731 = vmul.f32 %v4532, %v5418
    %v5732 = vmul.f32 %v4533, %v5419
    %v5733 = vmul.f32 %v4534, %v5420
    %v5734 = vmul.f32 %v4535, %v5421
    %v5735 = vmul.f32 %v4536, %v5422
    %v5736 = vmul.f32 %v4537, %v5423
    %v5737 = vmul.f32 %v4538, %v5424
    %v5738 = vmul.f32 %v4539, %v5425
    %v5739 = vmul.f32 %v4540, %v5426
    %v5740 = vmul.f32 %v4541, %v5427
    %v5741 = vmul.f32 %v4542, %v5428
    %v5742 = vmul.f32 %v4543, %v5429
    %v5743 = vmul.f32 %v4544, %v5430
    %v5744 = vmul.f32 %v4545, %v5431
    %v5745 = vmul.f32 %v4546, %v5432
    %v5746 = vmul.f32 %v4547, %v5433
    %v5747 = vmul.f32 %v4548, %v5434
    %v5748 = vmul.f32 %v4549, %v5435
    %v5749 = vmul.f32 %v4550, %v5436
    %v5750 = vmul.f32 %v4551, %v5437
    %v5751 = vmul.f32 %v4552, %v5438
    %v5752 = vmul.f32 %v4553, %v5439
    %v5753 = vmul.f32 %v4554, %v5440
    %v5754 = vmul.f32 %v4555, %v5441
    %v5755 = vmul.f32 %v4556, %v5442
    %v5756 = vmul.f32 %v4557, %v5443
    %v5757 = vmul.f32 %v4558, %v5444
    %v5758 = vmul.f32 %v4559, %v5445
    %v5759 = vmul.f32 %v4560, %v5446
    %v5760 = vmul.f32 %v4561, %v5447
    %v5761 = vmul.f32 %v4562, %v5448
    %v5762 = vmul.f32 %v4563, %v5449
    %v5763 = vmul.f32 %v4564, %v5450
    %v5764 = vmul.f32 %v4565, %v5451
    %v5765 = vmul.f32 %v4566, %v5452
    %v5766 = vmul.f32 %v4567, %v5453
    %v5767 = vmul.f32 %v4568, %v5454
    %v5768 = vmul.f32 %v4569, %v5455
    %v5769 = vmul.f32 %v4570, %v5456
    %v5770 = vmul.f32 %v4571, %v5457
    %v5771 = vmul.f32 %v4572, %v5458
    %v5772 = vmul.f32 %v4573, %v5459
    %v5773 = vmul.f32 %v4574, %v5460
    %v5774 = vmul.f32 %v4575, %v5461
    %v5775 = vmul.f32 %v4576, %v5462
    %v5776 = vmul.f32 %v4577, %v5463
    %v5777 = vmul.f32 %v4578, %v5464
    %v5778 = vmul.f32 %v4579, %v5465
    %v5779 = vmul.f32 %v4580, %v5466
    %v5780 = vmul.f32 %v4581, %v5467
    %v5781 = vmul.f32 %v4582, %v5468
    %v5782 = vmul.f32 %v4583, %v5469
    %v5783 = vmul.f32 %v4584, %v5470
    %v5784 = vmul.f32 %v4585, %v5471
    %v5785 = vmul.f32 %v4586, %v5472
    %v5786 = vmul.f32 %v4587, %v5473
    %v5787 = vmul.f32 %v4588, %v5474
    %v5788 = vmul.f32 %v4589, %v5475
    %v5789 = vmul.f32 %v4590, %v5476
    %v5790 = vmul.f32 %v4591, %v5477
    %v5791 = vmul.f32 %v4592, %v5478
    %v5792 = vmul.f32 %v4593, %v5479
    %v5793 = vmul.f32 %v4594, %v5480
    %v5794 = vadd.f32 %v5731, %v5732
    %v5795 = vadd.f32 %v5794, %v5733
    %v5796 = vadd.f32 %v5795, %v5734
    %v5797 = vadd.f32 %v5796, %v5735
    %v5798 = vadd.f32 %v5797, %v5736
    %v5799 = vadd.f32 %v5798, %v5737
    %v5800 = vadd.f32 %v5799, %v5738
    %v5801 = vadd.f32 %v5800, %v5739
    %v5802 = vadd.f32 %v5801, %v5740
    %v5803 = vadd.f32 %v5802, %v5741
    %v5804 = vadd.f32 %v5803, %v5742
    %v5805 = vadd.f32 %v5804, %v5743
    %v5806 = vadd.f32 %v5805, %v5744
    %v5807 = vadd.f32 %v5806, %v5745
    %v5808 = vadd.f32 %v5807, %v5746
    %v5809 = vadd.f32 %v5808, %v5747
    %v5810 = vadd.f32 %v5809, %v5748
    %v5811 = vadd.f32 %v5810, %v5749
    %v5812 = vadd.f32 %v5811, %v5750
    %v5813 = vadd.f32 %v5812, %v5751
    %v5814 = vadd.f32 %v5813, %v5752
    %v5815 = vadd.f32 %v5814, %v5753
    %v5816 = vadd.f32 %v5815, %v5754
    %v5817 = vadd.f32 %v5816, %v5755
    %v5818 = vadd.f32 %v5817, %v5756
    %v5819 = vadd.f32 %v5818, %v5757
    %v5820 = vadd.f32 %v5819, %v5758
    %v5821 = vadd.f32 %v5820, %v5759
    %v5822 = vadd.f32 %v5821, %v5760
    %v5823 = vadd.f32 %v5822, %v5761
    %v5824 = vadd.f32 %v5823, %v5762
    %v5825 = vadd.f32 %v5824, %v5763
    %v5826 = vadd.f32 %v5825, %v5764
    %v5827 = vadd.f32 %v5826, %v5765
    %v5828 = vadd.f32 %v5827, %v5766
    %v5829 = vadd.f32 %v5828, %v5767
    %v5830 = vadd.f32 %v5829, %v5768
    %v5831 = vadd.f32 %v5830, %v5769
    %v5832 = vadd.f32 %v5831, %v5770
    %v5833 = vadd.f32 %v5832, %v5771
    %v5834 = vadd.f32 %v5833, %v5772
    %v5835 = vadd.f32 %v5834, %v5773
    %v5836 = vadd.f32 %v5835, %v5774
    %v5837 = vadd.f32 %v5836, %v5775
    %v5838 = vadd.f32 %v5837, %v5776
    %v5839 = vadd.f32 %v5838, %v5777
    %v5840 = vadd.f32 %v5839, %v5778
    %v5841 = vadd.f32 %v5840, %v5779
    %v5842 = vadd.f32 %v5841, %v5780
    %v5843 = vadd.f32 %v5842, %v5781
    %v5844 = vadd.f32 %v5843, %v5782
    %v5845 = vadd.f32 %v5844, %v5783
    %v5846 = vadd.f32 %v5845, %v5784
    %v5847 = vadd.f32 %v5846, %v5785
    %v5848 = vadd.f32 %v5847, %v5786
    %v5849 = vadd.f32 %v5848, %v5787
    %v5850 = vadd.f32 %v5849, %v5788
    %v5851 = vadd.f32 %v5850, %v5789
    %v5852 = vadd.f32 %v5851, %v5790
    %v5853 = vadd.f32 %v5852, %v5791
    %v5854 = vadd.f32 %v5853, %v5792
    %v5855 = vadd.f32 %v5854, %v5793
    %v5856 = vmul.f32 %v4533, %v5418
    %v5857 = vmul.f32 %v4534, %v5419
    %v5858 = vmul.f32 %v4535, %v5420
    %v5859 = vmul.f32 %v4536, %v5421
    %v5860 = vmul.f32 %v4537, %v5422
    %v5861 = vmul.f32 %v4538, %v5423
    %v5862 = vmul.f32 %v4539, %v5424
    %v5863 = vmul.f32 %v4540, %v5425
    %v5864 = vmul.f32 %v4541, %v5426
    %v5865 = vmul.f32 %v4542, %v5427
    %v5866 = vmul.f32 %v4543, %v5428
    %v5867 = vmul.f32 %v4544, %v5429
    %v5868 = vmul.f32 %v4545, %v5430
    %v5869 = vmul.f32 %v4546, %v5431
    %v5870 = vmul.f32 %v4547, %v5432
    %v5871 = vmul.f32 %v4548, %v5433
    %v5872 = vmul.f32 %v4549, %v5434
    %v5873 = vmul.f32 %v4550, %v5435
    %v5874 = vmul.f32 %v4551, %v5436
    %v5875 = vmul.f32 %v4552, %v5437
    %v5876 = vmul.f32 %v4553, %v5438
    %v5877 = vmul.f32 %v4554, %v5439
    %v5878 = vmul.f32 %v4555, %v5440
    %v5879 = vmul.f32 %v4556, %v5441
    %v5880 = vmul.f32 %v4557, %v5442
    %v5881 = vmul.f32 %v4558, %v5443
    %v5882 = vmul.f32 %v4559, %v5444
    %v5883 = vmul.f32 %v4560, %v5445
    %v5884 = vmul.f32 %v4561, %v5446
    %v5885 = vmul.f32 %v4562, %v5447
    %v5886 = vmul.f32 %v4563, %v5448
    %v5887 = vmul.f32 %v4564, %v5449
    %v5888 = vmul.f32 %v4565, %v5450
    %v5889 = vmul.f32 %v4566, %v5451
    %v5890 = vmul.f32 %v4567, %v5452
    %v5891 = vmul.f32 %v4568, %v5453
    %v5892 = vmul.f32 %v4569, %v5454
    %v5893 = vmul.f32 %v4570, %v5455
    %v5894 = vmul.f32 %v4571, %v5456
    %v5895 = vmul.f32 %v4572, %v5457
    %v5896 = vmul.f32 %v4573, %v5458
    %v5897 = vmul.f32 %v4574, %v5459
    %v5898 = vmul.f32 %v4575, %v5460
    %v5899 = vmul.f32 %v4576, %v5461
    %v5900 = vmul.f32 %v4577, %v5462
    %v5901 = vmul.f32 %v4578, %v5463
    %v5902 = vmul.f32 %v4579, %v5464
    %v5903 = vmul.f32 %v4580, %v5465
    %v5904 = vmul.f32 %v4581, %v5466
    %v5905 = vmul.f32 %v4582, %v5467
    %v5906 = vmul.f32 %v4583, %v5468
    %v5907 = vmul.f32 %v4584, %v5469
    %v5908 = vmul.f32 %v4585, %v5470
    %v5909 = vmul.f32 %v4586, %v5471
    %v5910 = vmul.f32 %v4587, %v5472
    %v5911 = vmul.f32 %v4588, %v5473
    %v5912 = vmul.f32 %v4589, %v5474
    %v5913 = vmul.f32 %v4590, %v5475
    %v5914 = vmul.f32 %v4591, %v5476
    %v5915 = vmul.f32 %v4592, %v5477
    %v5916 = vmul.f32 %v4593, %v5478
    %v5917 = vmul.f32 %v4594, %v5479
    %v5918 = vmul.f32 %v4595, %v5480
    %v5919 = vadd.f32 %v5856, %v5857
    %v5920 = vadd.f32 %v5919, %v5858
    %v5921 = vadd.f32 %v5920, %v5859
    %v5922 = vadd.f32 %v5921, %v5860
    %v5923 = vadd.f32 %v5922, %v5861
    %v5924 = vadd.f32 %v5923, %v5862
    %v5925 = vadd.f32 %v5924, %v5863
    %v5926 = vadd.f32 %v5925, %v5864
    %v5927 = vadd.f32 %v5926, %v5865
    %v5928 = vadd.f32 %v5927, %v5866
    %v5929 = vadd.f32 %v5928, %v5867
    %v5930 = vadd.f32 %v5929, %v5868
    %v5931 = vadd.f32 %v5930, %v5869
    %v5932 = vadd.f32 %v5931, %v5870
    %v5933 = vadd.f32 %v5932, %v5871
    %v5934 = vadd.f32 %v5933, %v5872
    %v5935 = vadd.f32 %v5934, %v5873
    %v5936 = vadd.f32 %v5935, %v5874
    %v5937 = vadd.f32 %v5936, %v5875
    %v5938 = vadd.f32 %v5937, %v5876
    %v5939 = vadd.f32 %v5938, %v5877
    %v5940 = vadd.f32 %v5939, %v5878
    %v5941 = vadd.f32 %v5940, %v5879
    %v5942 = vadd.f32 %v5941, %v5880
    %v5943 = vadd.f32 %v5942, %v5881
    %v5944 = vadd.f32 %v5943, %v5882
    %v5945 = vadd.f32 %v5944, %v5883
    %v5946 = vadd.f32 %v5945, %v5884
    %v5947 = vadd.f32 %v5946, %v5885
    %v5948 = vadd.f32 %v5947, %v5886
    %v5949 = vadd.f32 %v5948, %v5887
    %v5950 = vadd.f32 %v5949, %v5888
    %v5951 = vadd.f32 %v5950, %v5889
    %v5952 = vadd.f32 %v5951, %v5890
    %v5953 = vadd.f32 %v5952, %v5891
    %v5954 = vadd.f32 %v5953, %v5892
    %v5955 = vadd.f32 %v5954, %v5893
    %v5956 = vadd.f32 %v5955, %v5894
    %v5957 = vadd.f32 %v5956, %v5895
    %v5958 = vadd.f32 %v5957, %v5896
    %v5959 = vadd.f32 %v5958, %v5897
    %v5960 = vadd.f32 %v5959, %v5898
    %v5961 = vadd.f32 %v5960, %v5899
    %v5962 = vadd.f32 %v5961, %v5900
    %v5963 = vadd.f32 %v5962, %v5901
    %v5964 = vadd.f32 %v5963, %v5902
    %v5965 = vadd.f32 %v5964, %v5903
    %v5966 = vadd.f32 %v5965, %v5904
    %v5967 = vadd.f32 %v5966, %v5905
    %v5968 = vadd.f32 %v5967, %v5906
    %v5969 = vadd.f32 %v5968, %v5907
    %v5970 = vadd.f32 %v5969, %v5908
    %v5971 = vadd.f32 %v5970, %v5909
    %v5972 = vadd.f32 %v5971, %v5910
    %v5973 = vadd.f32 %v5972, %v5911
    %v5974 = vadd.f32 %v5973, %v5912
    %v5975 = vadd.f32 %v5974, %v5913
    %v5976 = vadd.f32 %v5975, %v5914
    %v5977 = vadd.f32 %v5976, %v5915
    %v5978 = vadd.f32 %v5977, %v5916
    %v5979 = vadd.f32 %v5978, %v5917
    %v5980 = vadd.f32 %v5979, %v5918
    %vm5981 = vcmp.ge.f32.partialorder %v5605, 0.0
    %vm5982 = vcmp.le.f32.partialorder %v5730, 0.0
    %vm5983 = vmand %vm5981, %vm5982
    %vm5984 = vmxor %vm5983, 1
    %vm5985 = vmand %vm4026, %vm5984
    %v5986 = vadd.f32 %v5605, 0.25
    %v5987 = vmax.f32 %v5986, 0.0
    %v5988 = vrsqrt.pop %v5987
    %v5989 = vmul.f32 %v5987, %v5988
    %vm5990 = vcmp.eq.f32.partialorder %v5987, inf
    %v5991 = vsel %vm5990, %v5987, %v5989
    %vm5992 = vcmp.eq.f32.partialorder %v5987, 0.0
    %v5993 = vand.u32 %v5987, 2147483648
    %v5994 = vsel %vm5992, %v5993, %v5991
    %v5995 = vsub.f32 %v5994, 0.5
    %v5996 = vadd.f32 %v5730, 0.25
    %v5997 = vmax.f32 %v5996, 0.0
    %v5998 = vrsqrt.pop %v5997
    %v5999 = vmul.f32 %v5997, %v5998
    %vm6000 = vcmp.eq.f32.partialorder %v5997, inf
    %v6001 = vsel %vm6000, %v5997, %v5999
    %vm6002 = vcmp.eq.f32.partialorder %v5997, 0.0
    %v6003 = vand.u32 %v5997, 2147483648
    %v6004 = vsel %vm6002, %v6003, %v6001
    %v6005 = vsub.f32 %v6004, 0.5
    %v6006 = vsub.f32 %v6005, %v5995
    %v6007 = vand.u32 2147483647, %v6006
    %vm6008 = vcmp.lt.f32.partialorder %v6007, 1e-10
    %vm6009 = vcmp.lt.f32.partialorder %v6006, 0.0
    %v6010 = vsel %vm6009, -1e-10, 1e-10
    %v6011 = vsel %vm6008, %v6010, %v6006
    %v6012 = vsub.f32 %v5980, %v5855
    %v6013 = vmul.f32 %v5995, %v6012
    %v6014 = vrcp.pop %v6011
    %v6015 = vmul.f32 %v6013, %v6014
    %v6016 = vsub.f32 %v5855, %v6015
    %v6017 = vmul.f32 %v6016, %v3151
    %v6018 = vadd.f32 %v3048, %v6017
    %v6019 = vmul.f32 %v6016, %v3152
    %v6020 = vadd.f32 %v3050, %v6019
    %v6021 = vmul.f32 %v6016, %v3153
    %v6022 = vadd.f32 %v3052, %v6021
    %v6023 = vmul.f32 %v6018, %v6018
    %v6024 = vmul.f32 %v6020, %v6020
    %v6025 = vadd.f32 %v6023, %v6024
    %v6026 = vmul.f32 %v6022, %v6022
    %v6027 = vadd.f32 %v6025, %v6026
    %v6028 = vmax.f32 %v6027, 1e-12
    %v6029 = vrsqrt.pop %v6028
    %v6030 = vmul.f32 %v6018, %v6029
    %v6031 = vsel %vm5985, %v6030, 0.0
    %v6032 = vmul.f32 %v6020, %v6029
    %v6033 = vsel %vm5985, %v6032, 0.0
    %v6034 = vmul.f32 %v6022, %v6029
    %v6035 = vsel %vm5985, %v6034, 0.0
    %vm6036 = vmand %vm3183, %vm5985
    %v6037 = vsub.f32 0.0, %v6031
    %v6038 = vsub.f32 0.0, %v6033
    %v6039 = vsub.f32 0.0, %v6035
    %v6040 = vmul.f32 %v3151, %v6037
    %v6041 = vmul.f32 %v3152, %v6038
    %v6042 = vadd.f32 %v6040, %v6041
    %v6043 = vmul.f32 %v3153, %v6039
    %v6044 = vadd.f32 %v6042, %v6043
    %v6045 = vsub.f32 0.0, %v6044
    %v6046 = vmul.f32 %v6037, %v6045
    %v6047 = vadd.f32 %v3151, %v6046
    %v6048 = vmul.f32 %v6038, %v6045
    %v6049 = vadd.f32 %v3152, %v6048
    %v6050 = vmul.f32 %v6039, %v6045
    %v6051 = vadd.f32 %v3153, %v6050
    %v6052 = vmul.f32 %v6047, 1.5195441
    %v6053 = vmul.f32 %v6049, 1.5195441
    %v6054 = vmul.f32 %v6051, 1.5195441
    %v6055 = vmul.f32 %v6052, %v6052
    %v6056 = vmul.f32 %v6053, %v6053
    %v6057 = vadd.f32 %v6055, %v6056
    %v6058 = vmul.f32 %v6054, %v6054
    %v6059 = vadd.f32 %v6057, %v6058
    %v6060 = vmax.f32 %v6059, 0.0
    %v6061 = vmin.f32 %v6060, 0.999999
    %v6062 = vsub.f32 1.0, %v6061
    %v6063 = vrsqrt.pop %v6062
    %v6064 = vmul.f32 %v6062, %v6063
    %vm6065 = vcmp.eq.f32.partialorder %v6062, inf
    %v6066 = vsel %vm6065, %v6062, %v6064
    %vm6067 = vcmp.eq.f32.partialorder %v6062, 0.0
    %v6068 = vand.u32 %v6062, 2147483648
    %v6069 = vsel %vm6067, %v6068, %v6066
    %v6070 = vsub.f32 0.0, %v6037
    %v6071 = vmul.f32 %v6070, %v6069
    %v6072 = vadd.f32 %v6071, %v6052
    %v6073 = vsub.f32 0.0, %v6038
    %v6074 = vmul.f32 %v6073, %v6069
    %v6075 = vadd.f32 %v6074, %v6053
    %v6076 = vsub.f32 0.0, %v6039
    %v6077 = vmul.f32 %v6076, %v6069
    %v6078 = vadd.f32 %v6077, %v6054
    %v6079 = vmul.f32 %v6072, %v6072
    %v6080 = vmul.f32 %v6075, %v6075
    %v6081 = vadd.f32 %v6079, %v6080
    %v6082 = vmul.f32 %v6078, %v6078
    %v6083 = vadd.f32 %v6081, %v6082
    %v6084 = vmax.f32 %v6083, 1e-10
    %v6085 = vrsqrt.pop %v6084
    %v6086 = vmul.f32 %v6072, %v6085
    %v6087 = vmul.f32 %v6075, %v6085
    %v6088 = vmul.f32 %v6078, %v6085
    %v6089 = vmul.f32 %v6086, %v6037
    %v6090 = vmul.f32 %v6087, %v6038
    %v6091 = vadd.f32 %v6089, %v6090
    %v6092 = vmul.f32 %v6088, %v6039
    %v6093 = vadd.f32 %v6091, %v6092
    %v6094 = vsub.f32 0.0, %v6093
    %v6095 = vmul.f32 %v6094, 1.0003
    %v6096 = vmul.f32 %v6045, 1.52
    %v6097 = vsub.f32 %v6095, %v6096
    %v6098 = vadd.f32 %v6095, %v6096
    %v6099 = vmax.f32 %v6098, 1e-10
    %v6100 = vrcp.pop %v6099
    %v6101 = vmul.f32 %v6097, %v6100
    %v6102 = vmul.f32 %v6094, 1.52
    %v6103 = vmul.f32 %v6045, 1.0003
    %v6104 = vsub.f32 %v6102, %v6103
    %v6105 = vadd.f32 %v6102, %v6103
    %v6106 = vmax.f32 %v6105, 1e-10
    %v6107 = vrcp.pop %v6106
    %v6108 = vmul.f32 %v6104, %v6107
    %v6109 = vmul.f32 %v6101, %v6101
    %v6110 = vmul.f32 %v6108, %v6108
    %v6111 = vadd.f32 %v6109, %v6110
    %v6112 = vmul.f32 %v6111, 0.5
    %v6113 = vmax.f32 %v6112, 0.0
    %v6114 = vmin.f32 %v6113, 1.0
    %v6115 = vmul.f32 %v6086, %v6086
    %v6116 = vmul.f32 %v6087, %v6087
    %v6117 = vadd.f32 %v6115, %v6116
    %v6118 = vmul.f32 %v6088, %v6088
    %v6119 = vadd.f32 %v6117, %v6118
    %v6120 = vmul.f32 %v6018, %v6086
    %v6121 = vmul.f32 %v6020, %v6087
    %v6122 = vadd.f32 %v6120, %v6121
    %v6123 = vmul.f32 %v6022, %v6088
    %v6124 = vadd.f32 %v6122, %v6123
    %v6125 = vmul.f32 %v6124, 2.0
    %v6126 = vsub.f32 %v6027, 0.25
    %v6127 = vsub.f32 0.0, %v6125
    %v6128 = vmul.f32 %v6127, 0.5
    %v6129 = vrcp.pop %v6119
    %v6130 = vmul.f32 %v6128, %v6129
    %v6131 = vsub.f32 %v6130, 1.0
    %v6132 = vmax.f32 %v6131, 0.0
    %v6133 = vadd.f32 %v6130, 1.0
    %v6134 = vsub.f32 %v6133, %v6132
    %v6135 = vmul.f32 %v6134, %v73
    %v6136 = vmul.f32 %v6134, %v74
    %v6137 = vmul.f32 %v6134, %v75
    %v6138 = vmul.f32 %v6134, %v76
    %v6139 = vmul.f32 %v6134, %v77
    %v6140 = vmul.f32 %v6134, %v78
    %v6141 = vmul.f32 %v6134, %v79
    %v6142 = vmul.f32 %v6134, %v80
    %v6143 = vmul.f32 %v6134, %v81
    %v6144 = vmul.f32 %v6134, %v82
    %v6145 = vmul.f32 %v6134, %v83
    %v6146 = vmul.f32 %v6134, %v84
    %v6147 = vmul.f32 %v6134, %v85
    %v6148 = vmul.f32 %v6134, %v86
    %v6149 = vmul.f32 %v6134, %v87
    %v6150 = vmul.f32 %v6134, %v88
    %v6151 = vmul.f32 %v6134, %v89
    %v6152 = vmul.f32 %v6134, %v90
    %v6153 = vmul.f32 %v6134, %v91
    %v6154 = vmul.f32 %v6134, %v92
    %v6155 = vmul.f32 %v6134, %v93
    %v6156 = vmul.f32 %v6134, %v94
    %v6157 = vmul.f32 %v6134, %v95
    %v6158 = vmul.f32 %v6134, %v96
    %v6159 = vmul.f32 %v6134, %v97
    %v6160 = vmul.f32 %v6134, %v98
    %v6161 = vmul.f32 %v6134, %v99
    %v6162 = vmul.f32 %v6134, %v100
    %v6163 = vmul.f32 %v6134, %v101
    %v6164 = vmul.f32 %v6134, %v102
    %v6165 = vmul.f32 %v6134, %v103
    %v6166 = vmul.f32 %v6134, %v104
    %v6167 = vmul.f32 %v6134, %v105
    %v6168 = vmul.f32 %v6134, %v106
    %v6169 = vmul.f32 %v6134, %v107
    %v6170 = vmul.f32 %v6134, %v108
    %v6171 = vmul.f32 %v6134, %v109
    %v6172 = vmul.f32 %v6134, %v110
    %v6173 = vmul.f32 %v6134, %v111
    %v6174 = vmul.f32 %v6134, %v112
    %v6175 = vmul.f32 %v6134, %v113
    %v6176 = vmul.f32 %v6134, %v114
    %v6177 = vmul.f32 %v6134, %v115
    %v6178 = vmul.f32 %v6134, %v116
    %v6179 = vmul.f32 %v6134, %v117
    %v6180 = vmul.f32 %v6134, %v118
    %v6181 = vmul.f32 %v6134, %v119
    %v6182 = vmul.f32 %v6134, %v120
    %v6183 = vmul.f32 %v6134, %v121
    %v6184 = vmul.f32 %v6134, %v122
    %v6185 = vmul.f32 %v6134, %v123
    %v6186 = vmul.f32 %v6134, %v124
    %v6187 = vmul.f32 %v6134, %v125
    %v6188 = vmul.f32 %v6134, %v126
    %v6189 = vmul.f32 %v6134, %v127
    %v6190 = vmul.f32 %v6134, %v128
    %v6191 = vmul.f32 %v6134, %v129
    %v6192 = vmul.f32 %v6134, %v130
    %v6193 = vmul.f32 %v6134, %v131
    %v6194 = vmul.f32 %v6134, %v132
    %v6195 = vmul.f32 %v6134, %v133
    %v6196 = vmul.f32 %v6134, %v134
    %v6197 = vmul.f32 %v6134, %v135
    %v6198 = vmul.f32 %v6134, %v136
    %v6199 = vadd.f32 %v6132, %v6135
    %v6200 = vadd.f32 %v6132, %v6136
    %v6201 = vadd.f32 %v6132, %v6137
    %v6202 = vadd.f32 %v6132, %v6138
    %v6203 = vadd.f32 %v6132, %v6139
    %v6204 = vadd.f32 %v6132, %v6140
    %v6205 = vadd.f32 %v6132, %v6141
    %v6206 = vadd.f32 %v6132, %v6142
    %v6207 = vadd.f32 %v6132, %v6143
    %v6208 = vadd.f32 %v6132, %v6144
    %v6209 = vadd.f32 %v6132, %v6145
    %v6210 = vadd.f32 %v6132, %v6146
    %v6211 = vadd.f32 %v6132, %v6147
    %v6212 = vadd.f32 %v6132, %v6148
    %v6213 = vadd.f32 %v6132, %v6149
    %v6214 = vadd.f32 %v6132, %v6150
    %v6215 = vadd.f32 %v6132, %v6151
    %v6216 = vadd.f32 %v6132, %v6152
    %v6217 = vadd.f32 %v6132, %v6153
    %v6218 = vadd.f32 %v6132, %v6154
    %v6219 = vadd.f32 %v6132, %v6155
    %v6220 = vadd.f32 %v6132, %v6156
    %v6221 = vadd.f32 %v6132, %v6157
    %v6222 = vadd.f32 %v6132, %v6158
    %v6223 = vadd.f32 %v6132, %v6159
    %v6224 = vadd.f32 %v6132, %v6160
    %v6225 = vadd.f32 %v6132, %v6161
    %v6226 = vadd.f32 %v6132, %v6162
    %v6227 = vadd.f32 %v6132, %v6163
    %v6228 = vadd.f32 %v6132, %v6164
    %v6229 = vadd.f32 %v6132, %v6165
    %v6230 = vadd.f32 %v6132, %v6166
    %v6231 = vadd.f32 %v6132, %v6167
    %v6232 = vadd.f32 %v6132, %v6168
    %v6233 = vadd.f32 %v6132, %v6169
    %v6234 = vadd.f32 %v6132, %v6170
    %v6235 = vadd.f32 %v6132, %v6171
    %v6236 = vadd.f32 %v6132, %v6172
    %v6237 = vadd.f32 %v6132, %v6173
    %v6238 = vadd.f32 %v6132, %v6174
    %v6239 = vadd.f32 %v6132, %v6175
    %v6240 = vadd.f32 %v6132, %v6176
    %v6241 = vadd.f32 %v6132, %v6177
    %v6242 = vadd.f32 %v6132, %v6178
    %v6243 = vadd.f32 %v6132, %v6179
    %v6244 = vadd.f32 %v6132, %v6180
    %v6245 = vadd.f32 %v6132, %v6181
    %v6246 = vadd.f32 %v6132, %v6182
    %v6247 = vadd.f32 %v6132, %v6183
    %v6248 = vadd.f32 %v6132, %v6184
    %v6249 = vadd.f32 %v6132, %v6185
    %v6250 = vadd.f32 %v6132, %v6186
    %v6251 = vadd.f32 %v6132, %v6187
    %v6252 = vadd.f32 %v6132, %v6188
    %v6253 = vadd.f32 %v6132, %v6189
    %v6254 = vadd.f32 %v6132, %v6190
    %v6255 = vadd.f32 %v6132, %v6191
    %v6256 = vadd.f32 %v6132, %v6192
    %v6257 = vadd.f32 %v6132, %v6193
    %v6258 = vadd.f32 %v6132, %v6194
    %v6259 = vadd.f32 %v6132, %v6195
    %v6260 = vadd.f32 %v6132, %v6196
    %v6261 = vadd.f32 %v6132, %v6197
    %v6262 = vadd.f32 %v6132, %v6198
    %v6263 = vmul.f32 %v6119, %v6199
    %v6264 = vmul.f32 %v6119, %v6200
    %v6265 = vmul.f32 %v6119, %v6201
    %v6266 = vmul.f32 %v6119, %v6202
    %v6267 = vmul.f32 %v6119, %v6203
    %v6268 = vmul.f32 %v6119, %v6204
    %v6269 = vmul.f32 %v6119, %v6205
    %v6270 = vmul.f32 %v6119, %v6206
    %v6271 = vmul.f32 %v6119, %v6207
    %v6272 = vmul.f32 %v6119, %v6208
    %v6273 = vmul.f32 %v6119, %v6209
    %v6274 = vmul.f32 %v6119, %v6210
    %v6275 = vmul.f32 %v6119, %v6211
    %v6276 = vmul.f32 %v6119, %v6212
    %v6277 = vmul.f32 %v6119, %v6213
    %v6278 = vmul.f32 %v6119, %v6214
    %v6279 = vmul.f32 %v6119, %v6215
    %v6280 = vmul.f32 %v6119, %v6216
    %v6281 = vmul.f32 %v6119, %v6217
    %v6282 = vmul.f32 %v6119, %v6218
    %v6283 = vmul.f32 %v6119, %v6219
    %v6284 = vmul.f32 %v6119, %v6220
    %v6285 = vmul.f32 %v6119, %v6221
    %v6286 = vmul.f32 %v6119, %v6222
    %v6287 = vmul.f32 %v6119, %v6223
    %v6288 = vmul.f32 %v6119, %v6224
    %v6289 = vmul.f32 %v6119, %v6225
    %v6290 = vmul.f32 %v6119, %v6226
    %v6291 = vmul.f32 %v6119, %v6227
    %v6292 = vmul.f32 %v6119, %v6228
    %v6293 = vmul.f32 %v6119, %v6229
    %v6294 = vmul.f32 %v6119, %v6230
    %v6295 = vmul.f32 %v6119, %v6231
    %v6296 = vmul.f32 %v6119, %v6232
    %v6297 = vmul.f32 %v6119, %v6233
    %v6298 = vmul.f32 %v6119, %v6234
    %v6299 = vmul.f32 %v6119, %v6235
    %v6300 = vmul.f32 %v6119, %v6236
    %v6301 = vmul.f32 %v6119, %v6237
    %v6302 = vmul.f32 %v6119, %v6238
    %v6303 = vmul.f32 %v6119, %v6239
    %v6304 = vmul.f32 %v6119, %v6240
    %v6305 = vmul.f32 %v6119, %v6241
    %v6306 = vmul.f32 %v6119, %v6242
    %v6307 = vmul.f32 %v6119, %v6243
    %v6308 = vmul.f32 %v6119, %v6244
    %v6309 = vmul.f32 %v6119, %v6245
    %v6310 = vmul.f32 %v6119, %v6246
    %v6311 = vmul.f32 %v6119, %v6247
    %v6312 = vmul.f32 %v6119, %v6248
    %v6313 = vmul.f32 %v6119, %v6249
    %v6314 = vmul.f32 %v6119, %v6250
    %v6315 = vmul.f32 %v6119, %v6251
    %v6316 = vmul.f32 %v6119, %v6252
    %v6317 = vmul.f32 %v6119, %v6253
    %v6318 = vmul.f32 %v6119, %v6254
    %v6319 = vmul.f32 %v6119, %v6255
    %v6320 = vmul.f32 %v6119, %v6256
    %v6321 = vmul.f32 %v6119, %v6257
    %v6322 = vmul.f32 %v6119, %v6258
    %v6323 = vmul.f32 %v6119, %v6259
    %v6324 = vmul.f32 %v6119, %v6260
    %v6325 = vmul.f32 %v6119, %v6261
    %v6326 = vmul.f32 %v6119, %v6262
    %v6327 = vadd.f32 %v6263, %v6125
    %v6328 = vadd.f32 %v6264, %v6125
    %v6329 = vadd.f32 %v6265, %v6125
    %v6330 = vadd.f32 %v6266, %v6125
    %v6331 = vadd.f32 %v6267, %v6125
    %v6332 = vadd.f32 %v6268, %v6125
    %v6333 = vadd.f32 %v6269, %v6125
    %v6334 = vadd.f32 %v6270, %v6125
    %v6335 = vadd.f32 %v6271, %v6125
    %v6336 = vadd.f32 %v6272, %v6125
    %v6337 = vadd.f32 %v6273, %v6125
    %v6338 = vadd.f32 %v6274, %v6125
    %v6339 = vadd.f32 %v6275, %v6125
    %v6340 = vadd.f32 %v6276, %v6125
    %v6341 = vadd.f32 %v6277, %v6125
    %v6342 = vadd.f32 %v6278, %v6125
    %v6343 = vadd.f32 %v6279, %v6125
    %v6344 = vadd.f32 %v6280, %v6125
    %v6345 = vadd.f32 %v6281, %v6125
    %v6346 = vadd.f32 %v6282, %v6125
    %v6347 = vadd.f32 %v6283, %v6125
    %v6348 = vadd.f32 %v6284, %v6125
    %v6349 = vadd.f32 %v6285, %v6125
    %v6350 = vadd.f32 %v6286, %v6125
    %v6351 = vadd.f32 %v6287, %v6125
    %v6352 = vadd.f32 %v6288, %v6125
    %v6353 = vadd.f32 %v6289, %v6125
    %v6354 = vadd.f32 %v6290, %v6125
    %v6355 = vadd.f32 %v6291, %v6125
    %v6356 = vadd.f32 %v6292, %v6125
    %v6357 = vadd.f32 %v6293, %v6125
    %v6358 = vadd.f32 %v6294, %v6125
    %v6359 = vadd.f32 %v6295, %v6125
    %v6360 = vadd.f32 %v6296, %v6125
    %v6361 = vadd.f32 %v6297, %v6125
    %v6362 = vadd.f32 %v6298, %v6125
    %v6363 = vadd.f32 %v6299, %v6125
    %v6364 = vadd.f32 %v6300, %v6125
    %v6365 = vadd.f32 %v6301, %v6125
    %v6366 = vadd.f32 %v6302, %v6125
    %v6367 = vadd.f32 %v6303, %v6125
    %v6368 = vadd.f32 %v6304, %v6125
    %v6369 = vadd.f32 %v6305, %v6125
    %v6370 = vadd.f32 %v6306, %v6125
    %v6371 = vadd.f32 %v6307, %v6125
    %v6372 = vadd.f32 %v6308, %v6125
    %v6373 = vadd.f32 %v6309, %v6125
    %v6374 = vadd.f32 %v6310, %v6125
    %v6375 = vadd.f32 %v6311, %v6125
    %v6376 = vadd.f32 %v6312, %v6125
    %v6377 = vadd.f32 %v6313, %v6125
    %v6378 = vadd.f32 %v6314, %v6125
    %v6379 = vadd.f32 %v6315, %v6125
    %v6380 = vadd.f32 %v6316, %v6125
    %v6381 = vadd.f32 %v6317, %v6125
    %v6382 = vadd.f32 %v6318, %v6125
    %v6383 = vadd.f32 %v6319, %v6125
    %v6384 = vadd.f32 %v6320, %v6125
    %v6385 = vadd.f32 %v6321, %v6125
    %v6386 = vadd.f32 %v6322, %v6125
    %v6387 = vadd.f32 %v6323, %v6125
    %v6388 = vadd.f32 %v6324, %v6125
    %v6389 = vadd.f32 %v6325, %v6125
    %v6390 = vadd.f32 %v6326, %v6125
    %v6391 = vmul.f32 %v6327, %v6199
    %v6392 = vmul.f32 %v6328, %v6200
    %v6393 = vmul.f32 %v6329, %v6201
    %v6394 = vmul.f32 %v6330, %v6202
    %v6395 = vmul.f32 %v6331, %v6203
    %v6396 = vmul.f32 %v6332, %v6204
    %v6397 = vmul.f32 %v6333, %v6205
    %v6398 = vmul.f32 %v6334, %v6206
    %v6399 = vmul.f32 %v6335, %v6207
    %v6400 = vmul.f32 %v6336, %v6208
    %v6401 = vmul.f32 %v6337, %v6209
    %v6402 = vmul.f32 %v6338, %v6210
    %v6403 = vmul.f32 %v6339, %v6211
    %v6404 = vmul.f32 %v6340, %v6212
    %v6405 = vmul.f32 %v6341, %v6213
    %v6406 = vmul.f32 %v6342, %v6214
    %v6407 = vmul.f32 %v6343, %v6215
    %v6408 = vmul.f32 %v6344, %v6216
    %v6409 = vmul.f32 %v6345, %v6217
    %v6410 = vmul.f32 %v6346, %v6218
    %v6411 = vmul.f32 %v6347, %v6219
    %v6412 = vmul.f32 %v6348, %v6220
    %v6413 = vmul.f32 %v6349, %v6221
    %v6414 = vmul.f32 %v6350, %v6222
    %v6415 = vmul.f32 %v6351, %v6223
    %v6416 = vmul.f32 %v6352, %v6224
    %v6417 = vmul.f32 %v6353, %v6225
    %v6418 = vmul.f32 %v6354, %v6226
    %v6419 = vmul.f32 %v6355, %v6227
    %v6420 = vmul.f32 %v6356, %v6228
    %v6421 = vmul.f32 %v6357, %v6229
    %v6422 = vmul.f32 %v6358, %v6230
    %v6423 = vmul.f32 %v6359, %v6231
    %v6424 = vmul.f32 %v6360, %v6232
    %v6425 = vmul.f32 %v6361, %v6233
    %v6426 = vmul.f32 %v6362, %v6234
    %v6427 = vmul.f32 %v6363, %v6235
    %v6428 = vmul.f32 %v6364, %v6236
    %v6429 = vmul.f32 %v6365, %v6237
    %v6430 = vmul.f32 %v6366, %v6238
    %v6431 = vmul.f32 %v6367, %v6239
    %v6432 = vmul.f32 %v6368, %v6240
    %v6433 = vmul.f32 %v6369, %v6241
    %v6434 = vmul.f32 %v6370, %v6242
    %v6435 = vmul.f32 %v6371, %v6243
    %v6436 = vmul.f32 %v6372, %v6244
    %v6437 = vmul.f32 %v6373, %v6245
    %v6438 = vmul.f32 %v6374, %v6246
    %v6439 = vmul.f32 %v6375, %v6247
    %v6440 = vmul.f32 %v6376, %v6248
    %v6441 = vmul.f32 %v6377, %v6249
    %v6442 = vmul.f32 %v6378, %v6250
    %v6443 = vmul.f32 %v6379, %v6251
    %v6444 = vmul.f32 %v6380, %v6252
    %v6445 = vmul.f32 %v6381, %v6253
    %v6446 = vmul.f32 %v6382, %v6254
    %v6447 = vmul.f32 %v6383, %v6255
    %v6448 = vmul.f32 %v6384, %v6256
    %v6449 = vmul.f32 %v6385, %v6257
    %v6450 = vmul.f32 %v6386, %v6258
    %v6451 = vmul.f32 %v6387, %v6259
    %v6452 = vmul.f32 %v6388, %v6260
    %v6453 = vmul.f32 %v6389, %v6261
    %v6454 = vmul.f32 %v6390, %v6262
    %v6455 = vadd.f32 %v6391, %v6126
    %v6456 = vadd.f32 %v6392, %v6126
    %v6457 = vadd.f32 %v6393, %v6126
    %v6458 = vadd.f32 %v6394, %v6126
    %v6459 = vadd.f32 %v6395, %v6126
    %v6460 = vadd.f32 %v6396, %v6126
    %v6461 = vadd.f32 %v6397, %v6126
    %v6462 = vadd.f32 %v6398, %v6126
    %v6463 = vadd.f32 %v6399, %v6126
    %v6464 = vadd.f32 %v6400, %v6126
    %v6465 = vadd.f32 %v6401, %v6126
    %v6466 = vadd.f32 %v6402, %v6126
    %v6467 = vadd.f32 %v6403, %v6126
    %v6468 = vadd.f32 %v6404, %v6126
    %v6469 = vadd.f32 %v6405, %v6126
    %v6470 = vadd.f32 %v6406, %v6126
    %v6471 = vadd.f32 %v6407, %v6126
    %v6472 = vadd.f32 %v6408, %v6126
    %v6473 = vadd.f32 %v6409, %v6126
    %v6474 = vadd.f32 %v6410, %v6126
    %v6475 = vadd.f32 %v6411, %v6126
    %v6476 = vadd.f32 %v6412, %v6126
    %v6477 = vadd.f32 %v6413, %v6126
    %v6478 = vadd.f32 %v6414, %v6126
    %v6479 = vadd.f32 %v6415, %v6126
    %v6480 = vadd.f32 %v6416, %v6126
    %v6481 = vadd.f32 %v6417, %v6126
    %v6482 = vadd.f32 %v6418, %v6126
    %v6483 = vadd.f32 %v6419, %v6126
    %v6484 = vadd.f32 %v6420, %v6126
    %v6485 = vadd.f32 %v6421, %v6126
    %v6486 = vadd.f32 %v6422, %v6126
    %v6487 = vadd.f32 %v6423, %v6126
    %v6488 = vadd.f32 %v6424, %v6126
    %v6489 = vadd.f32 %v6425, %v6126
    %v6490 = vadd.f32 %v6426, %v6126
    %v6491 = vadd.f32 %v6427, %v6126
    %v6492 = vadd.f32 %v6428, %v6126
    %v6493 = vadd.f32 %v6429, %v6126
    %v6494 = vadd.f32 %v6430, %v6126
    %v6495 = vadd.f32 %v6431, %v6126
    %v6496 = vadd.f32 %v6432, %v6126
    %v6497 = vadd.f32 %v6433, %v6126
    %v6498 = vadd.f32 %v6434, %v6126
    %v6499 = vadd.f32 %v6435, %v6126
    %v6500 = vadd.f32 %v6436, %v6126
    %v6501 = vadd.f32 %v6437, %v6126
    %v6502 = vadd.f32 %v6438, %v6126
    %v6503 = vadd.f32 %v6439, %v6126
    %v6504 = vadd.f32 %v6440, %v6126
    %v6505 = vadd.f32 %v6441, %v6126
    %v6506 = vadd.f32 %v6442, %v6126
    %v6507 = vadd.f32 %v6443, %v6126
    %v6508 = vadd.f32 %v6444, %v6126
    %v6509 = vadd.f32 %v6445, %v6126
    %v6510 = vadd.f32 %v6446, %v6126
    %v6511 = vadd.f32 %v6447, %v6126
    %v6512 = vadd.f32 %v6448, %v6126
    %v6513 = vadd.f32 %v6449, %v6126
    %v6514 = vadd.f32 %v6450, %v6126
    %v6515 = vadd.f32 %v6451, %v6126
    %v6516 = vadd.f32 %v6452, %v6126
    %v6517 = vadd.f32 %v6453, %v6126
    %v6518 = vadd.f32 %v6454, %v6126
    %v6519 = vmul.f32 %v6456, %v6455
    %v6520 = vmul.f32 %v6457, %v6456
    %v6521 = vmul.f32 %v6458, %v6457
    %v6522 = vmul.f32 %v6459, %v6458
    %v6523 = vmul.f32 %v6460, %v6459
    %v6524 = vmul.f32 %v6461, %v6460
    %v6525 = vmul.f32 %v6462, %v6461
    %v6526 = vmul.f32 %v6463, %v6462
    %v6527 = vmul.f32 %v6464, %v6463
    %v6528 = vmul.f32 %v6465, %v6464
    %v6529 = vmul.f32 %v6466, %v6465
    %v6530 = vmul.f32 %v6467, %v6466
    %v6531 = vmul.f32 %v6468, %v6467
    %v6532 = vmul.f32 %v6469, %v6468
    %v6533 = vmul.f32 %v6470, %v6469
    %v6534 = vmul.f32 %v6471, %v6470
    %v6535 = vmul.f32 %v6472, %v6471
    %v6536 = vmul.f32 %v6473, %v6472
    %v6537 = vmul.f32 %v6474, %v6473
    %v6538 = vmul.f32 %v6475, %v6474
    %v6539 = vmul.f32 %v6476, %v6475
    %v6540 = vmul.f32 %v6477, %v6476
    %v6541 = vmul.f32 %v6478, %v6477
    %v6542 = vmul.f32 %v6479, %v6478
    %v6543 = vmul.f32 %v6480, %v6479
    %v6544 = vmul.f32 %v6481, %v6480
    %v6545 = vmul.f32 %v6482, %v6481
    %v6546 = vmul.f32 %v6483, %v6482
    %v6547 = vmul.f32 %v6484, %v6483
    %v6548 = vmul.f32 %v6485, %v6484
    %v6549 = vmul.f32 %v6486, %v6485
    %v6550 = vmul.f32 %v6487, %v6486
    %v6551 = vmul.f32 %v6488, %v6487
    %v6552 = vmul.f32 %v6489, %v6488
    %v6553 = vmul.f32 %v6490, %v6489
    %v6554 = vmul.f32 %v6491, %v6490
    %v6555 = vmul.f32 %v6492, %v6491
    %v6556 = vmul.f32 %v6493, %v6492
    %v6557 = vmul.f32 %v6494, %v6493
    %v6558 = vmul.f32 %v6495, %v6494
    %v6559 = vmul.f32 %v6496, %v6495
    %v6560 = vmul.f32 %v6497, %v6496
    %v6561 = vmul.f32 %v6498, %v6497
    %v6562 = vmul.f32 %v6499, %v6498
    %v6563 = vmul.f32 %v6500, %v6499
    %v6564 = vmul.f32 %v6501, %v6500
    %v6565 = vmul.f32 %v6502, %v6501
    %v6566 = vmul.f32 %v6503, %v6502
    %v6567 = vmul.f32 %v6504, %v6503
    %v6568 = vmul.f32 %v6505, %v6504
    %v6569 = vmul.f32 %v6506, %v6505
    %v6570 = vmul.f32 %v6507, %v6506
    %v6571 = vmul.f32 %v6508, %v6507
    %v6572 = vmul.f32 %v6509, %v6508
    %v6573 = vmul.f32 %v6510, %v6509
    %v6574 = vmul.f32 %v6511, %v6510
    %v6575 = vmul.f32 %v6512, %v6511
    %v6576 = vmul.f32 %v6513, %v6512
    %v6577 = vmul.f32 %v6514, %v6513
    %v6578 = vmul.f32 %v6515, %v6514
    %v6579 = vmul.f32 %v6516, %v6515
    %v6580 = vmul.f32 %v6517, %v6516
    %v6581 = vmul.f32 %v6518, %v6517
    %vm6582 = vcmp.le.f32.partialorder %v6519, 0.0
    %vm6583 = vcmp.le.f32.partialorder %v6520, 0.0
    %vm6584 = vcmp.le.f32.partialorder %v6521, 0.0
    %vm6585 = vcmp.le.f32.partialorder %v6522, 0.0
    %vm6586 = vcmp.le.f32.partialorder %v6523, 0.0
    %vm6587 = vcmp.le.f32.partialorder %v6524, 0.0
    %vm6588 = vcmp.le.f32.partialorder %v6525, 0.0
    %vm6589 = vcmp.le.f32.partialorder %v6526, 0.0
    %vm6590 = vcmp.le.f32.partialorder %v6527, 0.0
    %vm6591 = vcmp.le.f32.partialorder %v6528, 0.0
    %vm6592 = vcmp.le.f32.partialorder %v6529, 0.0
    %vm6593 = vcmp.le.f32.partialorder %v6530, 0.0
    %vm6594 = vcmp.le.f32.partialorder %v6531, 0.0
    %vm6595 = vcmp.le.f32.partialorder %v6532, 0.0
    %vm6596 = vcmp.le.f32.partialorder %v6533, 0.0
    %vm6597 = vcmp.le.f32.partialorder %v6534, 0.0
    %vm6598 = vcmp.le.f32.partialorder %v6535, 0.0
    %vm6599 = vcmp.le.f32.partialorder %v6536, 0.0
    %vm6600 = vcmp.le.f32.partialorder %v6537, 0.0
    %vm6601 = vcmp.le.f32.partialorder %v6538, 0.0
    %vm6602 = vcmp.le.f32.partialorder %v6539, 0.0
    %vm6603 = vcmp.le.f32.partialorder %v6540, 0.0
    %vm6604 = vcmp.le.f32.partialorder %v6541, 0.0
    %vm6605 = vcmp.le.f32.partialorder %v6542, 0.0
    %vm6606 = vcmp.le.f32.partialorder %v6543, 0.0
    %vm6607 = vcmp.le.f32.partialorder %v6544, 0.0
    %vm6608 = vcmp.le.f32.partialorder %v6545, 0.0
    %vm6609 = vcmp.le.f32.partialorder %v6546, 0.0
    %vm6610 = vcmp.le.f32.partialorder %v6547, 0.0
    %vm6611 = vcmp.le.f32.partialorder %v6548, 0.0
    %vm6612 = vcmp.le.f32.partialorder %v6549, 0.0
    %vm6613 = vcmp.le.f32.partialorder %v6550, 0.0
    %vm6614 = vcmp.le.f32.partialorder %v6551, 0.0
    %vm6615 = vcmp.le.f32.partialorder %v6552, 0.0
    %vm6616 = vcmp.le.f32.partialorder %v6553, 0.0
    %vm6617 = vcmp.le.f32.partialorder %v6554, 0.0
    %vm6618 = vcmp.le.f32.partialorder %v6555, 0.0
    %vm6619 = vcmp.le.f32.partialorder %v6556, 0.0
    %vm6620 = vcmp.le.f32.partialorder %v6557, 0.0
    %vm6621 = vcmp.le.f32.partialorder %v6558, 0.0
    %vm6622 = vcmp.le.f32.partialorder %v6559, 0.0
    %vm6623 = vcmp.le.f32.partialorder %v6560, 0.0
    %vm6624 = vcmp.le.f32.partialorder %v6561, 0.0
    %vm6625 = vcmp.le.f32.partialorder %v6562, 0.0
    %vm6626 = vcmp.le.f32.partialorder %v6563, 0.0
    %vm6627 = vcmp.le.f32.partialorder %v6564, 0.0
    %vm6628 = vcmp.le.f32.partialorder %v6565, 0.0
    %vm6629 = vcmp.le.f32.partialorder %v6566, 0.0
    %vm6630 = vcmp.le.f32.partialorder %v6567, 0.0
    %vm6631 = vcmp.le.f32.partialorder %v6568, 0.0
    %vm6632 = vcmp.le.f32.partialorder %v6569, 0.0
    %vm6633 = vcmp.le.f32.partialorder %v6570, 0.0
    %vm6634 = vcmp.le.f32.partialorder %v6571, 0.0
    %vm6635 = vcmp.le.f32.partialorder %v6572, 0.0
    %vm6636 = vcmp.le.f32.partialorder %v6573, 0.0
    %vm6637 = vcmp.le.f32.partialorder %v6574, 0.0
    %vm6638 = vcmp.le.f32.partialorder %v6575, 0.0
    %vm6639 = vcmp.le.f32.partialorder %v6576, 0.0
    %vm6640 = vcmp.le.f32.partialorder %v6577, 0.0
    %vm6641 = vcmp.le.f32.partialorder %v6578, 0.0
    %vm6642 = vcmp.le.f32.partialorder %v6579, 0.0
    %vm6643 = vcmp.le.f32.partialorder %v6580, 0.0
    %vm6644 = vcmp.le.f32.partialorder %v6581, 0.0
    %v6645 = vsel %vm6582, %v137, 64
    %v6646 = vsel %vm6583, %v138, 64
    %v6647 = vsel %vm6584, %v139, 64
    %v6648 = vsel %vm6585, %v140, 64
    %v6649 = vsel %vm6586, %v141, 64
    %v6650 = vsel %vm6587, %v142, 64
    %v6651 = vsel %vm6588, %v143, 64
    %v6652 = vsel %vm6589, %v144, 64
    %v6653 = vsel %vm6590, %v145, 64
    %v6654 = vsel %vm6591, %v146, 64
    %v6655 = vsel %vm6592, %v147, 64
    %v6656 = vsel %vm6593, %v148, 64
    %v6657 = vsel %vm6594, %v149, 64
    %v6658 = vsel %vm6595, %v150, 64
    %v6659 = vsel %vm6596, %v151, 64
    %v6660 = vsel %vm6597, %v152, 64
    %v6661 = vsel %vm6598, %v153, 64
    %v6662 = vsel %vm6599, %v154, 64
    %v6663 = vsel %vm6600, %v155, 64
    %v6664 = vsel %vm6601, %v156, 64
    %v6665 = vsel %vm6602, %v157, 64
    %v6666 = vsel %vm6603, %v158, 64
    %v6667 = vsel %vm6604, %v159, 64
    %v6668 = vsel %vm6605, %v160, 64
    %v6669 = vsel %vm6606, %v161, 64
    %v6670 = vsel %vm6607, %v162, 64
    %v6671 = vsel %vm6608, %v163, 64
    %v6672 = vsel %vm6609, %v164, 64
    %v6673 = vsel %vm6610, %v165, 64
    %v6674 = vsel %vm6611, %v166, 64
    %v6675 = vsel %vm6612, %v167, 64
    %v6676 = vsel %vm6613, %v168, 64
    %v6677 = vsel %vm6614, %v169, 64
    %v6678 = vsel %vm6615, %v170, 64
    %v6679 = vsel %vm6616, %v171, 64
    %v6680 = vsel %vm6617, %v172, 64
    %v6681 = vsel %vm6618, %v173, 64
    %v6682 = vsel %vm6619, %v174, 64
    %v6683 = vsel %vm6620, %v175, 64
    %v6684 = vsel %vm6621, %v176, 64
    %v6685 = vsel %vm6622, %v177, 64
    %v6686 = vsel %vm6623, %v178, 64
    %v6687 = vsel %vm6624, %v179, 64
    %v6688 = vsel %vm6625, %v180, 64
    %v6689 = vsel %vm6626, %v181, 64
    %v6690 = vsel %vm6627, %v182, 64
    %v6691 = vsel %vm6628, %v183, 64
    %v6692 = vsel %vm6629, %v184, 64
    %v6693 = vsel %vm6630, %v185, 64
    %v6694 = vsel %vm6631, %v186, 64
    %v6695 = vsel %vm6632, %v187, 64
    %v6696 = vsel %vm6633, %v188, 64
    %v6697 = vsel %vm6634, %v189, 64
    %v6698 = vsel %vm6635, %v190, 64
    %v6699 = vsel %vm6636, %v191, 64
    %v6700 = vsel %vm6637, %v192, 64
    %v6701 = vsel %vm6638, %v193, 64
    %v6702 = vsel %vm6639, %v194, 64
    %v6703 = vsel %vm6640, %v195, 64
    %v6704 = vsel %vm6641, %v196, 64
    %v6705 = vsel %vm6642, %v197, 64
    %v6706 = vsel %vm6643, %v198, 64
    %v6707 = vsel %vm6644, %v199, 64
    %vm6708 = vcmp.lt.s32.totalorder %v6645, %v6649
    %v6709 = vsel %vm6708, %v6645, %v6649
    %vm6710 = vcmp.lt.s32.totalorder %v6646, %v6650
    %v6711 = vsel %vm6710, %v6646, %v6650
    %vm6712 = vcmp.lt.s32.totalorder %v6647, %v6651
    %v6713 = vsel %vm6712, %v6647, %v6651
    %vm6714 = vcmp.lt.s32.totalorder %v6648, %v6652
    %v6715 = vsel %vm6714, %v6648, %v6652
    %vm6716 = vcmp.lt.s32.totalorder %v6709, %v6653
    %v6717 = vsel %vm6716, %v6709, %v6653
    %vm6718 = vcmp.lt.s32.totalorder %v6711, %v6654
    %v6719 = vsel %vm6718, %v6711, %v6654
    %vm6720 = vcmp.lt.s32.totalorder %v6713, %v6655
    %v6721 = vsel %vm6720, %v6713, %v6655
    %vm6722 = vcmp.lt.s32.totalorder %v6715, %v6656
    %v6723 = vsel %vm6722, %v6715, %v6656
    %vm6724 = vcmp.lt.s32.totalorder %v6717, %v6657
    %v6725 = vsel %vm6724, %v6717, %v6657
    %vm6726 = vcmp.lt.s32.totalorder %v6719, %v6658
    %v6727 = vsel %vm6726, %v6719, %v6658
    %vm6728 = vcmp.lt.s32.totalorder %v6721, %v6659
    %v6729 = vsel %vm6728, %v6721, %v6659
    %vm6730 = vcmp.lt.s32.totalorder %v6723, %v6660
    %v6731 = vsel %vm6730, %v6723, %v6660
    %vm6732 = vcmp.lt.s32.totalorder %v6725, %v6661
    %v6733 = vsel %vm6732, %v6725, %v6661
    %vm6734 = vcmp.lt.s32.totalorder %v6727, %v6662
    %v6735 = vsel %vm6734, %v6727, %v6662
    %vm6736 = vcmp.lt.s32.totalorder %v6729, %v6663
    %v6737 = vsel %vm6736, %v6729, %v6663
    %vm6738 = vcmp.lt.s32.totalorder %v6731, %v6664
    %v6739 = vsel %vm6738, %v6731, %v6664
    %vm6740 = vcmp.lt.s32.totalorder %v6733, %v6665
    %v6741 = vsel %vm6740, %v6733, %v6665
    %vm6742 = vcmp.lt.s32.totalorder %v6735, %v6666
    %v6743 = vsel %vm6742, %v6735, %v6666
    %vm6744 = vcmp.lt.s32.totalorder %v6737, %v6667
    %v6745 = vsel %vm6744, %v6737, %v6667
    %vm6746 = vcmp.lt.s32.totalorder %v6739, %v6668
    %v6747 = vsel %vm6746, %v6739, %v6668
    %vm6748 = vcmp.lt.s32.totalorder %v6741, %v6669
    %v6749 = vsel %vm6748, %v6741, %v6669
    %vm6750 = vcmp.lt.s32.totalorder %v6743, %v6670
    %v6751 = vsel %vm6750, %v6743, %v6670
    %vm6752 = vcmp.lt.s32.totalorder %v6745, %v6671
    %v6753 = vsel %vm6752, %v6745, %v6671
    %vm6754 = vcmp.lt.s32.totalorder %v6747, %v6672
    %v6755 = vsel %vm6754, %v6747, %v6672
    %vm6756 = vcmp.lt.s32.totalorder %v6749, %v6673
    %v6757 = vsel %vm6756, %v6749, %v6673
    %vm6758 = vcmp.lt.s32.totalorder %v6751, %v6674
    %v6759 = vsel %vm6758, %v6751, %v6674
    %vm6760 = vcmp.lt.s32.totalorder %v6753, %v6675
    %v6761 = vsel %vm6760, %v6753, %v6675
    %vm6762 = vcmp.lt.s32.totalorder %v6755, %v6676
    %v6763 = vsel %vm6762, %v6755, %v6676
    %vm6764 = vcmp.lt.s32.totalorder %v6757, %v6677
    %v6765 = vsel %vm6764, %v6757, %v6677
    %vm6766 = vcmp.lt.s32.totalorder %v6759, %v6678
    %v6767 = vsel %vm6766, %v6759, %v6678
    %vm6768 = vcmp.lt.s32.totalorder %v6761, %v6679
    %v6769 = vsel %vm6768, %v6761, %v6679
    %vm6770 = vcmp.lt.s32.totalorder %v6763, %v6680
    %v6771 = vsel %vm6770, %v6763, %v6680
    %vm6772 = vcmp.lt.s32.totalorder %v6765, %v6681
    %v6773 = vsel %vm6772, %v6765, %v6681
    %vm6774 = vcmp.lt.s32.totalorder %v6767, %v6682
    %v6775 = vsel %vm6774, %v6767, %v6682
    %vm6776 = vcmp.lt.s32.totalorder %v6769, %v6683
    %v6777 = vsel %vm6776, %v6769, %v6683
    %vm6778 = vcmp.lt.s32.totalorder %v6771, %v6684
    %v6779 = vsel %vm6778, %v6771, %v6684
    %vm6780 = vcmp.lt.s32.totalorder %v6773, %v6685
    %v6781 = vsel %vm6780, %v6773, %v6685
    %vm6782 = vcmp.lt.s32.totalorder %v6775, %v6686
    %v6783 = vsel %vm6782, %v6775, %v6686
    %vm6784 = vcmp.lt.s32.totalorder %v6777, %v6687
    %v6785 = vsel %vm6784, %v6777, %v6687
    %vm6786 = vcmp.lt.s32.totalorder %v6779, %v6688
    %v6787 = vsel %vm6786, %v6779, %v6688
    %vm6788 = vcmp.lt.s32.totalorder %v6781, %v6689
    %v6789 = vsel %vm6788, %v6781, %v6689
    %vm6790 = vcmp.lt.s32.totalorder %v6783, %v6690
    %v6791 = vsel %vm6790, %v6783, %v6690
    %vm6792 = vcmp.lt.s32.totalorder %v6785, %v6691
    %v6793 = vsel %vm6792, %v6785, %v6691
    %vm6794 = vcmp.lt.s32.totalorder %v6787, %v6692
    %v6795 = vsel %vm6794, %v6787, %v6692
    %vm6796 = vcmp.lt.s32.totalorder %v6789, %v6693
    %v6797 = vsel %vm6796, %v6789, %v6693
    %vm6798 = vcmp.lt.s32.totalorder %v6791, %v6694
    %v6799 = vsel %vm6798, %v6791, %v6694
    %vm6800 = vcmp.lt.s32.totalorder %v6793, %v6695
    %v6801 = vsel %vm6800, %v6793, %v6695
    %vm6802 = vcmp.lt.s32.totalorder %v6795, %v6696
    %v6803 = vsel %vm6802, %v6795, %v6696
    %vm6804 = vcmp.lt.s32.totalorder %v6797, %v6697
    %v6805 = vsel %vm6804, %v6797, %v6697
    %vm6806 = vcmp.lt.s32.totalorder %v6799, %v6698
    %v6807 = vsel %vm6806, %v6799, %v6698
    %vm6808 = vcmp.lt.s32.totalorder %v6801, %v6699
    %v6809 = vsel %vm6808, %v6801, %v6699
    %vm6810 = vcmp.lt.s32.totalorder %v6803, %v6700
    %v6811 = vsel %vm6810, %v6803, %v6700
    %vm6812 = vcmp.lt.s32.totalorder %v6805, %v6701
    %v6813 = vsel %vm6812, %v6805, %v6701
    %vm6814 = vcmp.lt.s32.totalorder %v6807, %v6702
    %v6815 = vsel %vm6814, %v6807, %v6702
    %vm6816 = vcmp.lt.s32.totalorder %v6809, %v6703
    %v6817 = vsel %vm6816, %v6809, %v6703
    %vm6818 = vcmp.lt.s32.totalorder %v6811, %v6704
    %v6819 = vsel %vm6818, %v6811, %v6704
    %vm6820 = vcmp.lt.s32.totalorder %v6813, %v6705
    %v6821 = vsel %vm6820, %v6813, %v6705
    %vm6822 = vcmp.lt.s32.totalorder %v6815, %v6706
    %v6823 = vsel %vm6822, %v6815, %v6706
    %vm6824 = vcmp.lt.s32.totalorder %v6817, %v6707
    %v6825 = vsel %vm6824, %v6817, %v6707
    %vm6826 = vcmp.lt.s32.totalorder %v6821, %v6823
    %v6827 = vsel %vm6826, %v6821, %v6823
    %vm6828 = vcmp.lt.s32.totalorder %v6825, %v6819
    %v6829 = vsel %vm6828, %v6825, %v6819
    %vm6830 = vcmp.lt.s32.totalorder %v6827, %v6829
    %v6831 = vsel %vm6830, %v6827, %v6829
    %v6832 = vsel %vm6582, 1.0, 0.0
    %v6833 = vsel %vm6583, 1.0, 0.0
    %v6834 = vsel %vm6584, 1.0, 0.0
    %v6835 = vsel %vm6585, 1.0, 0.0
    %v6836 = vsel %vm6586, 1.0, 0.0
    %v6837 = vsel %vm6587, 1.0, 0.0
    %v6838 = vsel %vm6588, 1.0, 0.0
    %v6839 = vsel %vm6589, 1.0, 0.0
    %v6840 = vsel %vm6590, 1.0, 0.0
    %v6841 = vsel %vm6591, 1.0, 0.0
    %v6842 = vsel %vm6592, 1.0, 0.0
    %v6843 = vsel %vm6593, 1.0, 0.0
    %v6844 = vsel %vm6594, 1.0, 0.0
    %v6845 = vsel %vm6595, 1.0, 0.0
    %v6846 = vsel %vm6596, 1.0, 0.0
    %v6847 = vsel %vm6597, 1.0, 0.0
    %v6848 = vsel %vm6598, 1.0, 0.0
    %v6849 = vsel %vm6599, 1.0, 0.0
    %v6850 = vsel %vm6600, 1.0, 0.0
    %v6851 = vsel %vm6601, 1.0, 0.0
    %v6852 = vsel %vm6602, 1.0, 0.0
    %v6853 = vsel %vm6603, 1.0, 0.0
    %v6854 = vsel %vm6604, 1.0, 0.0
    %v6855 = vsel %vm6605, 1.0, 0.0
    %v6856 = vsel %vm6606, 1.0, 0.0
    %v6857 = vsel %vm6607, 1.0, 0.0
    %v6858 = vsel %vm6608, 1.0, 0.0
    %v6859 = vsel %vm6609, 1.0, 0.0
    %v6860 = vsel %vm6610, 1.0, 0.0
    %v6861 = vsel %vm6611, 1.0, 0.0
    %v6862 = vsel %vm6612, 1.0, 0.0
    %v6863 = vsel %vm6613, 1.0, 0.0
    %v6864 = vsel %vm6614, 1.0, 0.0
    %v6865 = vsel %vm6615, 1.0, 0.0
    %v6866 = vsel %vm6616, 1.0, 0.0
    %v6867 = vsel %vm6617, 1.0, 0.0
    %v6868 = vsel %vm6618, 1.0, 0.0
    %v6869 = vsel %vm6619, 1.0, 0.0
    %v6870 = vsel %vm6620, 1.0, 0.0
    %v6871 = vsel %vm6621, 1.0, 0.0
    %v6872 = vsel %vm6622, 1.0, 0.0
    %v6873 = vsel %vm6623, 1.0, 0.0
    %v6874 = vsel %vm6624, 1.0, 0.0
    %v6875 = vsel %vm6625, 1.0, 0.0
    %v6876 = vsel %vm6626, 1.0, 0.0
    %v6877 = vsel %vm6627, 1.0, 0.0
    %v6878 = vsel %vm6628, 1.0, 0.0
    %v6879 = vsel %vm6629, 1.0, 0.0
    %v6880 = vsel %vm6630, 1.0, 0.0
    %v6881 = vsel %vm6631, 1.0, 0.0
    %v6882 = vsel %vm6632, 1.0, 0.0
    %v6883 = vsel %vm6633, 1.0, 0.0
    %v6884 = vsel %vm6634, 1.0, 0.0
    %v6885 = vsel %vm6635, 1.0, 0.0
    %v6886 = vsel %vm6636, 1.0, 0.0
    %v6887 = vsel %vm6637, 1.0, 0.0
    %v6888 = vsel %vm6638, 1.0, 0.0
    %v6889 = vsel %vm6639, 1.0, 0.0
    %v6890 = vsel %vm6640, 1.0, 0.0
    %v6891 = vsel %vm6641, 1.0, 0.0
    %v6892 = vsel %vm6642, 1.0, 0.0
    %v6893 = vsel %vm6643, 1.0, 0.0
    %v6894 = vsel %vm6644, 1.0, 0.0
    %v6895 = vmax.f32 %v6832, %v6836
    %v6896 = vmax.f32 %v6833, %v6837
    %v6897 = vmax.f32 %v6834, %v6838
    %v6898 = vmax.f32 %v6835, %v6839
    %v6899 = vmax.f32 %v6895, %v6840
    %v6900 = vmax.f32 %v6896, %v6841
    %v6901 = vmax.f32 %v6897, %v6842
    %v6902 = vmax.f32 %v6898, %v6843
    %v6903 = vmax.f32 %v6899, %v6844
    %v6904 = vmax.f32 %v6900, %v6845
    %v6905 = vmax.f32 %v6901, %v6846
    %v6906 = vmax.f32 %v6902, %v6847
    %v6907 = vmax.f32 %v6903, %v6848
    %v6908 = vmax.f32 %v6904, %v6849
    %v6909 = vmax.f32 %v6905, %v6850
    %v6910 = vmax.f32 %v6906, %v6851
    %v6911 = vmax.f32 %v6907, %v6852
    %v6912 = vmax.f32 %v6908, %v6853
    %v6913 = vmax.f32 %v6909, %v6854
    %v6914 = vmax.f32 %v6910, %v6855
    %v6915 = vmax.f32 %v6911, %v6856
    %v6916 = vmax.f32 %v6912, %v6857
    %v6917 = vmax.f32 %v6913, %v6858
    %v6918 = vmax.f32 %v6914, %v6859
    %v6919 = vmax.f32 %v6915, %v6860
    %v6920 = vmax.f32 %v6916, %v6861
    %v6921 = vmax.f32 %v6917, %v6862
    %v6922 = vmax.f32 %v6918, %v6863
    %v6923 = vmax.f32 %v6919, %v6864
    %v6924 = vmax.f32 %v6920, %v6865
    %v6925 = vmax.f32 %v6921, %v6866
    %v6926 = vmax.f32 %v6922, %v6867
    %v6927 = vmax.f32 %v6923, %v6868
    %v6928 = vmax.f32 %v6924, %v6869
    %v6929 = vmax.f32 %v6925, %v6870
    %v6930 = vmax.f32 %v6926, %v6871
    %v6931 = vmax.f32 %v6927, %v6872
    %v6932 = vmax.f32 %v6928, %v6873
    %v6933 = vmax.f32 %v6929, %v6874
    %v6934 = vmax.f32 %v6930, %v6875
    %v6935 = vmax.f32 %v6931, %v6876
    %v6936 = vmax.f32 %v6932, %v6877
    %v6937 = vmax.f32 %v6933, %v6878
    %v6938 = vmax.f32 %v6934, %v6879
    %v6939 = vmax.f32 %v6935, %v6880
    %v6940 = vmax.f32 %v6936, %v6881
    %v6941 = vmax.f32 %v6937, %v6882
    %v6942 = vmax.f32 %v6938, %v6883
    %v6943 = vmax.f32 %v6939, %v6884
    %v6944 = vmax.f32 %v6940, %v6885
    %v6945 = vmax.f32 %v6941, %v6886
    %v6946 = vmax.f32 %v6942, %v6887
    %v6947 = vmax.f32 %v6943, %v6888
    %v6948 = vmax.f32 %v6944, %v6889
    %v6949 = vmax.f32 %v6945, %v6890
    %v6950 = vmax.f32 %v6946, %v6891
    %v6951 = vmax.f32 %v6947, %v6892
    %v6952 = vmax.f32 %v6948, %v6893
    %v6953 = vmax.f32 %v6949, %v6894
    %v6954 = vmax.f32 %v6951, %v6952
    %v6955 = vmax.f32 %v6953, %v6950
    %v6956 = vmax.f32 %v6954, %v6955
    %vm6957 = vcmp.gt.f32.partialorder %v6956, 0.0
    %v6958 = vsel %vm6957, %v6831, 0
    %vm6959 = vcmp.eq.s32.totalorder %v137, %v6958
    %vm6960 = vcmp.eq.s32.totalorder %v138, %v6958
    %vm6961 = vcmp.eq.s32.totalorder %v139, %v6958
    %vm6962 = vcmp.eq.s32.totalorder %v140, %v6958
    %vm6963 = vcmp.eq.s32.totalorder %v141, %v6958
    %vm6964 = vcmp.eq.s32.totalorder %v142, %v6958
    %vm6965 = vcmp.eq.s32.totalorder %v143, %v6958
    %vm6966 = vcmp.eq.s32.totalorder %v144, %v6958
    %vm6967 = vcmp.eq.s32.totalorder %v145, %v6958
    %vm6968 = vcmp.eq.s32.totalorder %v146, %v6958
    %vm6969 = vcmp.eq.s32.totalorder %v147, %v6958
    %vm6970 = vcmp.eq.s32.totalorder %v148, %v6958
    %vm6971 = vcmp.eq.s32.totalorder %v149, %v6958
    %vm6972 = vcmp.eq.s32.totalorder %v150, %v6958
    %vm6973 = vcmp.eq.s32.totalorder %v151, %v6958
    %vm6974 = vcmp.eq.s32.totalorder %v152, %v6958
    %vm6975 = vcmp.eq.s32.totalorder %v153, %v6958
    %vm6976 = vcmp.eq.s32.totalorder %v154, %v6958
    %vm6977 = vcmp.eq.s32.totalorder %v155, %v6958
    %vm6978 = vcmp.eq.s32.totalorder %v156, %v6958
    %vm6979 = vcmp.eq.s32.totalorder %v157, %v6958
    %vm6980 = vcmp.eq.s32.totalorder %v158, %v6958
    %vm6981 = vcmp.eq.s32.totalorder %v159, %v6958
    %vm6982 = vcmp.eq.s32.totalorder %v160, %v6958
    %vm6983 = vcmp.eq.s32.totalorder %v161, %v6958
    %vm6984 = vcmp.eq.s32.totalorder %v162, %v6958
    %vm6985 = vcmp.eq.s32.totalorder %v163, %v6958
    %vm6986 = vcmp.eq.s32.totalorder %v164, %v6958
    %vm6987 = vcmp.eq.s32.totalorder %v165, %v6958
    %vm6988 = vcmp.eq.s32.totalorder %v166, %v6958
    %vm6989 = vcmp.eq.s32.totalorder %v167, %v6958
    %vm6990 = vcmp.eq.s32.totalorder %v168, %v6958
    %vm6991 = vcmp.eq.s32.totalorder %v169, %v6958
    %vm6992 = vcmp.eq.s32.totalorder %v170, %v6958
    %vm6993 = vcmp.eq.s32.totalorder %v171, %v6958
    %vm6994 = vcmp.eq.s32.totalorder %v172, %v6958
    %vm6995 = vcmp.eq.s32.totalorder %v173, %v6958
    %vm6996 = vcmp.eq.s32.totalorder %v174, %v6958
    %vm6997 = vcmp.eq.s32.totalorder %v175, %v6958
    %vm6998 = vcmp.eq.s32.totalorder %v176, %v6958
    %vm6999 = vcmp.eq.s32.totalorder %v177, %v6958
    %vm7000 = vcmp.eq.s32.totalorder %v178, %v6958
    %vm7001 = vcmp.eq.s32.totalorder %v179, %v6958
    %vm7002 = vcmp.eq.s32.totalorder %v180, %v6958
    %vm7003 = vcmp.eq.s32.totalorder %v181, %v6958
    %vm7004 = vcmp.eq.s32.totalorder %v182, %v6958
    %vm7005 = vcmp.eq.s32.totalorder %v183, %v6958
    %vm7006 = vcmp.eq.s32.totalorder %v184, %v6958
    %vm7007 = vcmp.eq.s32.totalorder %v185, %v6958
    %vm7008 = vcmp.eq.s32.totalorder %v186, %v6958
    %vm7009 = vcmp.eq.s32.totalorder %v187, %v6958
    %vm7010 = vcmp.eq.s32.totalorder %v188, %v6958
    %vm7011 = vcmp.eq.s32.totalorder %v189, %v6958
    %vm7012 = vcmp.eq.s32.totalorder %v190, %v6958
    %vm7013 = vcmp.eq.s32.totalorder %v191, %v6958
    %vm7014 = vcmp.eq.s32.totalorder %v192, %v6958
    %vm7015 = vcmp.eq.s32.totalorder %v193, %v6958
    %vm7016 = vcmp.eq.s32.totalorder %v194, %v6958
    %vm7017 = vcmp.eq.s32.totalorder %v195, %v6958
    %vm7018 = vcmp.eq.s32.totalorder %v196, %v6958
    %vm7019 = vcmp.eq.s32.totalorder %v197, %v6958
    %vm7020 = vcmp.eq.s32.totalorder %v198, %v6958
    %vm7021 = vcmp.eq.s32.totalorder %v199, %v6958
    %v7022 = vsel %vm6959, 1, 0
    %v7023 = vsel %vm6960, 1, 0
    %v7024 = vsel %vm6961, 1, 0
    %v7025 = vsel %vm6962, 1, 0
    %v7026 = vsel %vm6963, 1, 0
    %v7027 = vsel %vm6964, 1, 0
    %v7028 = vsel %vm6965, 1, 0
    %v7029 = vsel %vm6966, 1, 0
    %v7030 = vsel %vm6967, 1, 0
    %v7031 = vsel %vm6968, 1, 0
    %v7032 = vsel %vm6969, 1, 0
    %v7033 = vsel %vm6970, 1, 0
    %v7034 = vsel %vm6971, 1, 0
    %v7035 = vsel %vm6972, 1, 0
    %v7036 = vsel %vm6973, 1, 0
    %v7037 = vsel %vm6974, 1, 0
    %v7038 = vsel %vm6975, 1, 0
    %v7039 = vsel %vm6976, 1, 0
    %v7040 = vsel %vm6977, 1, 0
    %v7041 = vsel %vm6978, 1, 0
    %v7042 = vsel %vm6979, 1, 0
    %v7043 = vsel %vm6980, 1, 0
    %v7044 = vsel %vm6981, 1, 0
    %v7045 = vsel %vm6982, 1, 0
    %v7046 = vsel %vm6983, 1, 0
    %v7047 = vsel %vm6984, 1, 0
    %v7048 = vsel %vm6985, 1, 0
    %v7049 = vsel %vm6986, 1, 0
    %v7050 = vsel %vm6987, 1, 0
    %v7051 = vsel %vm6988, 1, 0
    %v7052 = vsel %vm6989, 1, 0
    %v7053 = vsel %vm6990, 1, 0
    %v7054 = vsel %vm6991, 1, 0
    %v7055 = vsel %vm6992, 1, 0
    %v7056 = vsel %vm6993, 1, 0
    %v7057 = vsel %vm6994, 1, 0
    %v7058 = vsel %vm6995, 1, 0
    %v7059 = vsel %vm6996, 1, 0
    %v7060 = vsel %vm6997, 1, 0
    %v7061 = vsel %vm6998, 1, 0
    %v7062 = vsel %vm6999, 1, 0
    %v7063 = vsel %vm7000, 1, 0
    %v7064 = vsel %vm7001, 1, 0
    %v7065 = vsel %vm7002, 1, 0
    %v7066 = vsel %vm7003, 1, 0
    %v7067 = vsel %vm7004, 1, 0
    %v7068 = vsel %vm7005, 1, 0
    %v7069 = vsel %vm7006, 1, 0
    %v7070 = vsel %vm7007, 1, 0
    %v7071 = vsel %vm7008, 1, 0
    %v7072 = vsel %vm7009, 1, 0
    %v7073 = vsel %vm7010, 1, 0
    %v7074 = vsel %vm7011, 1, 0
    %v7075 = vsel %vm7012, 1, 0
    %v7076 = vsel %vm7013, 1, 0
    %v7077 = vsel %vm7014, 1, 0
    %v7078 = vsel %vm7015, 1, 0
    %v7079 = vsel %vm7016, 1, 0
    %v7080 = vsel %vm7017, 1, 0
    %v7081 = vsel %vm7018, 1, 0
    %v7082 = vsel %vm7019, 1, 0
    %v7083 = vsel %vm7020, 1, 0
    %v7084 = vsel %vm7021, 1, 0
    %v7085 = vcvt.s32.f32 %v7022
    %v7086 = vcvt.s32.f32 %v7023
    %v7087 = vcvt.s32.f32 %v7024
    %v7088 = vcvt.s32.f32 %v7025
    %v7089 = vcvt.s32.f32 %v7026
    %v7090 = vcvt.s32.f32 %v7027
    %v7091 = vcvt.s32.f32 %v7028
    %v7092 = vcvt.s32.f32 %v7029
    %v7093 = vcvt.s32.f32 %v7030
    %v7094 = vcvt.s32.f32 %v7031
    %v7095 = vcvt.s32.f32 %v7032
    %v7096 = vcvt.s32.f32 %v7033
    %v7097 = vcvt.s32.f32 %v7034
    %v7098 = vcvt.s32.f32 %v7035
    %v7099 = vcvt.s32.f32 %v7036
    %v7100 = vcvt.s32.f32 %v7037
    %v7101 = vcvt.s32.f32 %v7038
    %v7102 = vcvt.s32.f32 %v7039
    %v7103 = vcvt.s32.f32 %v7040
    %v7104 = vcvt.s32.f32 %v7041
    %v7105 = vcvt.s32.f32 %v7042
    %v7106 = vcvt.s32.f32 %v7043
    %v7107 = vcvt.s32.f32 %v7044
    %v7108 = vcvt.s32.f32 %v7045
    %v7109 = vcvt.s32.f32 %v7046
    %v7110 = vcvt.s32.f32 %v7047
    %v7111 = vcvt.s32.f32 %v7048
    %v7112 = vcvt.s32.f32 %v7049
    %v7113 = vcvt.s32.f32 %v7050
    %v7114 = vcvt.s32.f32 %v7051
    %v7115 = vcvt.s32.f32 %v7052
    %v7116 = vcvt.s32.f32 %v7053
    %v7117 = vcvt.s32.f32 %v7054
    %v7118 = vcvt.s32.f32 %v7055
    %v7119 = vcvt.s32.f32 %v7056
    %v7120 = vcvt.s32.f32 %v7057
    %v7121 = vcvt.s32.f32 %v7058
    %v7122 = vcvt.s32.f32 %v7059
    %v7123 = vcvt.s32.f32 %v7060
    %v7124 = vcvt.s32.f32 %v7061
    %v7125 = vcvt.s32.f32 %v7062
    %v7126 = vcvt.s32.f32 %v7063
    %v7127 = vcvt.s32.f32 %v7064
    %v7128 = vcvt.s32.f32 %v7065
    %v7129 = vcvt.s32.f32 %v7066
    %v7130 = vcvt.s32.f32 %v7067
    %v7131 = vcvt.s32.f32 %v7068
    %v7132 = vcvt.s32.f32 %v7069
    %v7133 = vcvt.s32.f32 %v7070
    %v7134 = vcvt.s32.f32 %v7071
    %v7135 = vcvt.s32.f32 %v7072
    %v7136 = vcvt.s32.f32 %v7073
    %v7137 = vcvt.s32.f32 %v7074
    %v7138 = vcvt.s32.f32 %v7075
    %v7139 = vcvt.s32.f32 %v7076
    %v7140 = vcvt.s32.f32 %v7077
    %v7141 = vcvt.s32.f32 %v7078
    %v7142 = vcvt.s32.f32 %v7079
    %v7143 = vcvt.s32.f32 %v7080
    %v7144 = vcvt.s32.f32 %v7081
    %v7145 = vcvt.s32.f32 %v7082
    %v7146 = vcvt.s32.f32 %v7083
    %v7147 = vcvt.s32.f32 %v7084
    %v7148 = vmul.f32 %v6455, %v7085
    %v7149 = vmul.f32 %v6456, %v7086
    %v7150 = vmul.f32 %v6457, %v7087
    %v7151 = vmul.f32 %v6458, %v7088
    %v7152 = vmul.f32 %v6459, %v7089
    %v7153 = vmul.f32 %v6460, %v7090
    %v7154 = vmul.f32 %v6461, %v7091
    %v7155 = vmul.f32 %v6462, %v7092
    %v7156 = vmul.f32 %v6463, %v7093
    %v7157 = vmul.f32 %v6464, %v7094
    %v7158 = vmul.f32 %v6465, %v7095
    %v7159 = vmul.f32 %v6466, %v7096
    %v7160 = vmul.f32 %v6467, %v7097
    %v7161 = vmul.f32 %v6468, %v7098
    %v7162 = vmul.f32 %v6469, %v7099
    %v7163 = vmul.f32 %v6470, %v7100
    %v7164 = vmul.f32 %v6471, %v7101
    %v7165 = vmul.f32 %v6472, %v7102
    %v7166 = vmul.f32 %v6473, %v7103
    %v7167 = vmul.f32 %v6474, %v7104
    %v7168 = vmul.f32 %v6475, %v7105
    %v7169 = vmul.f32 %v6476, %v7106
    %v7170 = vmul.f32 %v6477, %v7107
    %v7171 = vmul.f32 %v6478, %v7108
    %v7172 = vmul.f32 %v6479, %v7109
    %v7173 = vmul.f32 %v6480, %v7110
    %v7174 = vmul.f32 %v6481, %v7111
    %v7175 = vmul.f32 %v6482, %v7112
    %v7176 = vmul.f32 %v6483, %v7113
    %v7177 = vmul.f32 %v6484, %v7114
    %v7178 = vmul.f32 %v6485, %v7115
    %v7179 = vmul.f32 %v6486, %v7116
    %v7180 = vmul.f32 %v6487, %v7117
    %v7181 = vmul.f32 %v6488, %v7118
    %v7182 = vmul.f32 %v6489, %v7119
    %v7183 = vmul.f32 %v6490, %v7120
    %v7184 = vmul.f32 %v6491, %v7121
    %v7185 = vmul.f32 %v6492, %v7122
    %v7186 = vmul.f32 %v6493, %v7123
    %v7187 = vmul.f32 %v6494, %v7124
    %v7188 = vmul.f32 %v6495, %v7125
    %v7189 = vmul.f32 %v6496, %v7126
    %v7190 = vmul.f32 %v6497, %v7127
    %v7191 = vmul.f32 %v6498, %v7128
    %v7192 = vmul.f32 %v6499, %v7129
    %v7193 = vmul.f32 %v6500, %v7130
    %v7194 = vmul.f32 %v6501, %v7131
    %v7195 = vmul.f32 %v6502, %v7132
    %v7196 = vmul.f32 %v6503, %v7133
    %v7197 = vmul.f32 %v6504, %v7134
    %v7198 = vmul.f32 %v6505, %v7135
    %v7199 = vmul.f32 %v6506, %v7136
    %v7200 = vmul.f32 %v6507, %v7137
    %v7201 = vmul.f32 %v6508, %v7138
    %v7202 = vmul.f32 %v6509, %v7139
    %v7203 = vmul.f32 %v6510, %v7140
    %v7204 = vmul.f32 %v6511, %v7141
    %v7205 = vmul.f32 %v6512, %v7142
    %v7206 = vmul.f32 %v6513, %v7143
    %v7207 = vmul.f32 %v6514, %v7144
    %v7208 = vmul.f32 %v6515, %v7145
    %v7209 = vmul.f32 %v6516, %v7146
    %v7210 = vmul.f32 %v6517, %v7147
    %v7211 = vadd.f32 %v7148, %v7149
    %v7212 = vadd.f32 %v7211, %v7150
    %v7213 = vadd.f32 %v7212, %v7151
    %v7214 = vadd.f32 %v7213, %v7152
    %v7215 = vadd.f32 %v7214, %v7153
    %v7216 = vadd.f32 %v7215, %v7154
    %v7217 = vadd.f32 %v7216, %v7155
    %v7218 = vadd.f32 %v7217, %v7156
    %v7219 = vadd.f32 %v7218, %v7157
    %v7220 = vadd.f32 %v7219, %v7158
    %v7221 = vadd.f32 %v7220, %v7159
    %v7222 = vadd.f32 %v7221, %v7160
    %v7223 = vadd.f32 %v7222, %v7161
    %v7224 = vadd.f32 %v7223, %v7162
    %v7225 = vadd.f32 %v7224, %v7163
    %v7226 = vadd.f32 %v7225, %v7164
    %v7227 = vadd.f32 %v7226, %v7165
    %v7228 = vadd.f32 %v7227, %v7166
    %v7229 = vadd.f32 %v7228, %v7167
    %v7230 = vadd.f32 %v7229, %v7168
    %v7231 = vadd.f32 %v7230, %v7169
    %v7232 = vadd.f32 %v7231, %v7170
    %v7233 = vadd.f32 %v7232, %v7171
    %v7234 = vadd.f32 %v7233, %v7172
    %v7235 = vadd.f32 %v7234, %v7173
    %v7236 = vadd.f32 %v7235, %v7174
    %v7237 = vadd.f32 %v7236, %v7175
    %v7238 = vadd.f32 %v7237, %v7176
    %v7239 = vadd.f32 %v7238, %v7177
    %v7240 = vadd.f32 %v7239, %v7178
    %v7241 = vadd.f32 %v7240, %v7179
    %v7242 = vadd.f32 %v7241, %v7180
    %v7243 = vadd.f32 %v7242, %v7181
    %v7244 = vadd.f32 %v7243, %v7182
    %v7245 = vadd.f32 %v7244, %v7183
    %v7246 = vadd.f32 %v7245, %v7184
    %v7247 = vadd.f32 %v7246, %v7185
    %v7248 = vadd.f32 %v7247, %v7186
    %v7249 = vadd.f32 %v7248, %v7187
    %v7250 = vadd.f32 %v7249, %v7188
    %v7251 = vadd.f32 %v7250, %v7189
    %v7252 = vadd.f32 %v7251, %v7190
    %v7253 = vadd.f32 %v7252, %v7191
    %v7254 = vadd.f32 %v7253, %v7192
    %v7255 = vadd.f32 %v7254, %v7193
    %v7256 = vadd.f32 %v7255, %v7194
    %v7257 = vadd.f32 %v7256, %v7195
    %v7258 = vadd.f32 %v7257, %v7196
    %v7259 = vadd.f32 %v7258, %v7197
    %v7260 = vadd.f32 %v7259, %v7198
    %v7261 = vadd.f32 %v7260, %v7199
    %v7262 = vadd.f32 %v7261, %v7200
    %v7263 = vadd.f32 %v7262, %v7201
    %v7264 = vadd.f32 %v7263, %v7202
    %v7265 = vadd.f32 %v7264, %v7203
    %v7266 = vadd.f32 %v7265, %v7204
    %v7267 = vadd.f32 %v7266, %v7205
    %v7268 = vadd.f32 %v7267, %v7206
    %v7269 = vadd.f32 %v7268, %v7207
    %v7270 = vadd.f32 %v7269, %v7208
    %v7271 = vadd.f32 %v7270, %v7209
    %v7272 = vadd.f32 %v7271, %v7210
    %v7273 = vmul.f32 %v6456, %v7085
    %v7274 = vmul.f32 %v6457, %v7086
    %v7275 = vmul.f32 %v6458, %v7087
    %v7276 = vmul.f32 %v6459, %v7088
    %v7277 = vmul.f32 %v6460, %v7089
    %v7278 = vmul.f32 %v6461, %v7090
    %v7279 = vmul.f32 %v6462, %v7091
    %v7280 = vmul.f32 %v6463, %v7092
    %v7281 = vmul.f32 %v6464, %v7093
    %v7282 = vmul.f32 %v6465, %v7094
    %v7283 = vmul.f32 %v6466, %v7095
    %v7284 = vmul.f32 %v6467, %v7096
    %v7285 = vmul.f32 %v6468, %v7097
    %v7286 = vmul.f32 %v6469, %v7098
    %v7287 = vmul.f32 %v6470, %v7099
    %v7288 = vmul.f32 %v6471, %v7100
    %v7289 = vmul.f32 %v6472, %v7101
    %v7290 = vmul.f32 %v6473, %v7102
    %v7291 = vmul.f32 %v6474, %v7103
    %v7292 = vmul.f32 %v6475, %v7104
    %v7293 = vmul.f32 %v6476, %v7105
    %v7294 = vmul.f32 %v6477, %v7106
    %v7295 = vmul.f32 %v6478, %v7107
    %v7296 = vmul.f32 %v6479, %v7108
    %v7297 = vmul.f32 %v6480, %v7109
    %v7298 = vmul.f32 %v6481, %v7110
    %v7299 = vmul.f32 %v6482, %v7111
    %v7300 = vmul.f32 %v6483, %v7112
    %v7301 = vmul.f32 %v6484, %v7113
    %v7302 = vmul.f32 %v6485, %v7114
    %v7303 = vmul.f32 %v6486, %v7115
    %v7304 = vmul.f32 %v6487, %v7116
    %v7305 = vmul.f32 %v6488, %v7117
    %v7306 = vmul.f32 %v6489, %v7118
    %v7307 = vmul.f32 %v6490, %v7119
    %v7308 = vmul.f32 %v6491, %v7120
    %v7309 = vmul.f32 %v6492, %v7121
    %v7310 = vmul.f32 %v6493, %v7122
    %v7311 = vmul.f32 %v6494, %v7123
    %v7312 = vmul.f32 %v6495, %v7124
    %v7313 = vmul.f32 %v6496, %v7125
    %v7314 = vmul.f32 %v6497, %v7126
    %v7315 = vmul.f32 %v6498, %v7127
    %v7316 = vmul.f32 %v6499, %v7128
    %v7317 = vmul.f32 %v6500, %v7129
    %v7318 = vmul.f32 %v6501, %v7130
    %v7319 = vmul.f32 %v6502, %v7131
    %v7320 = vmul.f32 %v6503, %v7132
    %v7321 = vmul.f32 %v6504, %v7133
    %v7322 = vmul.f32 %v6505, %v7134
    %v7323 = vmul.f32 %v6506, %v7135
    %v7324 = vmul.f32 %v6507, %v7136
    %v7325 = vmul.f32 %v6508, %v7137
    %v7326 = vmul.f32 %v6509, %v7138
    %v7327 = vmul.f32 %v6510, %v7139
    %v7328 = vmul.f32 %v6511, %v7140
    %v7329 = vmul.f32 %v6512, %v7141
    %v7330 = vmul.f32 %v6513, %v7142
    %v7331 = vmul.f32 %v6514, %v7143
    %v7332 = vmul.f32 %v6515, %v7144
    %v7333 = vmul.f32 %v6516, %v7145
    %v7334 = vmul.f32 %v6517, %v7146
    %v7335 = vmul.f32 %v6518, %v7147
    %v7336 = vadd.f32 %v7273, %v7274
    %v7337 = vadd.f32 %v7336, %v7275
    %v7338 = vadd.f32 %v7337, %v7276
    %v7339 = vadd.f32 %v7338, %v7277
    %v7340 = vadd.f32 %v7339, %v7278
    %v7341 = vadd.f32 %v7340, %v7279
    %v7342 = vadd.f32 %v7341, %v7280
    %v7343 = vadd.f32 %v7342, %v7281
    %v7344 = vadd.f32 %v7343, %v7282
    %v7345 = vadd.f32 %v7344, %v7283
    %v7346 = vadd.f32 %v7345, %v7284
    %v7347 = vadd.f32 %v7346, %v7285
    %v7348 = vadd.f32 %v7347, %v7286
    %v7349 = vadd.f32 %v7348, %v7287
    %v7350 = vadd.f32 %v7349, %v7288
    %v7351 = vadd.f32 %v7350, %v7289
    %v7352 = vadd.f32 %v7351, %v7290
    %v7353 = vadd.f32 %v7352, %v7291
    %v7354 = vadd.f32 %v7353, %v7292
    %v7355 = vadd.f32 %v7354, %v7293
    %v7356 = vadd.f32 %v7355, %v7294
    %v7357 = vadd.f32 %v7356, %v7295
    %v7358 = vadd.f32 %v7357, %v7296
    %v7359 = vadd.f32 %v7358, %v7297
    %v7360 = vadd.f32 %v7359, %v7298
    %v7361 = vadd.f32 %v7360, %v7299
    %v7362 = vadd.f32 %v7361, %v7300
    %v7363 = vadd.f32 %v7362, %v7301
    %v7364 = vadd.f32 %v7363, %v7302
    %v7365 = vadd.f32 %v7364, %v7303
    %v7366 = vadd.f32 %v7365, %v7304
    %v7367 = vadd.f32 %v7366, %v7305
    %v7368 = vadd.f32 %v7367, %v7306
    %v7369 = vadd.f32 %v7368, %v7307
    %v7370 = vadd.f32 %v7369, %v7308
    %v7371 = vadd.f32 %v7370, %v7309
    %v7372 = vadd.f32 %v7371, %v7310
    %v7373 = vadd.f32 %v7372, %v7311
    %v7374 = vadd.f32 %v7373, %v7312
    %v7375 = vadd.f32 %v7374, %v7313
    %v7376 = vadd.f32 %v7375, %v7314
    %v7377 = vadd.f32 %v7376, %v7315
    %v7378 = vadd.f32 %v7377, %v7316
    %v7379 = vadd.f32 %v7378, %v7317
    %v7380 = vadd.f32 %v7379, %v7318
    %v7381 = vadd.f32 %v7380, %v7319
    %v7382 = vadd.f32 %v7381, %v7320
    %v7383 = vadd.f32 %v7382, %v7321
    %v7384 = vadd.f32 %v7383, %v7322
    %v7385 = vadd.f32 %v7384, %v7323
    %v7386 = vadd.f32 %v7385, %v7324
    %v7387 = vadd.f32 %v7386, %v7325
    %v7388 = vadd.f32 %v7387, %v7326
    %v7389 = vadd.f32 %v7388, %v7327
    %v7390 = vadd.f32 %v7389, %v7328
    %v7391 = vadd.f32 %v7390, %v7329
    %v7392 = vadd.f32 %v7391, %v7330
    %v7393 = vadd.f32 %v7392, %v7331
    %v7394 = vadd.f32 %v7393, %v7332
    %v7395 = vadd.f32 %v7394, %v7333
    %v7396 = vadd.f32 %v7395, %v7334
    %v7397 = vadd.f32 %v7396, %v7335
    %vm7398 = vcmp.ge.f32.partialorder %v7272, 0.0
    %vm7399 = vcmp.le.f32.partialorder %v7397, 0.0
    %vm7400 = vmand %vm7398, %vm7399
    %vm7401 = vmand %vm6957, %vm7400
    %vm7402 = vmxor %vm7401, 1
    %vm7403 = vmand %vm6036, %vm7402
    %v7404 = vsel %vm7403, %v6018, 0.0
    %v7405 = vsel %vm7403, %v6020, 0.0
    %v7406 = vsel %vm7403, %v6022, 0.0
    %v7407 = vsel %vm7403, %v6086, 0.0
    %v7408 = vsel %vm7403, %v6087, 0.0
    %v7409 = vsel %vm7403, %v6088, 0.0
    %v7410 = vsub.f32 1.0, %v3179
    %v7411 = vsub.f32 1.0, %v6114
    %v7412 = vmul.f32 %v7410, %v7411
    %v7413 = vsel %vm7403, %v7412, 0.0
    %v7414 = vsel %vm3066, 1, 0
    %v7415 = vcvt.s32.f32 %v7414
    %7416 = vst [vmem:[#allocation10] sm:$0xff] %v7415
    %v7417 = vsel %vm3180, 1, 0
    %v7418 = vcvt.s32.f32 %v7417
    %s7419 = scalar_lea.vmem [#allocation10], 8
    %7420 = vst [vmem:[%s7419] sm:$0xff] %v7418
    %v7421 = vsel %vm7403, 1, 0
    %v7422 = vcvt.s32.f32 %v7421
    %s7423 = scalar_lea.vmem [#allocation10], 16
    %7424 = vst [vmem:[%s7423] sm:$0xff] %v7422
    %s7425 = scalar_lea.vmem [#allocation10], 24
    %7426 = vst [vmem:[%s7425] sm:$0xff] 0.0
    %s7427 = scalar_lea.vmem [#allocation10], 32
    %7428 = vst [vmem:[%s7427] sm:$0xff] %v3110
    %s7429 = scalar_lea.vmem [#allocation10], 56
    %7430 = vst [vmem:[%s7429] sm:$0xff] %v3113
    %s7431 = scalar_lea.vmem [#allocation10], 80
    %7432 = vst [vmem:[%s7431] sm:$0xff] %v7404
    %s7433 = scalar_lea.vmem [#allocation10], 104
    %7434 = vst [vmem:[%s7433] sm:$0xff] %v7407
    %s7435 = scalar_lea.vmem [#allocation10], 40
    %7436 = vst [vmem:[%s7435] sm:$0xff] %v3111
    %s7437 = scalar_lea.vmem [#allocation10], 64
    %7438 = vst [vmem:[%s7437] sm:$0xff] %v3114
    %s7439 = scalar_lea.vmem [#allocation10], 88
    %7440 = vst [vmem:[%s7439] sm:$0xff] %v7405
    %s7441 = scalar_lea.vmem [#allocation10], 112
    %7442 = vst [vmem:[%s7441] sm:$0xff] %v7408
    %s7443 = scalar_lea.vmem [#allocation10], 48
    %7444 = vst [vmem:[%s7443] sm:$0xff] %v3112
    %s7445 = scalar_lea.vmem [#allocation10], 72
    %7446 = vst [vmem:[%s7445] sm:$0xff] %v3115
    %s7447 = scalar_lea.vmem [#allocation10], 96
    %7448 = vst [vmem:[%s7447] sm:$0xff] %v7406
    %s7449 = scalar_lea.vmem [#allocation10], 120
    %7450 = vst [vmem:[%s7449] sm:$0xff] %v7409
    %s7451 = scalar_lea.vmem [#allocation10], 128
    %7452 = vst [vmem:[%s7451] sm:$0xff] %v3181
    %s7453 = scalar_lea.vmem [#allocation10], 136
    %7454 = vst [vmem:[%s7453] sm:$0xff] %v7413
    // Predicated region
    $region34: #{tpu_custom_call.1} parent=1 // pred_check
      _
    $region35: #{tpu_custom_call.1} parent=1 // pred_check_branch
      %7456 = sbr.rel (0) target = $region37
    $region36: #{tpu_custom_call.1} parent=1 // pred_region
      %s7458 = ssub.s32 2304, 2304
      %7459 = vsyncadd [#allocation4], %s7458
      %s7460 = sshll.u32 [#allocation10], 4
      %s7461 = int_to_ptr.vmem [resolvable:$true] %s7460
      %7466 = dma.vmem_to_hbm [thread:$0]  %s7461, 2304, %s4, [#allocation4], 128, 128, 8
    $region37: #{tpu_custom_call.1} parent=1 // pred_fallthru
      _
    // Predicated region
    $region38: #{tpu_custom_call.1} parent=1 // pred_check
      _
    $region39: #{tpu_custom_call.1} parent=1 // pred_check_branch
      %7468 = sbr.rel (0) target = $region41
    $region40: #{tpu_custom_call.1} parent=1 // pred_region
      %7469 = dma.done [#allocation4], 2304
    $region41: #{tpu_custom_call.1} parent=1 // pred_fallthru
      _
    %7470 = vsyncpa [#allocation3], 1
    %7471 = vsyncpa [#allocation6], 1
    %7472 = vsyncpa [#allocation9], 1
    %7473 = vsyncpa [#allocation4], 1

</llo_original>
